<compile_context>
chip_gen: v7x
topology: tpu7x:2x2x1
jax: 0.10.0
libtpu: 0.0.40
codegen_flags: <defaults>
</compile_context>

<pallas_src>
import jax
import jax.numpy as jnp
from jax.experimental import pallas as pl
from jax.experimental.pallas import tpu as pltpu

BN_EPS = 1e-5


def _round_up(x, m):
    return (x + m - 1) // m * m


# ---------------------------------------------------------------------------
# Fused kernel: GAP -> concat-embedding projection -> Linear+BN(fold)+ReLU ->
#               Linear(512, O_pad)
# ---------------------------------------------------------------------------
def fused_kernel(x_ref, wcat_ref, bcat_ref, w1_ref, b1_ref, w2_ref, b2_ref,
                 o_ref):
    # x_ref: [BT, C, HW] bf16 image tile; spatial (mult of 128) on lanes.
    x = x_ref[...].astype(jnp.float32)
    g = jnp.mean(x, axis=-1)                       # GAP (lane reduce) -> [BT, C]

    # Concatenated per-backbone embeddings: feats = g @ W_cat + b_cat.
    # K = C is tiny (3-4), so keep it off the MXU: C broadcast-FMAs on the VPU.
    wcat = wcat_ref[...].astype(jnp.float32)       # [C, F]
    C = wcat.shape[0]
    feats = g[:, 0:1] * wcat[0:1, :]               # [BT,1]*[1,F] -> [BT,F]
    for c in range(1, C):
        feats = feats + g[:, c:c + 1] * wcat[c:c + 1, :]
    feats = feats + bcat_ref[...]                  # [BT, F]

    # Linear(F,512) with BatchNorm1d(eval) folded into w1/b1, then ReLU.
    h = jnp.dot(feats.astype(jnp.bfloat16), w1_ref[...],
                preferred_element_type=jnp.float32) + b1_ref[...]
    h = jnp.maximum(h, 0.0)
    # Dropout(p=0) -> identity.

    # Linear(512, O) against a 128-lane padded weight -> unmasked dense stores.
    out = jnp.dot(h.astype(jnp.bfloat16), w2_ref[...],
                  preferred_element_type=jnp.float32) + b2_ref[...]
    o_ref[...] = out.astype(o_ref.dtype)


# ---------------------------------------------------------------------------
# Full model wrapper (host-side: layout, parameter folding/padding, batch pad)
# ---------------------------------------------------------------------------
def hybrid_vision_classification(image_nchw, params):
    B, C, H, W = image_nchw.shape
    HW = H * W

    # NCHW -> [B, C, HW]: a free reshape (no transpose), spatial on lanes.
    x = image_nchw.reshape(B, C, HW).astype(jnp.bfloat16)

    # --- one-time parameter folding on the host side ---
    wcat = jnp.concatenate([w for (w, _) in params["embedds"]], axis=1)  # [C,F]
    bcat = jnp.concatenate([b for (_, b) in params["embedds"]], axis=1)  # [1,F]

    head = params["head"]
    scale = head["gamma"] * jax.lax.rsqrt(head["var"] + BN_EPS)          # [1,Hd]
    w1 = head["w1"] * scale                                              # [F,Hd]
    b1 = (head["b1"] - head["mean"]) * scale + head["beta"]              # [1,Hd]

    O = head["w2"].shape[1]
    O_pad = _round_up(O, 128)
    w2 = jnp.pad(head["w2"], ((0, 0), (0, O_pad - O)))                   # [Hd,Op]
    b2 = jnp.pad(head["b2"], ((0, 0), (0, O_pad - O)))                   # [1,Op]

    F = wcat.shape[1]
    Hd = w1.shape[1]

    # --- batch tiling (pipelined grid; "parallel" shards across v7x's 2 TCs) ---
    BT = min(128, _round_up(B, 8))
    B_pad = _round_up(B, BT)
    if B_pad != B:
        x = jnp.pad(x, ((0, B_pad - B), (0, 0), (0, 0)))
    grid = (B_pad // BT,)

    out = pl.pallas_call(
        fused_kernel,
        out_shape=jax.ShapeDtypeStruct((B_pad, O_pad), jnp.float32),
        grid_spec=pltpu.PrefetchScalarGridSpec(
            num_scalar_prefetch=0,
            grid=grid,
            in_specs=[
                pl.BlockSpec((BT, C, HW), lambda i: (i, 0, 0)),   # image tile
                pl.BlockSpec((C, F), lambda i: (0, 0)),           # W_cat (resident)
                pl.BlockSpec((1, F), lambda i: (0, 0)),           # b_cat
                pl.BlockSpec((F, Hd), lambda i: (0, 0)),          # w1 (BN folded)
                pl.BlockSpec((1, Hd), lambda i: (0, 0)),          # b1
                pl.BlockSpec((Hd, O_pad), lambda i: (0, 0)),      # w2 (padded)
                pl.BlockSpec((1, O_pad), lambda i: (0, 0)),       # b2
            ],
            out_specs=pl.BlockSpec((BT, O_pad), lambda i: (i, 0)),
        ),
        compiler_params=pltpu.CompilerParams(
            dimension_semantics=("parallel",)),
    )(x,
      wcat.astype(jnp.bfloat16), bcat.astype(jnp.float32),
      w1.astype(jnp.bfloat16), b1.astype(jnp.float32),
      w2.astype(jnp.bfloat16), b2.astype(jnp.float32))

    return out[:B, :O]


def init_params(key, in_channels, embedd_lens, hidden, output_size):
    params = {"embedds": [], "head": {}}
    keys = jax.random.split(key, 2 * len(embedd_lens) + 4)
    ki = 0
    for E in embedd_lens:
        w = jax.random.normal(keys[ki], (in_channels, E), jnp.float32) * 0.05
        b = jax.random.normal(keys[ki + 1], (1, E), jnp.float32) * 0.01
        ki += 2
        params["embedds"].append((w, b))

    F = sum(embedd_lens)
    head = params["head"]
    head["w1"] = jax.random.normal(keys[ki], (F, hidden), jnp.float32) * 0.05
    head["b1"] = jax.random.normal(keys[ki + 1], (1, hidden), jnp.float32) * 0.01
    head["w2"] = jax.random.normal(keys[ki + 2], (hidden, output_size),
                                   jnp.float32) * 0.05
    head["b2"] = jax.random.normal(keys[ki + 3], (1, output_size),
                                   jnp.float32) * 0.01
    # BatchNorm1d init: gamma=1, beta=0, running_mean=0, running_var=1
    head["gamma"] = jnp.ones((1, hidden), jnp.float32)
    head["beta"] = jnp.zeros((1, hidden), jnp.float32)
    head["mean"] = jnp.zeros((1, hidden), jnp.float32)
    head["var"] = jnp.ones((1, hidden), jnp.float32)
    return params


if __name__ == "__main__":
    key = jax.random.PRNGKey(0)
    k_img, k_par = jax.random.split(key)

    # small synthetic config: two "vision models" with embedd_len 128 and 256
    B, C, H, W = 2, 4, 16, 16
    embedd_lens = [128, 256]
    hidden = 512
    output_size = 10

    image = jax.random.normal(k_img, (B, C, H, W), jnp.float32)
    params = init_params(k_par, C, embedd_lens, hidden, output_size)

    out = hybrid_vision_classification(image, params)
    out = jax.block_until_ready(out)
    assert out.shape == (B, output_size), out.shape
    print("KERNEL_OK")
</pallas_src>

<mosaic_0001>
module attributes {stable_mosaic.version = 11 : i64} {
  func.func @fused_kernel(%arg0: i32, %arg1: memref<8x4x256xbf16, #tpu.memory_space<vmem>>, %arg2: memref<4x384xbf16, #tpu.memory_space<vmem>>, %arg3: memref<1x384xf32, #tpu.memory_space<vmem>>, %arg4: memref<384x512xbf16, #tpu.memory_space<vmem>>, %arg5: memref<1x512xf32, #tpu.memory_space<vmem>>, %arg6: memref<512x128xbf16, #tpu.memory_space<vmem>>, %arg7: memref<1x128xf32, #tpu.memory_space<vmem>>, %arg8: memref<8x128xf32, #tpu.memory_space<vmem>>) attributes {dimension_semantics = [#tpu.dimension_semantics<parallel>], iteration_bounds = array<i64: 1>, scalar_prefetch = 0 : i64, scratch_operands = 0 : i64, tpu.core_type = #tpu.core_type<tc>, window_params = [{transform_indices = @transform_0, window_bounds = array<i64: 8, 4, 256>}, {pipeline_mode = #tpu.pipeline_mode<synchronous>, transform_indices = @transform_1, window_bounds = array<i64: 4, 384>}, {pipeline_mode = #tpu.pipeline_mode<synchronous>, transform_indices = @transform_2, window_bounds = array<i64: 1, 384>}, {pipeline_mode = #tpu.pipeline_mode<synchronous>, transform_indices = @transform_3, window_bounds = array<i64: 384, 512>}, {pipeline_mode = #tpu.pipeline_mode<synchronous>, transform_indices = @transform_4, window_bounds = array<i64: 1, 512>}, {pipeline_mode = #tpu.pipeline_mode<synchronous>, transform_indices = @transform_5, window_bounds = array<i64: 512, 128>}, {pipeline_mode = #tpu.pipeline_mode<synchronous>, transform_indices = @transform_6, window_bounds = array<i64: 1, 128>}, {transform_indices = @transform_7, window_bounds = array<i64: 8, 128>}]} {
    %c0 = arith.constant 0 : index
    %c0_0 = arith.constant 0 : index
    %c0_1 = arith.constant 0 : index
    %0 = vector.load %arg1[%c0, %c0_0, %c0_1] : memref<8x4x256xbf16, #tpu.memory_space<vmem>>, vector<8x4x256xbf16>
    %1 = arith.extf %0 : vector<8x4x256xbf16> to vector<8x4x256xf32>
    %cst = arith.constant dense<0.000000e+00> : vector<8x4xf32>
    %2 = vector.multi_reduction <add>, %1, %cst [2] : vector<8x4x256xf32> to vector<8x4xf32>
    %cst_2 = arith.constant 2.560000e+02 : f32
    %3 = vector.broadcast %cst_2 : f32 to vector<8x4xf32>
    %4 = arith.divf %2, %3 : vector<8x4xf32>
    %c0_3 = arith.constant 0 : index
    %c0_4 = arith.constant 0 : index
    %5 = vector.load %arg2[%c0_3, %c0_4] : memref<4x384xbf16, #tpu.memory_space<vmem>>, vector<4x384xbf16>
    %6 = arith.extf %5 : vector<4x384xbf16> to vector<4x384xf32>
    %7 = vector.extract_strided_slice %4 {offsets = [0, 0], sizes = [8, 1], strides = [1, 1]} : vector<8x4xf32> to vector<8x1xf32>
    %8 = vector.extract_strided_slice %6 {offsets = [0, 0], sizes = [1, 384], strides = [1, 1]} : vector<4x384xf32> to vector<1x384xf32>
    %9 = vector.broadcast %7 : vector<8x1xf32> to vector<8x384xf32>
    %10 = vector.broadcast %8 : vector<1x384xf32> to vector<8x384xf32>
    %11 = arith.mulf %9, %10 : vector<8x384xf32>
    %12 = vector.extract_strided_slice %4 {offsets = [0, 1], sizes = [8, 1], strides = [1, 1]} : vector<8x4xf32> to vector<8x1xf32>
    %13 = vector.extract_strided_slice %6 {offsets = [1, 0], sizes = [1, 384], strides = [1, 1]} : vector<4x384xf32> to vector<1x384xf32>
    %14 = vector.broadcast %12 : vector<8x1xf32> to vector<8x384xf32>
    %15 = vector.broadcast %13 : vector<1x384xf32> to vector<8x384xf32>
    %16 = arith.mulf %14, %15 : vector<8x384xf32>
    %17 = arith.addf %11, %16 : vector<8x384xf32>
    %18 = vector.extract_strided_slice %4 {offsets = [0, 2], sizes = [8, 1], strides = [1, 1]} : vector<8x4xf32> to vector<8x1xf32>
    %19 = vector.extract_strided_slice %6 {offsets = [2, 0], sizes = [1, 384], strides = [1, 1]} : vector<4x384xf32> to vector<1x384xf32>
    %20 = vector.broadcast %18 : vector<8x1xf32> to vector<8x384xf32>
    %21 = vector.broadcast %19 : vector<1x384xf32> to vector<8x384xf32>
    %22 = arith.mulf %20, %21 : vector<8x384xf32>
    %23 = arith.addf %17, %22 : vector<8x384xf32>
    %24 = vector.extract_strided_slice %4 {offsets = [0, 3], sizes = [8, 1], strides = [1, 1]} : vector<8x4xf32> to vector<8x1xf32>
    %25 = vector.extract_strided_slice %6 {offsets = [3, 0], sizes = [1, 384], strides = [1, 1]} : vector<4x384xf32> to vector<1x384xf32>
    %26 = vector.broadcast %24 : vector<8x1xf32> to vector<8x384xf32>
    %27 = vector.broadcast %25 : vector<1x384xf32> to vector<8x384xf32>
    %28 = arith.mulf %26, %27 : vector<8x384xf32>
    %29 = arith.addf %23, %28 : vector<8x384xf32>
    %c0_5 = arith.constant 0 : index
    %c0_6 = arith.constant 0 : index
    %30 = vector.load %arg3[%c0_5, %c0_6] : memref<1x384xf32, #tpu.memory_space<vmem>>, vector<1x384xf32>
    %31 = vector.broadcast %30 : vector<1x384xf32> to vector<8x384xf32>
    %32 = arith.addf %29, %31 : vector<8x384xf32>
    %33 = arith.truncf %32 : vector<8x384xf32> to vector<8x384xbf16>
    %c0_7 = arith.constant 0 : index
    %c0_8 = arith.constant 0 : index
    %34 = vector.load %arg4[%c0_7, %c0_8] : memref<384x512xbf16, #tpu.memory_space<vmem>>, vector<384x512xbf16>
    %cst_9 = arith.constant dense<0.000000e+00> : vector<8x512xf32>
    %35 = tpu.matmul %33, %34, %cst_9 {dimension_numbers = #tpu.dot_dimension_numbers<[1], [0], [0], [1], [0, 0, 1, 1], [], []>} : vector<8x384xbf16>, vector<384x512xbf16>, vector<8x512xf32> -> vector<8x512xf32>
    %c0_10 = arith.constant 0 : index
    %c0_11 = arith.constant 0 : index
    %36 = vector.load %arg5[%c0_10, %c0_11] : memref<1x512xf32, #tpu.memory_space<vmem>>, vector<1x512xf32>
    %37 = vector.broadcast %36 : vector<1x512xf32> to vector<8x512xf32>
    %38 = arith.addf %35, %37 : vector<8x512xf32>
    %cst_12 = arith.constant 0.000000e+00 : f32
    %39 = vector.broadcast %cst_12 : f32 to vector<8x512xf32>
    %40 = arith.maximumf %38, %39 : vector<8x512xf32>
    %41 = arith.truncf %40 : vector<8x512xf32> to vector<8x512xbf16>
    %c0_13 = arith.constant 0 : index
    %c0_14 = arith.constant 0 : index
    %42 = vector.load %arg6[%c0_13, %c0_14] : memref<512x128xbf16, #tpu.memory_space<vmem>>, vector<512x128xbf16>
    %cst_15 = arith.constant dense<0.000000e+00> : vector<8x128xf32>
    %43 = tpu.matmul %41, %42, %cst_15 {dimension_numbers = #tpu.dot_dimension_numbers<[1], [0], [0], [1], [0, 0, 1, 1], [], []>} : vector<8x512xbf16>, vector<512x128xbf16>, vector<8x128xf32> -> vector<8x128xf32>
    %c0_16 = arith.constant 0 : index
    %c0_17 = arith.constant 0 : index
    %44 = vector.load %arg7[%c0_16, %c0_17] : memref<1x128xf32, #tpu.memory_space<vmem>>, vector<1x128xf32>
    %45 = vector.broadcast %44 : vector<1x128xf32> to vector<8x128xf32>
    %46 = arith.addf %43, %45 : vector<8x128xf32>
    %c0_18 = arith.constant 0 : index
    %c0_19 = arith.constant 0 : index
    %47 = vector.load %arg8[%c0_18, %c0_19] : memref<8x128xf32, #tpu.memory_space<vmem>>, vector<8x128xf32>
    tpu.vector_store %arg8[%c0_18, %c0_19], %46 {strides = array<i32>} : memref<8x128xf32, #tpu.memory_space<vmem>>, vector<8x128xf32>,
    return
  }
  func.func @transform_0(%arg0: i32) -> (i32, i32, i32) {
    %c0_i32 = arith.constant 0 : i32
    %c0_i32_0 = arith.constant 0 : i32
    %c0_i32_1 = arith.constant 0 : i32
    return %arg0, %c0_i32, %c0_i32_0 : i32, i32, i32
  }
  func.func @transform_1(%arg0: i32) -> (i32, i32) {
    %c0_i32 = arith.constant 0 : i32
    %c0_i32_0 = arith.constant 0 : i32
    %c0_i32_1 = arith.constant 0 : i32
    return %c0_i32, %c0_i32_0 : i32, i32
  }
  func.func @transform_2(%arg0: i32) -> (i32, i32) {
    %c0_i32 = arith.constant 0 : i32
    %c0_i32_0 = arith.constant 0 : i32
    %c0_i32_1 = arith.constant 0 : i32
    return %c0_i32, %c0_i32_0 : i32, i32
  }
  func.func @transform_3(%arg0: i32) -> (i32, i32) {
    %c0_i32 = arith.constant 0 : i32
    %c0_i32_0 = arith.constant 0 : i32
    %c0_i32_1 = arith.constant 0 : i32
    return %c0_i32, %c0_i32_0 : i32, i32
  }
  func.func @transform_4(%arg0: i32) -> (i32, i32) {
    %c0_i32 = arith.constant 0 : i32
    %c0_i32_0 = arith.constant 0 : i32
    %c0_i32_1 = arith.constant 0 : i32
    return %c0_i32, %c0_i32_0 : i32, i32
  }
  func.func @transform_5(%arg0: i32) -> (i32, i32) {
    %c0_i32 = arith.constant 0 : i32
    %c0_i32_0 = arith.constant 0 : i32
    %c0_i32_1 = arith.constant 0 : i32
    return %c0_i32, %c0_i32_0 : i32, i32
  }
  func.func @transform_6(%arg0: i32) -> (i32, i32) {
    %c0_i32 = arith.constant 0 : i32
    %c0_i32_0 = arith.constant 0 : i32
    %c0_i32_1 = arith.constant 0 : i32
    return %c0_i32, %c0_i32_0 : i32, i32
  }
  func.func @transform_7(%arg0: i32) -> (i32, i32) {
    %c0_i32 = arith.constant 0 : i32
    %c0_i32_0 = arith.constant 0 : i32
    return %arg0, %c0_i32 : i32, i32
  }
}

</mosaic_0001>

<llo_original>
// kernel: tpu_custom_call.1
$region0: #{tpu_custom_call.1}
  #allocation0 [shape = 'u32[]', space=smem, size = 0x4, offset = 0x4, fixed_abs, tag = 'smem constant byte address 0x4 - core index']
  #allocation1 [shape = 'u32[144,128]{1,0:T(1,128)}', space=vmem, size = 0x12000, scoped, tag = 'internal scratch']
  %s0 = inlined_call_operand.hbm [shape: bf16[8,4,256], index: 0, kind: input, shape index: {}]
  %s1 = inlined_call_operand.hbm [shape: bf16[4,384], index: 1, kind: input, shape index: {}]
  %s2 = inlined_call_operand.vmem [shape: f32[1,384], index: 2, kind: input, shape index: {}]
  %s3 = inlined_call_operand.hbm [shape: bf16[384,512], index: 3, kind: input, shape index: {}]
  %s4 = inlined_call_operand.vmem [shape: f32[1,512], index: 4, kind: input, shape index: {}]
  %s5 = inlined_call_operand.hbm [shape: bf16[512,128], index: 5, kind: input, shape index: {}]
  %s6 = inlined_call_operand.vmem [shape: f32[1,128], index: 6, kind: input, shape index: {}]
  %s7 = inlined_call_operand.hbm [shape: f32[8,128], index: 7, kind: output, shape index: {}]
  %s8 = sld [smem:[#allocation0]]
  $region54: #{tpu_custom_call.1} parent=0
    _
  %s10 = ssub.s32 1, %s8
  %s11 = scalar_select 0, %s10, %s8
  $region1: #{tpu_custom_call.1} parent=0
    #allocation2 [shape = 'u8[16384]{0}', space=vmem, size = 0x4000, scoped, tag = 'input window, operand 0, single buffered']
    #allocation3 [shape = 's32[1]{0}', space=sflag, size = 0x4, scoped, tag = 'scoped memory for tpu_custom_call.1']
    #allocation4 [shape = 's32[1]{0}', space=sflag, size = 0x4, scoped, tag = 'scoped memory for tpu_custom_call.1']
    #allocation5 [shape = 'u8[3072]{0}', space=vmem, size = 0xc00, scoped, tag = 'input window, operand 1, single buffered']
    #allocation6 [shape = 's32[1]{0}', space=sflag, size = 0x4, scoped, tag = 'scoped memory for tpu_custom_call.1']
    #allocation7 [shape = 'u8[393216]{0}', space=vmem, size = 0x60000, scoped, tag = 'input window, operand 3, single buffered']
    #allocation8 [shape = 'u8[131072]{0}', space=vmem, size = 0x20000, scoped, tag = 'input window, operand 5, single buffered']
    #allocation9 [shape = 's32[1]{0}', space=sflag, size = 0x4, scoped, tag = 'scoped memory for tpu_custom_call.1']
    #allocation10 [shape = 'u8[4096]{0}', space=vmem, size = 0x1000, scoped, tag = 'output window, operand 0, single buffered']
    %12 = vsyncpa [#allocation3], 0
    %13 = vsyncpa [#allocation6], 0
    %14 = vsyncpa [#allocation9], 0
    %15 = vsyncpa [#allocation4], 0
    // Predicated region
    $region2: #{tpu_custom_call.1} parent=1 // pred_check
      _
    $region3: #{tpu_custom_call.1} parent=1 // pred_check_branch
      %17 = sbr.rel (0) target = $region5
    $region4: #{tpu_custom_call.1} parent=1 // pred_region
      %s19 = ssub.s32 512, 512
      %20 = vsyncadd [#allocation3], %s19
      %s21 = sshll.u32 [#allocation2], 4
      %s22 = int_to_ptr.vmem [resolvable:$true] %s21
      %27 = dma.hbm_to_vmem [thread:$0]  %s0, 512, %s22, [#allocation3], 64, 64, 4
    $region5: #{tpu_custom_call.1} parent=1 // pred_fallthru
      _
    // Predicated region
    $region6: #{tpu_custom_call.1} parent=1 // pred_check
      _
    $region7: #{tpu_custom_call.1} parent=1 // pred_check_branch
      %29 = sbr.rel (0) target = $region9
    $region8: #{tpu_custom_call.1} parent=1 // pred_region
      %s31 = ssub.s32 96, 96
      %32 = vsyncadd [#allocation6], %s31
      %s34 = sshll.u32 [#allocation5], 4
      %s35 = int_to_ptr.vmem [resolvable:$true] %s34
      %37 = dma.hbm_to_vmem [thread:$0]  %s1, 96, %s35, [#allocation6]
    $region9: #{tpu_custom_call.1} parent=1 // pred_fallthru
      _
    // Predicated region
    $region10: #{tpu_custom_call.1} parent=1 // pred_check
      _
    $region11: #{tpu_custom_call.1} parent=1 // pred_check_branch
      %39 = sbr.rel (0) target = $region13
    $region12: #{tpu_custom_call.1} parent=1 // pred_region
      _
    $region13: #{tpu_custom_call.1} parent=1 // pred_fallthru
      _
    // Predicated region
    $region14: #{tpu_custom_call.1} parent=1 // pred_check
      _
    $region15: #{tpu_custom_call.1} parent=1 // pred_check_branch
      %41 = sbr.rel (0) target = $region17
    $region16: #{tpu_custom_call.1} parent=1 // pred_region
      %s43 = ssub.s32 12288, 12288
      %44 = vsyncadd [#allocation6], %s43
      %s45 = sshll.u32 [#allocation7], 4
      %s46 = int_to_ptr.vmem [resolvable:$true] %s45
      %51 = dma.hbm_to_vmem [thread:$0]  %s3, 12288, %s46, [#allocation6], 256, 256, 16
    $region17: #{tpu_custom_call.1} parent=1 // pred_fallthru
      _
    // Predicated region
    $region18: #{tpu_custom_call.1} parent=1 // pred_check
      _
    $region19: #{tpu_custom_call.1} parent=1 // pred_check_branch
      %53 = sbr.rel (0) target = $region21
    $region20: #{tpu_custom_call.1} parent=1 // pred_region
      _
    $region21: #{tpu_custom_call.1} parent=1 // pred_fallthru
      _
    // Predicated region
    $region22: #{tpu_custom_call.1} parent=1 // pred_check
      _
    $region23: #{tpu_custom_call.1} parent=1 // pred_check_branch
      %55 = sbr.rel (0) target = $region25
    $region24: #{tpu_custom_call.1} parent=1 // pred_region
      %s57 = ssub.s32 4096, 4096
      %58 = vsyncadd [#allocation9], %s57
      %s59 = sshll.u32 [#allocation8], 4
      %s60 = int_to_ptr.vmem [resolvable:$true] %s59
      %65 = dma.hbm_to_vmem [thread:$0]  %s5, 4096, %s60, [#allocation9], 64, 64, 4
    $region25: #{tpu_custom_call.1} parent=1 // pred_fallthru
      _
    // Predicated region
    $region26: #{tpu_custom_call.1} parent=1 // pred_check
      _
    $region27: #{tpu_custom_call.1} parent=1 // pred_check_branch
      %67 = sbr.rel (0) target = $region29
    $region28: #{tpu_custom_call.1} parent=1 // pred_region
      _
    $region29: #{tpu_custom_call.1} parent=1 // pred_fallthru
      _
    // Predicated region
    $region30: #{tpu_custom_call.1} parent=1 // pred_check
      _
    $region31: #{tpu_custom_call.1} parent=1 // pred_check_branch
      %69 = sbr.rel (0) target = $region33
    $region32: #{tpu_custom_call.1} parent=1 // pred_region
      %70 = dma.done [#allocation3], 512
    $region33: #{tpu_custom_call.1} parent=1 // pred_fallthru
      _
    // Predicated region
    $region34: #{tpu_custom_call.1} parent=1 // pred_check
      _
    $region35: #{tpu_custom_call.1} parent=1 // pred_check_branch
      %72 = sbr.rel (0) target = $region37
    $region36: #{tpu_custom_call.1} parent=1 // pred_region
      %73 = dma.done [#allocation6], 96
    $region37: #{tpu_custom_call.1} parent=1 // pred_fallthru
      _
    // Predicated region
    $region38: #{tpu_custom_call.1} parent=1 // pred_check
      _
    $region39: #{tpu_custom_call.1} parent=1 // pred_check_branch
      %75 = sbr.rel (0) target = $region41
    $region40: #{tpu_custom_call.1} parent=1 // pred_region
      %76 = dma.done [#allocation6], 12288
    $region41: #{tpu_custom_call.1} parent=1 // pred_fallthru
      _
    // Predicated region
    $region42: #{tpu_custom_call.1} parent=1 // pred_check
      _
    $region43: #{tpu_custom_call.1} parent=1 // pred_check_branch
      %78 = sbr.rel (0) target = $region45
    $region44: #{tpu_custom_call.1} parent=1 // pred_region
      %79 = dma.done [#allocation9], 4096
    $region45: #{tpu_custom_call.1} parent=1 // pred_fallthru
      _
    %v81 = vld [vmem:[#allocation2] sm:$0xf]
    %v82 = vld [vmem:[#allocation2 + $0x4] sm:$0xf]
    %v83 = vld [vmem:[#allocation2 + $0x8] sm:$0xf]
    %v84 = vld [vmem:[#allocation2 + $0xc] sm:$0xf]
    %v85 = vld [vmem:[#allocation2 + $0x10] sm:$0xf]
    %v86 = vld [vmem:[#allocation2 + $0x14] sm:$0xf]
    %v87 = vld [vmem:[#allocation2 + $0x18] sm:$0xf]
    %v88 = vld [vmem:[#allocation2 + $0x1c] sm:$0xf]
    %v89 = vunpack.c.l.bf16 %v81
    %v90 = vunpack.c.l.bf16 %v82
    %v91 = vunpack.c.l.bf16 %v83
    %v92 = vunpack.c.l.bf16 %v84
    %v93 = vunpack.c.l.bf16 %v85
    %v94 = vunpack.c.l.bf16 %v86
    %v95 = vunpack.c.l.bf16 %v87
    %v96 = vunpack.c.l.bf16 %v88
    %v105 = vcombine.high %v89, %v89
    %v106 = vcombine.high %v90, %v90
    %v107 = vcombine.high %v91, %v91
    %v108 = vcombine.high %v92, %v92
    %v109 = vcombine.high %v93, %v93
    %v110 = vcombine.high %v94, %v94
    %v111 = vcombine.high %v95, %v95
    %v112 = vcombine.high %v96, %v96
    %vm121 = vcmask 1043456
    %v122 = vsel %vm121, %v89, 0.0
    %v123 = vsel %vm121, %v105, 0.0
    %v124 = vadd.f32 %v122, %v123
    %125 = vadd.xlane.f32.xlu0 %v124
    %v126 = vpop.xlane.xlu0 %125
    %v127 = vsel %vm121, %v90, 0.0
    %v128 = vsel %vm121, %v106, 0.0
    %v129 = vadd.f32 %v127, %v128
    %130 = vadd.xlane.f32.xlu0 %v129
    %v131 = vpop.xlane.xlu0 %130
    %v132 = vsel %vm121, %v91, 0.0
    %v133 = vsel %vm121, %v107, 0.0
    %v134 = vadd.f32 %v132, %v133
    %135 = vadd.xlane.f32.xlu0 %v134
    %v136 = vpop.xlane.xlu0 %135
    %v137 = vsel %vm121, %v92, 0.0
    %v138 = vsel %vm121, %v108, 0.0
    %v139 = vadd.f32 %v137, %v138
    %140 = vadd.xlane.f32.xlu0 %v139
    %v141 = vpop.xlane.xlu0 %140
    %v142 = vsel %vm121, %v93, 0.0
    %v143 = vsel %vm121, %v109, 0.0
    %v144 = vadd.f32 %v142, %v143
    %145 = vadd.xlane.f32.xlu0 %v144
    %v146 = vpop.xlane.xlu0 %145
    %v147 = vsel %vm121, %v94, 0.0
    %v148 = vsel %vm121, %v110, 0.0
    %v149 = vadd.f32 %v147, %v148
    %150 = vadd.xlane.f32.xlu0 %v149
    %v151 = vpop.xlane.xlu0 %150
    %v152 = vsel %vm121, %v95, 0.0
    %v153 = vsel %vm121, %v111, 0.0
    %v154 = vadd.f32 %v152, %v153
    %155 = vadd.xlane.f32.xlu0 %v154
    %v156 = vpop.xlane.xlu0 %155
    %v157 = vsel %vm121, %v96, 0.0
    %v158 = vsel %vm121, %v112, 0.0
    %v159 = vadd.f32 %v157, %v158
    %160 = vadd.xlane.f32.xlu0 %v159
    %v161 = vpop.xlane.xlu0 %160
    %v162 = vrcp.pop 256.0
    %v163 = vmul.f32 %v126, %v162
    %v164 = vmul.f32 %v131, %v162
    %v165 = vmul.f32 %v136, %v162
    %v166 = vmul.f32 %v141, %v162
    %v167 = vmul.f32 %v146, %v162
    %v168 = vmul.f32 %v151, %v162
    %v169 = vmul.f32 %v156, %v162
    %v170 = vmul.f32 %v161, %v162
    %v171 = vld [vmem:[#allocation5] sm:$0x3f]
    %v172 = vunpack.c.l.bf16 %v171
    %v173 = vunpack.c.h.bf16 %v171
    %v174 = vlaneseq
    %v175 = vshrl.u32 %v174, 7
    %v176 = vsub.s32 0, %v175
    %v177 = vrot.slane %v163, %v176
    %v178 = vlaneseq
    %v179 = vshrl.u32 %v178, 7
    %v180 = vsub.s32 0, %v179
    %v181 = vrot.slane %v164, %v180
    %v182 = vlaneseq
    %v183 = vshrl.u32 %v182, 7
    %v184 = vsub.s32 0, %v183
    %v185 = vrot.slane %v165, %v184
    %v186 = vlaneseq
    %v187 = vshrl.u32 %v186, 7
    %v188 = vsub.s32 0, %v187
    %v189 = vrot.slane %v166, %v188
    %v190 = vlaneseq
    %v191 = vshrl.u32 %v190, 7
    %v192 = vsub.s32 0, %v191
    %v193 = vrot.slane %v167, %v192
    %v194 = vlaneseq
    %v195 = vshrl.u32 %v194, 7
    %v196 = vsub.s32 0, %v195
    %v197 = vrot.slane %v168, %v196
    %v198 = vlaneseq
    %v199 = vshrl.u32 %v198, 7
    %v200 = vsub.s32 0, %v199
    %v201 = vrot.slane %v169, %v200
    %v202 = vlaneseq
    %v203 = vshrl.u32 %v202, 7
    %v204 = vsub.s32 0, %v203
    %v205 = vrot.slane %v170, %v204
    %v208 = vlaneseq
    %v209 = vshrl.u32 %v208, 7
    %v210 = vsub.s32 0, %v209
    %v211 = vrot.slane %v172, %v210
    %v212 = vlaneseq
    %v213 = vshrl.u32 %v212, 7
    %v214 = vsub.s32 4, %v213
    %v215 = vrot.slane %v172, %v214
    %v216 = vlaneseq
    %v217 = vshrl.u32 %v216, 7
    %v218 = vsub.s32 0, %v217
    %v219 = vrot.slane %v173, %v218
    %v223 = vlaneseq
    %v224 = vshrl.u32 %v223, 7
    %v225 = vsub.s32 0, %v224
    %v226 = vrot.slane %v211, %v225
    %v227 = vlaneseq
    %v228 = vshrl.u32 %v227, 7
    %v229 = vsub.s32 0, %v228
    %v230 = vrot.slane %v215, %v229
    %v231 = vlaneseq
    %v232 = vshrl.u32 %v231, 7
    %v233 = vsub.s32 0, %v232
    %v234 = vrot.slane %v219, %v233
    %239 = vbcast.lane.b32.xlu0 %v226, 256
    %v240 = vpop.permute.xlu0 %239
    %s242 = sor.u32 256, 8
    %243 = vbcast.lane.b32.xlu0 %v226, %s242
    %v244 = vpop.permute.xlu0 %243
    %s246 = sor.u32 256, 16
    %247 = vbcast.lane.b32.xlu0 %v226, %s246
    %v248 = vpop.permute.xlu0 %247
    %s250 = sor.u32 256, 24
    %251 = vbcast.lane.b32.xlu0 %v226, %s250
    %v252 = vpop.permute.xlu0 %251
    %s254 = sor.u32 256, 32
    %255 = vbcast.lane.b32.xlu0 %v226, %s254
    %v256 = vpop.permute.xlu0 %255
    %s258 = sor.u32 256, 40
    %259 = vbcast.lane.b32.xlu0 %v226, %s258
    %v260 = vpop.permute.xlu0 %259
    %s262 = sor.u32 256, 48
    %263 = vbcast.lane.b32.xlu0 %v226, %s262
    %v264 = vpop.permute.xlu0 %263
    %s266 = sor.u32 256, 56
    %267 = vbcast.lane.b32.xlu0 %v226, %s266
    %v268 = vpop.permute.xlu0 %267
    %s270 = sor.u32 256, 64
    %271 = vbcast.lane.b32.xlu0 %v226, %s270
    %v272 = vpop.permute.xlu0 %271
    %s274 = sor.u32 256, 72
    %275 = vbcast.lane.b32.xlu0 %v226, %s274
    %v276 = vpop.permute.xlu0 %275
    %s278 = sor.u32 256, 80
    %279 = vbcast.lane.b32.xlu0 %v226, %s278
    %v280 = vpop.permute.xlu0 %279
    %s282 = sor.u32 256, 88
    %283 = vbcast.lane.b32.xlu0 %v226, %s282
    %v284 = vpop.permute.xlu0 %283
    %s286 = sor.u32 256, 96
    %287 = vbcast.lane.b32.xlu0 %v226, %s286
    %v288 = vpop.permute.xlu0 %287
    %s290 = sor.u32 256, 104
    %291 = vbcast.lane.b32.xlu0 %v226, %s290
    %v292 = vpop.permute.xlu0 %291
    %s294 = sor.u32 256, 112
    %295 = vbcast.lane.b32.xlu0 %v226, %s294
    %v296 = vpop.permute.xlu0 %295
    %s298 = sor.u32 256, 120
    %299 = vbcast.lane.b32.xlu0 %v226, %s298
    %v300 = vpop.permute.xlu0 %299
    %302 = vbcast.lane.b32.xlu0 %v230, 256
    %v303 = vpop.permute.xlu0 %302
    %s305 = sor.u32 256, 8
    %306 = vbcast.lane.b32.xlu0 %v230, %s305
    %v307 = vpop.permute.xlu0 %306
    %s309 = sor.u32 256, 16
    %310 = vbcast.lane.b32.xlu0 %v230, %s309
    %v311 = vpop.permute.xlu0 %310
    %s313 = sor.u32 256, 24
    %314 = vbcast.lane.b32.xlu0 %v230, %s313
    %v315 = vpop.permute.xlu0 %314
    %s317 = sor.u32 256, 32
    %318 = vbcast.lane.b32.xlu0 %v230, %s317
    %v319 = vpop.permute.xlu0 %318
    %s321 = sor.u32 256, 40
    %322 = vbcast.lane.b32.xlu0 %v230, %s321
    %v323 = vpop.permute.xlu0 %322
    %s325 = sor.u32 256, 48
    %326 = vbcast.lane.b32.xlu0 %v230, %s325
    %v327 = vpop.permute.xlu0 %326
    %s329 = sor.u32 256, 56
    %330 = vbcast.lane.b32.xlu0 %v230, %s329
    %v331 = vpop.permute.xlu0 %330
    %s333 = sor.u32 256, 64
    %334 = vbcast.lane.b32.xlu0 %v230, %s333
    %v335 = vpop.permute.xlu0 %334
    %s337 = sor.u32 256, 72
    %338 = vbcast.lane.b32.xlu0 %v230, %s337
    %v339 = vpop.permute.xlu0 %338
    %s341 = sor.u32 256, 80
    %342 = vbcast.lane.b32.xlu0 %v230, %s341
    %v343 = vpop.permute.xlu0 %342
    %s345 = sor.u32 256, 88
    %346 = vbcast.lane.b32.xlu0 %v230, %s345
    %v347 = vpop.permute.xlu0 %346
    %s349 = sor.u32 256, 96
    %350 = vbcast.lane.b32.xlu0 %v230, %s349
    %v351 = vpop.permute.xlu0 %350
    %s353 = sor.u32 256, 104
    %354 = vbcast.lane.b32.xlu0 %v230, %s353
    %v355 = vpop.permute.xlu0 %354
    %s357 = sor.u32 256, 112
    %358 = vbcast.lane.b32.xlu0 %v230, %s357
    %v359 = vpop.permute.xlu0 %358
    %s361 = sor.u32 256, 120
    %362 = vbcast.lane.b32.xlu0 %v230, %s361
    %v363 = vpop.permute.xlu0 %362
    %365 = vbcast.lane.b32.xlu0 %v234, 256
    %v366 = vpop.permute.xlu0 %365
    %s368 = sor.u32 256, 8
    %369 = vbcast.lane.b32.xlu0 %v234, %s368
    %v370 = vpop.permute.xlu0 %369
    %s372 = sor.u32 256, 16
    %373 = vbcast.lane.b32.xlu0 %v234, %s372
    %v374 = vpop.permute.xlu0 %373
    %s376 = sor.u32 256, 24
    %377 = vbcast.lane.b32.xlu0 %v234, %s376
    %v378 = vpop.permute.xlu0 %377
    %s380 = sor.u32 256, 32
    %381 = vbcast.lane.b32.xlu0 %v234, %s380
    %v382 = vpop.permute.xlu0 %381
    %s384 = sor.u32 256, 40
    %385 = vbcast.lane.b32.xlu0 %v234, %s384
    %v386 = vpop.permute.xlu0 %385
    %s388 = sor.u32 256, 48
    %389 = vbcast.lane.b32.xlu0 %v234, %s388
    %v390 = vpop.permute.xlu0 %389
    %s392 = sor.u32 256, 56
    %393 = vbcast.lane.b32.xlu0 %v234, %s392
    %v394 = vpop.permute.xlu0 %393
    %s396 = sor.u32 256, 64
    %397 = vbcast.lane.b32.xlu0 %v234, %s396
    %v398 = vpop.permute.xlu0 %397
    %s400 = sor.u32 256, 72
    %401 = vbcast.lane.b32.xlu0 %v234, %s400
    %v402 = vpop.permute.xlu0 %401
    %s404 = sor.u32 256, 80
    %405 = vbcast.lane.b32.xlu0 %v234, %s404
    %v406 = vpop.permute.xlu0 %405
    %s408 = sor.u32 256, 88
    %409 = vbcast.lane.b32.xlu0 %v234, %s408
    %v410 = vpop.permute.xlu0 %409
    %s412 = sor.u32 256, 96
    %413 = vbcast.lane.b32.xlu0 %v234, %s412
    %v414 = vpop.permute.xlu0 %413
    %s416 = sor.u32 256, 104
    %417 = vbcast.lane.b32.xlu0 %v234, %s416
    %v418 = vpop.permute.xlu0 %417
    %s420 = sor.u32 256, 112
    %421 = vbcast.lane.b32.xlu0 %v234, %s420
    %v422 = vpop.permute.xlu0 %421
    %s424 = sor.u32 256, 120
    %425 = vbcast.lane.b32.xlu0 %v234, %s424
    %v426 = vpop.permute.xlu0 %425
    %v475 = vmul.f32 %v177, %v240
    %v476 = vmul.f32 %v177, %v244
    %v477 = vmul.f32 %v177, %v248
    %v478 = vmul.f32 %v177, %v252
    %v479 = vmul.f32 %v177, %v256
    %v480 = vmul.f32 %v177, %v260
    %v481 = vmul.f32 %v177, %v264
    %v482 = vmul.f32 %v177, %v268
    %v483 = vmul.f32 %v177, %v272
    %v484 = vmul.f32 %v177, %v276
    %v485 = vmul.f32 %v177, %v280
    %v486 = vmul.f32 %v177, %v284
    %v487 = vmul.f32 %v177, %v288
    %v488 = vmul.f32 %v177, %v292
    %v489 = vmul.f32 %v177, %v296
    %v490 = vmul.f32 %v177, %v300
    %v491 = vmul.f32 %v177, %v303
    %v492 = vmul.f32 %v177, %v307
    %v493 = vmul.f32 %v177, %v311
    %v494 = vmul.f32 %v177, %v315
    %v495 = vmul.f32 %v177, %v319
    %v496 = vmul.f32 %v177, %v323
    %v497 = vmul.f32 %v177, %v327
    %v498 = vmul.f32 %v177, %v331
    %v499 = vmul.f32 %v177, %v335
    %v500 = vmul.f32 %v177, %v339
    %v501 = vmul.f32 %v177, %v343
    %v502 = vmul.f32 %v177, %v347
    %v503 = vmul.f32 %v177, %v351
    %v504 = vmul.f32 %v177, %v355
    %v505 = vmul.f32 %v177, %v359
    %v506 = vmul.f32 %v177, %v363
    %v507 = vmul.f32 %v177, %v366
    %v508 = vmul.f32 %v177, %v370
    %v509 = vmul.f32 %v177, %v374
    %v510 = vmul.f32 %v177, %v378
    %v511 = vmul.f32 %v177, %v382
    %v512 = vmul.f32 %v177, %v386
    %v513 = vmul.f32 %v177, %v390
    %v514 = vmul.f32 %v177, %v394
    %v515 = vmul.f32 %v177, %v398
    %v516 = vmul.f32 %v177, %v402
    %v517 = vmul.f32 %v177, %v406
    %v518 = vmul.f32 %v177, %v410
    %v519 = vmul.f32 %v177, %v414
    %v520 = vmul.f32 %v177, %v418
    %v521 = vmul.f32 %v177, %v422
    %v522 = vmul.f32 %v177, %v426
    %v523 = vmul.f32 %v181, %v240
    %v524 = vmul.f32 %v181, %v244
    %v525 = vmul.f32 %v181, %v248
    %v526 = vmul.f32 %v181, %v252
    %v527 = vmul.f32 %v181, %v256
    %v528 = vmul.f32 %v181, %v260
    %v529 = vmul.f32 %v181, %v264
    %v530 = vmul.f32 %v181, %v268
    %v531 = vmul.f32 %v181, %v272
    %v532 = vmul.f32 %v181, %v276
    %v533 = vmul.f32 %v181, %v280
    %v534 = vmul.f32 %v181, %v284
    %v535 = vmul.f32 %v181, %v288
    %v536 = vmul.f32 %v181, %v292
    %v537 = vmul.f32 %v181, %v296
    %v538 = vmul.f32 %v181, %v300
    %v539 = vmul.f32 %v181, %v303
    %v540 = vmul.f32 %v181, %v307
    %v541 = vmul.f32 %v181, %v311
    %v542 = vmul.f32 %v181, %v315
    %v543 = vmul.f32 %v181, %v319
    %v544 = vmul.f32 %v181, %v323
    %v545 = vmul.f32 %v181, %v327
    %v546 = vmul.f32 %v181, %v331
    %v547 = vmul.f32 %v181, %v335
    %v548 = vmul.f32 %v181, %v339
    %v549 = vmul.f32 %v181, %v343
    %v550 = vmul.f32 %v181, %v347
    %v551 = vmul.f32 %v181, %v351
    %v552 = vmul.f32 %v181, %v355
    %v553 = vmul.f32 %v181, %v359
    %v554 = vmul.f32 %v181, %v363
    %v555 = vmul.f32 %v181, %v366
    %v556 = vmul.f32 %v181, %v370
    %v557 = vmul.f32 %v181, %v374
    %v558 = vmul.f32 %v181, %v378
    %v559 = vmul.f32 %v181, %v382
    %v560 = vmul.f32 %v181, %v386
    %v561 = vmul.f32 %v181, %v390
    %v562 = vmul.f32 %v181, %v394
    %v563 = vmul.f32 %v181, %v398
    %v564 = vmul.f32 %v181, %v402
    %v565 = vmul.f32 %v181, %v406
    %v566 = vmul.f32 %v181, %v410
    %v567 = vmul.f32 %v181, %v414
    %v568 = vmul.f32 %v181, %v418
    %v569 = vmul.f32 %v181, %v422
    %v570 = vmul.f32 %v181, %v426
    %v571 = vmul.f32 %v185, %v240
    %v572 = vmul.f32 %v185, %v244
    %v573 = vmul.f32 %v185, %v248
    %v574 = vmul.f32 %v185, %v252
    %v575 = vmul.f32 %v185, %v256
    %v576 = vmul.f32 %v185, %v260
    %v577 = vmul.f32 %v185, %v264
    %v578 = vmul.f32 %v185, %v268
    %v579 = vmul.f32 %v185, %v272
    %v580 = vmul.f32 %v185, %v276
    %v581 = vmul.f32 %v185, %v280
    %v582 = vmul.f32 %v185, %v284
    %v583 = vmul.f32 %v185, %v288
    %v584 = vmul.f32 %v185, %v292
    %v585 = vmul.f32 %v185, %v296
    %v586 = vmul.f32 %v185, %v300
    %v587 = vmul.f32 %v185, %v303
    %v588 = vmul.f32 %v185, %v307
    %v589 = vmul.f32 %v185, %v311
    %v590 = vmul.f32 %v185, %v315
    %v591 = vmul.f32 %v185, %v319
    %v592 = vmul.f32 %v185, %v323
    %v593 = vmul.f32 %v185, %v327
    %v594 = vmul.f32 %v185, %v331
    %v595 = vmul.f32 %v185, %v335
    %v596 = vmul.f32 %v185, %v339
    %v597 = vmul.f32 %v185, %v343
    %v598 = vmul.f32 %v185, %v347
    %v599 = vmul.f32 %v185, %v351
    %v600 = vmul.f32 %v185, %v355
    %v601 = vmul.f32 %v185, %v359
    %v602 = vmul.f32 %v185, %v363
    %v603 = vmul.f32 %v185, %v366
    %v604 = vmul.f32 %v185, %v370
    %v605 = vmul.f32 %v185, %v374
    %v606 = vmul.f32 %v185, %v378
    %v607 = vmul.f32 %v185, %v382
    %v608 = vmul.f32 %v185, %v386
    %v609 = vmul.f32 %v185, %v390
    %v610 = vmul.f32 %v185, %v394
    %v611 = vmul.f32 %v185, %v398
    %v612 = vmul.f32 %v185, %v402
    %v613 = vmul.f32 %v185, %v406
    %v614 = vmul.f32 %v185, %v410
    %v615 = vmul.f32 %v185, %v414
    %v616 = vmul.f32 %v185, %v418
    %v617 = vmul.f32 %v185, %v422
    %v618 = vmul.f32 %v185, %v426
    %v619 = vmul.f32 %v189, %v240
    %v620 = vmul.f32 %v189, %v244
    %v621 = vmul.f32 %v189, %v248
    %v622 = vmul.f32 %v189, %v252
    %v623 = vmul.f32 %v189, %v256
    %v624 = vmul.f32 %v189, %v260
    %v625 = vmul.f32 %v189, %v264
    %v626 = vmul.f32 %v189, %v268
    %v627 = vmul.f32 %v189, %v272
    %v628 = vmul.f32 %v189, %v276
    %v629 = vmul.f32 %v189, %v280
    %v630 = vmul.f32 %v189, %v284
    %v631 = vmul.f32 %v189, %v288
    %v632 = vmul.f32 %v189, %v292
    %v633 = vmul.f32 %v189, %v296
    %v634 = vmul.f32 %v189, %v300
    %v635 = vmul.f32 %v189, %v303
    %v636 = vmul.f32 %v189, %v307
    %v637 = vmul.f32 %v189, %v311
    %v638 = vmul.f32 %v189, %v315
    %v639 = vmul.f32 %v189, %v319
    %v640 = vmul.f32 %v189, %v323
    %v641 = vmul.f32 %v189, %v327
    %v642 = vmul.f32 %v189, %v331
    %v643 = vmul.f32 %v189, %v335
    %v644 = vmul.f32 %v189, %v339
    %v645 = vmul.f32 %v189, %v343
    %v646 = vmul.f32 %v189, %v347
    %v647 = vmul.f32 %v189, %v351
    %v648 = vmul.f32 %v189, %v355
    %v649 = vmul.f32 %v189, %v359
    %v650 = vmul.f32 %v189, %v363
    %v651 = vmul.f32 %v189, %v366
    %v652 = vmul.f32 %v189, %v370
    %v653 = vmul.f32 %v189, %v374
    %v654 = vmul.f32 %v189, %v378
    %v655 = vmul.f32 %v189, %v382
    %v656 = vmul.f32 %v189, %v386
    %v657 = vmul.f32 %v189, %v390
    %v658 = vmul.f32 %v189, %v394
    %v659 = vmul.f32 %v189, %v398
    %v660 = vmul.f32 %v189, %v402
    %v661 = vmul.f32 %v189, %v406
    %v662 = vmul.f32 %v189, %v410
    %v663 = vmul.f32 %v189, %v414
    %v664 = vmul.f32 %v189, %v418
    %v665 = vmul.f32 %v189, %v422
    %v666 = vmul.f32 %v189, %v426
    %v667 = vmul.f32 %v193, %v240
    %v668 = vmul.f32 %v193, %v244
    %v669 = vmul.f32 %v193, %v248
    %v670 = vmul.f32 %v193, %v252
    %v671 = vmul.f32 %v193, %v256
    %v672 = vmul.f32 %v193, %v260
    %v673 = vmul.f32 %v193, %v264
    %v674 = vmul.f32 %v193, %v268
    %v675 = vmul.f32 %v193, %v272
    %v676 = vmul.f32 %v193, %v276
    %v677 = vmul.f32 %v193, %v280
    %v678 = vmul.f32 %v193, %v284
    %v679 = vmul.f32 %v193, %v288
    %v680 = vmul.f32 %v193, %v292
    %v681 = vmul.f32 %v193, %v296
    %v682 = vmul.f32 %v193, %v300
    %v683 = vmul.f32 %v193, %v303
    %v684 = vmul.f32 %v193, %v307
    %v685 = vmul.f32 %v193, %v311
    %v686 = vmul.f32 %v193, %v315
    %v687 = vmul.f32 %v193, %v319
    %v688 = vmul.f32 %v193, %v323
    %v689 = vmul.f32 %v193, %v327
    %v690 = vmul.f32 %v193, %v331
    %v691 = vmul.f32 %v193, %v335
    %v692 = vmul.f32 %v193, %v339
    %v693 = vmul.f32 %v193, %v343
    %v694 = vmul.f32 %v193, %v347
    %v695 = vmul.f32 %v193, %v351
    %v696 = vmul.f32 %v193, %v355
    %v697 = vmul.f32 %v193, %v359
    %v698 = vmul.f32 %v193, %v363
    %v699 = vmul.f32 %v193, %v366
    %v700 = vmul.f32 %v193, %v370
    %v701 = vmul.f32 %v193, %v374
    %v702 = vmul.f32 %v193, %v378
    %v703 = vmul.f32 %v193, %v382
    %v704 = vmul.f32 %v193, %v386
    %v705 = vmul.f32 %v193, %v390
    %v706 = vmul.f32 %v193, %v394
    %v707 = vmul.f32 %v193, %v398
    %v708 = vmul.f32 %v193, %v402
    %v709 = vmul.f32 %v193, %v406
    %v710 = vmul.f32 %v193, %v410
    %v711 = vmul.f32 %v193, %v414
    %v712 = vmul.f32 %v193, %v418
    %v713 = vmul.f32 %v193, %v422
    %v714 = vmul.f32 %v193, %v426
    %v715 = vmul.f32 %v197, %v240
    %v716 = vmul.f32 %v197, %v244
    %v717 = vmul.f32 %v197, %v248
    %v718 = vmul.f32 %v197, %v252
    %v719 = vmul.f32 %v197, %v256
    %v720 = vmul.f32 %v197, %v260
    %v721 = vmul.f32 %v197, %v264
    %v722 = vmul.f32 %v197, %v268
    %v723 = vmul.f32 %v197, %v272
    %v724 = vmul.f32 %v197, %v276
    %v725 = vmul.f32 %v197, %v280
    %v726 = vmul.f32 %v197, %v284
    %v727 = vmul.f32 %v197, %v288
    %v728 = vmul.f32 %v197, %v292
    %v729 = vmul.f32 %v197, %v296
    %v730 = vmul.f32 %v197, %v300
    %v731 = vmul.f32 %v197, %v303
    %v732 = vmul.f32 %v197, %v307
    %v733 = vmul.f32 %v197, %v311
    %v734 = vmul.f32 %v197, %v315
    %v735 = vmul.f32 %v197, %v319
    %v736 = vmul.f32 %v197, %v323
    %v737 = vmul.f32 %v197, %v327
    %v738 = vmul.f32 %v197, %v331
    %v739 = vmul.f32 %v197, %v335
    %v740 = vmul.f32 %v197, %v339
    %v741 = vmul.f32 %v197, %v343
    %v742 = vmul.f32 %v197, %v347
    %v743 = vmul.f32 %v197, %v351
    %v744 = vmul.f32 %v197, %v355
    %v745 = vmul.f32 %v197, %v359
    %v746 = vmul.f32 %v197, %v363
    %v747 = vmul.f32 %v197, %v366
    %v748 = vmul.f32 %v197, %v370
    %v749 = vmul.f32 %v197, %v374
    %v750 = vmul.f32 %v197, %v378
    %v751 = vmul.f32 %v197, %v382
    %v752 = vmul.f32 %v197, %v386
    %v753 = vmul.f32 %v197, %v390
    %v754 = vmul.f32 %v197, %v394
    %v755 = vmul.f32 %v197, %v398
    %v756 = vmul.f32 %v197, %v402
    %v757 = vmul.f32 %v197, %v406
    %v758 = vmul.f32 %v197, %v410
    %v759 = vmul.f32 %v197, %v414
    %v760 = vmul.f32 %v197, %v418
    %v761 = vmul.f32 %v197, %v422
    %v762 = vmul.f32 %v197, %v426
    %v763 = vmul.f32 %v201, %v240
    %v764 = vmul.f32 %v201, %v244
    %v765 = vmul.f32 %v201, %v248
    %v766 = vmul.f32 %v201, %v252
    %v767 = vmul.f32 %v201, %v256
    %v768 = vmul.f32 %v201, %v260
    %v769 = vmul.f32 %v201, %v264
    %v770 = vmul.f32 %v201, %v268
    %v771 = vmul.f32 %v201, %v272
    %v772 = vmul.f32 %v201, %v276
    %v773 = vmul.f32 %v201, %v280
    %v774 = vmul.f32 %v201, %v284
    %v775 = vmul.f32 %v201, %v288
    %v776 = vmul.f32 %v201, %v292
    %v777 = vmul.f32 %v201, %v296
    %v778 = vmul.f32 %v201, %v300
    %v779 = vmul.f32 %v201, %v303
    %v780 = vmul.f32 %v201, %v307
    %v781 = vmul.f32 %v201, %v311
    %v782 = vmul.f32 %v201, %v315
    %v783 = vmul.f32 %v201, %v319
    %v784 = vmul.f32 %v201, %v323
    %v785 = vmul.f32 %v201, %v327
    %v786 = vmul.f32 %v201, %v331
    %v787 = vmul.f32 %v201, %v335
    %v788 = vmul.f32 %v201, %v339
    %v789 = vmul.f32 %v201, %v343
    %v790 = vmul.f32 %v201, %v347
    %v791 = vmul.f32 %v201, %v351
    %v792 = vmul.f32 %v201, %v355
    %v793 = vmul.f32 %v201, %v359
    %v794 = vmul.f32 %v201, %v363
    %v795 = vmul.f32 %v201, %v366
    %v796 = vmul.f32 %v201, %v370
    %v797 = vmul.f32 %v201, %v374
    %v798 = vmul.f32 %v201, %v378
    %v799 = vmul.f32 %v201, %v382
    %v800 = vmul.f32 %v201, %v386
    %v801 = vmul.f32 %v201, %v390
    %v802 = vmul.f32 %v201, %v394
    %v803 = vmul.f32 %v201, %v398
    %v804 = vmul.f32 %v201, %v402
    %v805 = vmul.f32 %v201, %v406
    %v806 = vmul.f32 %v201, %v410
    %v807 = vmul.f32 %v201, %v414
    %v808 = vmul.f32 %v201, %v418
    %v809 = vmul.f32 %v201, %v422
    %v810 = vmul.f32 %v201, %v426
    %v811 = vmul.f32 %v205, %v240
    %v812 = vmul.f32 %v205, %v244
    %v813 = vmul.f32 %v205, %v248
    %v814 = vmul.f32 %v205, %v252
    %v815 = vmul.f32 %v205, %v256
    %v816 = vmul.f32 %v205, %v260
    %v817 = vmul.f32 %v205, %v264
    %v818 = vmul.f32 %v205, %v268
    %v819 = vmul.f32 %v205, %v272
    %v820 = vmul.f32 %v205, %v276
    %v821 = vmul.f32 %v205, %v280
    %v822 = vmul.f32 %v205, %v284
    %v823 = vmul.f32 %v205, %v288
    %v824 = vmul.f32 %v205, %v292
    %v825 = vmul.f32 %v205, %v296
    %v826 = vmul.f32 %v205, %v300
    %v827 = vmul.f32 %v205, %v303
    %v828 = vmul.f32 %v205, %v307
    %v829 = vmul.f32 %v205, %v311
    %v830 = vmul.f32 %v205, %v315
    %v831 = vmul.f32 %v205, %v319
    %v832 = vmul.f32 %v205, %v323
    %v833 = vmul.f32 %v205, %v327
    %v834 = vmul.f32 %v205, %v331
    %v835 = vmul.f32 %v205, %v335
    %v836 = vmul.f32 %v205, %v339
    %v837 = vmul.f32 %v205, %v343
    %v838 = vmul.f32 %v205, %v347
    %v839 = vmul.f32 %v205, %v351
    %v840 = vmul.f32 %v205, %v355
    %v841 = vmul.f32 %v205, %v359
    %v842 = vmul.f32 %v205, %v363
    %v843 = vmul.f32 %v205, %v366
    %v844 = vmul.f32 %v205, %v370
    %v845 = vmul.f32 %v205, %v374
    %v846 = vmul.f32 %v205, %v378
    %v847 = vmul.f32 %v205, %v382
    %v848 = vmul.f32 %v205, %v386
    %v849 = vmul.f32 %v205, %v390
    %v850 = vmul.f32 %v205, %v394
    %v851 = vmul.f32 %v205, %v398
    %v852 = vmul.f32 %v205, %v402
    %v853 = vmul.f32 %v205, %v406
    %v854 = vmul.f32 %v205, %v410
    %v855 = vmul.f32 %v205, %v414
    %v856 = vmul.f32 %v205, %v418
    %v857 = vmul.f32 %v205, %v422
    %v858 = vmul.f32 %v205, %v426
    %v859 = vlaneseq
    %v860 = vshrl.u32 %v859, 7
    %v861 = vsub.s32 1, %v860
    %v862 = vrot.slane %v163, %v861
    %v863 = vlaneseq
    %v864 = vshrl.u32 %v863, 7
    %v865 = vsub.s32 1, %v864
    %v866 = vrot.slane %v164, %v865
    %v867 = vlaneseq
    %v868 = vshrl.u32 %v867, 7
    %v869 = vsub.s32 1, %v868
    %v870 = vrot.slane %v165, %v869
    %v871 = vlaneseq
    %v872 = vshrl.u32 %v871, 7
    %v873 = vsub.s32 1, %v872
    %v874 = vrot.slane %v166, %v873
    %v875 = vlaneseq
    %v876 = vshrl.u32 %v875, 7
    %v877 = vsub.s32 1, %v876
    %v878 = vrot.slane %v167, %v877
    %v879 = vlaneseq
    %v880 = vshrl.u32 %v879, 7
    %v881 = vsub.s32 1, %v880
    %v882 = vrot.slane %v168, %v881
    %v883 = vlaneseq
    %v884 = vshrl.u32 %v883, 7
    %v885 = vsub.s32 1, %v884
    %v886 = vrot.slane %v169, %v885
    %v887 = vlaneseq
    %v888 = vshrl.u32 %v887, 7
    %v889 = vsub.s32 1, %v888
    %v890 = vrot.slane %v170, %v889
    %v891 = vlaneseq
    %v892 = vshrl.u32 %v891, 7
    %v893 = vsub.s32 1, %v892
    %v894 = vrot.slane %v172, %v893
    %v895 = vlaneseq
    %v896 = vshrl.u32 %v895, 7
    %v897 = vsub.s32 5, %v896
    %v898 = vrot.slane %v172, %v897
    %v899 = vlaneseq
    %v900 = vshrl.u32 %v899, 7
    %v901 = vsub.s32 1, %v900
    %v902 = vrot.slane %v173, %v901
    %v906 = vlaneseq
    %v907 = vshrl.u32 %v906, 7
    %v908 = vsub.s32 1, %v907
    %v909 = vrot.slane %v894, %v908
    %v910 = vlaneseq
    %v911 = vshrl.u32 %v910, 7
    %v912 = vsub.s32 1, %v911
    %v913 = vrot.slane %v898, %v912
    %v914 = vlaneseq
    %v915 = vshrl.u32 %v914, 7
    %v916 = vsub.s32 1, %v915
    %v917 = vrot.slane %v902, %v916
    %922 = vbcast.lane.b32.xlu0 %v909, 256
    %v923 = vpop.permute.xlu0 %922
    %s925 = sor.u32 256, 8
    %926 = vbcast.lane.b32.xlu0 %v909, %s925
    %v927 = vpop.permute.xlu0 %926
    %s929 = sor.u32 256, 16
    %930 = vbcast.lane.b32.xlu0 %v909, %s929
    %v931 = vpop.permute.xlu0 %930
    %s933 = sor.u32 256, 24
    %934 = vbcast.lane.b32.xlu0 %v909, %s933
    %v935 = vpop.permute.xlu0 %934
    %s937 = sor.u32 256, 32
    %938 = vbcast.lane.b32.xlu0 %v909, %s937
    %v939 = vpop.permute.xlu0 %938
    %s941 = sor.u32 256, 40
    %942 = vbcast.lane.b32.xlu0 %v909, %s941
    %v943 = vpop.permute.xlu0 %942
    %s945 = sor.u32 256, 48
    %946 = vbcast.lane.b32.xlu0 %v909, %s945
    %v947 = vpop.permute.xlu0 %946
    %s949 = sor.u32 256, 56
    %950 = vbcast.lane.b32.xlu0 %v909, %s949
    %v951 = vpop.permute.xlu0 %950
    %s953 = sor.u32 256, 64
    %954 = vbcast.lane.b32.xlu0 %v909, %s953
    %v955 = vpop.permute.xlu0 %954
    %s957 = sor.u32 256, 72
    %958 = vbcast.lane.b32.xlu0 %v909, %s957
    %v959 = vpop.permute.xlu0 %958
    %s961 = sor.u32 256, 80
    %962 = vbcast.lane.b32.xlu0 %v909, %s961
    %v963 = vpop.permute.xlu0 %962
    %s965 = sor.u32 256, 88
    %966 = vbcast.lane.b32.xlu0 %v909, %s965
    %v967 = vpop.permute.xlu0 %966
    %s969 = sor.u32 256, 96
    %970 = vbcast.lane.b32.xlu0 %v909, %s969
    %v971 = vpop.permute.xlu0 %970
    %s973 = sor.u32 256, 104
    %974 = vbcast.lane.b32.xlu0 %v909, %s973
    %v975 = vpop.permute.xlu0 %974
    %s977 = sor.u32 256, 112
    %978 = vbcast.lane.b32.xlu0 %v909, %s977
    %v979 = vpop.permute.xlu0 %978
    %s981 = sor.u32 256, 120
    %982 = vbcast.lane.b32.xlu0 %v909, %s981
    %v983 = vpop.permute.xlu0 %982
    %985 = vbcast.lane.b32.xlu0 %v913, 256
    %v986 = vpop.permute.xlu0 %985
    %s988 = sor.u32 256, 8
    %989 = vbcast.lane.b32.xlu0 %v913, %s988
    %v990 = vpop.permute.xlu0 %989
    %s992 = sor.u32 256, 16
    %993 = vbcast.lane.b32.xlu0 %v913, %s992
    %v994 = vpop.permute.xlu0 %993
    %s996 = sor.u32 256, 24
    %997 = vbcast.lane.b32.xlu0 %v913, %s996
    %v998 = vpop.permute.xlu0 %997
    %s1000 = sor.u32 256, 32
    %1001 = vbcast.lane.b32.xlu0 %v913, %s1000
    %v1002 = vpop.permute.xlu0 %1001
    %s1004 = sor.u32 256, 40
    %1005 = vbcast.lane.b32.xlu0 %v913, %s1004
    %v1006 = vpop.permute.xlu0 %1005
    %s1008 = sor.u32 256, 48
    %1009 = vbcast.lane.b32.xlu0 %v913, %s1008
    %v1010 = vpop.permute.xlu0 %1009
    %s1012 = sor.u32 256, 56
    %1013 = vbcast.lane.b32.xlu0 %v913, %s1012
    %v1014 = vpop.permute.xlu0 %1013
    %s1016 = sor.u32 256, 64
    %1017 = vbcast.lane.b32.xlu0 %v913, %s1016
    %v1018 = vpop.permute.xlu0 %1017
    %s1020 = sor.u32 256, 72
    %1021 = vbcast.lane.b32.xlu0 %v913, %s1020
    %v1022 = vpop.permute.xlu0 %1021
    %s1024 = sor.u32 256, 80
    %1025 = vbcast.lane.b32.xlu0 %v913, %s1024
    %v1026 = vpop.permute.xlu0 %1025
    %s1028 = sor.u32 256, 88
    %1029 = vbcast.lane.b32.xlu0 %v913, %s1028
    %v1030 = vpop.permute.xlu0 %1029
    %s1032 = sor.u32 256, 96
    %1033 = vbcast.lane.b32.xlu0 %v913, %s1032
    %v1034 = vpop.permute.xlu0 %1033
    %s1036 = sor.u32 256, 104
    %1037 = vbcast.lane.b32.xlu0 %v913, %s1036
    %v1038 = vpop.permute.xlu0 %1037
    %s1040 = sor.u32 256, 112
    %1041 = vbcast.lane.b32.xlu0 %v913, %s1040
    %v1042 = vpop.permute.xlu0 %1041
    %s1044 = sor.u32 256, 120
    %1045 = vbcast.lane.b32.xlu0 %v913, %s1044
    %v1046 = vpop.permute.xlu0 %1045
    %1048 = vbcast.lane.b32.xlu0 %v917, 256
    %v1049 = vpop.permute.xlu0 %1048
    %s1051 = sor.u32 256, 8
    %1052 = vbcast.lane.b32.xlu0 %v917, %s1051
    %v1053 = vpop.permute.xlu0 %1052
    %s1055 = sor.u32 256, 16
    %1056 = vbcast.lane.b32.xlu0 %v917, %s1055
    %v1057 = vpop.permute.xlu0 %1056
    %s1059 = sor.u32 256, 24
    %1060 = vbcast.lane.b32.xlu0 %v917, %s1059
    %v1061 = vpop.permute.xlu0 %1060
    %s1063 = sor.u32 256, 32
    %1064 = vbcast.lane.b32.xlu0 %v917, %s1063
    %v1065 = vpop.permute.xlu0 %1064
    %s1067 = sor.u32 256, 40
    %1068 = vbcast.lane.b32.xlu0 %v917, %s1067
    %v1069 = vpop.permute.xlu0 %1068
    %s1071 = sor.u32 256, 48
    %1072 = vbcast.lane.b32.xlu0 %v917, %s1071
    %v1073 = vpop.permute.xlu0 %1072
    %s1075 = sor.u32 256, 56
    %1076 = vbcast.lane.b32.xlu0 %v917, %s1075
    %v1077 = vpop.permute.xlu0 %1076
    %s1079 = sor.u32 256, 64
    %1080 = vbcast.lane.b32.xlu0 %v917, %s1079
    %v1081 = vpop.permute.xlu0 %1080
    %s1083 = sor.u32 256, 72
    %1084 = vbcast.lane.b32.xlu0 %v917, %s1083
    %v1085 = vpop.permute.xlu0 %1084
    %s1087 = sor.u32 256, 80
    %1088 = vbcast.lane.b32.xlu0 %v917, %s1087
    %v1089 = vpop.permute.xlu0 %1088
    %s1091 = sor.u32 256, 88
    %1092 = vbcast.lane.b32.xlu0 %v917, %s1091
    %v1093 = vpop.permute.xlu0 %1092
    %s1095 = sor.u32 256, 96
    %1096 = vbcast.lane.b32.xlu0 %v917, %s1095
    %v1097 = vpop.permute.xlu0 %1096
    %s1099 = sor.u32 256, 104
    %1100 = vbcast.lane.b32.xlu0 %v917, %s1099
    %v1101 = vpop.permute.xlu0 %1100
    %s1103 = sor.u32 256, 112
    %1104 = vbcast.lane.b32.xlu0 %v917, %s1103
    %v1105 = vpop.permute.xlu0 %1104
    %s1107 = sor.u32 256, 120
    %1108 = vbcast.lane.b32.xlu0 %v917, %s1107
    %v1109 = vpop.permute.xlu0 %1108
    %v1158 = vmul.f32 %v862, %v923
    %v1159 = vmul.f32 %v862, %v927
    %v1160 = vmul.f32 %v862, %v931
    %v1161 = vmul.f32 %v862, %v935
    %v1162 = vmul.f32 %v862, %v939
    %v1163 = vmul.f32 %v862, %v943
    %v1164 = vmul.f32 %v862, %v947
    %v1165 = vmul.f32 %v862, %v951
    %v1166 = vmul.f32 %v862, %v955
    %v1167 = vmul.f32 %v862, %v959
    %v1168 = vmul.f32 %v862, %v963
    %v1169 = vmul.f32 %v862, %v967
    %v1170 = vmul.f32 %v862, %v971
    %v1171 = vmul.f32 %v862, %v975
    %v1172 = vmul.f32 %v862, %v979
    %v1173 = vmul.f32 %v862, %v983
    %v1174 = vmul.f32 %v862, %v986
    %v1175 = vmul.f32 %v862, %v990
    %v1176 = vmul.f32 %v862, %v994
    %v1177 = vmul.f32 %v862, %v998
    %v1178 = vmul.f32 %v862, %v1002
    %v1179 = vmul.f32 %v862, %v1006
    %v1180 = vmul.f32 %v862, %v1010
    %v1181 = vmul.f32 %v862, %v1014
    %v1182 = vmul.f32 %v862, %v1018
    %v1183 = vmul.f32 %v862, %v1022
    %v1184 = vmul.f32 %v862, %v1026
    %v1185 = vmul.f32 %v862, %v1030
    %v1186 = vmul.f32 %v862, %v1034
    %v1187 = vmul.f32 %v862, %v1038
    %v1188 = vmul.f32 %v862, %v1042
    %v1189 = vmul.f32 %v862, %v1046
    %v1190 = vmul.f32 %v862, %v1049
    %v1191 = vmul.f32 %v862, %v1053
    %v1192 = vmul.f32 %v862, %v1057
    %v1193 = vmul.f32 %v862, %v1061
    %v1194 = vmul.f32 %v862, %v1065
    %v1195 = vmul.f32 %v862, %v1069
    %v1196 = vmul.f32 %v862, %v1073
    %v1197 = vmul.f32 %v862, %v1077
    %v1198 = vmul.f32 %v862, %v1081
    %v1199 = vmul.f32 %v862, %v1085
    %v1200 = vmul.f32 %v862, %v1089
    %v1201 = vmul.f32 %v862, %v1093
    %v1202 = vmul.f32 %v862, %v1097
    %v1203 = vmul.f32 %v862, %v1101
    %v1204 = vmul.f32 %v862, %v1105
    %v1205 = vmul.f32 %v862, %v1109
    %v1206 = vmul.f32 %v866, %v923
    %v1207 = vmul.f32 %v866, %v927
    %v1208 = vmul.f32 %v866, %v931
    %v1209 = vmul.f32 %v866, %v935
    %v1210 = vmul.f32 %v866, %v939
    %v1211 = vmul.f32 %v866, %v943
    %v1212 = vmul.f32 %v866, %v947
    %v1213 = vmul.f32 %v866, %v951
    %v1214 = vmul.f32 %v866, %v955
    %v1215 = vmul.f32 %v866, %v959
    %v1216 = vmul.f32 %v866, %v963
    %v1217 = vmul.f32 %v866, %v967
    %v1218 = vmul.f32 %v866, %v971
    %v1219 = vmul.f32 %v866, %v975
    %v1220 = vmul.f32 %v866, %v979
    %v1221 = vmul.f32 %v866, %v983
    %v1222 = vmul.f32 %v866, %v986
    %v1223 = vmul.f32 %v866, %v990
    %v1224 = vmul.f32 %v866, %v994
    %v1225 = vmul.f32 %v866, %v998
    %v1226 = vmul.f32 %v866, %v1002
    %v1227 = vmul.f32 %v866, %v1006
    %v1228 = vmul.f32 %v866, %v1010
    %v1229 = vmul.f32 %v866, %v1014
    %v1230 = vmul.f32 %v866, %v1018
    %v1231 = vmul.f32 %v866, %v1022
    %v1232 = vmul.f32 %v866, %v1026
    %v1233 = vmul.f32 %v866, %v1030
    %v1234 = vmul.f32 %v866, %v1034
    %v1235 = vmul.f32 %v866, %v1038
    %v1236 = vmul.f32 %v866, %v1042
    %v1237 = vmul.f32 %v866, %v1046
    %v1238 = vmul.f32 %v866, %v1049
    %v1239 = vmul.f32 %v866, %v1053
    %v1240 = vmul.f32 %v866, %v1057
    %v1241 = vmul.f32 %v866, %v1061
    %v1242 = vmul.f32 %v866, %v1065
    %v1243 = vmul.f32 %v866, %v1069
    %v1244 = vmul.f32 %v866, %v1073
    %v1245 = vmul.f32 %v866, %v1077
    %v1246 = vmul.f32 %v866, %v1081
    %v1247 = vmul.f32 %v866, %v1085
    %v1248 = vmul.f32 %v866, %v1089
    %v1249 = vmul.f32 %v866, %v1093
    %v1250 = vmul.f32 %v866, %v1097
    %v1251 = vmul.f32 %v866, %v1101
    %v1252 = vmul.f32 %v866, %v1105
    %v1253 = vmul.f32 %v866, %v1109
    %v1254 = vmul.f32 %v870, %v923
    %v1255 = vmul.f32 %v870, %v927
    %v1256 = vmul.f32 %v870, %v931
    %v1257 = vmul.f32 %v870, %v935
    %v1258 = vmul.f32 %v870, %v939
    %v1259 = vmul.f32 %v870, %v943
    %v1260 = vmul.f32 %v870, %v947
    %v1261 = vmul.f32 %v870, %v951
    %v1262 = vmul.f32 %v870, %v955
    %v1263 = vmul.f32 %v870, %v959
    %v1264 = vmul.f32 %v870, %v963
    %v1265 = vmul.f32 %v870, %v967
    %v1266 = vmul.f32 %v870, %v971
    %v1267 = vmul.f32 %v870, %v975
    %v1268 = vmul.f32 %v870, %v979
    %v1269 = vmul.f32 %v870, %v983
    %v1270 = vmul.f32 %v870, %v986
    %v1271 = vmul.f32 %v870, %v990
    %v1272 = vmul.f32 %v870, %v994
    %v1273 = vmul.f32 %v870, %v998
    %v1274 = vmul.f32 %v870, %v1002
    %v1275 = vmul.f32 %v870, %v1006
    %v1276 = vmul.f32 %v870, %v1010
    %v1277 = vmul.f32 %v870, %v1014
    %v1278 = vmul.f32 %v870, %v1018
    %v1279 = vmul.f32 %v870, %v1022
    %v1280 = vmul.f32 %v870, %v1026
    %v1281 = vmul.f32 %v870, %v1030
    %v1282 = vmul.f32 %v870, %v1034
    %v1283 = vmul.f32 %v870, %v1038
    %v1284 = vmul.f32 %v870, %v1042
    %v1285 = vmul.f32 %v870, %v1046
    %v1286 = vmul.f32 %v870, %v1049
    %v1287 = vmul.f32 %v870, %v1053
    %v1288 = vmul.f32 %v870, %v1057
    %v1289 = vmul.f32 %v870, %v1061
    %v1290 = vmul.f32 %v870, %v1065
    %v1291 = vmul.f32 %v870, %v1069
    %v1292 = vmul.f32 %v870, %v1073
    %v1293 = vmul.f32 %v870, %v1077
    %v1294 = vmul.f32 %v870, %v1081
    %v1295 = vmul.f32 %v870, %v1085
    %v1296 = vmul.f32 %v870, %v1089
    %v1297 = vmul.f32 %v870, %v1093
    %v1298 = vmul.f32 %v870, %v1097
    %v1299 = vmul.f32 %v870, %v1101
    %v1300 = vmul.f32 %v870, %v1105
    %v1301 = vmul.f32 %v870, %v1109
    %v1302 = vmul.f32 %v874, %v923
    %v1303 = vmul.f32 %v874, %v927
    %v1304 = vmul.f32 %v874, %v931
    %v1305 = vmul.f32 %v874, %v935
    %v1306 = vmul.f32 %v874, %v939
    %v1307 = vmul.f32 %v874, %v943
    %v1308 = vmul.f32 %v874, %v947
    %v1309 = vmul.f32 %v874, %v951
    %v1310 = vmul.f32 %v874, %v955
    %v1311 = vmul.f32 %v874, %v959
    %v1312 = vmul.f32 %v874, %v963
    %v1313 = vmul.f32 %v874, %v967
    %v1314 = vmul.f32 %v874, %v971
    %v1315 = vmul.f32 %v874, %v975
    %v1316 = vmul.f32 %v874, %v979
    %v1317 = vmul.f32 %v874, %v983
    %v1318 = vmul.f32 %v874, %v986
    %v1319 = vmul.f32 %v874, %v990
    %v1320 = vmul.f32 %v874, %v994
    %v1321 = vmul.f32 %v874, %v998
    %v1322 = vmul.f32 %v874, %v1002
    %v1323 = vmul.f32 %v874, %v1006
    %v1324 = vmul.f32 %v874, %v1010
    %v1325 = vmul.f32 %v874, %v1014
    %v1326 = vmul.f32 %v874, %v1018
    %v1327 = vmul.f32 %v874, %v1022
    %v1328 = vmul.f32 %v874, %v1026
    %v1329 = vmul.f32 %v874, %v1030
    %v1330 = vmul.f32 %v874, %v1034
    %v1331 = vmul.f32 %v874, %v1038
    %v1332 = vmul.f32 %v874, %v1042
    %v1333 = vmul.f32 %v874, %v1046
    %v1334 = vmul.f32 %v874, %v1049
    %v1335 = vmul.f32 %v874, %v1053
    %v1336 = vmul.f32 %v874, %v1057
    %v1337 = vmul.f32 %v874, %v1061
    %v1338 = vmul.f32 %v874, %v1065
    %v1339 = vmul.f32 %v874, %v1069
    %v1340 = vmul.f32 %v874, %v1073
    %v1341 = vmul.f32 %v874, %v1077
    %v1342 = vmul.f32 %v874, %v1081
    %v1343 = vmul.f32 %v874, %v1085
    %v1344 = vmul.f32 %v874, %v1089
    %v1345 = vmul.f32 %v874, %v1093
    %v1346 = vmul.f32 %v874, %v1097
    %v1347 = vmul.f32 %v874, %v1101
    %v1348 = vmul.f32 %v874, %v1105
    %v1349 = vmul.f32 %v874, %v1109
    %v1350 = vmul.f32 %v878, %v923
    %v1351 = vmul.f32 %v878, %v927
    %v1352 = vmul.f32 %v878, %v931
    %v1353 = vmul.f32 %v878, %v935
    %v1354 = vmul.f32 %v878, %v939
    %v1355 = vmul.f32 %v878, %v943
    %v1356 = vmul.f32 %v878, %v947
    %v1357 = vmul.f32 %v878, %v951
    %v1358 = vmul.f32 %v878, %v955
    %v1359 = vmul.f32 %v878, %v959
    %v1360 = vmul.f32 %v878, %v963
    %v1361 = vmul.f32 %v878, %v967
    %v1362 = vmul.f32 %v878, %v971
    %v1363 = vmul.f32 %v878, %v975
    %v1364 = vmul.f32 %v878, %v979
    %v1365 = vmul.f32 %v878, %v983
    %v1366 = vmul.f32 %v878, %v986
    %v1367 = vmul.f32 %v878, %v990
    %v1368 = vmul.f32 %v878, %v994
    %v1369 = vmul.f32 %v878, %v998
    %v1370 = vmul.f32 %v878, %v1002
    %v1371 = vmul.f32 %v878, %v1006
    %v1372 = vmul.f32 %v878, %v1010
    %v1373 = vmul.f32 %v878, %v1014
    %v1374 = vmul.f32 %v878, %v1018
    %v1375 = vmul.f32 %v878, %v1022
    %v1376 = vmul.f32 %v878, %v1026
    %v1377 = vmul.f32 %v878, %v1030
    %v1378 = vmul.f32 %v878, %v1034
    %v1379 = vmul.f32 %v878, %v1038
    %v1380 = vmul.f32 %v878, %v1042
    %v1381 = vmul.f32 %v878, %v1046
    %v1382 = vmul.f32 %v878, %v1049
    %v1383 = vmul.f32 %v878, %v1053
    %v1384 = vmul.f32 %v878, %v1057
    %v1385 = vmul.f32 %v878, %v1061
    %v1386 = vmul.f32 %v878, %v1065
    %v1387 = vmul.f32 %v878, %v1069
    %v1388 = vmul.f32 %v878, %v1073
    %v1389 = vmul.f32 %v878, %v1077
    %v1390 = vmul.f32 %v878, %v1081
    %v1391 = vmul.f32 %v878, %v1085
    %v1392 = vmul.f32 %v878, %v1089
    %v1393 = vmul.f32 %v878, %v1093
    %v1394 = vmul.f32 %v878, %v1097
    %v1395 = vmul.f32 %v878, %v1101
    %v1396 = vmul.f32 %v878, %v1105
    %v1397 = vmul.f32 %v878, %v1109
    %v1398 = vmul.f32 %v882, %v923
    %v1399 = vmul.f32 %v882, %v927
    %v1400 = vmul.f32 %v882, %v931
    %v1401 = vmul.f32 %v882, %v935
    %v1402 = vmul.f32 %v882, %v939
    %v1403 = vmul.f32 %v882, %v943
    %v1404 = vmul.f32 %v882, %v947
    %v1405 = vmul.f32 %v882, %v951
    %v1406 = vmul.f32 %v882, %v955
    %v1407 = vmul.f32 %v882, %v959
    %v1408 = vmul.f32 %v882, %v963
    %v1409 = vmul.f32 %v882, %v967
    %v1410 = vmul.f32 %v882, %v971
    %v1411 = vmul.f32 %v882, %v975
    %v1412 = vmul.f32 %v882, %v979
    %v1413 = vmul.f32 %v882, %v983
    %v1414 = vmul.f32 %v882, %v986
    %v1415 = vmul.f32 %v882, %v990
    %v1416 = vmul.f32 %v882, %v994
    %v1417 = vmul.f32 %v882, %v998
    %v1418 = vmul.f32 %v882, %v1002
    %v1419 = vmul.f32 %v882, %v1006
    %v1420 = vmul.f32 %v882, %v1010
    %v1421 = vmul.f32 %v882, %v1014
    %v1422 = vmul.f32 %v882, %v1018
    %v1423 = vmul.f32 %v882, %v1022
    %v1424 = vmul.f32 %v882, %v1026
    %v1425 = vmul.f32 %v882, %v1030
    %v1426 = vmul.f32 %v882, %v1034
    %v1427 = vmul.f32 %v882, %v1038
    %v1428 = vmul.f32 %v882, %v1042
    %v1429 = vmul.f32 %v882, %v1046
    %v1430 = vmul.f32 %v882, %v1049
    %v1431 = vmul.f32 %v882, %v1053
    %v1432 = vmul.f32 %v882, %v1057
    %v1433 = vmul.f32 %v882, %v1061
    %v1434 = vmul.f32 %v882, %v1065
    %v1435 = vmul.f32 %v882, %v1069
    %v1436 = vmul.f32 %v882, %v1073
    %v1437 = vmul.f32 %v882, %v1077
    %v1438 = vmul.f32 %v882, %v1081
    %v1439 = vmul.f32 %v882, %v1085
    %v1440 = vmul.f32 %v882, %v1089
    %v1441 = vmul.f32 %v882, %v1093
    %v1442 = vmul.f32 %v882, %v1097
    %v1443 = vmul.f32 %v882, %v1101
    %v1444 = vmul.f32 %v882, %v1105
    %v1445 = vmul.f32 %v882, %v1109
    %v1446 = vmul.f32 %v886, %v923
    %v1447 = vmul.f32 %v886, %v927
    %v1448 = vmul.f32 %v886, %v931
    %v1449 = vmul.f32 %v886, %v935
    %v1450 = vmul.f32 %v886, %v939
    %v1451 = vmul.f32 %v886, %v943
    %v1452 = vmul.f32 %v886, %v947
    %v1453 = vmul.f32 %v886, %v951
    %v1454 = vmul.f32 %v886, %v955
    %v1455 = vmul.f32 %v886, %v959
    %v1456 = vmul.f32 %v886, %v963
    %v1457 = vmul.f32 %v886, %v967
    %v1458 = vmul.f32 %v886, %v971
    %v1459 = vmul.f32 %v886, %v975
    %v1460 = vmul.f32 %v886, %v979
    %v1461 = vmul.f32 %v886, %v983
    %v1462 = vmul.f32 %v886, %v986
    %v1463 = vmul.f32 %v886, %v990
    %v1464 = vmul.f32 %v886, %v994
    %v1465 = vmul.f32 %v886, %v998
    %v1466 = vmul.f32 %v886, %v1002
    %v1467 = vmul.f32 %v886, %v1006
    %v1468 = vmul.f32 %v886, %v1010
    %v1469 = vmul.f32 %v886, %v1014
    %v1470 = vmul.f32 %v886, %v1018
    %v1471 = vmul.f32 %v886, %v1022
    %v1472 = vmul.f32 %v886, %v1026
    %v1473 = vmul.f32 %v886, %v1030
    %v1474 = vmul.f32 %v886, %v1034
    %v1475 = vmul.f32 %v886, %v1038
    %v1476 = vmul.f32 %v886, %v1042
    %v1477 = vmul.f32 %v886, %v1046
    %v1478 = vmul.f32 %v886, %v1049
    %v1479 = vmul.f32 %v886, %v1053
    %v1480 = vmul.f32 %v886, %v1057
    %v1481 = vmul.f32 %v886, %v1061
    %v1482 = vmul.f32 %v886, %v1065
    %v1483 = vmul.f32 %v886, %v1069
    %v1484 = vmul.f32 %v886, %v1073
    %v1485 = vmul.f32 %v886, %v1077
    %v1486 = vmul.f32 %v886, %v1081
    %v1487 = vmul.f32 %v886, %v1085
    %v1488 = vmul.f32 %v886, %v1089
    %v1489 = vmul.f32 %v886, %v1093
    %v1490 = vmul.f32 %v886, %v1097
    %v1491 = vmul.f32 %v886, %v1101
    %v1492 = vmul.f32 %v886, %v1105
    %v1493 = vmul.f32 %v886, %v1109
    %v1494 = vmul.f32 %v890, %v923
    %v1495 = vmul.f32 %v890, %v927
    %v1496 = vmul.f32 %v890, %v931
    %v1497 = vmul.f32 %v890, %v935
    %v1498 = vmul.f32 %v890, %v939
    %v1499 = vmul.f32 %v890, %v943
    %v1500 = vmul.f32 %v890, %v947
    %v1501 = vmul.f32 %v890, %v951
    %v1502 = vmul.f32 %v890, %v955
    %v1503 = vmul.f32 %v890, %v959
    %v1504 = vmul.f32 %v890, %v963
    %v1505 = vmul.f32 %v890, %v967
    %v1506 = vmul.f32 %v890, %v971
    %v1507 = vmul.f32 %v890, %v975
    %v1508 = vmul.f32 %v890, %v979
    %v1509 = vmul.f32 %v890, %v983
    %v1510 = vmul.f32 %v890, %v986
    %v1511 = vmul.f32 %v890, %v990
    %v1512 = vmul.f32 %v890, %v994
    %v1513 = vmul.f32 %v890, %v998
    %v1514 = vmul.f32 %v890, %v1002
    %v1515 = vmul.f32 %v890, %v1006
    %v1516 = vmul.f32 %v890, %v1010
    %v1517 = vmul.f32 %v890, %v1014
    %v1518 = vmul.f32 %v890, %v1018
    %v1519 = vmul.f32 %v890, %v1022
    %v1520 = vmul.f32 %v890, %v1026
    %v1521 = vmul.f32 %v890, %v1030
    %v1522 = vmul.f32 %v890, %v1034
    %v1523 = vmul.f32 %v890, %v1038
    %v1524 = vmul.f32 %v890, %v1042
    %v1525 = vmul.f32 %v890, %v1046
    %v1526 = vmul.f32 %v890, %v1049
    %v1527 = vmul.f32 %v890, %v1053
    %v1528 = vmul.f32 %v890, %v1057
    %v1529 = vmul.f32 %v890, %v1061
    %v1530 = vmul.f32 %v890, %v1065
    %v1531 = vmul.f32 %v890, %v1069
    %v1532 = vmul.f32 %v890, %v1073
    %v1533 = vmul.f32 %v890, %v1077
    %v1534 = vmul.f32 %v890, %v1081
    %v1535 = vmul.f32 %v890, %v1085
    %v1536 = vmul.f32 %v890, %v1089
    %v1537 = vmul.f32 %v890, %v1093
    %v1538 = vmul.f32 %v890, %v1097
    %v1539 = vmul.f32 %v890, %v1101
    %v1540 = vmul.f32 %v890, %v1105
    %v1541 = vmul.f32 %v890, %v1109
    %v1542 = vadd.f32 %v475, %v1158
    %v1543 = vadd.f32 %v476, %v1159
    %v1544 = vadd.f32 %v477, %v1160
    %v1545 = vadd.f32 %v478, %v1161
    %v1546 = vadd.f32 %v479, %v1162
    %v1547 = vadd.f32 %v480, %v1163
    %v1548 = vadd.f32 %v481, %v1164
    %v1549 = vadd.f32 %v482, %v1165
    %v1550 = vadd.f32 %v483, %v1166
    %v1551 = vadd.f32 %v484, %v1167
    %v1552 = vadd.f32 %v485, %v1168
    %v1553 = vadd.f32 %v486, %v1169
    %v1554 = vadd.f32 %v487, %v1170
    %v1555 = vadd.f32 %v488, %v1171
    %v1556 = vadd.f32 %v489, %v1172
    %v1557 = vadd.f32 %v490, %v1173
    %v1558 = vadd.f32 %v491, %v1174
    %v1559 = vadd.f32 %v492, %v1175
    %v1560 = vadd.f32 %v493, %v1176
    %v1561 = vadd.f32 %v494, %v1177
    %v1562 = vadd.f32 %v495, %v1178
    %v1563 = vadd.f32 %v496, %v1179
    %v1564 = vadd.f32 %v497, %v1180
    %v1565 = vadd.f32 %v498, %v1181
    %v1566 = vadd.f32 %v499, %v1182
    %v1567 = vadd.f32 %v500, %v1183
    %v1568 = vadd.f32 %v501, %v1184
    %v1569 = vadd.f32 %v502, %v1185
    %v1570 = vadd.f32 %v503, %v1186
    %v1571 = vadd.f32 %v504, %v1187
    %v1572 = vadd.f32 %v505, %v1188
    %v1573 = vadd.f32 %v506, %v1189
    %v1574 = vadd.f32 %v507, %v1190
    %v1575 = vadd.f32 %v508, %v1191
    %v1576 = vadd.f32 %v509, %v1192
    %v1577 = vadd.f32 %v510, %v1193
    %v1578 = vadd.f32 %v511, %v1194
    %v1579 = vadd.f32 %v512, %v1195
    %v1580 = vadd.f32 %v513, %v1196
    %v1581 = vadd.f32 %v514, %v1197
    %v1582 = vadd.f32 %v515, %v1198
    %v1583 = vadd.f32 %v516, %v1199
    %v1584 = vadd.f32 %v517, %v1200
    %v1585 = vadd.f32 %v518, %v1201
    %v1586 = vadd.f32 %v519, %v1202
    %v1587 = vadd.f32 %v520, %v1203
    %v1588 = vadd.f32 %v521, %v1204
    %v1589 = vadd.f32 %v522, %v1205
    %v1590 = vadd.f32 %v523, %v1206
    %v1591 = vadd.f32 %v524, %v1207
    %v1592 = vadd.f32 %v525, %v1208
    %v1593 = vadd.f32 %v526, %v1209
    %v1594 = vadd.f32 %v527, %v1210
    %v1595 = vadd.f32 %v528, %v1211
    %v1596 = vadd.f32 %v529, %v1212
    %v1597 = vadd.f32 %v530, %v1213
    %v1598 = vadd.f32 %v531, %v1214
    %v1599 = vadd.f32 %v532, %v1215
    %v1600 = vadd.f32 %v533, %v1216
    %v1601 = vadd.f32 %v534, %v1217
    %v1602 = vadd.f32 %v535, %v1218
    %v1603 = vadd.f32 %v536, %v1219
    %v1604 = vadd.f32 %v537, %v1220
    %v1605 = vadd.f32 %v538, %v1221
    %v1606 = vadd.f32 %v539, %v1222
    %v1607 = vadd.f32 %v540, %v1223
    %v1608 = vadd.f32 %v541, %v1224
    %v1609 = vadd.f32 %v542, %v1225
    %v1610 = vadd.f32 %v543, %v1226
    %v1611 = vadd.f32 %v544, %v1227
    %v1612 = vadd.f32 %v545, %v1228
    %v1613 = vadd.f32 %v546, %v1229
    %v1614 = vadd.f32 %v547, %v1230
    %v1615 = vadd.f32 %v548, %v1231
    %v1616 = vadd.f32 %v549, %v1232
    %v1617 = vadd.f32 %v550, %v1233
    %v1618 = vadd.f32 %v551, %v1234
    %v1619 = vadd.f32 %v552, %v1235
    %v1620 = vadd.f32 %v553, %v1236
    %v1621 = vadd.f32 %v554, %v1237
    %v1622 = vadd.f32 %v555, %v1238
    %v1623 = vadd.f32 %v556, %v1239
    %v1624 = vadd.f32 %v557, %v1240
    %v1625 = vadd.f32 %v558, %v1241
    %v1626 = vadd.f32 %v559, %v1242
    %v1627 = vadd.f32 %v560, %v1243
    %v1628 = vadd.f32 %v561, %v1244
    %v1629 = vadd.f32 %v562, %v1245
    %v1630 = vadd.f32 %v563, %v1246
    %v1631 = vadd.f32 %v564, %v1247
    %v1632 = vadd.f32 %v565, %v1248
    %v1633 = vadd.f32 %v566, %v1249
    %v1634 = vadd.f32 %v567, %v1250
    %v1635 = vadd.f32 %v568, %v1251
    %v1636 = vadd.f32 %v569, %v1252
    %v1637 = vadd.f32 %v570, %v1253
    %v1638 = vadd.f32 %v571, %v1254
    %v1639 = vadd.f32 %v572, %v1255
    %v1640 = vadd.f32 %v573, %v1256
    %v1641 = vadd.f32 %v574, %v1257
    %v1642 = vadd.f32 %v575, %v1258
    %v1643 = vadd.f32 %v576, %v1259
    %v1644 = vadd.f32 %v577, %v1260
    %v1645 = vadd.f32 %v578, %v1261
    %v1646 = vadd.f32 %v579, %v1262
    %v1647 = vadd.f32 %v580, %v1263
    %v1648 = vadd.f32 %v581, %v1264
    %v1649 = vadd.f32 %v582, %v1265
    %v1650 = vadd.f32 %v583, %v1266
    %v1651 = vadd.f32 %v584, %v1267
    %v1652 = vadd.f32 %v585, %v1268
    %v1653 = vadd.f32 %v586, %v1269
    %v1654 = vadd.f32 %v587, %v1270
    %v1655 = vadd.f32 %v588, %v1271
    %v1656 = vadd.f32 %v589, %v1272
    %v1657 = vadd.f32 %v590, %v1273
    %v1658 = vadd.f32 %v591, %v1274
    %v1659 = vadd.f32 %v592, %v1275
    %v1660 = vadd.f32 %v593, %v1276
    %v1661 = vadd.f32 %v594, %v1277
    %v1662 = vadd.f32 %v595, %v1278
    %v1663 = vadd.f32 %v596, %v1279
    %v1664 = vadd.f32 %v597, %v1280
    %v1665 = vadd.f32 %v598, %v1281
    %v1666 = vadd.f32 %v599, %v1282
    %v1667 = vadd.f32 %v600, %v1283
    %v1668 = vadd.f32 %v601, %v1284
    %v1669 = vadd.f32 %v602, %v1285
    %v1670 = vadd.f32 %v603, %v1286
    %v1671 = vadd.f32 %v604, %v1287
    %v1672 = vadd.f32 %v605, %v1288
    %v1673 = vadd.f32 %v606, %v1289
    %v1674 = vadd.f32 %v607, %v1290
    %v1675 = vadd.f32 %v608, %v1291
    %v1676 = vadd.f32 %v609, %v1292
    %v1677 = vadd.f32 %v610, %v1293
    %v1678 = vadd.f32 %v611, %v1294
    %v1679 = vadd.f32 %v612, %v1295
    %v1680 = vadd.f32 %v613, %v1296
    %v1681 = vadd.f32 %v614, %v1297
    %v1682 = vadd.f32 %v615, %v1298
    %v1683 = vadd.f32 %v616, %v1299
    %v1684 = vadd.f32 %v617, %v1300
    %v1685 = vadd.f32 %v618, %v1301
    %v1686 = vadd.f32 %v619, %v1302
    %v1687 = vadd.f32 %v620, %v1303
    %v1688 = vadd.f32 %v621, %v1304
    %v1689 = vadd.f32 %v622, %v1305
    %v1690 = vadd.f32 %v623, %v1306
    %v1691 = vadd.f32 %v624, %v1307
    %v1692 = vadd.f32 %v625, %v1308
    %v1693 = vadd.f32 %v626, %v1309
    %v1694 = vadd.f32 %v627, %v1310
    %v1695 = vadd.f32 %v628, %v1311
    %v1696 = vadd.f32 %v629, %v1312
    %v1697 = vadd.f32 %v630, %v1313
    %v1698 = vadd.f32 %v631, %v1314
    %v1699 = vadd.f32 %v632, %v1315
    %v1700 = vadd.f32 %v633, %v1316
    %v1701 = vadd.f32 %v634, %v1317
    %v1702 = vadd.f32 %v635, %v1318
    %v1703 = vadd.f32 %v636, %v1319
    %v1704 = vadd.f32 %v637, %v1320
    %v1705 = vadd.f32 %v638, %v1321
    %v1706 = vadd.f32 %v639, %v1322
    %v1707 = vadd.f32 %v640, %v1323
    %v1708 = vadd.f32 %v641, %v1324
    %v1709 = vadd.f32 %v642, %v1325
    %v1710 = vadd.f32 %v643, %v1326
    %v1711 = vadd.f32 %v644, %v1327
    %v1712 = vadd.f32 %v645, %v1328
    %v1713 = vadd.f32 %v646, %v1329
    %v1714 = vadd.f32 %v647, %v1330
    %v1715 = vadd.f32 %v648, %v1331
    %v1716 = vadd.f32 %v649, %v1332
    %v1717 = vadd.f32 %v650, %v1333
    %v1718 = vadd.f32 %v651, %v1334
    %v1719 = vadd.f32 %v652, %v1335
    %v1720 = vadd.f32 %v653, %v1336
    %v1721 = vadd.f32 %v654, %v1337
    %v1722 = vadd.f32 %v655, %v1338
    %v1723 = vadd.f32 %v656, %v1339
    %v1724 = vadd.f32 %v657, %v1340
    %v1725 = vadd.f32 %v658, %v1341
    %v1726 = vadd.f32 %v659, %v1342
    %v1727 = vadd.f32 %v660, %v1343
    %v1728 = vadd.f32 %v661, %v1344
    %v1729 = vadd.f32 %v662, %v1345
    %v1730 = vadd.f32 %v663, %v1346
    %v1731 = vadd.f32 %v664, %v1347
    %v1732 = vadd.f32 %v665, %v1348
    %v1733 = vadd.f32 %v666, %v1349
    %v1734 = vadd.f32 %v667, %v1350
    %v1735 = vadd.f32 %v668, %v1351
    %v1736 = vadd.f32 %v669, %v1352
    %v1737 = vadd.f32 %v670, %v1353
    %v1738 = vadd.f32 %v671, %v1354
    %v1739 = vadd.f32 %v672, %v1355
    %v1740 = vadd.f32 %v673, %v1356
    %v1741 = vadd.f32 %v674, %v1357
    %v1742 = vadd.f32 %v675, %v1358
    %v1743 = vadd.f32 %v676, %v1359
    %v1744 = vadd.f32 %v677, %v1360
    %v1745 = vadd.f32 %v678, %v1361
    %v1746 = vadd.f32 %v679, %v1362
    %v1747 = vadd.f32 %v680, %v1363
    %v1748 = vadd.f32 %v681, %v1364
    %v1749 = vadd.f32 %v682, %v1365
    %v1750 = vadd.f32 %v683, %v1366
    %v1751 = vadd.f32 %v684, %v1367
    %v1752 = vadd.f32 %v685, %v1368
    %v1753 = vadd.f32 %v686, %v1369
    %v1754 = vadd.f32 %v687, %v1370
    %v1755 = vadd.f32 %v688, %v1371
    %v1756 = vadd.f32 %v689, %v1372
    %v1757 = vadd.f32 %v690, %v1373
    %v1758 = vadd.f32 %v691, %v1374
    %v1759 = vadd.f32 %v692, %v1375
    %v1760 = vadd.f32 %v693, %v1376
    %v1761 = vadd.f32 %v694, %v1377
    %v1762 = vadd.f32 %v695, %v1378
    %v1763 = vadd.f32 %v696, %v1379
    %v1764 = vadd.f32 %v697, %v1380
    %v1765 = vadd.f32 %v698, %v1381
    %v1766 = vadd.f32 %v699, %v1382
    %v1767 = vadd.f32 %v700, %v1383
    %v1768 = vadd.f32 %v701, %v1384
    %v1769 = vadd.f32 %v702, %v1385
    %v1770 = vadd.f32 %v703, %v1386
    %v1771 = vadd.f32 %v704, %v1387
    %v1772 = vadd.f32 %v705, %v1388
    %v1773 = vadd.f32 %v706, %v1389
    %v1774 = vadd.f32 %v707, %v1390
    %v1775 = vadd.f32 %v708, %v1391
    %v1776 = vadd.f32 %v709, %v1392
    %v1777 = vadd.f32 %v710, %v1393
    %v1778 = vadd.f32 %v711, %v1394
    %v1779 = vadd.f32 %v712, %v1395
    %v1780 = vadd.f32 %v713, %v1396
    %v1781 = vadd.f32 %v714, %v1397
    %v1782 = vadd.f32 %v715, %v1398
    %v1783 = vadd.f32 %v716, %v1399
    %v1784 = vadd.f32 %v717, %v1400
    %v1785 = vadd.f32 %v718, %v1401
    %v1786 = vadd.f32 %v719, %v1402
    %v1787 = vadd.f32 %v720, %v1403
    %v1788 = vadd.f32 %v721, %v1404
    %v1789 = vadd.f32 %v722, %v1405
    %v1790 = vadd.f32 %v723, %v1406
    %v1791 = vadd.f32 %v724, %v1407
    %v1792 = vadd.f32 %v725, %v1408
    %v1793 = vadd.f32 %v726, %v1409
    %v1794 = vadd.f32 %v727, %v1410
    %v1795 = vadd.f32 %v728, %v1411
    %v1796 = vadd.f32 %v729, %v1412
    %v1797 = vadd.f32 %v730, %v1413
    %v1798 = vadd.f32 %v731, %v1414
    %v1799 = vadd.f32 %v732, %v1415
    %v1800 = vadd.f32 %v733, %v1416
    %v1801 = vadd.f32 %v734, %v1417
    %v1802 = vadd.f32 %v735, %v1418
    %v1803 = vadd.f32 %v736, %v1419
    %v1804 = vadd.f32 %v737, %v1420
    %v1805 = vadd.f32 %v738, %v1421
    %v1806 = vadd.f32 %v739, %v1422
    %v1807 = vadd.f32 %v740, %v1423
    %v1808 = vadd.f32 %v741, %v1424
    %v1809 = vadd.f32 %v742, %v1425
    %v1810 = vadd.f32 %v743, %v1426
    %v1811 = vadd.f32 %v744, %v1427
    %v1812 = vadd.f32 %v745, %v1428
    %v1813 = vadd.f32 %v746, %v1429
    %v1814 = vadd.f32 %v747, %v1430
    %v1815 = vadd.f32 %v748, %v1431
    %v1816 = vadd.f32 %v749, %v1432
    %v1817 = vadd.f32 %v750, %v1433
    %v1818 = vadd.f32 %v751, %v1434
    %v1819 = vadd.f32 %v752, %v1435
    %v1820 = vadd.f32 %v753, %v1436
    %v1821 = vadd.f32 %v754, %v1437
    %v1822 = vadd.f32 %v755, %v1438
    %v1823 = vadd.f32 %v756, %v1439
    %v1824 = vadd.f32 %v757, %v1440
    %v1825 = vadd.f32 %v758, %v1441
    %v1826 = vadd.f32 %v759, %v1442
    %v1827 = vadd.f32 %v760, %v1443
    %v1828 = vadd.f32 %v761, %v1444
    %v1829 = vadd.f32 %v762, %v1445
    %v1830 = vadd.f32 %v763, %v1446
    %v1831 = vadd.f32 %v764, %v1447
    %v1832 = vadd.f32 %v765, %v1448
    %v1833 = vadd.f32 %v766, %v1449
    %v1834 = vadd.f32 %v767, %v1450
    %v1835 = vadd.f32 %v768, %v1451
    %v1836 = vadd.f32 %v769, %v1452
    %v1837 = vadd.f32 %v770, %v1453
    %v1838 = vadd.f32 %v771, %v1454
    %v1839 = vadd.f32 %v772, %v1455
    %v1840 = vadd.f32 %v773, %v1456
    %v1841 = vadd.f32 %v774, %v1457
    %v1842 = vadd.f32 %v775, %v1458
    %v1843 = vadd.f32 %v776, %v1459
    %v1844 = vadd.f32 %v777, %v1460
    %v1845 = vadd.f32 %v778, %v1461
    %v1846 = vadd.f32 %v779, %v1462
    %v1847 = vadd.f32 %v780, %v1463
    %v1848 = vadd.f32 %v781, %v1464
    %v1849 = vadd.f32 %v782, %v1465
    %v1850 = vadd.f32 %v783, %v1466
    %v1851 = vadd.f32 %v784, %v1467
    %v1852 = vadd.f32 %v785, %v1468
    %v1853 = vadd.f32 %v786, %v1469
    %v1854 = vadd.f32 %v787, %v1470
    %v1855 = vadd.f32 %v788, %v1471
    %v1856 = vadd.f32 %v789, %v1472
    %v1857 = vadd.f32 %v790, %v1473
    %v1858 = vadd.f32 %v791, %v1474
    %v1859 = vadd.f32 %v792, %v1475
    %v1860 = vadd.f32 %v793, %v1476
    %v1861 = vadd.f32 %v794, %v1477
    %v1862 = vadd.f32 %v795, %v1478
    %v1863 = vadd.f32 %v796, %v1479
    %v1864 = vadd.f32 %v797, %v1480
    %v1865 = vadd.f32 %v798, %v1481
    %v1866 = vadd.f32 %v799, %v1482
    %v1867 = vadd.f32 %v800, %v1483
    %v1868 = vadd.f32 %v801, %v1484
    %v1869 = vadd.f32 %v802, %v1485
    %v1870 = vadd.f32 %v803, %v1486
    %v1871 = vadd.f32 %v804, %v1487
    %v1872 = vadd.f32 %v805, %v1488
    %v1873 = vadd.f32 %v806, %v1489
    %v1874 = vadd.f32 %v807, %v1490
    %v1875 = vadd.f32 %v808, %v1491
    %v1876 = vadd.f32 %v809, %v1492
    %v1877 = vadd.f32 %v810, %v1493
    %v1878 = vadd.f32 %v811, %v1494
    %v1879 = vadd.f32 %v812, %v1495
    %v1880 = vadd.f32 %v813, %v1496
    %v1881 = vadd.f32 %v814, %v1497
    %v1882 = vadd.f32 %v815, %v1498
    %v1883 = vadd.f32 %v816, %v1499
    %v1884 = vadd.f32 %v817, %v1500
    %v1885 = vadd.f32 %v818, %v1501
    %v1886 = vadd.f32 %v819, %v1502
    %v1887 = vadd.f32 %v820, %v1503
    %v1888 = vadd.f32 %v821, %v1504
    %v1889 = vadd.f32 %v822, %v1505
    %v1890 = vadd.f32 %v823, %v1506
    %v1891 = vadd.f32 %v824, %v1507
    %v1892 = vadd.f32 %v825, %v1508
    %v1893 = vadd.f32 %v826, %v1509
    %v1894 = vadd.f32 %v827, %v1510
    %v1895 = vadd.f32 %v828, %v1511
    %v1896 = vadd.f32 %v829, %v1512
    %v1897 = vadd.f32 %v830, %v1513
    %v1898 = vadd.f32 %v831, %v1514
    %v1899 = vadd.f32 %v832, %v1515
    %v1900 = vadd.f32 %v833, %v1516
    %v1901 = vadd.f32 %v834, %v1517
    %v1902 = vadd.f32 %v835, %v1518
    %v1903 = vadd.f32 %v836, %v1519
    %v1904 = vadd.f32 %v837, %v1520
    %v1905 = vadd.f32 %v838, %v1521
    %v1906 = vadd.f32 %v839, %v1522
    %v1907 = vadd.f32 %v840, %v1523
    %v1908 = vadd.f32 %v841, %v1524
    %v1909 = vadd.f32 %v842, %v1525
    %v1910 = vadd.f32 %v843, %v1526
    %v1911 = vadd.f32 %v844, %v1527
    %v1912 = vadd.f32 %v845, %v1528
    %v1913 = vadd.f32 %v846, %v1529
    %v1914 = vadd.f32 %v847, %v1530
    %v1915 = vadd.f32 %v848, %v1531
    %v1916 = vadd.f32 %v849, %v1532
    %v1917 = vadd.f32 %v850, %v1533
    %v1918 = vadd.f32 %v851, %v1534
    %v1919 = vadd.f32 %v852, %v1535
    %v1920 = vadd.f32 %v853, %v1536
    %v1921 = vadd.f32 %v854, %v1537
    %v1922 = vadd.f32 %v855, %v1538
    %v1923 = vadd.f32 %v856, %v1539
    %v1924 = vadd.f32 %v857, %v1540
    %v1925 = vadd.f32 %v858, %v1541
    %v1926 = vlaneseq
    %v1927 = vshrl.u32 %v1926, 7
    %v1928 = vsub.s32 2, %v1927
    %v1929 = vrot.slane %v163, %v1928
    %v1930 = vlaneseq
    %v1931 = vshrl.u32 %v1930, 7
    %v1932 = vsub.s32 2, %v1931
    %v1933 = vrot.slane %v164, %v1932
    %v1934 = vlaneseq
    %v1935 = vshrl.u32 %v1934, 7
    %v1936 = vsub.s32 2, %v1935
    %v1937 = vrot.slane %v165, %v1936
    %v1938 = vlaneseq
    %v1939 = vshrl.u32 %v1938, 7
    %v1940 = vsub.s32 2, %v1939
    %v1941 = vrot.slane %v166, %v1940
    %v1942 = vlaneseq
    %v1943 = vshrl.u32 %v1942, 7
    %v1944 = vsub.s32 2, %v1943
    %v1945 = vrot.slane %v167, %v1944
    %v1946 = vlaneseq
    %v1947 = vshrl.u32 %v1946, 7
    %v1948 = vsub.s32 2, %v1947
    %v1949 = vrot.slane %v168, %v1948
    %v1950 = vlaneseq
    %v1951 = vshrl.u32 %v1950, 7
    %v1952 = vsub.s32 2, %v1951
    %v1953 = vrot.slane %v169, %v1952
    %v1954 = vlaneseq
    %v1955 = vshrl.u32 %v1954, 7
    %v1956 = vsub.s32 2, %v1955
    %v1957 = vrot.slane %v170, %v1956
    %v1958 = vlaneseq
    %v1959 = vshrl.u32 %v1958, 7
    %v1960 = vsub.s32 2, %v1959
    %v1961 = vrot.slane %v172, %v1960
    %v1962 = vlaneseq
    %v1963 = vshrl.u32 %v1962, 7
    %v1964 = vsub.s32 6, %v1963
    %v1965 = vrot.slane %v172, %v1964
    %v1966 = vlaneseq
    %v1967 = vshrl.u32 %v1966, 7
    %v1968 = vsub.s32 2, %v1967
    %v1969 = vrot.slane %v173, %v1968
    %v1973 = vlaneseq
    %v1974 = vshrl.u32 %v1973, 7
    %v1975 = vsub.s32 2, %v1974
    %v1976 = vrot.slane %v1961, %v1975
    %v1977 = vlaneseq
    %v1978 = vshrl.u32 %v1977, 7
    %v1979 = vsub.s32 2, %v1978
    %v1980 = vrot.slane %v1965, %v1979
    %v1981 = vlaneseq
    %v1982 = vshrl.u32 %v1981, 7
    %v1983 = vsub.s32 2, %v1982
    %v1984 = vrot.slane %v1969, %v1983
    %1989 = vbcast.lane.b32.xlu0 %v1976, 256
    %v1990 = vpop.permute.xlu0 %1989
    %s1992 = sor.u32 256, 8
    %1993 = vbcast.lane.b32.xlu0 %v1976, %s1992
    %v1994 = vpop.permute.xlu0 %1993
    %s1996 = sor.u32 256, 16
    %1997 = vbcast.lane.b32.xlu0 %v1976, %s1996
    %v1998 = vpop.permute.xlu0 %1997
    %s2000 = sor.u32 256, 24
    %2001 = vbcast.lane.b32.xlu0 %v1976, %s2000
    %v2002 = vpop.permute.xlu0 %2001
    %s2004 = sor.u32 256, 32
    %2005 = vbcast.lane.b32.xlu0 %v1976, %s2004
    %v2006 = vpop.permute.xlu0 %2005
    %s2008 = sor.u32 256, 40
    %2009 = vbcast.lane.b32.xlu0 %v1976, %s2008
    %v2010 = vpop.permute.xlu0 %2009
    %s2012 = sor.u32 256, 48
    %2013 = vbcast.lane.b32.xlu0 %v1976, %s2012
    %v2014 = vpop.permute.xlu0 %2013
    %s2016 = sor.u32 256, 56
    %2017 = vbcast.lane.b32.xlu0 %v1976, %s2016
    %v2018 = vpop.permute.xlu0 %2017
    %s2020 = sor.u32 256, 64
    %2021 = vbcast.lane.b32.xlu0 %v1976, %s2020
    %v2022 = vpop.permute.xlu0 %2021
    %s2024 = sor.u32 256, 72
    %2025 = vbcast.lane.b32.xlu0 %v1976, %s2024
    %v2026 = vpop.permute.xlu0 %2025
    %s2028 = sor.u32 256, 80
    %2029 = vbcast.lane.b32.xlu0 %v1976, %s2028
    %v2030 = vpop.permute.xlu0 %2029
    %s2032 = sor.u32 256, 88
    %2033 = vbcast.lane.b32.xlu0 %v1976, %s2032
    %v2034 = vpop.permute.xlu0 %2033
    %s2036 = sor.u32 256, 96
    %2037 = vbcast.lane.b32.xlu0 %v1976, %s2036
    %v2038 = vpop.permute.xlu0 %2037
    %s2040 = sor.u32 256, 104
    %2041 = vbcast.lane.b32.xlu0 %v1976, %s2040
    %v2042 = vpop.permute.xlu0 %2041
    %s2044 = sor.u32 256, 112
    %2045 = vbcast.lane.b32.xlu0 %v1976, %s2044
    %v2046 = vpop.permute.xlu0 %2045
    %s2048 = sor.u32 256, 120
    %2049 = vbcast.lane.b32.xlu0 %v1976, %s2048
    %v2050 = vpop.permute.xlu0 %2049
    %2052 = vbcast.lane.b32.xlu0 %v1980, 256
    %v2053 = vpop.permute.xlu0 %2052
    %s2055 = sor.u32 256, 8
    %2056 = vbcast.lane.b32.xlu0 %v1980, %s2055
    %v2057 = vpop.permute.xlu0 %2056
    %s2059 = sor.u32 256, 16
    %2060 = vbcast.lane.b32.xlu0 %v1980, %s2059
    %v2061 = vpop.permute.xlu0 %2060
    %s2063 = sor.u32 256, 24
    %2064 = vbcast.lane.b32.xlu0 %v1980, %s2063
    %v2065 = vpop.permute.xlu0 %2064
    %s2067 = sor.u32 256, 32
    %2068 = vbcast.lane.b32.xlu0 %v1980, %s2067
    %v2069 = vpop.permute.xlu0 %2068
    %s2071 = sor.u32 256, 40
    %2072 = vbcast.lane.b32.xlu0 %v1980, %s2071
    %v2073 = vpop.permute.xlu0 %2072
    %s2075 = sor.u32 256, 48
    %2076 = vbcast.lane.b32.xlu0 %v1980, %s2075
    %v2077 = vpop.permute.xlu0 %2076
    %s2079 = sor.u32 256, 56
    %2080 = vbcast.lane.b32.xlu0 %v1980, %s2079
    %v2081 = vpop.permute.xlu0 %2080
    %s2083 = sor.u32 256, 64
    %2084 = vbcast.lane.b32.xlu0 %v1980, %s2083
    %v2085 = vpop.permute.xlu0 %2084
    %s2087 = sor.u32 256, 72
    %2088 = vbcast.lane.b32.xlu0 %v1980, %s2087
    %v2089 = vpop.permute.xlu0 %2088
    %s2091 = sor.u32 256, 80
    %2092 = vbcast.lane.b32.xlu0 %v1980, %s2091
    %v2093 = vpop.permute.xlu0 %2092
    %s2095 = sor.u32 256, 88
    %2096 = vbcast.lane.b32.xlu0 %v1980, %s2095
    %v2097 = vpop.permute.xlu0 %2096
    %s2099 = sor.u32 256, 96
    %2100 = vbcast.lane.b32.xlu0 %v1980, %s2099
    %v2101 = vpop.permute.xlu0 %2100
    %s2103 = sor.u32 256, 104
    %2104 = vbcast.lane.b32.xlu0 %v1980, %s2103
    %v2105 = vpop.permute.xlu0 %2104
    %s2107 = sor.u32 256, 112
    %2108 = vbcast.lane.b32.xlu0 %v1980, %s2107
    %v2109 = vpop.permute.xlu0 %2108
    %s2111 = sor.u32 256, 120
    %2112 = vbcast.lane.b32.xlu0 %v1980, %s2111
    %v2113 = vpop.permute.xlu0 %2112
    %2115 = vbcast.lane.b32.xlu0 %v1984, 256
    %v2116 = vpop.permute.xlu0 %2115
    %s2118 = sor.u32 256, 8
    %2119 = vbcast.lane.b32.xlu0 %v1984, %s2118
    %v2120 = vpop.permute.xlu0 %2119
    %s2122 = sor.u32 256, 16
    %2123 = vbcast.lane.b32.xlu0 %v1984, %s2122
    %v2124 = vpop.permute.xlu0 %2123
    %s2126 = sor.u32 256, 24
    %2127 = vbcast.lane.b32.xlu0 %v1984, %s2126
    %v2128 = vpop.permute.xlu0 %2127
    %s2130 = sor.u32 256, 32
    %2131 = vbcast.lane.b32.xlu0 %v1984, %s2130
    %v2132 = vpop.permute.xlu0 %2131
    %s2134 = sor.u32 256, 40
    %2135 = vbcast.lane.b32.xlu0 %v1984, %s2134
    %v2136 = vpop.permute.xlu0 %2135
    %s2138 = sor.u32 256, 48
    %2139 = vbcast.lane.b32.xlu0 %v1984, %s2138
    %v2140 = vpop.permute.xlu0 %2139
    %s2142 = sor.u32 256, 56
    %2143 = vbcast.lane.b32.xlu0 %v1984, %s2142
    %v2144 = vpop.permute.xlu0 %2143
    %s2146 = sor.u32 256, 64
    %2147 = vbcast.lane.b32.xlu0 %v1984, %s2146
    %v2148 = vpop.permute.xlu0 %2147
    %s2150 = sor.u32 256, 72
    %2151 = vbcast.lane.b32.xlu0 %v1984, %s2150
    %v2152 = vpop.permute.xlu0 %2151
    %s2154 = sor.u32 256, 80
    %2155 = vbcast.lane.b32.xlu0 %v1984, %s2154
    %v2156 = vpop.permute.xlu0 %2155
    %s2158 = sor.u32 256, 88
    %2159 = vbcast.lane.b32.xlu0 %v1984, %s2158
    %v2160 = vpop.permute.xlu0 %2159
    %s2162 = sor.u32 256, 96
    %2163 = vbcast.lane.b32.xlu0 %v1984, %s2162
    %v2164 = vpop.permute.xlu0 %2163
    %s2166 = sor.u32 256, 104
    %2167 = vbcast.lane.b32.xlu0 %v1984, %s2166
    %v2168 = vpop.permute.xlu0 %2167
    %s2170 = sor.u32 256, 112
    %2171 = vbcast.lane.b32.xlu0 %v1984, %s2170
    %v2172 = vpop.permute.xlu0 %2171
    %s2174 = sor.u32 256, 120
    %2175 = vbcast.lane.b32.xlu0 %v1984, %s2174
    %v2176 = vpop.permute.xlu0 %2175
    %v2225 = vmul.f32 %v1929, %v1990
    %v2226 = vmul.f32 %v1929, %v1994
    %v2227 = vmul.f32 %v1929, %v1998
    %v2228 = vmul.f32 %v1929, %v2002
    %v2229 = vmul.f32 %v1929, %v2006
    %v2230 = vmul.f32 %v1929, %v2010
    %v2231 = vmul.f32 %v1929, %v2014
    %v2232 = vmul.f32 %v1929, %v2018
    %v2233 = vmul.f32 %v1929, %v2022
    %v2234 = vmul.f32 %v1929, %v2026
    %v2235 = vmul.f32 %v1929, %v2030
    %v2236 = vmul.f32 %v1929, %v2034
    %v2237 = vmul.f32 %v1929, %v2038
    %v2238 = vmul.f32 %v1929, %v2042
    %v2239 = vmul.f32 %v1929, %v2046
    %v2240 = vmul.f32 %v1929, %v2050
    %v2241 = vmul.f32 %v1929, %v2053
    %v2242 = vmul.f32 %v1929, %v2057
    %v2243 = vmul.f32 %v1929, %v2061
    %v2244 = vmul.f32 %v1929, %v2065
    %v2245 = vmul.f32 %v1929, %v2069
    %v2246 = vmul.f32 %v1929, %v2073
    %v2247 = vmul.f32 %v1929, %v2077
    %v2248 = vmul.f32 %v1929, %v2081
    %v2249 = vmul.f32 %v1929, %v2085
    %v2250 = vmul.f32 %v1929, %v2089
    %v2251 = vmul.f32 %v1929, %v2093
    %v2252 = vmul.f32 %v1929, %v2097
    %v2253 = vmul.f32 %v1929, %v2101
    %v2254 = vmul.f32 %v1929, %v2105
    %v2255 = vmul.f32 %v1929, %v2109
    %v2256 = vmul.f32 %v1929, %v2113
    %v2257 = vmul.f32 %v1929, %v2116
    %v2258 = vmul.f32 %v1929, %v2120
    %v2259 = vmul.f32 %v1929, %v2124
    %v2260 = vmul.f32 %v1929, %v2128
    %v2261 = vmul.f32 %v1929, %v2132
    %v2262 = vmul.f32 %v1929, %v2136
    %v2263 = vmul.f32 %v1929, %v2140
    %v2264 = vmul.f32 %v1929, %v2144
    %v2265 = vmul.f32 %v1929, %v2148
    %v2266 = vmul.f32 %v1929, %v2152
    %v2267 = vmul.f32 %v1929, %v2156
    %v2268 = vmul.f32 %v1929, %v2160
    %v2269 = vmul.f32 %v1929, %v2164
    %v2270 = vmul.f32 %v1929, %v2168
    %v2271 = vmul.f32 %v1929, %v2172
    %v2272 = vmul.f32 %v1929, %v2176
    %v2273 = vmul.f32 %v1933, %v1990
    %v2274 = vmul.f32 %v1933, %v1994
    %v2275 = vmul.f32 %v1933, %v1998
    %v2276 = vmul.f32 %v1933, %v2002
    %v2277 = vmul.f32 %v1933, %v2006
    %v2278 = vmul.f32 %v1933, %v2010
    %v2279 = vmul.f32 %v1933, %v2014
    %v2280 = vmul.f32 %v1933, %v2018
    %v2281 = vmul.f32 %v1933, %v2022
    %v2282 = vmul.f32 %v1933, %v2026
    %v2283 = vmul.f32 %v1933, %v2030
    %v2284 = vmul.f32 %v1933, %v2034
    %v2285 = vmul.f32 %v1933, %v2038
    %v2286 = vmul.f32 %v1933, %v2042
    %v2287 = vmul.f32 %v1933, %v2046
    %v2288 = vmul.f32 %v1933, %v2050
    %v2289 = vmul.f32 %v1933, %v2053
    %v2290 = vmul.f32 %v1933, %v2057
    %v2291 = vmul.f32 %v1933, %v2061
    %v2292 = vmul.f32 %v1933, %v2065
    %v2293 = vmul.f32 %v1933, %v2069
    %v2294 = vmul.f32 %v1933, %v2073
    %v2295 = vmul.f32 %v1933, %v2077
    %v2296 = vmul.f32 %v1933, %v2081
    %v2297 = vmul.f32 %v1933, %v2085
    %v2298 = vmul.f32 %v1933, %v2089
    %v2299 = vmul.f32 %v1933, %v2093
    %v2300 = vmul.f32 %v1933, %v2097
    %v2301 = vmul.f32 %v1933, %v2101
    %v2302 = vmul.f32 %v1933, %v2105
    %v2303 = vmul.f32 %v1933, %v2109
    %v2304 = vmul.f32 %v1933, %v2113
    %v2305 = vmul.f32 %v1933, %v2116
    %v2306 = vmul.f32 %v1933, %v2120
    %v2307 = vmul.f32 %v1933, %v2124
    %v2308 = vmul.f32 %v1933, %v2128
    %v2309 = vmul.f32 %v1933, %v2132
    %v2310 = vmul.f32 %v1933, %v2136
    %v2311 = vmul.f32 %v1933, %v2140
    %v2312 = vmul.f32 %v1933, %v2144
    %v2313 = vmul.f32 %v1933, %v2148
    %v2314 = vmul.f32 %v1933, %v2152
    %v2315 = vmul.f32 %v1933, %v2156
    %v2316 = vmul.f32 %v1933, %v2160
    %v2317 = vmul.f32 %v1933, %v2164
    %v2318 = vmul.f32 %v1933, %v2168
    %v2319 = vmul.f32 %v1933, %v2172
    %v2320 = vmul.f32 %v1933, %v2176
    %v2321 = vmul.f32 %v1937, %v1990
    %v2322 = vmul.f32 %v1937, %v1994
    %v2323 = vmul.f32 %v1937, %v1998
    %v2324 = vmul.f32 %v1937, %v2002
    %v2325 = vmul.f32 %v1937, %v2006
    %v2326 = vmul.f32 %v1937, %v2010
    %v2327 = vmul.f32 %v1937, %v2014
    %v2328 = vmul.f32 %v1937, %v2018
    %v2329 = vmul.f32 %v1937, %v2022
    %v2330 = vmul.f32 %v1937, %v2026
    %v2331 = vmul.f32 %v1937, %v2030
    %v2332 = vmul.f32 %v1937, %v2034
    %v2333 = vmul.f32 %v1937, %v2038
    %v2334 = vmul.f32 %v1937, %v2042
    %v2335 = vmul.f32 %v1937, %v2046
    %v2336 = vmul.f32 %v1937, %v2050
    %v2337 = vmul.f32 %v1937, %v2053
    %v2338 = vmul.f32 %v1937, %v2057
    %v2339 = vmul.f32 %v1937, %v2061
    %v2340 = vmul.f32 %v1937, %v2065
    %v2341 = vmul.f32 %v1937, %v2069
    %v2342 = vmul.f32 %v1937, %v2073
    %v2343 = vmul.f32 %v1937, %v2077
    %v2344 = vmul.f32 %v1937, %v2081
    %v2345 = vmul.f32 %v1937, %v2085
    %v2346 = vmul.f32 %v1937, %v2089
    %v2347 = vmul.f32 %v1937, %v2093
    %v2348 = vmul.f32 %v1937, %v2097
    %v2349 = vmul.f32 %v1937, %v2101
    %v2350 = vmul.f32 %v1937, %v2105
    %v2351 = vmul.f32 %v1937, %v2109
    %v2352 = vmul.f32 %v1937, %v2113
    %v2353 = vmul.f32 %v1937, %v2116
    %v2354 = vmul.f32 %v1937, %v2120
    %v2355 = vmul.f32 %v1937, %v2124
    %v2356 = vmul.f32 %v1937, %v2128
    %v2357 = vmul.f32 %v1937, %v2132
    %v2358 = vmul.f32 %v1937, %v2136
    %v2359 = vmul.f32 %v1937, %v2140
    %v2360 = vmul.f32 %v1937, %v2144
    %v2361 = vmul.f32 %v1937, %v2148
    %v2362 = vmul.f32 %v1937, %v2152
    %v2363 = vmul.f32 %v1937, %v2156
    %v2364 = vmul.f32 %v1937, %v2160
    %v2365 = vmul.f32 %v1937, %v2164
    %v2366 = vmul.f32 %v1937, %v2168
    %v2367 = vmul.f32 %v1937, %v2172
    %v2368 = vmul.f32 %v1937, %v2176
    %v2369 = vmul.f32 %v1941, %v1990
    %v2370 = vmul.f32 %v1941, %v1994
    %v2371 = vmul.f32 %v1941, %v1998
    %v2372 = vmul.f32 %v1941, %v2002
    %v2373 = vmul.f32 %v1941, %v2006
    %v2374 = vmul.f32 %v1941, %v2010
    %v2375 = vmul.f32 %v1941, %v2014
    %v2376 = vmul.f32 %v1941, %v2018
    %v2377 = vmul.f32 %v1941, %v2022
    %v2378 = vmul.f32 %v1941, %v2026
    %v2379 = vmul.f32 %v1941, %v2030
    %v2380 = vmul.f32 %v1941, %v2034
    %v2381 = vmul.f32 %v1941, %v2038
    %v2382 = vmul.f32 %v1941, %v2042
    %v2383 = vmul.f32 %v1941, %v2046
    %v2384 = vmul.f32 %v1941, %v2050
    %v2385 = vmul.f32 %v1941, %v2053
    %v2386 = vmul.f32 %v1941, %v2057
    %v2387 = vmul.f32 %v1941, %v2061
    %v2388 = vmul.f32 %v1941, %v2065
    %v2389 = vmul.f32 %v1941, %v2069
    %v2390 = vmul.f32 %v1941, %v2073
    %v2391 = vmul.f32 %v1941, %v2077
    %v2392 = vmul.f32 %v1941, %v2081
    %v2393 = vmul.f32 %v1941, %v2085
    %v2394 = vmul.f32 %v1941, %v2089
    %v2395 = vmul.f32 %v1941, %v2093
    %v2396 = vmul.f32 %v1941, %v2097
    %v2397 = vmul.f32 %v1941, %v2101
    %v2398 = vmul.f32 %v1941, %v2105
    %v2399 = vmul.f32 %v1941, %v2109
    %v2400 = vmul.f32 %v1941, %v2113
    %v2401 = vmul.f32 %v1941, %v2116
    %v2402 = vmul.f32 %v1941, %v2120
    %v2403 = vmul.f32 %v1941, %v2124
    %v2404 = vmul.f32 %v1941, %v2128
    %v2405 = vmul.f32 %v1941, %v2132
    %v2406 = vmul.f32 %v1941, %v2136
    %v2407 = vmul.f32 %v1941, %v2140
    %v2408 = vmul.f32 %v1941, %v2144
    %v2409 = vmul.f32 %v1941, %v2148
    %v2410 = vmul.f32 %v1941, %v2152
    %v2411 = vmul.f32 %v1941, %v2156
    %v2412 = vmul.f32 %v1941, %v2160
    %v2413 = vmul.f32 %v1941, %v2164
    %v2414 = vmul.f32 %v1941, %v2168
    %v2415 = vmul.f32 %v1941, %v2172
    %v2416 = vmul.f32 %v1941, %v2176
    %v2417 = vmul.f32 %v1945, %v1990
    %v2418 = vmul.f32 %v1945, %v1994
    %v2419 = vmul.f32 %v1945, %v1998
    %v2420 = vmul.f32 %v1945, %v2002
    %v2421 = vmul.f32 %v1945, %v2006
    %v2422 = vmul.f32 %v1945, %v2010
    %v2423 = vmul.f32 %v1945, %v2014
    %v2424 = vmul.f32 %v1945, %v2018
    %v2425 = vmul.f32 %v1945, %v2022
    %v2426 = vmul.f32 %v1945, %v2026
    %v2427 = vmul.f32 %v1945, %v2030
    %v2428 = vmul.f32 %v1945, %v2034
    %v2429 = vmul.f32 %v1945, %v2038
    %v2430 = vmul.f32 %v1945, %v2042
    %v2431 = vmul.f32 %v1945, %v2046
    %v2432 = vmul.f32 %v1945, %v2050
    %v2433 = vmul.f32 %v1945, %v2053
    %v2434 = vmul.f32 %v1945, %v2057
    %v2435 = vmul.f32 %v1945, %v2061
    %v2436 = vmul.f32 %v1945, %v2065
    %v2437 = vmul.f32 %v1945, %v2069
    %v2438 = vmul.f32 %v1945, %v2073
    %v2439 = vmul.f32 %v1945, %v2077
    %v2440 = vmul.f32 %v1945, %v2081
    %v2441 = vmul.f32 %v1945, %v2085
    %v2442 = vmul.f32 %v1945, %v2089
    %v2443 = vmul.f32 %v1945, %v2093
    %v2444 = vmul.f32 %v1945, %v2097
    %v2445 = vmul.f32 %v1945, %v2101
    %v2446 = vmul.f32 %v1945, %v2105
    %v2447 = vmul.f32 %v1945, %v2109
    %v2448 = vmul.f32 %v1945, %v2113
    %v2449 = vmul.f32 %v1945, %v2116
    %v2450 = vmul.f32 %v1945, %v2120
    %v2451 = vmul.f32 %v1945, %v2124
    %v2452 = vmul.f32 %v1945, %v2128
    %v2453 = vmul.f32 %v1945, %v2132
    %v2454 = vmul.f32 %v1945, %v2136
    %v2455 = vmul.f32 %v1945, %v2140
    %v2456 = vmul.f32 %v1945, %v2144
    %v2457 = vmul.f32 %v1945, %v2148
    %v2458 = vmul.f32 %v1945, %v2152
    %v2459 = vmul.f32 %v1945, %v2156
    %v2460 = vmul.f32 %v1945, %v2160
    %v2461 = vmul.f32 %v1945, %v2164
    %v2462 = vmul.f32 %v1945, %v2168
    %v2463 = vmul.f32 %v1945, %v2172
    %v2464 = vmul.f32 %v1945, %v2176
    %v2465 = vmul.f32 %v1949, %v1990
    %v2466 = vmul.f32 %v1949, %v1994
    %v2467 = vmul.f32 %v1949, %v1998
    %v2468 = vmul.f32 %v1949, %v2002
    %v2469 = vmul.f32 %v1949, %v2006
    %v2470 = vmul.f32 %v1949, %v2010
    %v2471 = vmul.f32 %v1949, %v2014
    %v2472 = vmul.f32 %v1949, %v2018
    %v2473 = vmul.f32 %v1949, %v2022
    %v2474 = vmul.f32 %v1949, %v2026
    %v2475 = vmul.f32 %v1949, %v2030
    %v2476 = vmul.f32 %v1949, %v2034
    %v2477 = vmul.f32 %v1949, %v2038
    %v2478 = vmul.f32 %v1949, %v2042
    %v2479 = vmul.f32 %v1949, %v2046
    %v2480 = vmul.f32 %v1949, %v2050
    %v2481 = vmul.f32 %v1949, %v2053
    %v2482 = vmul.f32 %v1949, %v2057
    %v2483 = vmul.f32 %v1949, %v2061
    %v2484 = vmul.f32 %v1949, %v2065
    %v2485 = vmul.f32 %v1949, %v2069
    %v2486 = vmul.f32 %v1949, %v2073
    %v2487 = vmul.f32 %v1949, %v2077
    %v2488 = vmul.f32 %v1949, %v2081
    %v2489 = vmul.f32 %v1949, %v2085
    %v2490 = vmul.f32 %v1949, %v2089
    %v2491 = vmul.f32 %v1949, %v2093
    %v2492 = vmul.f32 %v1949, %v2097
    %v2493 = vmul.f32 %v1949, %v2101
    %v2494 = vmul.f32 %v1949, %v2105
    %v2495 = vmul.f32 %v1949, %v2109
    %v2496 = vmul.f32 %v1949, %v2113
    %v2497 = vmul.f32 %v1949, %v2116
    %v2498 = vmul.f32 %v1949, %v2120
    %v2499 = vmul.f32 %v1949, %v2124
    %v2500 = vmul.f32 %v1949, %v2128
    %v2501 = vmul.f32 %v1949, %v2132
    %v2502 = vmul.f32 %v1949, %v2136
    %v2503 = vmul.f32 %v1949, %v2140
    %v2504 = vmul.f32 %v1949, %v2144
    %v2505 = vmul.f32 %v1949, %v2148
    %v2506 = vmul.f32 %v1949, %v2152
    %v2507 = vmul.f32 %v1949, %v2156
    %v2508 = vmul.f32 %v1949, %v2160
    %v2509 = vmul.f32 %v1949, %v2164
    %v2510 = vmul.f32 %v1949, %v2168
    %v2511 = vmul.f32 %v1949, %v2172
    %v2512 = vmul.f32 %v1949, %v2176
    %v2513 = vmul.f32 %v1953, %v1990
    %v2514 = vmul.f32 %v1953, %v1994
    %v2515 = vmul.f32 %v1953, %v1998
    %v2516 = vmul.f32 %v1953, %v2002
    %v2517 = vmul.f32 %v1953, %v2006
    %v2518 = vmul.f32 %v1953, %v2010
    %v2519 = vmul.f32 %v1953, %v2014
    %v2520 = vmul.f32 %v1953, %v2018
    %v2521 = vmul.f32 %v1953, %v2022
    %v2522 = vmul.f32 %v1953, %v2026
    %v2523 = vmul.f32 %v1953, %v2030
    %v2524 = vmul.f32 %v1953, %v2034
    %v2525 = vmul.f32 %v1953, %v2038
    %v2526 = vmul.f32 %v1953, %v2042
    %v2527 = vmul.f32 %v1953, %v2046
    %v2528 = vmul.f32 %v1953, %v2050
    %v2529 = vmul.f32 %v1953, %v2053
    %v2530 = vmul.f32 %v1953, %v2057
    %v2531 = vmul.f32 %v1953, %v2061
    %v2532 = vmul.f32 %v1953, %v2065
    %v2533 = vmul.f32 %v1953, %v2069
    %v2534 = vmul.f32 %v1953, %v2073
    %v2535 = vmul.f32 %v1953, %v2077
    %v2536 = vmul.f32 %v1953, %v2081
    %v2537 = vmul.f32 %v1953, %v2085
    %v2538 = vmul.f32 %v1953, %v2089
    %v2539 = vmul.f32 %v1953, %v2093
    %v2540 = vmul.f32 %v1953, %v2097
    %v2541 = vmul.f32 %v1953, %v2101
    %v2542 = vmul.f32 %v1953, %v2105
    %v2543 = vmul.f32 %v1953, %v2109
    %v2544 = vmul.f32 %v1953, %v2113
    %v2545 = vmul.f32 %v1953, %v2116
    %v2546 = vmul.f32 %v1953, %v2120
    %v2547 = vmul.f32 %v1953, %v2124
    %v2548 = vmul.f32 %v1953, %v2128
    %v2549 = vmul.f32 %v1953, %v2132
    %v2550 = vmul.f32 %v1953, %v2136
    %v2551 = vmul.f32 %v1953, %v2140
    %v2552 = vmul.f32 %v1953, %v2144
    %v2553 = vmul.f32 %v1953, %v2148
    %v2554 = vmul.f32 %v1953, %v2152
    %v2555 = vmul.f32 %v1953, %v2156
    %v2556 = vmul.f32 %v1953, %v2160
    %v2557 = vmul.f32 %v1953, %v2164
    %v2558 = vmul.f32 %v1953, %v2168
    %v2559 = vmul.f32 %v1953, %v2172
    %v2560 = vmul.f32 %v1953, %v2176
    %v2561 = vmul.f32 %v1957, %v1990
    %v2562 = vmul.f32 %v1957, %v1994
    %v2563 = vmul.f32 %v1957, %v1998
    %v2564 = vmul.f32 %v1957, %v2002
    %v2565 = vmul.f32 %v1957, %v2006
    %v2566 = vmul.f32 %v1957, %v2010
    %v2567 = vmul.f32 %v1957, %v2014
    %v2568 = vmul.f32 %v1957, %v2018
    %v2569 = vmul.f32 %v1957, %v2022
    %v2570 = vmul.f32 %v1957, %v2026
    %v2571 = vmul.f32 %v1957, %v2030
    %v2572 = vmul.f32 %v1957, %v2034
    %v2573 = vmul.f32 %v1957, %v2038
    %v2574 = vmul.f32 %v1957, %v2042
    %v2575 = vmul.f32 %v1957, %v2046
    %v2576 = vmul.f32 %v1957, %v2050
    %v2577 = vmul.f32 %v1957, %v2053
    %v2578 = vmul.f32 %v1957, %v2057
    %v2579 = vmul.f32 %v1957, %v2061
    %v2580 = vmul.f32 %v1957, %v2065
    %v2581 = vmul.f32 %v1957, %v2069
    %v2582 = vmul.f32 %v1957, %v2073
    %v2583 = vmul.f32 %v1957, %v2077
    %v2584 = vmul.f32 %v1957, %v2081
    %v2585 = vmul.f32 %v1957, %v2085
    %v2586 = vmul.f32 %v1957, %v2089
    %v2587 = vmul.f32 %v1957, %v2093
    %v2588 = vmul.f32 %v1957, %v2097
    %v2589 = vmul.f32 %v1957, %v2101
    %v2590 = vmul.f32 %v1957, %v2105
    %v2591 = vmul.f32 %v1957, %v2109
    %v2592 = vmul.f32 %v1957, %v2113
    %v2593 = vmul.f32 %v1957, %v2116
    %v2594 = vmul.f32 %v1957, %v2120
    %v2595 = vmul.f32 %v1957, %v2124
    %v2596 = vmul.f32 %v1957, %v2128
    %v2597 = vmul.f32 %v1957, %v2132
    %v2598 = vmul.f32 %v1957, %v2136
    %v2599 = vmul.f32 %v1957, %v2140
    %v2600 = vmul.f32 %v1957, %v2144
    %v2601 = vmul.f32 %v1957, %v2148
    %v2602 = vmul.f32 %v1957, %v2152
    %v2603 = vmul.f32 %v1957, %v2156
    %v2604 = vmul.f32 %v1957, %v2160
    %v2605 = vmul.f32 %v1957, %v2164
    %v2606 = vmul.f32 %v1957, %v2168
    %v2607 = vmul.f32 %v1957, %v2172
    %v2608 = vmul.f32 %v1957, %v2176
    %v2609 = vadd.f32 %v1542, %v2225
    %v2610 = vadd.f32 %v1543, %v2226
    %v2611 = vadd.f32 %v1544, %v2227
    %v2612 = vadd.f32 %v1545, %v2228
    %v2613 = vadd.f32 %v1546, %v2229
    %v2614 = vadd.f32 %v1547, %v2230
    %v2615 = vadd.f32 %v1548, %v2231
    %v2616 = vadd.f32 %v1549, %v2232
    %v2617 = vadd.f32 %v1550, %v2233
    %v2618 = vadd.f32 %v1551, %v2234
    %v2619 = vadd.f32 %v1552, %v2235
    %v2620 = vadd.f32 %v1553, %v2236
    %v2621 = vadd.f32 %v1554, %v2237
    %v2622 = vadd.f32 %v1555, %v2238
    %v2623 = vadd.f32 %v1556, %v2239
    %v2624 = vadd.f32 %v1557, %v2240
    %v2625 = vadd.f32 %v1558, %v2241
    %v2626 = vadd.f32 %v1559, %v2242
    %v2627 = vadd.f32 %v1560, %v2243
    %v2628 = vadd.f32 %v1561, %v2244
    %v2629 = vadd.f32 %v1562, %v2245
    %v2630 = vadd.f32 %v1563, %v2246
    %v2631 = vadd.f32 %v1564, %v2247
    %v2632 = vadd.f32 %v1565, %v2248
    %v2633 = vadd.f32 %v1566, %v2249
    %v2634 = vadd.f32 %v1567, %v2250
    %v2635 = vadd.f32 %v1568, %v2251
    %v2636 = vadd.f32 %v1569, %v2252
    %v2637 = vadd.f32 %v1570, %v2253
    %v2638 = vadd.f32 %v1571, %v2254
    %v2639 = vadd.f32 %v1572, %v2255
    %v2640 = vadd.f32 %v1573, %v2256
    %v2641 = vadd.f32 %v1574, %v2257
    %v2642 = vadd.f32 %v1575, %v2258
    %v2643 = vadd.f32 %v1576, %v2259
    %v2644 = vadd.f32 %v1577, %v2260
    %v2645 = vadd.f32 %v1578, %v2261
    %v2646 = vadd.f32 %v1579, %v2262
    %v2647 = vadd.f32 %v1580, %v2263
    %v2648 = vadd.f32 %v1581, %v2264
    %v2649 = vadd.f32 %v1582, %v2265
    %v2650 = vadd.f32 %v1583, %v2266
    %v2651 = vadd.f32 %v1584, %v2267
    %v2652 = vadd.f32 %v1585, %v2268
    %v2653 = vadd.f32 %v1586, %v2269
    %v2654 = vadd.f32 %v1587, %v2270
    %v2655 = vadd.f32 %v1588, %v2271
    %v2656 = vadd.f32 %v1589, %v2272
    %v2657 = vadd.f32 %v1590, %v2273
    %v2658 = vadd.f32 %v1591, %v2274
    %v2659 = vadd.f32 %v1592, %v2275
    %v2660 = vadd.f32 %v1593, %v2276
    %v2661 = vadd.f32 %v1594, %v2277
    %v2662 = vadd.f32 %v1595, %v2278
    %v2663 = vadd.f32 %v1596, %v2279
    %v2664 = vadd.f32 %v1597, %v2280
    %v2665 = vadd.f32 %v1598, %v2281
    %v2666 = vadd.f32 %v1599, %v2282
    %v2667 = vadd.f32 %v1600, %v2283
    %v2668 = vadd.f32 %v1601, %v2284
    %v2669 = vadd.f32 %v1602, %v2285
    %v2670 = vadd.f32 %v1603, %v2286
    %v2671 = vadd.f32 %v1604, %v2287
    %v2672 = vadd.f32 %v1605, %v2288
    %v2673 = vadd.f32 %v1606, %v2289
    %v2674 = vadd.f32 %v1607, %v2290
    %v2675 = vadd.f32 %v1608, %v2291
    %v2676 = vadd.f32 %v1609, %v2292
    %v2677 = vadd.f32 %v1610, %v2293
    %v2678 = vadd.f32 %v1611, %v2294
    %v2679 = vadd.f32 %v1612, %v2295
    %v2680 = vadd.f32 %v1613, %v2296
    %v2681 = vadd.f32 %v1614, %v2297
    %v2682 = vadd.f32 %v1615, %v2298
    %v2683 = vadd.f32 %v1616, %v2299
    %v2684 = vadd.f32 %v1617, %v2300
    %v2685 = vadd.f32 %v1618, %v2301
    %v2686 = vadd.f32 %v1619, %v2302
    %v2687 = vadd.f32 %v1620, %v2303
    %v2688 = vadd.f32 %v1621, %v2304
    %v2689 = vadd.f32 %v1622, %v2305
    %v2690 = vadd.f32 %v1623, %v2306
    %v2691 = vadd.f32 %v1624, %v2307
    %v2692 = vadd.f32 %v1625, %v2308
    %v2693 = vadd.f32 %v1626, %v2309
    %v2694 = vadd.f32 %v1627, %v2310
    %v2695 = vadd.f32 %v1628, %v2311
    %v2696 = vadd.f32 %v1629, %v2312
    %v2697 = vadd.f32 %v1630, %v2313
    %v2698 = vadd.f32 %v1631, %v2314
    %v2699 = vadd.f32 %v1632, %v2315
    %v2700 = vadd.f32 %v1633, %v2316
    %v2701 = vadd.f32 %v1634, %v2317
    %v2702 = vadd.f32 %v1635, %v2318
    %v2703 = vadd.f32 %v1636, %v2319
    %v2704 = vadd.f32 %v1637, %v2320
    %v2705 = vadd.f32 %v1638, %v2321
    %v2706 = vadd.f32 %v1639, %v2322
    %v2707 = vadd.f32 %v1640, %v2323
    %v2708 = vadd.f32 %v1641, %v2324
    %v2709 = vadd.f32 %v1642, %v2325
    %v2710 = vadd.f32 %v1643, %v2326
    %v2711 = vadd.f32 %v1644, %v2327
    %v2712 = vadd.f32 %v1645, %v2328
    %v2713 = vadd.f32 %v1646, %v2329
    %v2714 = vadd.f32 %v1647, %v2330
    %v2715 = vadd.f32 %v1648, %v2331
    %v2716 = vadd.f32 %v1649, %v2332
    %v2717 = vadd.f32 %v1650, %v2333
    %v2718 = vadd.f32 %v1651, %v2334
    %v2719 = vadd.f32 %v1652, %v2335
    %v2720 = vadd.f32 %v1653, %v2336
    %v2721 = vadd.f32 %v1654, %v2337
    %v2722 = vadd.f32 %v1655, %v2338
    %v2723 = vadd.f32 %v1656, %v2339
    %v2724 = vadd.f32 %v1657, %v2340
    %v2725 = vadd.f32 %v1658, %v2341
    %v2726 = vadd.f32 %v1659, %v2342
    %v2727 = vadd.f32 %v1660, %v2343
    %v2728 = vadd.f32 %v1661, %v2344
    %v2729 = vadd.f32 %v1662, %v2345
    %v2730 = vadd.f32 %v1663, %v2346
    %v2731 = vadd.f32 %v1664, %v2347
    %v2732 = vadd.f32 %v1665, %v2348
    %v2733 = vadd.f32 %v1666, %v2349
    %v2734 = vadd.f32 %v1667, %v2350
    %v2735 = vadd.f32 %v1668, %v2351
    %v2736 = vadd.f32 %v1669, %v2352
    %v2737 = vadd.f32 %v1670, %v2353
    %v2738 = vadd.f32 %v1671, %v2354
    %v2739 = vadd.f32 %v1672, %v2355
    %v2740 = vadd.f32 %v1673, %v2356
    %v2741 = vadd.f32 %v1674, %v2357
    %v2742 = vadd.f32 %v1675, %v2358
    %v2743 = vadd.f32 %v1676, %v2359
    %v2744 = vadd.f32 %v1677, %v2360
    %v2745 = vadd.f32 %v1678, %v2361
    %v2746 = vadd.f32 %v1679, %v2362
    %v2747 = vadd.f32 %v1680, %v2363
    %v2748 = vadd.f32 %v1681, %v2364
    %v2749 = vadd.f32 %v1682, %v2365
    %v2750 = vadd.f32 %v1683, %v2366
    %v2751 = vadd.f32 %v1684, %v2367
    %v2752 = vadd.f32 %v1685, %v2368
    %v2753 = vadd.f32 %v1686, %v2369
    %v2754 = vadd.f32 %v1687, %v2370
    %v2755 = vadd.f32 %v1688, %v2371
    %v2756 = vadd.f32 %v1689, %v2372
    %v2757 = vadd.f32 %v1690, %v2373
    %v2758 = vadd.f32 %v1691, %v2374
    %v2759 = vadd.f32 %v1692, %v2375
    %v2760 = vadd.f32 %v1693, %v2376
    %v2761 = vadd.f32 %v1694, %v2377
    %v2762 = vadd.f32 %v1695, %v2378
    %v2763 = vadd.f32 %v1696, %v2379
    %v2764 = vadd.f32 %v1697, %v2380
    %v2765 = vadd.f32 %v1698, %v2381
    %v2766 = vadd.f32 %v1699, %v2382
    %v2767 = vadd.f32 %v1700, %v2383
    %v2768 = vadd.f32 %v1701, %v2384
    %v2769 = vadd.f32 %v1702, %v2385
    %v2770 = vadd.f32 %v1703, %v2386
    %v2771 = vadd.f32 %v1704, %v2387
    %v2772 = vadd.f32 %v1705, %v2388
    %v2773 = vadd.f32 %v1706, %v2389
    %v2774 = vadd.f32 %v1707, %v2390
    %v2775 = vadd.f32 %v1708, %v2391
    %v2776 = vadd.f32 %v1709, %v2392
    %v2777 = vadd.f32 %v1710, %v2393
    %v2778 = vadd.f32 %v1711, %v2394
    %v2779 = vadd.f32 %v1712, %v2395
    %v2780 = vadd.f32 %v1713, %v2396
    %v2781 = vadd.f32 %v1714, %v2397
    %v2782 = vadd.f32 %v1715, %v2398
    %v2783 = vadd.f32 %v1716, %v2399
    %v2784 = vadd.f32 %v1717, %v2400
    %v2785 = vadd.f32 %v1718, %v2401
    %v2786 = vadd.f32 %v1719, %v2402
    %v2787 = vadd.f32 %v1720, %v2403
    %v2788 = vadd.f32 %v1721, %v2404
    %v2789 = vadd.f32 %v1722, %v2405
    %v2790 = vadd.f32 %v1723, %v2406
    %v2791 = vadd.f32 %v1724, %v2407
    %v2792 = vadd.f32 %v1725, %v2408
    %v2793 = vadd.f32 %v1726, %v2409
    %v2794 = vadd.f32 %v1727, %v2410
    %v2795 = vadd.f32 %v1728, %v2411
    %v2796 = vadd.f32 %v1729, %v2412
    %v2797 = vadd.f32 %v1730, %v2413
    %v2798 = vadd.f32 %v1731, %v2414
    %v2799 = vadd.f32 %v1732, %v2415
    %v2800 = vadd.f32 %v1733, %v2416
    %v2801 = vadd.f32 %v1734, %v2417
    %v2802 = vadd.f32 %v1735, %v2418
    %v2803 = vadd.f32 %v1736, %v2419
    %v2804 = vadd.f32 %v1737, %v2420
    %v2805 = vadd.f32 %v1738, %v2421
    %v2806 = vadd.f32 %v1739, %v2422
    %v2807 = vadd.f32 %v1740, %v2423
    %v2808 = vadd.f32 %v1741, %v2424
    %v2809 = vadd.f32 %v1742, %v2425
    %v2810 = vadd.f32 %v1743, %v2426
    %v2811 = vadd.f32 %v1744, %v2427
    %v2812 = vadd.f32 %v1745, %v2428
    %v2813 = vadd.f32 %v1746, %v2429
    %v2814 = vadd.f32 %v1747, %v2430
    %v2815 = vadd.f32 %v1748, %v2431
    %v2816 = vadd.f32 %v1749, %v2432
    %v2817 = vadd.f32 %v1750, %v2433
    %v2818 = vadd.f32 %v1751, %v2434
    %v2819 = vadd.f32 %v1752, %v2435
    %v2820 = vadd.f32 %v1753, %v2436
    %v2821 = vadd.f32 %v1754, %v2437
    %v2822 = vadd.f32 %v1755, %v2438
    %v2823 = vadd.f32 %v1756, %v2439
    %v2824 = vadd.f32 %v1757, %v2440
    %v2825 = vadd.f32 %v1758, %v2441
    %v2826 = vadd.f32 %v1759, %v2442
    %v2827 = vadd.f32 %v1760, %v2443
    %v2828 = vadd.f32 %v1761, %v2444
    %v2829 = vadd.f32 %v1762, %v2445
    %v2830 = vadd.f32 %v1763, %v2446
    %v2831 = vadd.f32 %v1764, %v2447
    %v2832 = vadd.f32 %v1765, %v2448
    %v2833 = vadd.f32 %v1766, %v2449
    %v2834 = vadd.f32 %v1767, %v2450
    %v2835 = vadd.f32 %v1768, %v2451
    %v2836 = vadd.f32 %v1769, %v2452
    %v2837 = vadd.f32 %v1770, %v2453
    %v2838 = vadd.f32 %v1771, %v2454
    %v2839 = vadd.f32 %v1772, %v2455
    %v2840 = vadd.f32 %v1773, %v2456
    %v2841 = vadd.f32 %v1774, %v2457
    %v2842 = vadd.f32 %v1775, %v2458
    %v2843 = vadd.f32 %v1776, %v2459
    %v2844 = vadd.f32 %v1777, %v2460
    %v2845 = vadd.f32 %v1778, %v2461
    %v2846 = vadd.f32 %v1779, %v2462
    %v2847 = vadd.f32 %v1780, %v2463
    %v2848 = vadd.f32 %v1781, %v2464
    %v2849 = vadd.f32 %v1782, %v2465
    %v2850 = vadd.f32 %v1783, %v2466
    %v2851 = vadd.f32 %v1784, %v2467
    %v2852 = vadd.f32 %v1785, %v2468
    %v2853 = vadd.f32 %v1786, %v2469
    %v2854 = vadd.f32 %v1787, %v2470
    %v2855 = vadd.f32 %v1788, %v2471
    %v2856 = vadd.f32 %v1789, %v2472
    %v2857 = vadd.f32 %v1790, %v2473
    %v2858 = vadd.f32 %v1791, %v2474
    %v2859 = vadd.f32 %v1792, %v2475
    %v2860 = vadd.f32 %v1793, %v2476
    %v2861 = vadd.f32 %v1794, %v2477
    %v2862 = vadd.f32 %v1795, %v2478
    %v2863 = vadd.f32 %v1796, %v2479
    %v2864 = vadd.f32 %v1797, %v2480
    %v2865 = vadd.f32 %v1798, %v2481
    %v2866 = vadd.f32 %v1799, %v2482
    %v2867 = vadd.f32 %v1800, %v2483
    %v2868 = vadd.f32 %v1801, %v2484
    %v2869 = vadd.f32 %v1802, %v2485
    %v2870 = vadd.f32 %v1803, %v2486
    %v2871 = vadd.f32 %v1804, %v2487
    %v2872 = vadd.f32 %v1805, %v2488
    %v2873 = vadd.f32 %v1806, %v2489
    %v2874 = vadd.f32 %v1807, %v2490
    %v2875 = vadd.f32 %v1808, %v2491
    %v2876 = vadd.f32 %v1809, %v2492
    %v2877 = vadd.f32 %v1810, %v2493
    %v2878 = vadd.f32 %v1811, %v2494
    %v2879 = vadd.f32 %v1812, %v2495
    %v2880 = vadd.f32 %v1813, %v2496
    %v2881 = vadd.f32 %v1814, %v2497
    %v2882 = vadd.f32 %v1815, %v2498
    %v2883 = vadd.f32 %v1816, %v2499
    %v2884 = vadd.f32 %v1817, %v2500
    %v2885 = vadd.f32 %v1818, %v2501
    %v2886 = vadd.f32 %v1819, %v2502
    %v2887 = vadd.f32 %v1820, %v2503
    %v2888 = vadd.f32 %v1821, %v2504
    %v2889 = vadd.f32 %v1822, %v2505
    %v2890 = vadd.f32 %v1823, %v2506
    %v2891 = vadd.f32 %v1824, %v2507
    %v2892 = vadd.f32 %v1825, %v2508
    %v2893 = vadd.f32 %v1826, %v2509
    %v2894 = vadd.f32 %v1827, %v2510
    %v2895 = vadd.f32 %v1828, %v2511
    %v2896 = vadd.f32 %v1829, %v2512
    %v2897 = vadd.f32 %v1830, %v2513
    %v2898 = vadd.f32 %v1831, %v2514
    %v2899 = vadd.f32 %v1832, %v2515
    %v2900 = vadd.f32 %v1833, %v2516
    %v2901 = vadd.f32 %v1834, %v2517
    %v2902 = vadd.f32 %v1835, %v2518
    %v2903 = vadd.f32 %v1836, %v2519
    %v2904 = vadd.f32 %v1837, %v2520
    %v2905 = vadd.f32 %v1838, %v2521
    %v2906 = vadd.f32 %v1839, %v2522
    %v2907 = vadd.f32 %v1840, %v2523
    %v2908 = vadd.f32 %v1841, %v2524
    %v2909 = vadd.f32 %v1842, %v2525
    %v2910 = vadd.f32 %v1843, %v2526
    %v2911 = vadd.f32 %v1844, %v2527
    %v2912 = vadd.f32 %v1845, %v2528
    %v2913 = vadd.f32 %v1846, %v2529
    %v2914 = vadd.f32 %v1847, %v2530
    %v2915 = vadd.f32 %v1848, %v2531
    %v2916 = vadd.f32 %v1849, %v2532
    %v2917 = vadd.f32 %v1850, %v2533
    %v2918 = vadd.f32 %v1851, %v2534
    %v2919 = vadd.f32 %v1852, %v2535
    %v2920 = vadd.f32 %v1853, %v2536
    %v2921 = vadd.f32 %v1854, %v2537
    %v2922 = vadd.f32 %v1855, %v2538
    %v2923 = vadd.f32 %v1856, %v2539
    %v2924 = vadd.f32 %v1857, %v2540
    %v2925 = vadd.f32 %v1858, %v2541
    %v2926 = vadd.f32 %v1859, %v2542
    %v2927 = vadd.f32 %v1860, %v2543
    %v2928 = vadd.f32 %v1861, %v2544
    %v2929 = vadd.f32 %v1862, %v2545
    %v2930 = vadd.f32 %v1863, %v2546
    %v2931 = vadd.f32 %v1864, %v2547
    %v2932 = vadd.f32 %v1865, %v2548
    %v2933 = vadd.f32 %v1866, %v2549
    %v2934 = vadd.f32 %v1867, %v2550
    %v2935 = vadd.f32 %v1868, %v2551
    %v2936 = vadd.f32 %v1869, %v2552
    %v2937 = vadd.f32 %v1870, %v2553
    %v2938 = vadd.f32 %v1871, %v2554
    %v2939 = vadd.f32 %v1872, %v2555
    %v2940 = vadd.f32 %v1873, %v2556
    %v2941 = vadd.f32 %v1874, %v2557
    %v2942 = vadd.f32 %v1875, %v2558
    %v2943 = vadd.f32 %v1876, %v2559
    %v2944 = vadd.f32 %v1877, %v2560
    %v2945 = vadd.f32 %v1878, %v2561
    %v2946 = vadd.f32 %v1879, %v2562
    %v2947 = vadd.f32 %v1880, %v2563
    %v2948 = vadd.f32 %v1881, %v2564
    %v2949 = vadd.f32 %v1882, %v2565
    %v2950 = vadd.f32 %v1883, %v2566
    %v2951 = vadd.f32 %v1884, %v2567
    %v2952 = vadd.f32 %v1885, %v2568
    %v2953 = vadd.f32 %v1886, %v2569
    %v2954 = vadd.f32 %v1887, %v2570
    %v2955 = vadd.f32 %v1888, %v2571
    %v2956 = vadd.f32 %v1889, %v2572
    %v2957 = vadd.f32 %v1890, %v2573
    %v2958 = vadd.f32 %v1891, %v2574
    %v2959 = vadd.f32 %v1892, %v2575
    %v2960 = vadd.f32 %v1893, %v2576
    %v2961 = vadd.f32 %v1894, %v2577
    %v2962 = vadd.f32 %v1895, %v2578
    %v2963 = vadd.f32 %v1896, %v2579
    %v2964 = vadd.f32 %v1897, %v2580
    %v2965 = vadd.f32 %v1898, %v2581
    %v2966 = vadd.f32 %v1899, %v2582
    %v2967 = vadd.f32 %v1900, %v2583
    %v2968 = vadd.f32 %v1901, %v2584
    %v2969 = vadd.f32 %v1902, %v2585
    %v2970 = vadd.f32 %v1903, %v2586
    %v2971 = vadd.f32 %v1904, %v2587
    %v2972 = vadd.f32 %v1905, %v2588
    %v2973 = vadd.f32 %v1906, %v2589
    %v2974 = vadd.f32 %v1907, %v2590
    %v2975 = vadd.f32 %v1908, %v2591
    %v2976 = vadd.f32 %v1909, %v2592
    %v2977 = vadd.f32 %v1910, %v2593
    %v2978 = vadd.f32 %v1911, %v2594
    %v2979 = vadd.f32 %v1912, %v2595
    %v2980 = vadd.f32 %v1913, %v2596
    %v2981 = vadd.f32 %v1914, %v2597
    %v2982 = vadd.f32 %v1915, %v2598
    %v2983 = vadd.f32 %v1916, %v2599
    %v2984 = vadd.f32 %v1917, %v2600
    %v2985 = vadd.f32 %v1918, %v2601
    %v2986 = vadd.f32 %v1919, %v2602
    %v2987 = vadd.f32 %v1920, %v2603
    %v2988 = vadd.f32 %v1921, %v2604
    %v2989 = vadd.f32 %v1922, %v2605
    %v2990 = vadd.f32 %v1923, %v2606
    %v2991 = vadd.f32 %v1924, %v2607
    %v2992 = vadd.f32 %v1925, %v2608
    %v2993 = vlaneseq
    %v2994 = vshrl.u32 %v2993, 7
    %v2995 = vsub.s32 3, %v2994
    %v2996 = vrot.slane %v163, %v2995
    %v2997 = vlaneseq
    %v2998 = vshrl.u32 %v2997, 7
    %v2999 = vsub.s32 3, %v2998
    %v3000 = vrot.slane %v164, %v2999
    %v3001 = vlaneseq
    %v3002 = vshrl.u32 %v3001, 7
    %v3003 = vsub.s32 3, %v3002
    %v3004 = vrot.slane %v165, %v3003
    %v3005 = vlaneseq
    %v3006 = vshrl.u32 %v3005, 7
    %v3007 = vsub.s32 3, %v3006
    %v3008 = vrot.slane %v166, %v3007
    %v3009 = vlaneseq
    %v3010 = vshrl.u32 %v3009, 7
    %v3011 = vsub.s32 3, %v3010
    %v3012 = vrot.slane %v167, %v3011
    %v3013 = vlaneseq
    %v3014 = vshrl.u32 %v3013, 7
    %v3015 = vsub.s32 3, %v3014
    %v3016 = vrot.slane %v168, %v3015
    %v3017 = vlaneseq
    %v3018 = vshrl.u32 %v3017, 7
    %v3019 = vsub.s32 3, %v3018
    %v3020 = vrot.slane %v169, %v3019
    %v3021 = vlaneseq
    %v3022 = vshrl.u32 %v3021, 7
    %v3023 = vsub.s32 3, %v3022
    %v3024 = vrot.slane %v170, %v3023
    %v3025 = vlaneseq
    %v3026 = vshrl.u32 %v3025, 7
    %v3027 = vsub.s32 3, %v3026
    %v3028 = vrot.slane %v172, %v3027
    %v3029 = vlaneseq
    %v3030 = vshrl.u32 %v3029, 7
    %v3031 = vsub.s32 7, %v3030
    %v3032 = vrot.slane %v172, %v3031
    %v3033 = vlaneseq
    %v3034 = vshrl.u32 %v3033, 7
    %v3035 = vsub.s32 3, %v3034
    %v3036 = vrot.slane %v173, %v3035
    %v3040 = vlaneseq
    %v3041 = vshrl.u32 %v3040, 7
    %v3042 = vsub.s32 3, %v3041
    %v3043 = vrot.slane %v3028, %v3042
    %v3044 = vlaneseq
    %v3045 = vshrl.u32 %v3044, 7
    %v3046 = vsub.s32 3, %v3045
    %v3047 = vrot.slane %v3032, %v3046
    %v3048 = vlaneseq
    %v3049 = vshrl.u32 %v3048, 7
    %v3050 = vsub.s32 3, %v3049
    %v3051 = vrot.slane %v3036, %v3050
    %3056 = vbcast.lane.b32.xlu0 %v3043, 256
    %v3057 = vpop.permute.xlu0 %3056
    %s3059 = sor.u32 256, 8
    %3060 = vbcast.lane.b32.xlu0 %v3043, %s3059
    %v3061 = vpop.permute.xlu0 %3060
    %s3063 = sor.u32 256, 16
    %3064 = vbcast.lane.b32.xlu0 %v3043, %s3063
    %v3065 = vpop.permute.xlu0 %3064
    %s3067 = sor.u32 256, 24
    %3068 = vbcast.lane.b32.xlu0 %v3043, %s3067
    %v3069 = vpop.permute.xlu0 %3068
    %s3071 = sor.u32 256, 32
    %3072 = vbcast.lane.b32.xlu0 %v3043, %s3071
    %v3073 = vpop.permute.xlu0 %3072
    %s3075 = sor.u32 256, 40
    %3076 = vbcast.lane.b32.xlu0 %v3043, %s3075
    %v3077 = vpop.permute.xlu0 %3076
    %s3079 = sor.u32 256, 48
    %3080 = vbcast.lane.b32.xlu0 %v3043, %s3079
    %v3081 = vpop.permute.xlu0 %3080
    %s3083 = sor.u32 256, 56
    %3084 = vbcast.lane.b32.xlu0 %v3043, %s3083
    %v3085 = vpop.permute.xlu0 %3084
    %s3087 = sor.u32 256, 64
    %3088 = vbcast.lane.b32.xlu0 %v3043, %s3087
    %v3089 = vpop.permute.xlu0 %3088
    %s3091 = sor.u32 256, 72
    %3092 = vbcast.lane.b32.xlu0 %v3043, %s3091
    %v3093 = vpop.permute.xlu0 %3092
    %s3095 = sor.u32 256, 80
    %3096 = vbcast.lane.b32.xlu0 %v3043, %s3095
    %v3097 = vpop.permute.xlu0 %3096
    %s3099 = sor.u32 256, 88
    %3100 = vbcast.lane.b32.xlu0 %v3043, %s3099
    %v3101 = vpop.permute.xlu0 %3100
    %s3103 = sor.u32 256, 96
    %3104 = vbcast.lane.b32.xlu0 %v3043, %s3103
    %v3105 = vpop.permute.xlu0 %3104
    %s3107 = sor.u32 256, 104
    %3108 = vbcast.lane.b32.xlu0 %v3043, %s3107
    %v3109 = vpop.permute.xlu0 %3108
    %s3111 = sor.u32 256, 112
    %3112 = vbcast.lane.b32.xlu0 %v3043, %s3111
    %v3113 = vpop.permute.xlu0 %3112
    %s3115 = sor.u32 256, 120
    %3116 = vbcast.lane.b32.xlu0 %v3043, %s3115
    %v3117 = vpop.permute.xlu0 %3116
    %3119 = vbcast.lane.b32.xlu0 %v3047, 256
    %v3120 = vpop.permute.xlu0 %3119
    %s3122 = sor.u32 256, 8
    %3123 = vbcast.lane.b32.xlu0 %v3047, %s3122
    %v3124 = vpop.permute.xlu0 %3123
    %s3126 = sor.u32 256, 16
    %3127 = vbcast.lane.b32.xlu0 %v3047, %s3126
    %v3128 = vpop.permute.xlu0 %3127
    %s3130 = sor.u32 256, 24
    %3131 = vbcast.lane.b32.xlu0 %v3047, %s3130
    %v3132 = vpop.permute.xlu0 %3131
    %s3134 = sor.u32 256, 32
    %3135 = vbcast.lane.b32.xlu0 %v3047, %s3134
    %v3136 = vpop.permute.xlu0 %3135
    %s3138 = sor.u32 256, 40
    %3139 = vbcast.lane.b32.xlu0 %v3047, %s3138
    %v3140 = vpop.permute.xlu0 %3139
    %s3142 = sor.u32 256, 48
    %3143 = vbcast.lane.b32.xlu0 %v3047, %s3142
    %v3144 = vpop.permute.xlu0 %3143
    %s3146 = sor.u32 256, 56
    %3147 = vbcast.lane.b32.xlu0 %v3047, %s3146
    %v3148 = vpop.permute.xlu0 %3147
    %s3150 = sor.u32 256, 64
    %3151 = vbcast.lane.b32.xlu0 %v3047, %s3150
    %v3152 = vpop.permute.xlu0 %3151
    %s3154 = sor.u32 256, 72
    %3155 = vbcast.lane.b32.xlu0 %v3047, %s3154
    %v3156 = vpop.permute.xlu0 %3155
    %s3158 = sor.u32 256, 80
    %3159 = vbcast.lane.b32.xlu0 %v3047, %s3158
    %v3160 = vpop.permute.xlu0 %3159
    %s3162 = sor.u32 256, 88
    %3163 = vbcast.lane.b32.xlu0 %v3047, %s3162
    %v3164 = vpop.permute.xlu0 %3163
    %s3166 = sor.u32 256, 96
    %3167 = vbcast.lane.b32.xlu0 %v3047, %s3166
    %v3168 = vpop.permute.xlu0 %3167
    %s3170 = sor.u32 256, 104
    %3171 = vbcast.lane.b32.xlu0 %v3047, %s3170
    %v3172 = vpop.permute.xlu0 %3171
    %s3174 = sor.u32 256, 112
    %3175 = vbcast.lane.b32.xlu0 %v3047, %s3174
    %v3176 = vpop.permute.xlu0 %3175
    %s3178 = sor.u32 256, 120
    %3179 = vbcast.lane.b32.xlu0 %v3047, %s3178
    %v3180 = vpop.permute.xlu0 %3179
    %3182 = vbcast.lane.b32.xlu0 %v3051, 256
    %v3183 = vpop.permute.xlu0 %3182
    %s3185 = sor.u32 256, 8
    %3186 = vbcast.lane.b32.xlu0 %v3051, %s3185
    %v3187 = vpop.permute.xlu0 %3186
    %s3189 = sor.u32 256, 16
    %3190 = vbcast.lane.b32.xlu0 %v3051, %s3189
    %v3191 = vpop.permute.xlu0 %3190
    %s3193 = sor.u32 256, 24
    %3194 = vbcast.lane.b32.xlu0 %v3051, %s3193
    %v3195 = vpop.permute.xlu0 %3194
    %s3197 = sor.u32 256, 32
    %3198 = vbcast.lane.b32.xlu0 %v3051, %s3197
    %v3199 = vpop.permute.xlu0 %3198
    %s3201 = sor.u32 256, 40
    %3202 = vbcast.lane.b32.xlu0 %v3051, %s3201
    %v3203 = vpop.permute.xlu0 %3202
    %s3205 = sor.u32 256, 48
    %3206 = vbcast.lane.b32.xlu0 %v3051, %s3205
    %v3207 = vpop.permute.xlu0 %3206
    %s3209 = sor.u32 256, 56
    %3210 = vbcast.lane.b32.xlu0 %v3051, %s3209
    %v3211 = vpop.permute.xlu0 %3210
    %s3213 = sor.u32 256, 64
    %3214 = vbcast.lane.b32.xlu0 %v3051, %s3213
    %v3215 = vpop.permute.xlu0 %3214
    %s3217 = sor.u32 256, 72
    %3218 = vbcast.lane.b32.xlu0 %v3051, %s3217
    %v3219 = vpop.permute.xlu0 %3218
    %s3221 = sor.u32 256, 80
    %3222 = vbcast.lane.b32.xlu0 %v3051, %s3221
    %v3223 = vpop.permute.xlu0 %3222
    %s3225 = sor.u32 256, 88
    %3226 = vbcast.lane.b32.xlu0 %v3051, %s3225
    %v3227 = vpop.permute.xlu0 %3226
    %s3229 = sor.u32 256, 96
    %3230 = vbcast.lane.b32.xlu0 %v3051, %s3229
    %v3231 = vpop.permute.xlu0 %3230
    %s3233 = sor.u32 256, 104
    %3234 = vbcast.lane.b32.xlu0 %v3051, %s3233
    %v3235 = vpop.permute.xlu0 %3234
    %s3237 = sor.u32 256, 112
    %3238 = vbcast.lane.b32.xlu0 %v3051, %s3237
    %v3239 = vpop.permute.xlu0 %3238
    %s3241 = sor.u32 256, 120
    %3242 = vbcast.lane.b32.xlu0 %v3051, %s3241
    %v3243 = vpop.permute.xlu0 %3242
    %v3292 = vmul.f32 %v2996, %v3057
    %v3293 = vmul.f32 %v2996, %v3061
    %v3294 = vmul.f32 %v2996, %v3065
    %v3295 = vmul.f32 %v2996, %v3069
    %v3296 = vmul.f32 %v2996, %v3073
    %v3297 = vmul.f32 %v2996, %v3077
    %v3298 = vmul.f32 %v2996, %v3081
    %v3299 = vmul.f32 %v2996, %v3085
    %v3300 = vmul.f32 %v2996, %v3089
    %v3301 = vmul.f32 %v2996, %v3093
    %v3302 = vmul.f32 %v2996, %v3097
    %v3303 = vmul.f32 %v2996, %v3101
    %v3304 = vmul.f32 %v2996, %v3105
    %v3305 = vmul.f32 %v2996, %v3109
    %v3306 = vmul.f32 %v2996, %v3113
    %v3307 = vmul.f32 %v2996, %v3117
    %v3308 = vmul.f32 %v2996, %v3120
    %v3309 = vmul.f32 %v2996, %v3124
    %v3310 = vmul.f32 %v2996, %v3128
    %v3311 = vmul.f32 %v2996, %v3132
    %v3312 = vmul.f32 %v2996, %v3136
    %v3313 = vmul.f32 %v2996, %v3140
    %v3314 = vmul.f32 %v2996, %v3144
    %v3315 = vmul.f32 %v2996, %v3148
    %v3316 = vmul.f32 %v2996, %v3152
    %v3317 = vmul.f32 %v2996, %v3156
    %v3318 = vmul.f32 %v2996, %v3160
    %v3319 = vmul.f32 %v2996, %v3164
    %v3320 = vmul.f32 %v2996, %v3168
    %v3321 = vmul.f32 %v2996, %v3172
    %v3322 = vmul.f32 %v2996, %v3176
    %v3323 = vmul.f32 %v2996, %v3180
    %v3324 = vmul.f32 %v2996, %v3183
    %v3325 = vmul.f32 %v2996, %v3187
    %v3326 = vmul.f32 %v2996, %v3191
    %v3327 = vmul.f32 %v2996, %v3195
    %v3328 = vmul.f32 %v2996, %v3199
    %v3329 = vmul.f32 %v2996, %v3203
    %v3330 = vmul.f32 %v2996, %v3207
    %v3331 = vmul.f32 %v2996, %v3211
    %v3332 = vmul.f32 %v2996, %v3215
    %v3333 = vmul.f32 %v2996, %v3219
    %v3334 = vmul.f32 %v2996, %v3223
    %v3335 = vmul.f32 %v2996, %v3227
    %v3336 = vmul.f32 %v2996, %v3231
    %v3337 = vmul.f32 %v2996, %v3235
    %v3338 = vmul.f32 %v2996, %v3239
    %v3339 = vmul.f32 %v2996, %v3243
    %v3340 = vmul.f32 %v3000, %v3057
    %v3341 = vmul.f32 %v3000, %v3061
    %v3342 = vmul.f32 %v3000, %v3065
    %v3343 = vmul.f32 %v3000, %v3069
    %v3344 = vmul.f32 %v3000, %v3073
    %v3345 = vmul.f32 %v3000, %v3077
    %v3346 = vmul.f32 %v3000, %v3081
    %v3347 = vmul.f32 %v3000, %v3085
    %v3348 = vmul.f32 %v3000, %v3089
    %v3349 = vmul.f32 %v3000, %v3093
    %v3350 = vmul.f32 %v3000, %v3097
    %v3351 = vmul.f32 %v3000, %v3101
    %v3352 = vmul.f32 %v3000, %v3105
    %v3353 = vmul.f32 %v3000, %v3109
    %v3354 = vmul.f32 %v3000, %v3113
    %v3355 = vmul.f32 %v3000, %v3117
    %v3356 = vmul.f32 %v3000, %v3120
    %v3357 = vmul.f32 %v3000, %v3124
    %v3358 = vmul.f32 %v3000, %v3128
    %v3359 = vmul.f32 %v3000, %v3132
    %v3360 = vmul.f32 %v3000, %v3136
    %v3361 = vmul.f32 %v3000, %v3140
    %v3362 = vmul.f32 %v3000, %v3144
    %v3363 = vmul.f32 %v3000, %v3148
    %v3364 = vmul.f32 %v3000, %v3152
    %v3365 = vmul.f32 %v3000, %v3156
    %v3366 = vmul.f32 %v3000, %v3160
    %v3367 = vmul.f32 %v3000, %v3164
    %v3368 = vmul.f32 %v3000, %v3168
    %v3369 = vmul.f32 %v3000, %v3172
    %v3370 = vmul.f32 %v3000, %v3176
    %v3371 = vmul.f32 %v3000, %v3180
    %v3372 = vmul.f32 %v3000, %v3183
    %v3373 = vmul.f32 %v3000, %v3187
    %v3374 = vmul.f32 %v3000, %v3191
    %v3375 = vmul.f32 %v3000, %v3195
    %v3376 = vmul.f32 %v3000, %v3199
    %v3377 = vmul.f32 %v3000, %v3203
    %v3378 = vmul.f32 %v3000, %v3207
    %v3379 = vmul.f32 %v3000, %v3211
    %v3380 = vmul.f32 %v3000, %v3215
    %v3381 = vmul.f32 %v3000, %v3219
    %v3382 = vmul.f32 %v3000, %v3223
    %v3383 = vmul.f32 %v3000, %v3227
    %v3384 = vmul.f32 %v3000, %v3231
    %v3385 = vmul.f32 %v3000, %v3235
    %v3386 = vmul.f32 %v3000, %v3239
    %v3387 = vmul.f32 %v3000, %v3243
    %v3388 = vmul.f32 %v3004, %v3057
    %v3389 = vmul.f32 %v3004, %v3061
    %v3390 = vmul.f32 %v3004, %v3065
    %v3391 = vmul.f32 %v3004, %v3069
    %v3392 = vmul.f32 %v3004, %v3073
    %v3393 = vmul.f32 %v3004, %v3077
    %v3394 = vmul.f32 %v3004, %v3081
    %v3395 = vmul.f32 %v3004, %v3085
    %v3396 = vmul.f32 %v3004, %v3089
    %v3397 = vmul.f32 %v3004, %v3093
    %v3398 = vmul.f32 %v3004, %v3097
    %v3399 = vmul.f32 %v3004, %v3101
    %v3400 = vmul.f32 %v3004, %v3105
    %v3401 = vmul.f32 %v3004, %v3109
    %v3402 = vmul.f32 %v3004, %v3113
    %v3403 = vmul.f32 %v3004, %v3117
    %v3404 = vmul.f32 %v3004, %v3120
    %v3405 = vmul.f32 %v3004, %v3124
    %v3406 = vmul.f32 %v3004, %v3128
    %v3407 = vmul.f32 %v3004, %v3132
    %v3408 = vmul.f32 %v3004, %v3136
    %v3409 = vmul.f32 %v3004, %v3140
    %v3410 = vmul.f32 %v3004, %v3144
    %v3411 = vmul.f32 %v3004, %v3148
    %v3412 = vmul.f32 %v3004, %v3152
    %v3413 = vmul.f32 %v3004, %v3156
    %v3414 = vmul.f32 %v3004, %v3160
    %v3415 = vmul.f32 %v3004, %v3164
    %v3416 = vmul.f32 %v3004, %v3168
    %v3417 = vmul.f32 %v3004, %v3172
    %v3418 = vmul.f32 %v3004, %v3176
    %v3419 = vmul.f32 %v3004, %v3180
    %v3420 = vmul.f32 %v3004, %v3183
    %v3421 = vmul.f32 %v3004, %v3187
    %v3422 = vmul.f32 %v3004, %v3191
    %v3423 = vmul.f32 %v3004, %v3195
    %v3424 = vmul.f32 %v3004, %v3199
    %v3425 = vmul.f32 %v3004, %v3203
    %v3426 = vmul.f32 %v3004, %v3207
    %v3427 = vmul.f32 %v3004, %v3211
    %v3428 = vmul.f32 %v3004, %v3215
    %v3429 = vmul.f32 %v3004, %v3219
    %v3430 = vmul.f32 %v3004, %v3223
    %v3431 = vmul.f32 %v3004, %v3227
    %v3432 = vmul.f32 %v3004, %v3231
    %v3433 = vmul.f32 %v3004, %v3235
    %v3434 = vmul.f32 %v3004, %v3239
    %v3435 = vmul.f32 %v3004, %v3243
    %v3436 = vmul.f32 %v3008, %v3057
    %v3437 = vmul.f32 %v3008, %v3061
    %v3438 = vmul.f32 %v3008, %v3065
    %v3439 = vmul.f32 %v3008, %v3069
    %v3440 = vmul.f32 %v3008, %v3073
    %v3441 = vmul.f32 %v3008, %v3077
    %v3442 = vmul.f32 %v3008, %v3081
    %v3443 = vmul.f32 %v3008, %v3085
    %v3444 = vmul.f32 %v3008, %v3089
    %v3445 = vmul.f32 %v3008, %v3093
    %v3446 = vmul.f32 %v3008, %v3097
    %v3447 = vmul.f32 %v3008, %v3101
    %v3448 = vmul.f32 %v3008, %v3105
    %v3449 = vmul.f32 %v3008, %v3109
    %v3450 = vmul.f32 %v3008, %v3113
    %v3451 = vmul.f32 %v3008, %v3117
    %v3452 = vmul.f32 %v3008, %v3120
    %v3453 = vmul.f32 %v3008, %v3124
    %v3454 = vmul.f32 %v3008, %v3128
    %v3455 = vmul.f32 %v3008, %v3132
    %v3456 = vmul.f32 %v3008, %v3136
    %v3457 = vmul.f32 %v3008, %v3140
    %v3458 = vmul.f32 %v3008, %v3144
    %v3459 = vmul.f32 %v3008, %v3148
    %v3460 = vmul.f32 %v3008, %v3152
    %v3461 = vmul.f32 %v3008, %v3156
    %v3462 = vmul.f32 %v3008, %v3160
    %v3463 = vmul.f32 %v3008, %v3164
    %v3464 = vmul.f32 %v3008, %v3168
    %v3465 = vmul.f32 %v3008, %v3172
    %v3466 = vmul.f32 %v3008, %v3176
    %v3467 = vmul.f32 %v3008, %v3180
    %v3468 = vmul.f32 %v3008, %v3183
    %v3469 = vmul.f32 %v3008, %v3187
    %v3470 = vmul.f32 %v3008, %v3191
    %v3471 = vmul.f32 %v3008, %v3195
    %v3472 = vmul.f32 %v3008, %v3199
    %v3473 = vmul.f32 %v3008, %v3203
    %v3474 = vmul.f32 %v3008, %v3207
    %v3475 = vmul.f32 %v3008, %v3211
    %v3476 = vmul.f32 %v3008, %v3215
    %v3477 = vmul.f32 %v3008, %v3219
    %v3478 = vmul.f32 %v3008, %v3223
    %v3479 = vmul.f32 %v3008, %v3227
    %v3480 = vmul.f32 %v3008, %v3231
    %v3481 = vmul.f32 %v3008, %v3235
    %v3482 = vmul.f32 %v3008, %v3239
    %v3483 = vmul.f32 %v3008, %v3243
    %v3484 = vmul.f32 %v3012, %v3057
    %v3485 = vmul.f32 %v3012, %v3061
    %v3486 = vmul.f32 %v3012, %v3065
    %v3487 = vmul.f32 %v3012, %v3069
    %v3488 = vmul.f32 %v3012, %v3073
    %v3489 = vmul.f32 %v3012, %v3077
    %v3490 = vmul.f32 %v3012, %v3081
    %v3491 = vmul.f32 %v3012, %v3085
    %v3492 = vmul.f32 %v3012, %v3089
    %v3493 = vmul.f32 %v3012, %v3093
    %v3494 = vmul.f32 %v3012, %v3097
    %v3495 = vmul.f32 %v3012, %v3101
    %v3496 = vmul.f32 %v3012, %v3105
    %v3497 = vmul.f32 %v3012, %v3109
    %v3498 = vmul.f32 %v3012, %v3113
    %v3499 = vmul.f32 %v3012, %v3117
    %v3500 = vmul.f32 %v3012, %v3120
    %v3501 = vmul.f32 %v3012, %v3124
    %v3502 = vmul.f32 %v3012, %v3128
    %v3503 = vmul.f32 %v3012, %v3132
    %v3504 = vmul.f32 %v3012, %v3136
    %v3505 = vmul.f32 %v3012, %v3140
    %v3506 = vmul.f32 %v3012, %v3144
    %v3507 = vmul.f32 %v3012, %v3148
    %v3508 = vmul.f32 %v3012, %v3152
    %v3509 = vmul.f32 %v3012, %v3156
    %v3510 = vmul.f32 %v3012, %v3160
    %v3511 = vmul.f32 %v3012, %v3164
    %v3512 = vmul.f32 %v3012, %v3168
    %v3513 = vmul.f32 %v3012, %v3172
    %v3514 = vmul.f32 %v3012, %v3176
    %v3515 = vmul.f32 %v3012, %v3180
    %v3516 = vmul.f32 %v3012, %v3183
    %v3517 = vmul.f32 %v3012, %v3187
    %v3518 = vmul.f32 %v3012, %v3191
    %v3519 = vmul.f32 %v3012, %v3195
    %v3520 = vmul.f32 %v3012, %v3199
    %v3521 = vmul.f32 %v3012, %v3203
    %v3522 = vmul.f32 %v3012, %v3207
    %v3523 = vmul.f32 %v3012, %v3211
    %v3524 = vmul.f32 %v3012, %v3215
    %v3525 = vmul.f32 %v3012, %v3219
    %v3526 = vmul.f32 %v3012, %v3223
    %v3527 = vmul.f32 %v3012, %v3227
    %v3528 = vmul.f32 %v3012, %v3231
    %v3529 = vmul.f32 %v3012, %v3235
    %v3530 = vmul.f32 %v3012, %v3239
    %v3531 = vmul.f32 %v3012, %v3243
    %v3532 = vmul.f32 %v3016, %v3057
    %v3533 = vmul.f32 %v3016, %v3061
    %v3534 = vmul.f32 %v3016, %v3065
    %v3535 = vmul.f32 %v3016, %v3069
    %v3536 = vmul.f32 %v3016, %v3073
    %v3537 = vmul.f32 %v3016, %v3077
    %v3538 = vmul.f32 %v3016, %v3081
    %v3539 = vmul.f32 %v3016, %v3085
    %v3540 = vmul.f32 %v3016, %v3089
    %v3541 = vmul.f32 %v3016, %v3093
    %v3542 = vmul.f32 %v3016, %v3097
    %v3543 = vmul.f32 %v3016, %v3101
    %v3544 = vmul.f32 %v3016, %v3105
    %v3545 = vmul.f32 %v3016, %v3109
    %v3546 = vmul.f32 %v3016, %v3113
    %v3547 = vmul.f32 %v3016, %v3117
    %v3548 = vmul.f32 %v3016, %v3120
    %v3549 = vmul.f32 %v3016, %v3124
    %v3550 = vmul.f32 %v3016, %v3128
    %v3551 = vmul.f32 %v3016, %v3132
    %v3552 = vmul.f32 %v3016, %v3136
    %v3553 = vmul.f32 %v3016, %v3140
    %v3554 = vmul.f32 %v3016, %v3144
    %v3555 = vmul.f32 %v3016, %v3148
    %v3556 = vmul.f32 %v3016, %v3152
    %v3557 = vmul.f32 %v3016, %v3156
    %v3558 = vmul.f32 %v3016, %v3160
    %v3559 = vmul.f32 %v3016, %v3164
    %v3560 = vmul.f32 %v3016, %v3168
    %v3561 = vmul.f32 %v3016, %v3172
    %v3562 = vmul.f32 %v3016, %v3176
    %v3563 = vmul.f32 %v3016, %v3180
    %v3564 = vmul.f32 %v3016, %v3183
    %v3565 = vmul.f32 %v3016, %v3187
    %v3566 = vmul.f32 %v3016, %v3191
    %v3567 = vmul.f32 %v3016, %v3195
    %v3568 = vmul.f32 %v3016, %v3199
    %v3569 = vmul.f32 %v3016, %v3203
    %v3570 = vmul.f32 %v3016, %v3207
    %v3571 = vmul.f32 %v3016, %v3211
    %v3572 = vmul.f32 %v3016, %v3215
    %v3573 = vmul.f32 %v3016, %v3219
    %v3574 = vmul.f32 %v3016, %v3223
    %v3575 = vmul.f32 %v3016, %v3227
    %v3576 = vmul.f32 %v3016, %v3231
    %v3577 = vmul.f32 %v3016, %v3235
    %v3578 = vmul.f32 %v3016, %v3239
    %v3579 = vmul.f32 %v3016, %v3243
    %v3580 = vmul.f32 %v3020, %v3057
    %v3581 = vmul.f32 %v3020, %v3061
    %v3582 = vmul.f32 %v3020, %v3065
    %v3583 = vmul.f32 %v3020, %v3069
    %v3584 = vmul.f32 %v3020, %v3073
    %v3585 = vmul.f32 %v3020, %v3077
    %v3586 = vmul.f32 %v3020, %v3081
    %v3587 = vmul.f32 %v3020, %v3085
    %v3588 = vmul.f32 %v3020, %v3089
    %v3589 = vmul.f32 %v3020, %v3093
    %v3590 = vmul.f32 %v3020, %v3097
    %v3591 = vmul.f32 %v3020, %v3101
    %v3592 = vmul.f32 %v3020, %v3105
    %v3593 = vmul.f32 %v3020, %v3109
    %v3594 = vmul.f32 %v3020, %v3113
    %v3595 = vmul.f32 %v3020, %v3117
    %v3596 = vmul.f32 %v3020, %v3120
    %v3597 = vmul.f32 %v3020, %v3124
    %v3598 = vmul.f32 %v3020, %v3128
    %v3599 = vmul.f32 %v3020, %v3132
    %v3600 = vmul.f32 %v3020, %v3136
    %v3601 = vmul.f32 %v3020, %v3140
    %v3602 = vmul.f32 %v3020, %v3144
    %v3603 = vmul.f32 %v3020, %v3148
    %v3604 = vmul.f32 %v3020, %v3152
    %v3605 = vmul.f32 %v3020, %v3156
    %v3606 = vmul.f32 %v3020, %v3160
    %v3607 = vmul.f32 %v3020, %v3164
    %v3608 = vmul.f32 %v3020, %v3168
    %v3609 = vmul.f32 %v3020, %v3172
    %v3610 = vmul.f32 %v3020, %v3176
    %v3611 = vmul.f32 %v3020, %v3180
    %v3612 = vmul.f32 %v3020, %v3183
    %v3613 = vmul.f32 %v3020, %v3187
    %v3614 = vmul.f32 %v3020, %v3191
    %v3615 = vmul.f32 %v3020, %v3195
    %v3616 = vmul.f32 %v3020, %v3199
    %v3617 = vmul.f32 %v3020, %v3203
    %v3618 = vmul.f32 %v3020, %v3207
    %v3619 = vmul.f32 %v3020, %v3211
    %v3620 = vmul.f32 %v3020, %v3215
    %v3621 = vmul.f32 %v3020, %v3219
    %v3622 = vmul.f32 %v3020, %v3223
    %v3623 = vmul.f32 %v3020, %v3227
    %v3624 = vmul.f32 %v3020, %v3231
    %v3625 = vmul.f32 %v3020, %v3235
    %v3626 = vmul.f32 %v3020, %v3239
    %v3627 = vmul.f32 %v3020, %v3243
    %v3628 = vmul.f32 %v3024, %v3057
    %v3629 = vmul.f32 %v3024, %v3061
    %v3630 = vmul.f32 %v3024, %v3065
    %v3631 = vmul.f32 %v3024, %v3069
    %v3632 = vmul.f32 %v3024, %v3073
    %v3633 = vmul.f32 %v3024, %v3077
    %v3634 = vmul.f32 %v3024, %v3081
    %v3635 = vmul.f32 %v3024, %v3085
    %v3636 = vmul.f32 %v3024, %v3089
    %v3637 = vmul.f32 %v3024, %v3093
    %v3638 = vmul.f32 %v3024, %v3097
    %v3639 = vmul.f32 %v3024, %v3101
    %v3640 = vmul.f32 %v3024, %v3105
    %v3641 = vmul.f32 %v3024, %v3109
    %v3642 = vmul.f32 %v3024, %v3113
    %v3643 = vmul.f32 %v3024, %v3117
    %v3644 = vmul.f32 %v3024, %v3120
    %v3645 = vmul.f32 %v3024, %v3124
    %v3646 = vmul.f32 %v3024, %v3128
    %v3647 = vmul.f32 %v3024, %v3132
    %v3648 = vmul.f32 %v3024, %v3136
    %v3649 = vmul.f32 %v3024, %v3140
    %v3650 = vmul.f32 %v3024, %v3144
    %v3651 = vmul.f32 %v3024, %v3148
    %v3652 = vmul.f32 %v3024, %v3152
    %v3653 = vmul.f32 %v3024, %v3156
    %v3654 = vmul.f32 %v3024, %v3160
    %v3655 = vmul.f32 %v3024, %v3164
    %v3656 = vmul.f32 %v3024, %v3168
    %v3657 = vmul.f32 %v3024, %v3172
    %v3658 = vmul.f32 %v3024, %v3176
    %v3659 = vmul.f32 %v3024, %v3180
    %v3660 = vmul.f32 %v3024, %v3183
    %v3661 = vmul.f32 %v3024, %v3187
    %v3662 = vmul.f32 %v3024, %v3191
    %v3663 = vmul.f32 %v3024, %v3195
    %v3664 = vmul.f32 %v3024, %v3199
    %v3665 = vmul.f32 %v3024, %v3203
    %v3666 = vmul.f32 %v3024, %v3207
    %v3667 = vmul.f32 %v3024, %v3211
    %v3668 = vmul.f32 %v3024, %v3215
    %v3669 = vmul.f32 %v3024, %v3219
    %v3670 = vmul.f32 %v3024, %v3223
    %v3671 = vmul.f32 %v3024, %v3227
    %v3672 = vmul.f32 %v3024, %v3231
    %v3673 = vmul.f32 %v3024, %v3235
    %v3674 = vmul.f32 %v3024, %v3239
    %v3675 = vmul.f32 %v3024, %v3243
    %v3676 = vadd.f32 %v2609, %v3292
    %v3677 = vadd.f32 %v2610, %v3293
    %v3678 = vadd.f32 %v2611, %v3294
    %v3679 = vadd.f32 %v2612, %v3295
    %v3680 = vadd.f32 %v2613, %v3296
    %v3681 = vadd.f32 %v2614, %v3297
    %v3682 = vadd.f32 %v2615, %v3298
    %v3683 = vadd.f32 %v2616, %v3299
    %v3684 = vadd.f32 %v2617, %v3300
    %v3685 = vadd.f32 %v2618, %v3301
    %v3686 = vadd.f32 %v2619, %v3302
    %v3687 = vadd.f32 %v2620, %v3303
    %v3688 = vadd.f32 %v2621, %v3304
    %v3689 = vadd.f32 %v2622, %v3305
    %v3690 = vadd.f32 %v2623, %v3306
    %v3691 = vadd.f32 %v2624, %v3307
    %v3692 = vadd.f32 %v2625, %v3308
    %v3693 = vadd.f32 %v2626, %v3309
    %v3694 = vadd.f32 %v2627, %v3310
    %v3695 = vadd.f32 %v2628, %v3311
    %v3696 = vadd.f32 %v2629, %v3312
    %v3697 = vadd.f32 %v2630, %v3313
    %v3698 = vadd.f32 %v2631, %v3314
    %v3699 = vadd.f32 %v2632, %v3315
    %v3700 = vadd.f32 %v2633, %v3316
    %v3701 = vadd.f32 %v2634, %v3317
    %v3702 = vadd.f32 %v2635, %v3318
    %v3703 = vadd.f32 %v2636, %v3319
    %v3704 = vadd.f32 %v2637, %v3320
    %v3705 = vadd.f32 %v2638, %v3321
    %v3706 = vadd.f32 %v2639, %v3322
    %v3707 = vadd.f32 %v2640, %v3323
    %v3708 = vadd.f32 %v2641, %v3324
    %v3709 = vadd.f32 %v2642, %v3325
    %v3710 = vadd.f32 %v2643, %v3326
    %v3711 = vadd.f32 %v2644, %v3327
    %v3712 = vadd.f32 %v2645, %v3328
    %v3713 = vadd.f32 %v2646, %v3329
    %v3714 = vadd.f32 %v2647, %v3330
    %v3715 = vadd.f32 %v2648, %v3331
    %v3716 = vadd.f32 %v2649, %v3332
    %v3717 = vadd.f32 %v2650, %v3333
    %v3718 = vadd.f32 %v2651, %v3334
    %v3719 = vadd.f32 %v2652, %v3335
    %v3720 = vadd.f32 %v2653, %v3336
    %v3721 = vadd.f32 %v2654, %v3337
    %v3722 = vadd.f32 %v2655, %v3338
    %v3723 = vadd.f32 %v2656, %v3339
    %v3724 = vadd.f32 %v2657, %v3340
    %v3725 = vadd.f32 %v2658, %v3341
    %v3726 = vadd.f32 %v2659, %v3342
    %v3727 = vadd.f32 %v2660, %v3343
    %v3728 = vadd.f32 %v2661, %v3344
    %v3729 = vadd.f32 %v2662, %v3345
    %v3730 = vadd.f32 %v2663, %v3346
    %v3731 = vadd.f32 %v2664, %v3347
    %v3732 = vadd.f32 %v2665, %v3348
    %v3733 = vadd.f32 %v2666, %v3349
    %v3734 = vadd.f32 %v2667, %v3350
    %v3735 = vadd.f32 %v2668, %v3351
    %v3736 = vadd.f32 %v2669, %v3352
    %v3737 = vadd.f32 %v2670, %v3353
    %v3738 = vadd.f32 %v2671, %v3354
    %v3739 = vadd.f32 %v2672, %v3355
    %v3740 = vadd.f32 %v2673, %v3356
    %v3741 = vadd.f32 %v2674, %v3357
    %v3742 = vadd.f32 %v2675, %v3358
    %v3743 = vadd.f32 %v2676, %v3359
    %v3744 = vadd.f32 %v2677, %v3360
    %v3745 = vadd.f32 %v2678, %v3361
    %v3746 = vadd.f32 %v2679, %v3362
    %v3747 = vadd.f32 %v2680, %v3363
    %v3748 = vadd.f32 %v2681, %v3364
    %v3749 = vadd.f32 %v2682, %v3365
    %v3750 = vadd.f32 %v2683, %v3366
    %v3751 = vadd.f32 %v2684, %v3367
    %v3752 = vadd.f32 %v2685, %v3368
    %v3753 = vadd.f32 %v2686, %v3369
    %v3754 = vadd.f32 %v2687, %v3370
    %v3755 = vadd.f32 %v2688, %v3371
    %v3756 = vadd.f32 %v2689, %v3372
    %v3757 = vadd.f32 %v2690, %v3373
    %v3758 = vadd.f32 %v2691, %v3374
    %v3759 = vadd.f32 %v2692, %v3375
    %v3760 = vadd.f32 %v2693, %v3376
    %v3761 = vadd.f32 %v2694, %v3377
    %v3762 = vadd.f32 %v2695, %v3378
    %v3763 = vadd.f32 %v2696, %v3379
    %v3764 = vadd.f32 %v2697, %v3380
    %v3765 = vadd.f32 %v2698, %v3381
    %v3766 = vadd.f32 %v2699, %v3382
    %v3767 = vadd.f32 %v2700, %v3383
    %v3768 = vadd.f32 %v2701, %v3384
    %v3769 = vadd.f32 %v2702, %v3385
    %v3770 = vadd.f32 %v2703, %v3386
    %v3771 = vadd.f32 %v2704, %v3387
    %v3772 = vadd.f32 %v2705, %v3388
    %v3773 = vadd.f32 %v2706, %v3389
    %v3774 = vadd.f32 %v2707, %v3390
    %v3775 = vadd.f32 %v2708, %v3391
    %v3776 = vadd.f32 %v2709, %v3392
    %v3777 = vadd.f32 %v2710, %v3393
    %v3778 = vadd.f32 %v2711, %v3394
    %v3779 = vadd.f32 %v2712, %v3395
    %v3780 = vadd.f32 %v2713, %v3396
    %v3781 = vadd.f32 %v2714, %v3397
    %v3782 = vadd.f32 %v2715, %v3398
    %v3783 = vadd.f32 %v2716, %v3399
    %v3784 = vadd.f32 %v2717, %v3400
    %v3785 = vadd.f32 %v2718, %v3401
    %v3786 = vadd.f32 %v2719, %v3402
    %v3787 = vadd.f32 %v2720, %v3403
    %v3788 = vadd.f32 %v2721, %v3404
    %v3789 = vadd.f32 %v2722, %v3405
    %v3790 = vadd.f32 %v2723, %v3406
    %v3791 = vadd.f32 %v2724, %v3407
    %v3792 = vadd.f32 %v2725, %v3408
    %v3793 = vadd.f32 %v2726, %v3409
    %v3794 = vadd.f32 %v2727, %v3410
    %v3795 = vadd.f32 %v2728, %v3411
    %v3796 = vadd.f32 %v2729, %v3412
    %v3797 = vadd.f32 %v2730, %v3413
    %v3798 = vadd.f32 %v2731, %v3414
    %v3799 = vadd.f32 %v2732, %v3415
    %v3800 = vadd.f32 %v2733, %v3416
    %v3801 = vadd.f32 %v2734, %v3417
    %v3802 = vadd.f32 %v2735, %v3418
    %v3803 = vadd.f32 %v2736, %v3419
    %v3804 = vadd.f32 %v2737, %v3420
    %v3805 = vadd.f32 %v2738, %v3421
    %v3806 = vadd.f32 %v2739, %v3422
    %v3807 = vadd.f32 %v2740, %v3423
    %v3808 = vadd.f32 %v2741, %v3424
    %v3809 = vadd.f32 %v2742, %v3425
    %v3810 = vadd.f32 %v2743, %v3426
    %v3811 = vadd.f32 %v2744, %v3427
    %v3812 = vadd.f32 %v2745, %v3428
    %v3813 = vadd.f32 %v2746, %v3429
    %v3814 = vadd.f32 %v2747, %v3430
    %v3815 = vadd.f32 %v2748, %v3431
    %v3816 = vadd.f32 %v2749, %v3432
    %v3817 = vadd.f32 %v2750, %v3433
    %v3818 = vadd.f32 %v2751, %v3434
    %v3819 = vadd.f32 %v2752, %v3435
    %v3820 = vadd.f32 %v2753, %v3436
    %v3821 = vadd.f32 %v2754, %v3437
    %v3822 = vadd.f32 %v2755, %v3438
    %v3823 = vadd.f32 %v2756, %v3439
    %v3824 = vadd.f32 %v2757, %v3440
    %v3825 = vadd.f32 %v2758, %v3441
    %v3826 = vadd.f32 %v2759, %v3442
    %v3827 = vadd.f32 %v2760, %v3443
    %v3828 = vadd.f32 %v2761, %v3444
    %v3829 = vadd.f32 %v2762, %v3445
    %v3830 = vadd.f32 %v2763, %v3446
    %v3831 = vadd.f32 %v2764, %v3447
    %v3832 = vadd.f32 %v2765, %v3448
    %v3833 = vadd.f32 %v2766, %v3449
    %v3834 = vadd.f32 %v2767, %v3450
    %v3835 = vadd.f32 %v2768, %v3451
    %v3836 = vadd.f32 %v2769, %v3452
    %v3837 = vadd.f32 %v2770, %v3453
    %v3838 = vadd.f32 %v2771, %v3454
    %v3839 = vadd.f32 %v2772, %v3455
    %v3840 = vadd.f32 %v2773, %v3456
    %v3841 = vadd.f32 %v2774, %v3457
    %v3842 = vadd.f32 %v2775, %v3458
    %v3843 = vadd.f32 %v2776, %v3459
    %v3844 = vadd.f32 %v2777, %v3460
    %v3845 = vadd.f32 %v2778, %v3461
    %v3846 = vadd.f32 %v2779, %v3462
    %v3847 = vadd.f32 %v2780, %v3463
    %v3848 = vadd.f32 %v2781, %v3464
    %v3849 = vadd.f32 %v2782, %v3465
    %v3850 = vadd.f32 %v2783, %v3466
    %v3851 = vadd.f32 %v2784, %v3467
    %v3852 = vadd.f32 %v2785, %v3468
    %v3853 = vadd.f32 %v2786, %v3469
    %v3854 = vadd.f32 %v2787, %v3470
    %v3855 = vadd.f32 %v2788, %v3471
    %v3856 = vadd.f32 %v2789, %v3472
    %v3857 = vadd.f32 %v2790, %v3473
    %v3858 = vadd.f32 %v2791, %v3474
    %v3859 = vadd.f32 %v2792, %v3475
    %v3860 = vadd.f32 %v2793, %v3476
    %v3861 = vadd.f32 %v2794, %v3477
    %v3862 = vadd.f32 %v2795, %v3478
    %v3863 = vadd.f32 %v2796, %v3479
    %v3864 = vadd.f32 %v2797, %v3480
    %v3865 = vadd.f32 %v2798, %v3481
    %v3866 = vadd.f32 %v2799, %v3482
    %v3867 = vadd.f32 %v2800, %v3483
    %v3868 = vadd.f32 %v2801, %v3484
    %v3869 = vadd.f32 %v2802, %v3485
    %v3870 = vadd.f32 %v2803, %v3486
    %v3871 = vadd.f32 %v2804, %v3487
    %v3872 = vadd.f32 %v2805, %v3488
    %v3873 = vadd.f32 %v2806, %v3489
    %v3874 = vadd.f32 %v2807, %v3490
    %v3875 = vadd.f32 %v2808, %v3491
    %v3876 = vadd.f32 %v2809, %v3492
    %v3877 = vadd.f32 %v2810, %v3493
    %v3878 = vadd.f32 %v2811, %v3494
    %v3879 = vadd.f32 %v2812, %v3495
    %v3880 = vadd.f32 %v2813, %v3496
    %v3881 = vadd.f32 %v2814, %v3497
    %v3882 = vadd.f32 %v2815, %v3498
    %v3883 = vadd.f32 %v2816, %v3499
    %v3884 = vadd.f32 %v2817, %v3500
    %v3885 = vadd.f32 %v2818, %v3501
    %v3886 = vadd.f32 %v2819, %v3502
    %v3887 = vadd.f32 %v2820, %v3503
    %v3888 = vadd.f32 %v2821, %v3504
    %v3889 = vadd.f32 %v2822, %v3505
    %v3890 = vadd.f32 %v2823, %v3506
    %v3891 = vadd.f32 %v2824, %v3507
    %v3892 = vadd.f32 %v2825, %v3508
    %v3893 = vadd.f32 %v2826, %v3509
    %v3894 = vadd.f32 %v2827, %v3510
    %v3895 = vadd.f32 %v2828, %v3511
    %v3896 = vadd.f32 %v2829, %v3512
    %v3897 = vadd.f32 %v2830, %v3513
    %v3898 = vadd.f32 %v2831, %v3514
    %v3899 = vadd.f32 %v2832, %v3515
    %v3900 = vadd.f32 %v2833, %v3516
    %v3901 = vadd.f32 %v2834, %v3517
    %v3902 = vadd.f32 %v2835, %v3518
    %v3903 = vadd.f32 %v2836, %v3519
    %v3904 = vadd.f32 %v2837, %v3520
    %v3905 = vadd.f32 %v2838, %v3521
    %v3906 = vadd.f32 %v2839, %v3522
    %v3907 = vadd.f32 %v2840, %v3523
    %v3908 = vadd.f32 %v2841, %v3524
    %v3909 = vadd.f32 %v2842, %v3525
    %v3910 = vadd.f32 %v2843, %v3526
    %v3911 = vadd.f32 %v2844, %v3527
    %v3912 = vadd.f32 %v2845, %v3528
    %v3913 = vadd.f32 %v2846, %v3529
    %v3914 = vadd.f32 %v2847, %v3530
    %v3915 = vadd.f32 %v2848, %v3531
    %v3916 = vadd.f32 %v2849, %v3532
    %v3917 = vadd.f32 %v2850, %v3533
    %v3918 = vadd.f32 %v2851, %v3534
    %v3919 = vadd.f32 %v2852, %v3535
    %v3920 = vadd.f32 %v2853, %v3536
    %v3921 = vadd.f32 %v2854, %v3537
    %v3922 = vadd.f32 %v2855, %v3538
    %v3923 = vadd.f32 %v2856, %v3539
    %v3924 = vadd.f32 %v2857, %v3540
    %v3925 = vadd.f32 %v2858, %v3541
    %v3926 = vadd.f32 %v2859, %v3542
    %v3927 = vadd.f32 %v2860, %v3543
    %v3928 = vadd.f32 %v2861, %v3544
    %v3929 = vadd.f32 %v2862, %v3545
    %v3930 = vadd.f32 %v2863, %v3546
    %v3931 = vadd.f32 %v2864, %v3547
    %v3932 = vadd.f32 %v2865, %v3548
    %v3933 = vadd.f32 %v2866, %v3549
    %v3934 = vadd.f32 %v2867, %v3550
    %v3935 = vadd.f32 %v2868, %v3551
    %v3936 = vadd.f32 %v2869, %v3552
    %v3937 = vadd.f32 %v2870, %v3553
    %v3938 = vadd.f32 %v2871, %v3554
    %v3939 = vadd.f32 %v2872, %v3555
    %v3940 = vadd.f32 %v2873, %v3556
    %v3941 = vadd.f32 %v2874, %v3557
    %v3942 = vadd.f32 %v2875, %v3558
    %v3943 = vadd.f32 %v2876, %v3559
    %v3944 = vadd.f32 %v2877, %v3560
    %v3945 = vadd.f32 %v2878, %v3561
    %v3946 = vadd.f32 %v2879, %v3562
    %v3947 = vadd.f32 %v2880, %v3563
    %v3948 = vadd.f32 %v2881, %v3564
    %v3949 = vadd.f32 %v2882, %v3565
    %v3950 = vadd.f32 %v2883, %v3566
    %v3951 = vadd.f32 %v2884, %v3567
    %v3952 = vadd.f32 %v2885, %v3568
    %v3953 = vadd.f32 %v2886, %v3569
    %v3954 = vadd.f32 %v2887, %v3570
    %v3955 = vadd.f32 %v2888, %v3571
    %v3956 = vadd.f32 %v2889, %v3572
    %v3957 = vadd.f32 %v2890, %v3573
    %v3958 = vadd.f32 %v2891, %v3574
    %v3959 = vadd.f32 %v2892, %v3575
    %v3960 = vadd.f32 %v2893, %v3576
    %v3961 = vadd.f32 %v2894, %v3577
    %v3962 = vadd.f32 %v2895, %v3578
    %v3963 = vadd.f32 %v2896, %v3579
    %v3964 = vadd.f32 %v2897, %v3580
    %v3965 = vadd.f32 %v2898, %v3581
    %v3966 = vadd.f32 %v2899, %v3582
    %v3967 = vadd.f32 %v2900, %v3583
    %v3968 = vadd.f32 %v2901, %v3584
    %v3969 = vadd.f32 %v2902, %v3585
    %v3970 = vadd.f32 %v2903, %v3586
    %v3971 = vadd.f32 %v2904, %v3587
    %v3972 = vadd.f32 %v2905, %v3588
    %v3973 = vadd.f32 %v2906, %v3589
    %v3974 = vadd.f32 %v2907, %v3590
    %v3975 = vadd.f32 %v2908, %v3591
    %v3976 = vadd.f32 %v2909, %v3592
    %v3977 = vadd.f32 %v2910, %v3593
    %v3978 = vadd.f32 %v2911, %v3594
    %v3979 = vadd.f32 %v2912, %v3595
    %v3980 = vadd.f32 %v2913, %v3596
    %v3981 = vadd.f32 %v2914, %v3597
    %v3982 = vadd.f32 %v2915, %v3598
    %v3983 = vadd.f32 %v2916, %v3599
    %v3984 = vadd.f32 %v2917, %v3600
    %v3985 = vadd.f32 %v2918, %v3601
    %v3986 = vadd.f32 %v2919, %v3602
    %v3987 = vadd.f32 %v2920, %v3603
    %v3988 = vadd.f32 %v2921, %v3604
    %v3989 = vadd.f32 %v2922, %v3605
    %v3990 = vadd.f32 %v2923, %v3606
    %v3991 = vadd.f32 %v2924, %v3607
    %v3992 = vadd.f32 %v2925, %v3608
    %v3993 = vadd.f32 %v2926, %v3609
    %v3994 = vadd.f32 %v2927, %v3610
    %v3995 = vadd.f32 %v2928, %v3611
    %v3996 = vadd.f32 %v2929, %v3612
    %v3997 = vadd.f32 %v2930, %v3613
    %v3998 = vadd.f32 %v2931, %v3614
    %v3999 = vadd.f32 %v2932, %v3615
    %v4000 = vadd.f32 %v2933, %v3616
    %v4001 = vadd.f32 %v2934, %v3617
    %v4002 = vadd.f32 %v2935, %v3618
    %v4003 = vadd.f32 %v2936, %v3619
    %v4004 = vadd.f32 %v2937, %v3620
    %v4005 = vadd.f32 %v2938, %v3621
    %v4006 = vadd.f32 %v2939, %v3622
    %v4007 = vadd.f32 %v2940, %v3623
    %v4008 = vadd.f32 %v2941, %v3624
    %v4009 = vadd.f32 %v2942, %v3625
    %v4010 = vadd.f32 %v2943, %v3626
    %v4011 = vadd.f32 %v2944, %v3627
    %v4012 = vadd.f32 %v2945, %v3628
    %v4013 = vadd.f32 %v2946, %v3629
    %v4014 = vadd.f32 %v2947, %v3630
    %v4015 = vadd.f32 %v2948, %v3631
    %v4016 = vadd.f32 %v2949, %v3632
    %v4017 = vadd.f32 %v2950, %v3633
    %v4018 = vadd.f32 %v2951, %v3634
    %v4019 = vadd.f32 %v2952, %v3635
    %v4020 = vadd.f32 %v2953, %v3636
    %v4021 = vadd.f32 %v2954, %v3637
    %v4022 = vadd.f32 %v2955, %v3638
    %v4023 = vadd.f32 %v2956, %v3639
    %v4024 = vadd.f32 %v2957, %v3640
    %v4025 = vadd.f32 %v2958, %v3641
    %v4026 = vadd.f32 %v2959, %v3642
    %v4027 = vadd.f32 %v2960, %v3643
    %v4028 = vadd.f32 %v2961, %v3644
    %v4029 = vadd.f32 %v2962, %v3645
    %v4030 = vadd.f32 %v2963, %v3646
    %v4031 = vadd.f32 %v2964, %v3647
    %v4032 = vadd.f32 %v2965, %v3648
    %v4033 = vadd.f32 %v2966, %v3649
    %v4034 = vadd.f32 %v2967, %v3650
    %v4035 = vadd.f32 %v2968, %v3651
    %v4036 = vadd.f32 %v2969, %v3652
    %v4037 = vadd.f32 %v2970, %v3653
    %v4038 = vadd.f32 %v2971, %v3654
    %v4039 = vadd.f32 %v2972, %v3655
    %v4040 = vadd.f32 %v2973, %v3656
    %v4041 = vadd.f32 %v2974, %v3657
    %v4042 = vadd.f32 %v2975, %v3658
    %v4043 = vadd.f32 %v2976, %v3659
    %v4044 = vadd.f32 %v2977, %v3660
    %v4045 = vadd.f32 %v2978, %v3661
    %v4046 = vadd.f32 %v2979, %v3662
    %v4047 = vadd.f32 %v2980, %v3663
    %v4048 = vadd.f32 %v2981, %v3664
    %v4049 = vadd.f32 %v2982, %v3665
    %v4050 = vadd.f32 %v2983, %v3666
    %v4051 = vadd.f32 %v2984, %v3667
    %v4052 = vadd.f32 %v2985, %v3668
    %v4053 = vadd.f32 %v2986, %v3669
    %v4054 = vadd.f32 %v2987, %v3670
    %v4055 = vadd.f32 %v2988, %v3671
    %v4056 = vadd.f32 %v2989, %v3672
    %v4057 = vadd.f32 %v2990, %v3673
    %v4058 = vadd.f32 %v2991, %v3674
    %v4059 = vadd.f32 %v2992, %v3675
    %v4060 = vld [vmem:[%s2] sm:$0x7]
    %v4062 = vlaneseq
    %v4063 = vshrl.u32 %v4062, 7
    %v4064 = vsub.s32 0, %v4063
    %v4065 = vrot.slane %v4060, %v4064
    %v4066 = vlaneseq
    %v4067 = vshrl.u32 %v4066, 7
    %v4068 = vsub.s32 1, %v4067
    %v4069 = vrot.slane %v4060, %v4068
    %v4070 = vlaneseq
    %v4071 = vshrl.u32 %v4070, 7
    %v4072 = vsub.s32 2, %v4071
    %v4073 = vrot.slane %v4060, %v4072
    %4075 = vbcast.lane.b32.xlu0 %v4065, 256
    %v4076 = vpop.permute.xlu0 %4075
    %s4078 = sor.u32 256, 8
    %4079 = vbcast.lane.b32.xlu0 %v4065, %s4078
    %v4080 = vpop.permute.xlu0 %4079
    %s4082 = sor.u32 256, 16
    %4083 = vbcast.lane.b32.xlu0 %v4065, %s4082
    %v4084 = vpop.permute.xlu0 %4083
    %s4086 = sor.u32 256, 24
    %4087 = vbcast.lane.b32.xlu0 %v4065, %s4086
    %v4088 = vpop.permute.xlu0 %4087
    %s4090 = sor.u32 256, 32
    %4091 = vbcast.lane.b32.xlu0 %v4065, %s4090
    %v4092 = vpop.permute.xlu0 %4091
    %s4094 = sor.u32 256, 40
    %4095 = vbcast.lane.b32.xlu0 %v4065, %s4094
    %v4096 = vpop.permute.xlu0 %4095
    %s4098 = sor.u32 256, 48
    %4099 = vbcast.lane.b32.xlu0 %v4065, %s4098
    %v4100 = vpop.permute.xlu0 %4099
    %s4102 = sor.u32 256, 56
    %4103 = vbcast.lane.b32.xlu0 %v4065, %s4102
    %v4104 = vpop.permute.xlu0 %4103
    %s4106 = sor.u32 256, 64
    %4107 = vbcast.lane.b32.xlu0 %v4065, %s4106
    %v4108 = vpop.permute.xlu0 %4107
    %s4110 = sor.u32 256, 72
    %4111 = vbcast.lane.b32.xlu0 %v4065, %s4110
    %v4112 = vpop.permute.xlu0 %4111
    %s4114 = sor.u32 256, 80
    %4115 = vbcast.lane.b32.xlu0 %v4065, %s4114
    %v4116 = vpop.permute.xlu0 %4115
    %s4118 = sor.u32 256, 88
    %4119 = vbcast.lane.b32.xlu0 %v4065, %s4118
    %v4120 = vpop.permute.xlu0 %4119
    %s4122 = sor.u32 256, 96
    %4123 = vbcast.lane.b32.xlu0 %v4065, %s4122
    %v4124 = vpop.permute.xlu0 %4123
    %s4126 = sor.u32 256, 104
    %4127 = vbcast.lane.b32.xlu0 %v4065, %s4126
    %v4128 = vpop.permute.xlu0 %4127
    %s4130 = sor.u32 256, 112
    %4131 = vbcast.lane.b32.xlu0 %v4065, %s4130
    %v4132 = vpop.permute.xlu0 %4131
    %s4134 = sor.u32 256, 120
    %4135 = vbcast.lane.b32.xlu0 %v4065, %s4134
    %v4136 = vpop.permute.xlu0 %4135
    %4138 = vbcast.lane.b32.xlu0 %v4069, 256
    %v4139 = vpop.permute.xlu0 %4138
    %s4141 = sor.u32 256, 8
    %4142 = vbcast.lane.b32.xlu0 %v4069, %s4141
    %v4143 = vpop.permute.xlu0 %4142
    %s4145 = sor.u32 256, 16
    %4146 = vbcast.lane.b32.xlu0 %v4069, %s4145
    %v4147 = vpop.permute.xlu0 %4146
    %s4149 = sor.u32 256, 24
    %4150 = vbcast.lane.b32.xlu0 %v4069, %s4149
    %v4151 = vpop.permute.xlu0 %4150
    %s4153 = sor.u32 256, 32
    %4154 = vbcast.lane.b32.xlu0 %v4069, %s4153
    %v4155 = vpop.permute.xlu0 %4154
    %s4157 = sor.u32 256, 40
    %4158 = vbcast.lane.b32.xlu0 %v4069, %s4157
    %v4159 = vpop.permute.xlu0 %4158
    %s4161 = sor.u32 256, 48
    %4162 = vbcast.lane.b32.xlu0 %v4069, %s4161
    %v4163 = vpop.permute.xlu0 %4162
    %s4165 = sor.u32 256, 56
    %4166 = vbcast.lane.b32.xlu0 %v4069, %s4165
    %v4167 = vpop.permute.xlu0 %4166
    %s4169 = sor.u32 256, 64
    %4170 = vbcast.lane.b32.xlu0 %v4069, %s4169
    %v4171 = vpop.permute.xlu0 %4170
    %s4173 = sor.u32 256, 72
    %4174 = vbcast.lane.b32.xlu0 %v4069, %s4173
    %v4175 = vpop.permute.xlu0 %4174
    %s4177 = sor.u32 256, 80
    %4178 = vbcast.lane.b32.xlu0 %v4069, %s4177
    %v4179 = vpop.permute.xlu0 %4178
    %s4181 = sor.u32 256, 88
    %4182 = vbcast.lane.b32.xlu0 %v4069, %s4181
    %v4183 = vpop.permute.xlu0 %4182
    %s4185 = sor.u32 256, 96
    %4186 = vbcast.lane.b32.xlu0 %v4069, %s4185
    %v4187 = vpop.permute.xlu0 %4186
    %s4189 = sor.u32 256, 104
    %4190 = vbcast.lane.b32.xlu0 %v4069, %s4189
    %v4191 = vpop.permute.xlu0 %4190
    %s4193 = sor.u32 256, 112
    %4194 = vbcast.lane.b32.xlu0 %v4069, %s4193
    %v4195 = vpop.permute.xlu0 %4194
    %s4197 = sor.u32 256, 120
    %4198 = vbcast.lane.b32.xlu0 %v4069, %s4197
    %v4199 = vpop.permute.xlu0 %4198
    %4201 = vbcast.lane.b32.xlu0 %v4073, 256
    %v4202 = vpop.permute.xlu0 %4201
    %s4204 = sor.u32 256, 8
    %4205 = vbcast.lane.b32.xlu0 %v4073, %s4204
    %v4206 = vpop.permute.xlu0 %4205
    %s4208 = sor.u32 256, 16
    %4209 = vbcast.lane.b32.xlu0 %v4073, %s4208
    %v4210 = vpop.permute.xlu0 %4209
    %s4212 = sor.u32 256, 24
    %4213 = vbcast.lane.b32.xlu0 %v4073, %s4212
    %v4214 = vpop.permute.xlu0 %4213
    %s4216 = sor.u32 256, 32
    %4217 = vbcast.lane.b32.xlu0 %v4073, %s4216
    %v4218 = vpop.permute.xlu0 %4217
    %s4220 = sor.u32 256, 40
    %4221 = vbcast.lane.b32.xlu0 %v4073, %s4220
    %v4222 = vpop.permute.xlu0 %4221
    %s4224 = sor.u32 256, 48
    %4225 = vbcast.lane.b32.xlu0 %v4073, %s4224
    %v4226 = vpop.permute.xlu0 %4225
    %s4228 = sor.u32 256, 56
    %4229 = vbcast.lane.b32.xlu0 %v4073, %s4228
    %v4230 = vpop.permute.xlu0 %4229
    %s4232 = sor.u32 256, 64
    %4233 = vbcast.lane.b32.xlu0 %v4073, %s4232
    %v4234 = vpop.permute.xlu0 %4233
    %s4236 = sor.u32 256, 72
    %4237 = vbcast.lane.b32.xlu0 %v4073, %s4236
    %v4238 = vpop.permute.xlu0 %4237
    %s4240 = sor.u32 256, 80
    %4241 = vbcast.lane.b32.xlu0 %v4073, %s4240
    %v4242 = vpop.permute.xlu0 %4241
    %s4244 = sor.u32 256, 88
    %4245 = vbcast.lane.b32.xlu0 %v4073, %s4244
    %v4246 = vpop.permute.xlu0 %4245
    %s4248 = sor.u32 256, 96
    %4249 = vbcast.lane.b32.xlu0 %v4073, %s4248
    %v4250 = vpop.permute.xlu0 %4249
    %s4252 = sor.u32 256, 104
    %4253 = vbcast.lane.b32.xlu0 %v4073, %s4252
    %v4254 = vpop.permute.xlu0 %4253
    %s4256 = sor.u32 256, 112
    %4257 = vbcast.lane.b32.xlu0 %v4073, %s4256
    %v4258 = vpop.permute.xlu0 %4257
    %s4260 = sor.u32 256, 120
    %4261 = vbcast.lane.b32.xlu0 %v4073, %s4260
    %v4262 = vpop.permute.xlu0 %4261
    %v4311 = vadd.f32 %v3676, %v4076
    %v4312 = vadd.f32 %v3677, %v4080
    %v4313 = vadd.f32 %v3678, %v4084
    %v4314 = vadd.f32 %v3679, %v4088
    %v4315 = vadd.f32 %v3680, %v4092
    %v4316 = vadd.f32 %v3681, %v4096
    %v4317 = vadd.f32 %v3682, %v4100
    %v4318 = vadd.f32 %v3683, %v4104
    %v4319 = vadd.f32 %v3684, %v4108
    %v4320 = vadd.f32 %v3685, %v4112
    %v4321 = vadd.f32 %v3686, %v4116
    %v4322 = vadd.f32 %v3687, %v4120
    %v4323 = vadd.f32 %v3688, %v4124
    %v4324 = vadd.f32 %v3689, %v4128
    %v4325 = vadd.f32 %v3690, %v4132
    %v4326 = vadd.f32 %v3691, %v4136
    %v4327 = vadd.f32 %v3692, %v4139
    %v4328 = vadd.f32 %v3693, %v4143
    %v4329 = vadd.f32 %v3694, %v4147
    %v4330 = vadd.f32 %v3695, %v4151
    %v4331 = vadd.f32 %v3696, %v4155
    %v4332 = vadd.f32 %v3697, %v4159
    %v4333 = vadd.f32 %v3698, %v4163
    %v4334 = vadd.f32 %v3699, %v4167
    %v4335 = vadd.f32 %v3700, %v4171
    %v4336 = vadd.f32 %v3701, %v4175
    %v4337 = vadd.f32 %v3702, %v4179
    %v4338 = vadd.f32 %v3703, %v4183
    %v4339 = vadd.f32 %v3704, %v4187
    %v4340 = vadd.f32 %v3705, %v4191
    %v4341 = vadd.f32 %v3706, %v4195
    %v4342 = vadd.f32 %v3707, %v4199
    %v4343 = vadd.f32 %v3708, %v4202
    %v4344 = vadd.f32 %v3709, %v4206
    %v4345 = vadd.f32 %v3710, %v4210
    %v4346 = vadd.f32 %v3711, %v4214
    %v4347 = vadd.f32 %v3712, %v4218
    %v4348 = vadd.f32 %v3713, %v4222
    %v4349 = vadd.f32 %v3714, %v4226
    %v4350 = vadd.f32 %v3715, %v4230
    %v4351 = vadd.f32 %v3716, %v4234
    %v4352 = vadd.f32 %v3717, %v4238
    %v4353 = vadd.f32 %v3718, %v4242
    %v4354 = vadd.f32 %v3719, %v4246
    %v4355 = vadd.f32 %v3720, %v4250
    %v4356 = vadd.f32 %v3721, %v4254
    %v4357 = vadd.f32 %v3722, %v4258
    %v4358 = vadd.f32 %v3723, %v4262
    %v4359 = vadd.f32 %v3724, %v4076
    %v4360 = vadd.f32 %v3725, %v4080
    %v4361 = vadd.f32 %v3726, %v4084
    %v4362 = vadd.f32 %v3727, %v4088
    %v4363 = vadd.f32 %v3728, %v4092
    %v4364 = vadd.f32 %v3729, %v4096
    %v4365 = vadd.f32 %v3730, %v4100
    %v4366 = vadd.f32 %v3731, %v4104
    %v4367 = vadd.f32 %v3732, %v4108
    %v4368 = vadd.f32 %v3733, %v4112
    %v4369 = vadd.f32 %v3734, %v4116
    %v4370 = vadd.f32 %v3735, %v4120
    %v4371 = vadd.f32 %v3736, %v4124
    %v4372 = vadd.f32 %v3737, %v4128
    %v4373 = vadd.f32 %v3738, %v4132
    %v4374 = vadd.f32 %v3739, %v4136
    %v4375 = vadd.f32 %v3740, %v4139
    %v4376 = vadd.f32 %v3741, %v4143
    %v4377 = vadd.f32 %v3742, %v4147
    %v4378 = vadd.f32 %v3743, %v4151
    %v4379 = vadd.f32 %v3744, %v4155
    %v4380 = vadd.f32 %v3745, %v4159
    %v4381 = vadd.f32 %v3746, %v4163
    %v4382 = vadd.f32 %v3747, %v4167
    %v4383 = vadd.f32 %v3748, %v4171
    %v4384 = vadd.f32 %v3749, %v4175
    %v4385 = vadd.f32 %v3750, %v4179
    %v4386 = vadd.f32 %v3751, %v4183
    %v4387 = vadd.f32 %v3752, %v4187
    %v4388 = vadd.f32 %v3753, %v4191
    %v4389 = vadd.f32 %v3754, %v4195
    %v4390 = vadd.f32 %v3755, %v4199
    %v4391 = vadd.f32 %v3756, %v4202
    %v4392 = vadd.f32 %v3757, %v4206
    %v4393 = vadd.f32 %v3758, %v4210
    %v4394 = vadd.f32 %v3759, %v4214
    %v4395 = vadd.f32 %v3760, %v4218
    %v4396 = vadd.f32 %v3761, %v4222
    %v4397 = vadd.f32 %v3762, %v4226
    %v4398 = vadd.f32 %v3763, %v4230
    %v4399 = vadd.f32 %v3764, %v4234
    %v4400 = vadd.f32 %v3765, %v4238
    %v4401 = vadd.f32 %v3766, %v4242
    %v4402 = vadd.f32 %v3767, %v4246
    %v4403 = vadd.f32 %v3768, %v4250
    %v4404 = vadd.f32 %v3769, %v4254
    %v4405 = vadd.f32 %v3770, %v4258
    %v4406 = vadd.f32 %v3771, %v4262
    %v4407 = vadd.f32 %v3772, %v4076
    %v4408 = vadd.f32 %v3773, %v4080
    %v4409 = vadd.f32 %v3774, %v4084
    %v4410 = vadd.f32 %v3775, %v4088
    %v4411 = vadd.f32 %v3776, %v4092
    %v4412 = vadd.f32 %v3777, %v4096
    %v4413 = vadd.f32 %v3778, %v4100
    %v4414 = vadd.f32 %v3779, %v4104
    %v4415 = vadd.f32 %v3780, %v4108
    %v4416 = vadd.f32 %v3781, %v4112
    %v4417 = vadd.f32 %v3782, %v4116
    %v4418 = vadd.f32 %v3783, %v4120
    %v4419 = vadd.f32 %v3784, %v4124
    %v4420 = vadd.f32 %v3785, %v4128
    %v4421 = vadd.f32 %v3786, %v4132
    %v4422 = vadd.f32 %v3787, %v4136
    %v4423 = vadd.f32 %v3788, %v4139
    %v4424 = vadd.f32 %v3789, %v4143
    %v4425 = vadd.f32 %v3790, %v4147
    %v4426 = vadd.f32 %v3791, %v4151
    %v4427 = vadd.f32 %v3792, %v4155
    %v4428 = vadd.f32 %v3793, %v4159
    %v4429 = vadd.f32 %v3794, %v4163
    %v4430 = vadd.f32 %v3795, %v4167
    %v4431 = vadd.f32 %v3796, %v4171
    %v4432 = vadd.f32 %v3797, %v4175
    %v4433 = vadd.f32 %v3798, %v4179
    %v4434 = vadd.f32 %v3799, %v4183
    %v4435 = vadd.f32 %v3800, %v4187
    %v4436 = vadd.f32 %v3801, %v4191
    %v4437 = vadd.f32 %v3802, %v4195
    %v4438 = vadd.f32 %v3803, %v4199
    %v4439 = vadd.f32 %v3804, %v4202
    %v4440 = vadd.f32 %v3805, %v4206
    %v4441 = vadd.f32 %v3806, %v4210
    %v4442 = vadd.f32 %v3807, %v4214
    %v4443 = vadd.f32 %v3808, %v4218
    %v4444 = vadd.f32 %v3809, %v4222
    %v4445 = vadd.f32 %v3810, %v4226
    %v4446 = vadd.f32 %v3811, %v4230
    %v4447 = vadd.f32 %v3812, %v4234
    %v4448 = vadd.f32 %v3813, %v4238
    %v4449 = vadd.f32 %v3814, %v4242
    %v4450 = vadd.f32 %v3815, %v4246
    %v4451 = vadd.f32 %v3816, %v4250
    %v4452 = vadd.f32 %v3817, %v4254
    %v4453 = vadd.f32 %v3818, %v4258
    %v4454 = vadd.f32 %v3819, %v4262
    %v4455 = vadd.f32 %v3820, %v4076
    %v4456 = vadd.f32 %v3821, %v4080
    %v4457 = vadd.f32 %v3822, %v4084
    %v4458 = vadd.f32 %v3823, %v4088
    %v4459 = vadd.f32 %v3824, %v4092
    %v4460 = vadd.f32 %v3825, %v4096
    %v4461 = vadd.f32 %v3826, %v4100
    %v4462 = vadd.f32 %v3827, %v4104
    %v4463 = vadd.f32 %v3828, %v4108
    %v4464 = vadd.f32 %v3829, %v4112
    %v4465 = vadd.f32 %v3830, %v4116
    %v4466 = vadd.f32 %v3831, %v4120
    %v4467 = vadd.f32 %v3832, %v4124
    %v4468 = vadd.f32 %v3833, %v4128
    %v4469 = vadd.f32 %v3834, %v4132
    %v4470 = vadd.f32 %v3835, %v4136
    %v4471 = vadd.f32 %v3836, %v4139
    %v4472 = vadd.f32 %v3837, %v4143
    %v4473 = vadd.f32 %v3838, %v4147
    %v4474 = vadd.f32 %v3839, %v4151
    %v4475 = vadd.f32 %v3840, %v4155
    %v4476 = vadd.f32 %v3841, %v4159
    %v4477 = vadd.f32 %v3842, %v4163
    %v4478 = vadd.f32 %v3843, %v4167
    %v4479 = vadd.f32 %v3844, %v4171
    %v4480 = vadd.f32 %v3845, %v4175
    %v4481 = vadd.f32 %v3846, %v4179
    %v4482 = vadd.f32 %v3847, %v4183
    %v4483 = vadd.f32 %v3848, %v4187
    %v4484 = vadd.f32 %v3849, %v4191
    %v4485 = vadd.f32 %v3850, %v4195
    %v4486 = vadd.f32 %v3851, %v4199
    %v4487 = vadd.f32 %v3852, %v4202
    %v4488 = vadd.f32 %v3853, %v4206
    %v4489 = vadd.f32 %v3854, %v4210
    %v4490 = vadd.f32 %v3855, %v4214
    %v4491 = vadd.f32 %v3856, %v4218
    %v4492 = vadd.f32 %v3857, %v4222
    %v4493 = vadd.f32 %v3858, %v4226
    %v4494 = vadd.f32 %v3859, %v4230
    %v4495 = vadd.f32 %v3860, %v4234
    %v4496 = vadd.f32 %v3861, %v4238
    %v4497 = vadd.f32 %v3862, %v4242
    %v4498 = vadd.f32 %v3863, %v4246
    %v4499 = vadd.f32 %v3864, %v4250
    %v4500 = vadd.f32 %v3865, %v4254
    %v4501 = vadd.f32 %v3866, %v4258
    %v4502 = vadd.f32 %v3867, %v4262
    %v4503 = vadd.f32 %v3868, %v4076
    %v4504 = vadd.f32 %v3869, %v4080
    %v4505 = vadd.f32 %v3870, %v4084
    %v4506 = vadd.f32 %v3871, %v4088
    %v4507 = vadd.f32 %v3872, %v4092
    %v4508 = vadd.f32 %v3873, %v4096
    %v4509 = vadd.f32 %v3874, %v4100
    %v4510 = vadd.f32 %v3875, %v4104
    %v4511 = vadd.f32 %v3876, %v4108
    %v4512 = vadd.f32 %v3877, %v4112
    %v4513 = vadd.f32 %v3878, %v4116
    %v4514 = vadd.f32 %v3879, %v4120
    %v4515 = vadd.f32 %v3880, %v4124
    %v4516 = vadd.f32 %v3881, %v4128
    %v4517 = vadd.f32 %v3882, %v4132
    %v4518 = vadd.f32 %v3883, %v4136
    %v4519 = vadd.f32 %v3884, %v4139
    %v4520 = vadd.f32 %v3885, %v4143
    %v4521 = vadd.f32 %v3886, %v4147
    %v4522 = vadd.f32 %v3887, %v4151
    %v4523 = vadd.f32 %v3888, %v4155
    %v4524 = vadd.f32 %v3889, %v4159
    %v4525 = vadd.f32 %v3890, %v4163
    %v4526 = vadd.f32 %v3891, %v4167
    %v4527 = vadd.f32 %v3892, %v4171
    %v4528 = vadd.f32 %v3893, %v4175
    %v4529 = vadd.f32 %v3894, %v4179
    %v4530 = vadd.f32 %v3895, %v4183
    %v4531 = vadd.f32 %v3896, %v4187
    %v4532 = vadd.f32 %v3897, %v4191
    %v4533 = vadd.f32 %v3898, %v4195
    %v4534 = vadd.f32 %v3899, %v4199
    %v4535 = vadd.f32 %v3900, %v4202
    %v4536 = vadd.f32 %v3901, %v4206
    %v4537 = vadd.f32 %v3902, %v4210
    %v4538 = vadd.f32 %v3903, %v4214
    %v4539 = vadd.f32 %v3904, %v4218
    %v4540 = vadd.f32 %v3905, %v4222
    %v4541 = vadd.f32 %v3906, %v4226
    %v4542 = vadd.f32 %v3907, %v4230
    %v4543 = vadd.f32 %v3908, %v4234
    %v4544 = vadd.f32 %v3909, %v4238
    %v4545 = vadd.f32 %v3910, %v4242
    %v4546 = vadd.f32 %v3911, %v4246
    %v4547 = vadd.f32 %v3912, %v4250
    %v4548 = vadd.f32 %v3913, %v4254
    %v4549 = vadd.f32 %v3914, %v4258
    %v4550 = vadd.f32 %v3915, %v4262
    %v4551 = vadd.f32 %v3916, %v4076
    %v4552 = vadd.f32 %v3917, %v4080
    %v4553 = vadd.f32 %v3918, %v4084
    %v4554 = vadd.f32 %v3919, %v4088
    %v4555 = vadd.f32 %v3920, %v4092
    %v4556 = vadd.f32 %v3921, %v4096
    %v4557 = vadd.f32 %v3922, %v4100
    %v4558 = vadd.f32 %v3923, %v4104
    %v4559 = vadd.f32 %v3924, %v4108
    %v4560 = vadd.f32 %v3925, %v4112
    %v4561 = vadd.f32 %v3926, %v4116
    %v4562 = vadd.f32 %v3927, %v4120
    %v4563 = vadd.f32 %v3928, %v4124
    %v4564 = vadd.f32 %v3929, %v4128
    %v4565 = vadd.f32 %v3930, %v4132
    %v4566 = vadd.f32 %v3931, %v4136
    %v4567 = vadd.f32 %v3932, %v4139
    %v4568 = vadd.f32 %v3933, %v4143
    %v4569 = vadd.f32 %v3934, %v4147
    %v4570 = vadd.f32 %v3935, %v4151
    %v4571 = vadd.f32 %v3936, %v4155
    %v4572 = vadd.f32 %v3937, %v4159
    %v4573 = vadd.f32 %v3938, %v4163
    %v4574 = vadd.f32 %v3939, %v4167
    %v4575 = vadd.f32 %v3940, %v4171
    %v4576 = vadd.f32 %v3941, %v4175
    %v4577 = vadd.f32 %v3942, %v4179
    %v4578 = vadd.f32 %v3943, %v4183
    %v4579 = vadd.f32 %v3944, %v4187
    %v4580 = vadd.f32 %v3945, %v4191
    %v4581 = vadd.f32 %v3946, %v4195
    %v4582 = vadd.f32 %v3947, %v4199
    %v4583 = vadd.f32 %v3948, %v4202
    %v4584 = vadd.f32 %v3949, %v4206
    %v4585 = vadd.f32 %v3950, %v4210
    %v4586 = vadd.f32 %v3951, %v4214
    %v4587 = vadd.f32 %v3952, %v4218
    %v4588 = vadd.f32 %v3953, %v4222
    %v4589 = vadd.f32 %v3954, %v4226
    %v4590 = vadd.f32 %v3955, %v4230
    %v4591 = vadd.f32 %v3956, %v4234
    %v4592 = vadd.f32 %v3957, %v4238
    %v4593 = vadd.f32 %v3958, %v4242
    %v4594 = vadd.f32 %v3959, %v4246
    %v4595 = vadd.f32 %v3960, %v4250
    %v4596 = vadd.f32 %v3961, %v4254
    %v4597 = vadd.f32 %v3962, %v4258
    %v4598 = vadd.f32 %v3963, %v4262
    %v4599 = vadd.f32 %v3964, %v4076
    %v4600 = vadd.f32 %v3965, %v4080
    %v4601 = vadd.f32 %v3966, %v4084
    %v4602 = vadd.f32 %v3967, %v4088
    %v4603 = vadd.f32 %v3968, %v4092
    %v4604 = vadd.f32 %v3969, %v4096
    %v4605 = vadd.f32 %v3970, %v4100
    %v4606 = vadd.f32 %v3971, %v4104
    %v4607 = vadd.f32 %v3972, %v4108
    %v4608 = vadd.f32 %v3973, %v4112
    %v4609 = vadd.f32 %v3974, %v4116
    %v4610 = vadd.f32 %v3975, %v4120
    %v4611 = vadd.f32 %v3976, %v4124
    %v4612 = vadd.f32 %v3977, %v4128
    %v4613 = vadd.f32 %v3978, %v4132
    %v4614 = vadd.f32 %v3979, %v4136
    %v4615 = vadd.f32 %v3980, %v4139
    %v4616 = vadd.f32 %v3981, %v4143
    %v4617 = vadd.f32 %v3982, %v4147
    %v4618 = vadd.f32 %v3983, %v4151
    %v4619 = vadd.f32 %v3984, %v4155
    %v4620 = vadd.f32 %v3985, %v4159
    %v4621 = vadd.f32 %v3986, %v4163
    %v4622 = vadd.f32 %v3987, %v4167
    %v4623 = vadd.f32 %v3988, %v4171
    %v4624 = vadd.f32 %v3989, %v4175
    %v4625 = vadd.f32 %v3990, %v4179
    %v4626 = vadd.f32 %v3991, %v4183
    %v4627 = vadd.f32 %v3992, %v4187
    %v4628 = vadd.f32 %v3993, %v4191
    %v4629 = vadd.f32 %v3994, %v4195
    %v4630 = vadd.f32 %v3995, %v4199
    %v4631 = vadd.f32 %v3996, %v4202
    %v4632 = vadd.f32 %v3997, %v4206
    %v4633 = vadd.f32 %v3998, %v4210
    %v4634 = vadd.f32 %v3999, %v4214
    %v4635 = vadd.f32 %v4000, %v4218
    %v4636 = vadd.f32 %v4001, %v4222
    %v4637 = vadd.f32 %v4002, %v4226
    %v4638 = vadd.f32 %v4003, %v4230
    %v4639 = vadd.f32 %v4004, %v4234
    %v4640 = vadd.f32 %v4005, %v4238
    %v4641 = vadd.f32 %v4006, %v4242
    %v4642 = vadd.f32 %v4007, %v4246
    %v4643 = vadd.f32 %v4008, %v4250
    %v4644 = vadd.f32 %v4009, %v4254
    %v4645 = vadd.f32 %v4010, %v4258
    %v4646 = vadd.f32 %v4011, %v4262
    %v4647 = vadd.f32 %v4012, %v4076
    %v4648 = vadd.f32 %v4013, %v4080
    %v4649 = vadd.f32 %v4014, %v4084
    %v4650 = vadd.f32 %v4015, %v4088
    %v4651 = vadd.f32 %v4016, %v4092
    %v4652 = vadd.f32 %v4017, %v4096
    %v4653 = vadd.f32 %v4018, %v4100
    %v4654 = vadd.f32 %v4019, %v4104
    %v4655 = vadd.f32 %v4020, %v4108
    %v4656 = vadd.f32 %v4021, %v4112
    %v4657 = vadd.f32 %v4022, %v4116
    %v4658 = vadd.f32 %v4023, %v4120
    %v4659 = vadd.f32 %v4024, %v4124
    %v4660 = vadd.f32 %v4025, %v4128
    %v4661 = vadd.f32 %v4026, %v4132
    %v4662 = vadd.f32 %v4027, %v4136
    %v4663 = vadd.f32 %v4028, %v4139
    %v4664 = vadd.f32 %v4029, %v4143
    %v4665 = vadd.f32 %v4030, %v4147
    %v4666 = vadd.f32 %v4031, %v4151
    %v4667 = vadd.f32 %v4032, %v4155
    %v4668 = vadd.f32 %v4033, %v4159
    %v4669 = vadd.f32 %v4034, %v4163
    %v4670 = vadd.f32 %v4035, %v4167
    %v4671 = vadd.f32 %v4036, %v4171
    %v4672 = vadd.f32 %v4037, %v4175
    %v4673 = vadd.f32 %v4038, %v4179
    %v4674 = vadd.f32 %v4039, %v4183
    %v4675 = vadd.f32 %v4040, %v4187
    %v4676 = vadd.f32 %v4041, %v4191
    %v4677 = vadd.f32 %v4042, %v4195
    %v4678 = vadd.f32 %v4043, %v4199
    %v4679 = vadd.f32 %v4044, %v4202
    %v4680 = vadd.f32 %v4045, %v4206
    %v4681 = vadd.f32 %v4046, %v4210
    %v4682 = vadd.f32 %v4047, %v4214
    %v4683 = vadd.f32 %v4048, %v4218
    %v4684 = vadd.f32 %v4049, %v4222
    %v4685 = vadd.f32 %v4050, %v4226
    %v4686 = vadd.f32 %v4051, %v4230
    %v4687 = vadd.f32 %v4052, %v4234
    %v4688 = vadd.f32 %v4053, %v4238
    %v4689 = vadd.f32 %v4054, %v4242
    %v4690 = vadd.f32 %v4055, %v4246
    %v4691 = vadd.f32 %v4056, %v4250
    %v4692 = vadd.f32 %v4057, %v4254
    %v4693 = vadd.f32 %v4058, %v4258
    %v4694 = vadd.f32 %v4059, %v4262
    %v4695 = vpack.c.bf16 %v4312, %v4311
    %v4696 = vpack.c.bf16 %v4314, %v4313
    %v4697 = vpack.c.bf16 %v4316, %v4315
    %v4698 = vpack.c.bf16 %v4318, %v4317
    %v4699 = vpack.c.bf16 %v4320, %v4319
    %v4700 = vpack.c.bf16 %v4322, %v4321
    %v4701 = vpack.c.bf16 %v4324, %v4323
    %v4702 = vpack.c.bf16 %v4326, %v4325
    %v4703 = vpack.c.bf16 %v4328, %v4327
    %v4704 = vpack.c.bf16 %v4330, %v4329
    %v4705 = vpack.c.bf16 %v4332, %v4331
    %v4706 = vpack.c.bf16 %v4334, %v4333
    %v4707 = vpack.c.bf16 %v4336, %v4335
    %v4708 = vpack.c.bf16 %v4338, %v4337
    %v4709 = vpack.c.bf16 %v4340, %v4339
    %v4710 = vpack.c.bf16 %v4342, %v4341
    %v4711 = vpack.c.bf16 %v4344, %v4343
    %v4712 = vpack.c.bf16 %v4346, %v4345
    %v4713 = vpack.c.bf16 %v4348, %v4347
    %v4714 = vpack.c.bf16 %v4350, %v4349
    %v4715 = vpack.c.bf16 %v4352, %v4351
    %v4716 = vpack.c.bf16 %v4354, %v4353
    %v4717 = vpack.c.bf16 %v4356, %v4355
    %v4718 = vpack.c.bf16 %v4358, %v4357
    %v4719 = vpack.c.bf16 %v4360, %v4359
    %v4720 = vpack.c.bf16 %v4362, %v4361
    %v4721 = vpack.c.bf16 %v4364, %v4363
    %v4722 = vpack.c.bf16 %v4366, %v4365
    %v4723 = vpack.c.bf16 %v4368, %v4367
    %v4724 = vpack.c.bf16 %v4370, %v4369
    %v4725 = vpack.c.bf16 %v4372, %v4371
    %v4726 = vpack.c.bf16 %v4374, %v4373
    %v4727 = vpack.c.bf16 %v4376, %v4375
    %v4728 = vpack.c.bf16 %v4378, %v4377
    %v4729 = vpack.c.bf16 %v4380, %v4379
    %v4730 = vpack.c.bf16 %v4382, %v4381
    %v4731 = vpack.c.bf16 %v4384, %v4383
    %v4732 = vpack.c.bf16 %v4386, %v4385
    %v4733 = vpack.c.bf16 %v4388, %v4387
    %v4734 = vpack.c.bf16 %v4390, %v4389
    %v4735 = vpack.c.bf16 %v4392, %v4391
    %v4736 = vpack.c.bf16 %v4394, %v4393
    %v4737 = vpack.c.bf16 %v4396, %v4395
    %v4738 = vpack.c.bf16 %v4398, %v4397
    %v4739 = vpack.c.bf16 %v4400, %v4399
    %v4740 = vpack.c.bf16 %v4402, %v4401
    %v4741 = vpack.c.bf16 %v4404, %v4403
    %v4742 = vpack.c.bf16 %v4406, %v4405
    %v4743 = vpack.c.bf16 %v4408, %v4407
    %v4744 = vpack.c.bf16 %v4410, %v4409
    %v4745 = vpack.c.bf16 %v4412, %v4411
    %v4746 = vpack.c.bf16 %v4414, %v4413
    %v4747 = vpack.c.bf16 %v4416, %v4415
    %v4748 = vpack.c.bf16 %v4418, %v4417
    %v4749 = vpack.c.bf16 %v4420, %v4419
    %v4750 = vpack.c.bf16 %v4422, %v4421
    %v4751 = vpack.c.bf16 %v4424, %v4423
    %v4752 = vpack.c.bf16 %v4426, %v4425
    %v4753 = vpack.c.bf16 %v4428, %v4427
    %v4754 = vpack.c.bf16 %v4430, %v4429
    %v4755 = vpack.c.bf16 %v4432, %v4431
    %v4756 = vpack.c.bf16 %v4434, %v4433
    %v4757 = vpack.c.bf16 %v4436, %v4435
    %v4758 = vpack.c.bf16 %v4438, %v4437
    %v4759 = vpack.c.bf16 %v4440, %v4439
    %v4760 = vpack.c.bf16 %v4442, %v4441
    %v4761 = vpack.c.bf16 %v4444, %v4443
    %v4762 = vpack.c.bf16 %v4446, %v4445
    %v4763 = vpack.c.bf16 %v4448, %v4447
    %v4764 = vpack.c.bf16 %v4450, %v4449
    %v4765 = vpack.c.bf16 %v4452, %v4451
    %v4766 = vpack.c.bf16 %v4454, %v4453
    %v4767 = vpack.c.bf16 %v4456, %v4455
    %v4768 = vpack.c.bf16 %v4458, %v4457
    %v4769 = vpack.c.bf16 %v4460, %v4459
    %v4770 = vpack.c.bf16 %v4462, %v4461
    %v4771 = vpack.c.bf16 %v4464, %v4463
    %v4772 = vpack.c.bf16 %v4466, %v4465
    %v4773 = vpack.c.bf16 %v4468, %v4467
    %v4774 = vpack.c.bf16 %v4470, %v4469
    %v4775 = vpack.c.bf16 %v4472, %v4471
    %v4776 = vpack.c.bf16 %v4474, %v4473
    %v4777 = vpack.c.bf16 %v4476, %v4475
    %v4778 = vpack.c.bf16 %v4478, %v4477
    %v4779 = vpack.c.bf16 %v4480, %v4479
    %v4780 = vpack.c.bf16 %v4482, %v4481
    %v4781 = vpack.c.bf16 %v4484, %v4483
    %v4782 = vpack.c.bf16 %v4486, %v4485
    %v4783 = vpack.c.bf16 %v4488, %v4487
    %v4784 = vpack.c.bf16 %v4490, %v4489
    %v4785 = vpack.c.bf16 %v4492, %v4491
    %v4786 = vpack.c.bf16 %v4494, %v4493
    %v4787 = vpack.c.bf16 %v4496, %v4495
    %v4788 = vpack.c.bf16 %v4498, %v4497
    %v4789 = vpack.c.bf16 %v4500, %v4499
    %v4790 = vpack.c.bf16 %v4502, %v4501
    %v4791 = vpack.c.bf16 %v4504, %v4503
    %v4792 = vpack.c.bf16 %v4506, %v4505
    %v4793 = vpack.c.bf16 %v4508, %v4507
    %v4794 = vpack.c.bf16 %v4510, %v4509
    %v4795 = vpack.c.bf16 %v4512, %v4511
    %v4796 = vpack.c.bf16 %v4514, %v4513
    %v4797 = vpack.c.bf16 %v4516, %v4515
    %v4798 = vpack.c.bf16 %v4518, %v4517
    %v4799 = vpack.c.bf16 %v4520, %v4519
    %v4800 = vpack.c.bf16 %v4522, %v4521
    %v4801 = vpack.c.bf16 %v4524, %v4523
    %v4802 = vpack.c.bf16 %v4526, %v4525
    %v4803 = vpack.c.bf16 %v4528, %v4527
    %v4804 = vpack.c.bf16 %v4530, %v4529
    %v4805 = vpack.c.bf16 %v4532, %v4531
    %v4806 = vpack.c.bf16 %v4534, %v4533
    %v4807 = vpack.c.bf16 %v4536, %v4535
    %v4808 = vpack.c.bf16 %v4538, %v4537
    %v4809 = vpack.c.bf16 %v4540, %v4539
    %v4810 = vpack.c.bf16 %v4542, %v4541
    %v4811 = vpack.c.bf16 %v4544, %v4543
    %v4812 = vpack.c.bf16 %v4546, %v4545
    %v4813 = vpack.c.bf16 %v4548, %v4547
    %v4814 = vpack.c.bf16 %v4550, %v4549
    %v4815 = vpack.c.bf16 %v4552, %v4551
    %v4816 = vpack.c.bf16 %v4554, %v4553
    %v4817 = vpack.c.bf16 %v4556, %v4555
    %v4818 = vpack.c.bf16 %v4558, %v4557
    %v4819 = vpack.c.bf16 %v4560, %v4559
    %v4820 = vpack.c.bf16 %v4562, %v4561
    %v4821 = vpack.c.bf16 %v4564, %v4563
    %v4822 = vpack.c.bf16 %v4566, %v4565
    %v4823 = vpack.c.bf16 %v4568, %v4567
    %v4824 = vpack.c.bf16 %v4570, %v4569
    %v4825 = vpack.c.bf16 %v4572, %v4571
    %v4826 = vpack.c.bf16 %v4574, %v4573
    %v4827 = vpack.c.bf16 %v4576, %v4575
    %v4828 = vpack.c.bf16 %v4578, %v4577
    %v4829 = vpack.c.bf16 %v4580, %v4579
    %v4830 = vpack.c.bf16 %v4582, %v4581
    %v4831 = vpack.c.bf16 %v4584, %v4583
    %v4832 = vpack.c.bf16 %v4586, %v4585
    %v4833 = vpack.c.bf16 %v4588, %v4587
    %v4834 = vpack.c.bf16 %v4590, %v4589
    %v4835 = vpack.c.bf16 %v4592, %v4591
    %v4836 = vpack.c.bf16 %v4594, %v4593
    %v4837 = vpack.c.bf16 %v4596, %v4595
    %v4838 = vpack.c.bf16 %v4598, %v4597
    %v4839 = vpack.c.bf16 %v4600, %v4599
    %v4840 = vpack.c.bf16 %v4602, %v4601
    %v4841 = vpack.c.bf16 %v4604, %v4603
    %v4842 = vpack.c.bf16 %v4606, %v4605
    %v4843 = vpack.c.bf16 %v4608, %v4607
    %v4844 = vpack.c.bf16 %v4610, %v4609
    %v4845 = vpack.c.bf16 %v4612, %v4611
    %v4846 = vpack.c.bf16 %v4614, %v4613
    %v4847 = vpack.c.bf16 %v4616, %v4615
    %v4848 = vpack.c.bf16 %v4618, %v4617
    %v4849 = vpack.c.bf16 %v4620, %v4619
    %v4850 = vpack.c.bf16 %v4622, %v4621
    %v4851 = vpack.c.bf16 %v4624, %v4623
    %v4852 = vpack.c.bf16 %v4626, %v4625
    %v4853 = vpack.c.bf16 %v4628, %v4627
    %v4854 = vpack.c.bf16 %v4630, %v4629
    %v4855 = vpack.c.bf16 %v4632, %v4631
    %v4856 = vpack.c.bf16 %v4634, %v4633
    %v4857 = vpack.c.bf16 %v4636, %v4635
    %v4858 = vpack.c.bf16 %v4638, %v4637
    %v4859 = vpack.c.bf16 %v4640, %v4639
    %v4860 = vpack.c.bf16 %v4642, %v4641
    %v4861 = vpack.c.bf16 %v4644, %v4643
    %v4862 = vpack.c.bf16 %v4646, %v4645
    %v4863 = vpack.c.bf16 %v4648, %v4647
    %v4864 = vpack.c.bf16 %v4650, %v4649
    %v4865 = vpack.c.bf16 %v4652, %v4651
    %v4866 = vpack.c.bf16 %v4654, %v4653
    %v4867 = vpack.c.bf16 %v4656, %v4655
    %v4868 = vpack.c.bf16 %v4658, %v4657
    %v4869 = vpack.c.bf16 %v4660, %v4659
    %v4870 = vpack.c.bf16 %v4662, %v4661
    %v4871 = vpack.c.bf16 %v4664, %v4663
    %v4872 = vpack.c.bf16 %v4666, %v4665
    %v4873 = vpack.c.bf16 %v4668, %v4667
    %v4874 = vpack.c.bf16 %v4670, %v4669
    %v4875 = vpack.c.bf16 %v4672, %v4671
    %v4876 = vpack.c.bf16 %v4674, %v4673
    %v4877 = vpack.c.bf16 %v4676, %v4675
    %v4878 = vpack.c.bf16 %v4678, %v4677
    %v4879 = vpack.c.bf16 %v4680, %v4679
    %v4880 = vpack.c.bf16 %v4682, %v4681
    %v4881 = vpack.c.bf16 %v4684, %v4683
    %v4882 = vpack.c.bf16 %v4686, %v4685
    %v4883 = vpack.c.bf16 %v4688, %v4687
    %v4884 = vpack.c.bf16 %v4690, %v4689
    %v4885 = vpack.c.bf16 %v4692, %v4691
    %v4886 = vpack.c.bf16 %v4694, %v4693
    %v4887 = vld [vmem:[#allocation7] sm:$0xff]
    %v4888 = vld [vmem:[#allocation7 + $0x8] sm:$0xff]
    %v4889 = vld [vmem:[#allocation7 + $0x10] sm:$0xff]
    %v4890 = vld [vmem:[#allocation7 + $0x18] sm:$0xff]
    %v4891 = vld [vmem:[#allocation7 + $0x20] sm:$0xff]
    %v4892 = vld [vmem:[#allocation7 + $0x28] sm:$0xff]
    %v4893 = vld [vmem:[#allocation7 + $0x30] sm:$0xff]
    %v4894 = vld [vmem:[#allocation7 + $0x38] sm:$0xff]
    %v4895 = vld [vmem:[#allocation7 + $0x40] sm:$0xff]
    %v4896 = vld [vmem:[#allocation7 + $0x48] sm:$0xff]
    %v4897 = vld [vmem:[#allocation7 + $0x50] sm:$0xff]
    %v4898 = vld [vmem:[#allocation7 + $0x58] sm:$0xff]
    %v4899 = vld [vmem:[#allocation7 + $0x60] sm:$0xff]
    %v4900 = vld [vmem:[#allocation7 + $0x68] sm:$0xff]
    %v4901 = vld [vmem:[#allocation7 + $0x70] sm:$0xff]
    %v4902 = vld [vmem:[#allocation7 + $0x78] sm:$0xff]
    %v4903 = vld [vmem:[#allocation7 + $0x80] sm:$0xff]
    %v4904 = vld [vmem:[#allocation7 + $0x88] sm:$0xff]
    %v4905 = vld [vmem:[#allocation7 + $0x90] sm:$0xff]
    %v4906 = vld [vmem:[#allocation7 + $0x98] sm:$0xff]
    %v4907 = vld [vmem:[#allocation7 + $0xa0] sm:$0xff]
    %v4908 = vld [vmem:[#allocation7 + $0xa8] sm:$0xff]
    %v4909 = vld [vmem:[#allocation7 + $0xb0] sm:$0xff]
    %v4910 = vld [vmem:[#allocation7 + $0xb8] sm:$0xff]
    %v4911 = vld [vmem:[#allocation7 + $0xc0] sm:$0xff]
    %v4912 = vld [vmem:[#allocation7 + $0xc8] sm:$0xff]
    %v4913 = vld [vmem:[#allocation7 + $0xd0] sm:$0xff]
    %v4914 = vld [vmem:[#allocation7 + $0xd8] sm:$0xff]
    %v4915 = vld [vmem:[#allocation7 + $0xe0] sm:$0xff]
    %v4916 = vld [vmem:[#allocation7 + $0xe8] sm:$0xff]
    %v4917 = vld [vmem:[#allocation7 + $0xf0] sm:$0xff]
    %v4918 = vld [vmem:[#allocation7 + $0xf8] sm:$0xff]
    %v4919 = vld [vmem:[#allocation7 + $0x100] sm:$0xff]
    %v4920 = vld [vmem:[#allocation7 + $0x108] sm:$0xff]
    %v4921 = vld [vmem:[#allocation7 + $0x110] sm:$0xff]
    %v4922 = vld [vmem:[#allocation7 + $0x118] sm:$0xff]
    %v4923 = vld [vmem:[#allocation7 + $0x120] sm:$0xff]
    %v4924 = vld [vmem:[#allocation7 + $0x128] sm:$0xff]
    %v4925 = vld [vmem:[#allocation7 + $0x130] sm:$0xff]
    %v4926 = vld [vmem:[#allocation7 + $0x138] sm:$0xff]
    %v4927 = vld [vmem:[#allocation7 + $0x140] sm:$0xff]
    %v4928 = vld [vmem:[#allocation7 + $0x148] sm:$0xff]
    %v4929 = vld [vmem:[#allocation7 + $0x150] sm:$0xff]
    %v4930 = vld [vmem:[#allocation7 + $0x158] sm:$0xff]
    %v4931 = vld [vmem:[#allocation7 + $0x160] sm:$0xff]
    %v4932 = vld [vmem:[#allocation7 + $0x168] sm:$0xff]
    %v4933 = vld [vmem:[#allocation7 + $0x170] sm:$0xff]
    %v4934 = vld [vmem:[#allocation7 + $0x178] sm:$0xff]
    %v4935 = vld [vmem:[#allocation7 + $0x180] sm:$0xff]
    %v4936 = vld [vmem:[#allocation7 + $0x188] sm:$0xff]
    %v4937 = vld [vmem:[#allocation7 + $0x190] sm:$0xff]
    %v4938 = vld [vmem:[#allocation7 + $0x198] sm:$0xff]
    %v4939 = vld [vmem:[#allocation7 + $0x1a0] sm:$0xff]
    %v4940 = vld [vmem:[#allocation7 + $0x1a8] sm:$0xff]
    %v4941 = vld [vmem:[#allocation7 + $0x1b0] sm:$0xff]
    %v4942 = vld [vmem:[#allocation7 + $0x1b8] sm:$0xff]
    %v4943 = vld [vmem:[#allocation7 + $0x1c0] sm:$0xff]
    %v4944 = vld [vmem:[#allocation7 + $0x1c8] sm:$0xff]
    %v4945 = vld [vmem:[#allocation7 + $0x1d0] sm:$0xff]
    %v4946 = vld [vmem:[#allocation7 + $0x1d8] sm:$0xff]
    %v4947 = vld [vmem:[#allocation7 + $0x1e0] sm:$0xff]
    %v4948 = vld [vmem:[#allocation7 + $0x1e8] sm:$0xff]
    %v4949 = vld [vmem:[#allocation7 + $0x1f0] sm:$0xff]
    %v4950 = vld [vmem:[#allocation7 + $0x1f8] sm:$0xff]
    %v4951 = vld [vmem:[#allocation7 + $0x200] sm:$0xff]
    %v4952 = vld [vmem:[#allocation7 + $0x208] sm:$0xff]
    %v4953 = vld [vmem:[#allocation7 + $0x210] sm:$0xff]
    %v4954 = vld [vmem:[#allocation7 + $0x218] sm:$0xff]
    %v4955 = vld [vmem:[#allocation7 + $0x220] sm:$0xff]
    %v4956 = vld [vmem:[#allocation7 + $0x228] sm:$0xff]
    %v4957 = vld [vmem:[#allocation7 + $0x230] sm:$0xff]
    %v4958 = vld [vmem:[#allocation7 + $0x238] sm:$0xff]
    %v4959 = vld [vmem:[#allocation7 + $0x240] sm:$0xff]
    %v4960 = vld [vmem:[#allocation7 + $0x248] sm:$0xff]
    %v4961 = vld [vmem:[#allocation7 + $0x250] sm:$0xff]
    %v4962 = vld [vmem:[#allocation7 + $0x258] sm:$0xff]
    %v4963 = vld [vmem:[#allocation7 + $0x260] sm:$0xff]
    %v4964 = vld [vmem:[#allocation7 + $0x268] sm:$0xff]
    %v4965 = vld [vmem:[#allocation7 + $0x270] sm:$0xff]
    %v4966 = vld [vmem:[#allocation7 + $0x278] sm:$0xff]
    %v4967 = vld [vmem:[#allocation7 + $0x280] sm:$0xff]
    %v4968 = vld [vmem:[#allocation7 + $0x288] sm:$0xff]
    %v4969 = vld [vmem:[#allocation7 + $0x290] sm:$0xff]
    %v4970 = vld [vmem:[#allocation7 + $0x298] sm:$0xff]
    %v4971 = vld [vmem:[#allocation7 + $0x2a0] sm:$0xff]
    %v4972 = vld [vmem:[#allocation7 + $0x2a8] sm:$0xff]
    %v4973 = vld [vmem:[#allocation7 + $0x2b0] sm:$0xff]
    %v4974 = vld [vmem:[#allocation7 + $0x2b8] sm:$0xff]
    %v4975 = vld [vmem:[#allocation7 + $0x2c0] sm:$0xff]
    %v4976 = vld [vmem:[#allocation7 + $0x2c8] sm:$0xff]
    %v4977 = vld [vmem:[#allocation7 + $0x2d0] sm:$0xff]
    %v4978 = vld [vmem:[#allocation7 + $0x2d8] sm:$0xff]
    %v4979 = vld [vmem:[#allocation7 + $0x2e0] sm:$0xff]
    %v4980 = vld [vmem:[#allocation7 + $0x2e8] sm:$0xff]
    %v4981 = vld [vmem:[#allocation7 + $0x2f0] sm:$0xff]
    %v4982 = vld [vmem:[#allocation7 + $0x2f8] sm:$0xff]
    %v4983 = vld [vmem:[%s4] sm:$0xf]
    %v4985 = vlaneseq
    %v4986 = vshrl.u32 %v4985, 7
    %v4987 = vsub.s32 0, %v4986
    %v4988 = vrot.slane %v4983, %v4987
    %v4989 = vlaneseq
    %v4990 = vshrl.u32 %v4989, 7
    %v4991 = vsub.s32 1, %v4990
    %v4992 = vrot.slane %v4983, %v4991
    %v4993 = vlaneseq
    %v4994 = vshrl.u32 %v4993, 7
    %v4995 = vsub.s32 2, %v4994
    %v4996 = vrot.slane %v4983, %v4995
    %v4997 = vlaneseq
    %v4998 = vshrl.u32 %v4997, 7
    %v4999 = vsub.s32 3, %v4998
    %v5000 = vrot.slane %v4983, %v4999
    %v5197 = vunpack.c.l.b16 %v4695
    %v5198 = vunpack.c.h.b16 %v4695
    %v5199 = vunpack.c.l.b16 %v4696
    %v5200 = vunpack.c.h.b16 %v4696
    %v5201 = vunpack.c.l.b16 %v4697
    %v5202 = vunpack.c.h.b16 %v4697
    %v5203 = vunpack.c.l.b16 %v4698
    %v5204 = vunpack.c.h.b16 %v4698
    %v5205 = vunpack.c.l.b16 %v4699
    %v5206 = vunpack.c.h.b16 %v4699
    %v5207 = vunpack.c.l.b16 %v4700
    %v5208 = vunpack.c.h.b16 %v4700
    %v5209 = vunpack.c.l.b16 %v4701
    %v5210 = vunpack.c.h.b16 %v4701
    %v5211 = vunpack.c.l.b16 %v4702
    %v5212 = vunpack.c.h.b16 %v4702
    %v5213 = vunpack.c.l.b16 %v4703
    %v5214 = vunpack.c.h.b16 %v4703
    %v5215 = vunpack.c.l.b16 %v4704
    %v5216 = vunpack.c.h.b16 %v4704
    %v5217 = vunpack.c.l.b16 %v4705
    %v5218 = vunpack.c.h.b16 %v4705
    %v5219 = vunpack.c.l.b16 %v4706
    %v5220 = vunpack.c.h.b16 %v4706
    %v5221 = vunpack.c.l.b16 %v4707
    %v5222 = vunpack.c.h.b16 %v4707
    %v5223 = vunpack.c.l.b16 %v4708
    %v5224 = vunpack.c.h.b16 %v4708
    %v5225 = vunpack.c.l.b16 %v4709
    %v5226 = vunpack.c.h.b16 %v4709
    %v5227 = vunpack.c.l.b16 %v4710
    %v5228 = vunpack.c.h.b16 %v4710
    %v5229 = vunpack.c.l.b16 %v4711
    %v5230 = vunpack.c.h.b16 %v4711
    %v5231 = vunpack.c.l.b16 %v4712
    %v5232 = vunpack.c.h.b16 %v4712
    %v5233 = vunpack.c.l.b16 %v4713
    %v5234 = vunpack.c.h.b16 %v4713
    %v5235 = vunpack.c.l.b16 %v4714
    %v5236 = vunpack.c.h.b16 %v4714
    %v5237 = vunpack.c.l.b16 %v4715
    %v5238 = vunpack.c.h.b16 %v4715
    %v5239 = vunpack.c.l.b16 %v4716
    %v5240 = vunpack.c.h.b16 %v4716
    %v5241 = vunpack.c.l.b16 %v4717
    %v5242 = vunpack.c.h.b16 %v4717
    %v5243 = vunpack.c.l.b16 %v4718
    %v5244 = vunpack.c.h.b16 %v4718
    %v5245 = vunpack.c.l.b16 %v4719
    %v5246 = vunpack.c.h.b16 %v4719
    %v5247 = vunpack.c.l.b16 %v4720
    %v5248 = vunpack.c.h.b16 %v4720
    %v5249 = vunpack.c.l.b16 %v4721
    %v5250 = vunpack.c.h.b16 %v4721
    %v5251 = vunpack.c.l.b16 %v4722
    %v5252 = vunpack.c.h.b16 %v4722
    %v5253 = vunpack.c.l.b16 %v4723
    %v5254 = vunpack.c.h.b16 %v4723
    %v5255 = vunpack.c.l.b16 %v4724
    %v5256 = vunpack.c.h.b16 %v4724
    %v5257 = vunpack.c.l.b16 %v4725
    %v5258 = vunpack.c.h.b16 %v4725
    %v5259 = vunpack.c.l.b16 %v4726
    %v5260 = vunpack.c.h.b16 %v4726
    %v5261 = vunpack.c.l.b16 %v4727
    %v5262 = vunpack.c.h.b16 %v4727
    %v5263 = vunpack.c.l.b16 %v4728
    %v5264 = vunpack.c.h.b16 %v4728
    %v5265 = vunpack.c.l.b16 %v4729
    %v5266 = vunpack.c.h.b16 %v4729
    %v5267 = vunpack.c.l.b16 %v4730
    %v5268 = vunpack.c.h.b16 %v4730
    %v5269 = vunpack.c.l.b16 %v4731
    %v5270 = vunpack.c.h.b16 %v4731
    %v5271 = vunpack.c.l.b16 %v4732
    %v5272 = vunpack.c.h.b16 %v4732
    %v5273 = vunpack.c.l.b16 %v4733
    %v5274 = vunpack.c.h.b16 %v4733
    %v5275 = vunpack.c.l.b16 %v4734
    %v5276 = vunpack.c.h.b16 %v4734
    %v5277 = vunpack.c.l.b16 %v4735
    %v5278 = vunpack.c.h.b16 %v4735
    %v5279 = vunpack.c.l.b16 %v4736
    %v5280 = vunpack.c.h.b16 %v4736
    %v5281 = vunpack.c.l.b16 %v4737
    %v5282 = vunpack.c.h.b16 %v4737
    %v5283 = vunpack.c.l.b16 %v4738
    %v5284 = vunpack.c.h.b16 %v4738
    %v5285 = vunpack.c.l.b16 %v4739
    %v5286 = vunpack.c.h.b16 %v4739
    %v5287 = vunpack.c.l.b16 %v4740
    %v5288 = vunpack.c.h.b16 %v4740
    %v5289 = vunpack.c.l.b16 %v4741
    %v5290 = vunpack.c.h.b16 %v4741
    %v5291 = vunpack.c.l.b16 %v4742
    %v5292 = vunpack.c.h.b16 %v4742
    %v5293 = vunpack.c.l.b16 %v4743
    %v5294 = vunpack.c.h.b16 %v4743
    %v5295 = vunpack.c.l.b16 %v4744
    %v5296 = vunpack.c.h.b16 %v4744
    %v5297 = vunpack.c.l.b16 %v4745
    %v5298 = vunpack.c.h.b16 %v4745
    %v5299 = vunpack.c.l.b16 %v4746
    %v5300 = vunpack.c.h.b16 %v4746
    %v5301 = vunpack.c.l.b16 %v4747
    %v5302 = vunpack.c.h.b16 %v4747
    %v5303 = vunpack.c.l.b16 %v4748
    %v5304 = vunpack.c.h.b16 %v4748
    %v5305 = vunpack.c.l.b16 %v4749
    %v5306 = vunpack.c.h.b16 %v4749
    %v5307 = vunpack.c.l.b16 %v4750
    %v5308 = vunpack.c.h.b16 %v4750
    %v5309 = vunpack.c.l.b16 %v4751
    %v5310 = vunpack.c.h.b16 %v4751
    %v5311 = vunpack.c.l.b16 %v4752
    %v5312 = vunpack.c.h.b16 %v4752
    %v5313 = vunpack.c.l.b16 %v4753
    %v5314 = vunpack.c.h.b16 %v4753
    %v5315 = vunpack.c.l.b16 %v4754
    %v5316 = vunpack.c.h.b16 %v4754
    %v5317 = vunpack.c.l.b16 %v4755
    %v5318 = vunpack.c.h.b16 %v4755
    %v5319 = vunpack.c.l.b16 %v4756
    %v5320 = vunpack.c.h.b16 %v4756
    %v5321 = vunpack.c.l.b16 %v4757
    %v5322 = vunpack.c.h.b16 %v4757
    %v5323 = vunpack.c.l.b16 %v4758
    %v5324 = vunpack.c.h.b16 %v4758
    %v5325 = vunpack.c.l.b16 %v4759
    %v5326 = vunpack.c.h.b16 %v4759
    %v5327 = vunpack.c.l.b16 %v4760
    %v5328 = vunpack.c.h.b16 %v4760
    %v5329 = vunpack.c.l.b16 %v4761
    %v5330 = vunpack.c.h.b16 %v4761
    %v5331 = vunpack.c.l.b16 %v4762
    %v5332 = vunpack.c.h.b16 %v4762
    %v5333 = vunpack.c.l.b16 %v4763
    %v5334 = vunpack.c.h.b16 %v4763
    %v5335 = vunpack.c.l.b16 %v4764
    %v5336 = vunpack.c.h.b16 %v4764
    %v5337 = vunpack.c.l.b16 %v4765
    %v5338 = vunpack.c.h.b16 %v4765
    %v5339 = vunpack.c.l.b16 %v4766
    %v5340 = vunpack.c.h.b16 %v4766
    %v5341 = vunpack.c.l.b16 %v4767
    %v5342 = vunpack.c.h.b16 %v4767
    %v5343 = vunpack.c.l.b16 %v4768
    %v5344 = vunpack.c.h.b16 %v4768
    %v5345 = vunpack.c.l.b16 %v4769
    %v5346 = vunpack.c.h.b16 %v4769
    %v5347 = vunpack.c.l.b16 %v4770
    %v5348 = vunpack.c.h.b16 %v4770
    %v5349 = vunpack.c.l.b16 %v4771
    %v5350 = vunpack.c.h.b16 %v4771
    %v5351 = vunpack.c.l.b16 %v4772
    %v5352 = vunpack.c.h.b16 %v4772
    %v5353 = vunpack.c.l.b16 %v4773
    %v5354 = vunpack.c.h.b16 %v4773
    %v5355 = vunpack.c.l.b16 %v4774
    %v5356 = vunpack.c.h.b16 %v4774
    %v5357 = vunpack.c.l.b16 %v4775
    %v5358 = vunpack.c.h.b16 %v4775
    %v5359 = vunpack.c.l.b16 %v4776
    %v5360 = vunpack.c.h.b16 %v4776
    %v5361 = vunpack.c.l.b16 %v4777
    %v5362 = vunpack.c.h.b16 %v4777
    %v5363 = vunpack.c.l.b16 %v4778
    %v5364 = vunpack.c.h.b16 %v4778
    %v5365 = vunpack.c.l.b16 %v4779
    %v5366 = vunpack.c.h.b16 %v4779
    %v5367 = vunpack.c.l.b16 %v4780
    %v5368 = vunpack.c.h.b16 %v4780
    %v5369 = vunpack.c.l.b16 %v4781
    %v5370 = vunpack.c.h.b16 %v4781
    %v5371 = vunpack.c.l.b16 %v4782
    %v5372 = vunpack.c.h.b16 %v4782
    %v5373 = vunpack.c.l.b16 %v4783
    %v5374 = vunpack.c.h.b16 %v4783
    %v5375 = vunpack.c.l.b16 %v4784
    %v5376 = vunpack.c.h.b16 %v4784
    %v5377 = vunpack.c.l.b16 %v4785
    %v5378 = vunpack.c.h.b16 %v4785
    %v5379 = vunpack.c.l.b16 %v4786
    %v5380 = vunpack.c.h.b16 %v4786
    %v5381 = vunpack.c.l.b16 %v4787
    %v5382 = vunpack.c.h.b16 %v4787
    %v5383 = vunpack.c.l.b16 %v4788
    %v5384 = vunpack.c.h.b16 %v4788
    %v5385 = vunpack.c.l.b16 %v4789
    %v5386 = vunpack.c.h.b16 %v4789
    %v5387 = vunpack.c.l.b16 %v4790
    %v5388 = vunpack.c.h.b16 %v4790
    %v5389 = vunpack.c.l.b16 %v4791
    %v5390 = vunpack.c.h.b16 %v4791
    %v5391 = vunpack.c.l.b16 %v4792
    %v5392 = vunpack.c.h.b16 %v4792
    %v5393 = vunpack.c.l.b16 %v4793
    %v5394 = vunpack.c.h.b16 %v4793
    %v5395 = vunpack.c.l.b16 %v4794
    %v5396 = vunpack.c.h.b16 %v4794
    %v5397 = vunpack.c.l.b16 %v4795
    %v5398 = vunpack.c.h.b16 %v4795
    %v5399 = vunpack.c.l.b16 %v4796
    %v5400 = vunpack.c.h.b16 %v4796
    %v5401 = vunpack.c.l.b16 %v4797
    %v5402 = vunpack.c.h.b16 %v4797
    %v5403 = vunpack.c.l.b16 %v4798
    %v5404 = vunpack.c.h.b16 %v4798
    %v5405 = vunpack.c.l.b16 %v4799
    %v5406 = vunpack.c.h.b16 %v4799
    %v5407 = vunpack.c.l.b16 %v4800
    %v5408 = vunpack.c.h.b16 %v4800
    %v5409 = vunpack.c.l.b16 %v4801
    %v5410 = vunpack.c.h.b16 %v4801
    %v5411 = vunpack.c.l.b16 %v4802
    %v5412 = vunpack.c.h.b16 %v4802
    %v5413 = vunpack.c.l.b16 %v4803
    %v5414 = vunpack.c.h.b16 %v4803
    %v5415 = vunpack.c.l.b16 %v4804
    %v5416 = vunpack.c.h.b16 %v4804
    %v5417 = vunpack.c.l.b16 %v4805
    %v5418 = vunpack.c.h.b16 %v4805
    %v5419 = vunpack.c.l.b16 %v4806
    %v5420 = vunpack.c.h.b16 %v4806
    %v5421 = vunpack.c.l.b16 %v4807
    %v5422 = vunpack.c.h.b16 %v4807
    %v5423 = vunpack.c.l.b16 %v4808
    %v5424 = vunpack.c.h.b16 %v4808
    %v5425 = vunpack.c.l.b16 %v4809
    %v5426 = vunpack.c.h.b16 %v4809
    %v5427 = vunpack.c.l.b16 %v4810
    %v5428 = vunpack.c.h.b16 %v4810
    %v5429 = vunpack.c.l.b16 %v4811
    %v5430 = vunpack.c.h.b16 %v4811
    %v5431 = vunpack.c.l.b16 %v4812
    %v5432 = vunpack.c.h.b16 %v4812
    %v5433 = vunpack.c.l.b16 %v4813
    %v5434 = vunpack.c.h.b16 %v4813
    %v5435 = vunpack.c.l.b16 %v4814
    %v5436 = vunpack.c.h.b16 %v4814
    %v5437 = vunpack.c.l.b16 %v4815
    %v5438 = vunpack.c.h.b16 %v4815
    %v5439 = vunpack.c.l.b16 %v4816
    %v5440 = vunpack.c.h.b16 %v4816
    %v5441 = vunpack.c.l.b16 %v4817
    %v5442 = vunpack.c.h.b16 %v4817
    %v5443 = vunpack.c.l.b16 %v4818
    %v5444 = vunpack.c.h.b16 %v4818
    %v5445 = vunpack.c.l.b16 %v4819
    %v5446 = vunpack.c.h.b16 %v4819
    %v5447 = vunpack.c.l.b16 %v4820
    %v5448 = vunpack.c.h.b16 %v4820
    %v5449 = vunpack.c.l.b16 %v4821
    %v5450 = vunpack.c.h.b16 %v4821
    %v5451 = vunpack.c.l.b16 %v4822
    %v5452 = vunpack.c.h.b16 %v4822
    %v5453 = vunpack.c.l.b16 %v4823
    %v5454 = vunpack.c.h.b16 %v4823
    %v5455 = vunpack.c.l.b16 %v4824
    %v5456 = vunpack.c.h.b16 %v4824
    %v5457 = vunpack.c.l.b16 %v4825
    %v5458 = vunpack.c.h.b16 %v4825
    %v5459 = vunpack.c.l.b16 %v4826
    %v5460 = vunpack.c.h.b16 %v4826
    %v5461 = vunpack.c.l.b16 %v4827
    %v5462 = vunpack.c.h.b16 %v4827
    %v5463 = vunpack.c.l.b16 %v4828
    %v5464 = vunpack.c.h.b16 %v4828
    %v5465 = vunpack.c.l.b16 %v4829
    %v5466 = vunpack.c.h.b16 %v4829
    %v5467 = vunpack.c.l.b16 %v4830
    %v5468 = vunpack.c.h.b16 %v4830
    %v5469 = vunpack.c.l.b16 %v4831
    %v5470 = vunpack.c.h.b16 %v4831
    %v5471 = vunpack.c.l.b16 %v4832
    %v5472 = vunpack.c.h.b16 %v4832
    %v5473 = vunpack.c.l.b16 %v4833
    %v5474 = vunpack.c.h.b16 %v4833
    %v5475 = vunpack.c.l.b16 %v4834
    %v5476 = vunpack.c.h.b16 %v4834
    %v5477 = vunpack.c.l.b16 %v4835
    %v5478 = vunpack.c.h.b16 %v4835
    %v5479 = vunpack.c.l.b16 %v4836
    %v5480 = vunpack.c.h.b16 %v4836
    %v5481 = vunpack.c.l.b16 %v4837
    %v5482 = vunpack.c.h.b16 %v4837
    %v5483 = vunpack.c.l.b16 %v4838
    %v5484 = vunpack.c.h.b16 %v4838
    %v5485 = vunpack.c.l.b16 %v4839
    %v5486 = vunpack.c.h.b16 %v4839
    %v5487 = vunpack.c.l.b16 %v4840
    %v5488 = vunpack.c.h.b16 %v4840
    %v5489 = vunpack.c.l.b16 %v4841
    %v5490 = vunpack.c.h.b16 %v4841
    %v5491 = vunpack.c.l.b16 %v4842
    %v5492 = vunpack.c.h.b16 %v4842
    %v5493 = vunpack.c.l.b16 %v4843
    %v5494 = vunpack.c.h.b16 %v4843
    %v5495 = vunpack.c.l.b16 %v4844
    %v5496 = vunpack.c.h.b16 %v4844
    %v5497 = vunpack.c.l.b16 %v4845
    %v5498 = vunpack.c.h.b16 %v4845
    %v5499 = vunpack.c.l.b16 %v4846
    %v5500 = vunpack.c.h.b16 %v4846
    %v5501 = vunpack.c.l.b16 %v4847
    %v5502 = vunpack.c.h.b16 %v4847
    %v5503 = vunpack.c.l.b16 %v4848
    %v5504 = vunpack.c.h.b16 %v4848
    %v5505 = vunpack.c.l.b16 %v4849
    %v5506 = vunpack.c.h.b16 %v4849
    %v5507 = vunpack.c.l.b16 %v4850
    %v5508 = vunpack.c.h.b16 %v4850
    %v5509 = vunpack.c.l.b16 %v4851
    %v5510 = vunpack.c.h.b16 %v4851
    %v5511 = vunpack.c.l.b16 %v4852
    %v5512 = vunpack.c.h.b16 %v4852
    %v5513 = vunpack.c.l.b16 %v4853
    %v5514 = vunpack.c.h.b16 %v4853
    %v5515 = vunpack.c.l.b16 %v4854
    %v5516 = vunpack.c.h.b16 %v4854
    %v5517 = vunpack.c.l.b16 %v4855
    %v5518 = vunpack.c.h.b16 %v4855
    %v5519 = vunpack.c.l.b16 %v4856
    %v5520 = vunpack.c.h.b16 %v4856
    %v5521 = vunpack.c.l.b16 %v4857
    %v5522 = vunpack.c.h.b16 %v4857
    %v5523 = vunpack.c.l.b16 %v4858
    %v5524 = vunpack.c.h.b16 %v4858
    %v5525 = vunpack.c.l.b16 %v4859
    %v5526 = vunpack.c.h.b16 %v4859
    %v5527 = vunpack.c.l.b16 %v4860
    %v5528 = vunpack.c.h.b16 %v4860
    %v5529 = vunpack.c.l.b16 %v4861
    %v5530 = vunpack.c.h.b16 %v4861
    %v5531 = vunpack.c.l.b16 %v4862
    %v5532 = vunpack.c.h.b16 %v4862
    %v5533 = vunpack.c.l.b16 %v4863
    %v5534 = vunpack.c.h.b16 %v4863
    %v5535 = vunpack.c.l.b16 %v4864
    %v5536 = vunpack.c.h.b16 %v4864
    %v5537 = vunpack.c.l.b16 %v4865
    %v5538 = vunpack.c.h.b16 %v4865
    %v5539 = vunpack.c.l.b16 %v4866
    %v5540 = vunpack.c.h.b16 %v4866
    %v5541 = vunpack.c.l.b16 %v4867
    %v5542 = vunpack.c.h.b16 %v4867
    %v5543 = vunpack.c.l.b16 %v4868
    %v5544 = vunpack.c.h.b16 %v4868
    %v5545 = vunpack.c.l.b16 %v4869
    %v5546 = vunpack.c.h.b16 %v4869
    %v5547 = vunpack.c.l.b16 %v4870
    %v5548 = vunpack.c.h.b16 %v4870
    %v5549 = vunpack.c.l.b16 %v4871
    %v5550 = vunpack.c.h.b16 %v4871
    %v5551 = vunpack.c.l.b16 %v4872
    %v5552 = vunpack.c.h.b16 %v4872
    %v5553 = vunpack.c.l.b16 %v4873
    %v5554 = vunpack.c.h.b16 %v4873
    %v5555 = vunpack.c.l.b16 %v4874
    %v5556 = vunpack.c.h.b16 %v4874
    %v5557 = vunpack.c.l.b16 %v4875
    %v5558 = vunpack.c.h.b16 %v4875
    %v5559 = vunpack.c.l.b16 %v4876
    %v5560 = vunpack.c.h.b16 %v4876
    %v5561 = vunpack.c.l.b16 %v4877
    %v5562 = vunpack.c.h.b16 %v4877
    %v5563 = vunpack.c.l.b16 %v4878
    %v5564 = vunpack.c.h.b16 %v4878
    %v5565 = vunpack.c.l.b16 %v4879
    %v5566 = vunpack.c.h.b16 %v4879
    %v5567 = vunpack.c.l.b16 %v4880
    %v5568 = vunpack.c.h.b16 %v4880
    %v5569 = vunpack.c.l.b16 %v4881
    %v5570 = vunpack.c.h.b16 %v4881
    %v5571 = vunpack.c.l.b16 %v4882
    %v5572 = vunpack.c.h.b16 %v4882
    %v5573 = vunpack.c.l.b16 %v4883
    %v5574 = vunpack.c.h.b16 %v4883
    %v5575 = vunpack.c.l.b16 %v4884
    %v5576 = vunpack.c.h.b16 %v4884
    %v5577 = vunpack.c.l.b16 %v4885
    %v5578 = vunpack.c.h.b16 %v4885
    %v5579 = vunpack.c.l.b16 %v4886
    %v5580 = vunpack.c.h.b16 %v4886
    %5581 = vset.pattern.permute.xlu0 0
    %5582 = vperm.xlu0 %5581, %v5197
    %v5583 = vpop.permute.xlu0 %5582
    %5584 = vset.pattern.permute.xlu0 0
    %5585 = vperm.xlu0 %5584, %v5198
    %v5586 = vpop.permute.xlu0 %5585
    %5587 = vset.pattern.permute.xlu0 0
    %5588 = vperm.xlu0 %5587, %v5199
    %v5589 = vpop.permute.xlu0 %5588
    %5590 = vset.pattern.permute.xlu0 0
    %5591 = vperm.xlu0 %5590, %v5200
    %v5592 = vpop.permute.xlu0 %5591
    %5593 = vset.pattern.permute.xlu0 0
    %5594 = vperm.xlu0 %5593, %v5201
    %v5595 = vpop.permute.xlu0 %5594
    %5596 = vset.pattern.permute.xlu0 0
    %5597 = vperm.xlu0 %5596, %v5202
    %v5598 = vpop.permute.xlu0 %5597
    %5599 = vset.pattern.permute.xlu0 0
    %5600 = vperm.xlu0 %5599, %v5203
    %v5601 = vpop.permute.xlu0 %5600
    %5602 = vset.pattern.permute.xlu0 0
    %5603 = vperm.xlu0 %5602, %v5204
    %v5604 = vpop.permute.xlu0 %5603
    %5605 = vset.pattern.permute.xlu0 0
    %5606 = vperm.xlu0 %5605, %v5205
    %v5607 = vpop.permute.xlu0 %5606
    %5608 = vset.pattern.permute.xlu0 0
    %5609 = vperm.xlu0 %5608, %v5206
    %v5610 = vpop.permute.xlu0 %5609
    %5611 = vset.pattern.permute.xlu0 0
    %5612 = vperm.xlu0 %5611, %v5207
    %v5613 = vpop.permute.xlu0 %5612
    %5614 = vset.pattern.permute.xlu0 0
    %5615 = vperm.xlu0 %5614, %v5208
    %v5616 = vpop.permute.xlu0 %5615
    %5617 = vset.pattern.permute.xlu0 0
    %5618 = vperm.xlu0 %5617, %v5209
    %v5619 = vpop.permute.xlu0 %5618
    %5620 = vset.pattern.permute.xlu0 0
    %5621 = vperm.xlu0 %5620, %v5210
    %v5622 = vpop.permute.xlu0 %5621
    %5623 = vset.pattern.permute.xlu0 0
    %5624 = vperm.xlu0 %5623, %v5211
    %v5625 = vpop.permute.xlu0 %5624
    %5626 = vset.pattern.permute.xlu0 0
    %5627 = vperm.xlu0 %5626, %v5212
    %v5628 = vpop.permute.xlu0 %5627
    %5629 = vset.pattern.permute.xlu0 0
    %5630 = vperm.xlu0 %5629, %v5213
    %v5631 = vpop.permute.xlu0 %5630
    %5632 = vset.pattern.permute.xlu0 0
    %5633 = vperm.xlu0 %5632, %v5214
    %v5634 = vpop.permute.xlu0 %5633
    %5635 = vset.pattern.permute.xlu0 0
    %5636 = vperm.xlu0 %5635, %v5215
    %v5637 = vpop.permute.xlu0 %5636
    %5638 = vset.pattern.permute.xlu0 0
    %5639 = vperm.xlu0 %5638, %v5216
    %v5640 = vpop.permute.xlu0 %5639
    %5641 = vset.pattern.permute.xlu0 0
    %5642 = vperm.xlu0 %5641, %v5217
    %v5643 = vpop.permute.xlu0 %5642
    %5644 = vset.pattern.permute.xlu0 0
    %5645 = vperm.xlu0 %5644, %v5218
    %v5646 = vpop.permute.xlu0 %5645
    %5647 = vset.pattern.permute.xlu0 0
    %5648 = vperm.xlu0 %5647, %v5219
    %v5649 = vpop.permute.xlu0 %5648
    %5650 = vset.pattern.permute.xlu0 0
    %5651 = vperm.xlu0 %5650, %v5220
    %v5652 = vpop.permute.xlu0 %5651
    %5653 = vset.pattern.permute.xlu0 0
    %5654 = vperm.xlu0 %5653, %v5221
    %v5655 = vpop.permute.xlu0 %5654
    %5656 = vset.pattern.permute.xlu0 0
    %5657 = vperm.xlu0 %5656, %v5222
    %v5658 = vpop.permute.xlu0 %5657
    %5659 = vset.pattern.permute.xlu0 0
    %5660 = vperm.xlu0 %5659, %v5223
    %v5661 = vpop.permute.xlu0 %5660
    %5662 = vset.pattern.permute.xlu0 0
    %5663 = vperm.xlu0 %5662, %v5224
    %v5664 = vpop.permute.xlu0 %5663
    %5665 = vset.pattern.permute.xlu0 0
    %5666 = vperm.xlu0 %5665, %v5225
    %v5667 = vpop.permute.xlu0 %5666
    %5668 = vset.pattern.permute.xlu0 0
    %5669 = vperm.xlu0 %5668, %v5226
    %v5670 = vpop.permute.xlu0 %5669
    %5671 = vset.pattern.permute.xlu0 0
    %5672 = vperm.xlu0 %5671, %v5227
    %v5673 = vpop.permute.xlu0 %5672
    %5674 = vset.pattern.permute.xlu0 0
    %5675 = vperm.xlu0 %5674, %v5228
    %v5676 = vpop.permute.xlu0 %5675
    %5677 = vset.pattern.permute.xlu0 0
    %5678 = vperm.xlu0 %5677, %v5229
    %v5679 = vpop.permute.xlu0 %5678
    %5680 = vset.pattern.permute.xlu0 0
    %5681 = vperm.xlu0 %5680, %v5230
    %v5682 = vpop.permute.xlu0 %5681
    %5683 = vset.pattern.permute.xlu0 0
    %5684 = vperm.xlu0 %5683, %v5231
    %v5685 = vpop.permute.xlu0 %5684
    %5686 = vset.pattern.permute.xlu0 0
    %5687 = vperm.xlu0 %5686, %v5232
    %v5688 = vpop.permute.xlu0 %5687
    %5689 = vset.pattern.permute.xlu0 0
    %5690 = vperm.xlu0 %5689, %v5233
    %v5691 = vpop.permute.xlu0 %5690
    %5692 = vset.pattern.permute.xlu0 0
    %5693 = vperm.xlu0 %5692, %v5234
    %v5694 = vpop.permute.xlu0 %5693
    %5695 = vset.pattern.permute.xlu0 0
    %5696 = vperm.xlu0 %5695, %v5235
    %v5697 = vpop.permute.xlu0 %5696
    %5698 = vset.pattern.permute.xlu0 0
    %5699 = vperm.xlu0 %5698, %v5236
    %v5700 = vpop.permute.xlu0 %5699
    %5701 = vset.pattern.permute.xlu0 0
    %5702 = vperm.xlu0 %5701, %v5237
    %v5703 = vpop.permute.xlu0 %5702
    %5704 = vset.pattern.permute.xlu0 0
    %5705 = vperm.xlu0 %5704, %v5238
    %v5706 = vpop.permute.xlu0 %5705
    %5707 = vset.pattern.permute.xlu0 0
    %5708 = vperm.xlu0 %5707, %v5239
    %v5709 = vpop.permute.xlu0 %5708
    %5710 = vset.pattern.permute.xlu0 0
    %5711 = vperm.xlu0 %5710, %v5240
    %v5712 = vpop.permute.xlu0 %5711
    %5713 = vset.pattern.permute.xlu0 0
    %5714 = vperm.xlu0 %5713, %v5241
    %v5715 = vpop.permute.xlu0 %5714
    %5716 = vset.pattern.permute.xlu0 0
    %5717 = vperm.xlu0 %5716, %v5242
    %v5718 = vpop.permute.xlu0 %5717
    %5719 = vset.pattern.permute.xlu0 0
    %5720 = vperm.xlu0 %5719, %v5243
    %v5721 = vpop.permute.xlu0 %5720
    %5722 = vset.pattern.permute.xlu0 0
    %5723 = vperm.xlu0 %5722, %v5244
    %v5724 = vpop.permute.xlu0 %5723
    %5725 = vset.pattern.permute.xlu0 0
    %5726 = vperm.xlu0 %5725, %v5245
    %v5727 = vpop.permute.xlu0 %5726
    %5728 = vset.pattern.permute.xlu0 0
    %5729 = vperm.xlu0 %5728, %v5246
    %v5730 = vpop.permute.xlu0 %5729
    %5731 = vset.pattern.permute.xlu0 0
    %5732 = vperm.xlu0 %5731, %v5247
    %v5733 = vpop.permute.xlu0 %5732
    %5734 = vset.pattern.permute.xlu0 0
    %5735 = vperm.xlu0 %5734, %v5248
    %v5736 = vpop.permute.xlu0 %5735
    %5737 = vset.pattern.permute.xlu0 0
    %5738 = vperm.xlu0 %5737, %v5249
    %v5739 = vpop.permute.xlu0 %5738
    %5740 = vset.pattern.permute.xlu0 0
    %5741 = vperm.xlu0 %5740, %v5250
    %v5742 = vpop.permute.xlu0 %5741
    %5743 = vset.pattern.permute.xlu0 0
    %5744 = vperm.xlu0 %5743, %v5251
    %v5745 = vpop.permute.xlu0 %5744
    %5746 = vset.pattern.permute.xlu0 0
    %5747 = vperm.xlu0 %5746, %v5252
    %v5748 = vpop.permute.xlu0 %5747
    %5749 = vset.pattern.permute.xlu0 0
    %5750 = vperm.xlu0 %5749, %v5253
    %v5751 = vpop.permute.xlu0 %5750
    %5752 = vset.pattern.permute.xlu0 0
    %5753 = vperm.xlu0 %5752, %v5254
    %v5754 = vpop.permute.xlu0 %5753
    %5755 = vset.pattern.permute.xlu0 0
    %5756 = vperm.xlu0 %5755, %v5255
    %v5757 = vpop.permute.xlu0 %5756
    %5758 = vset.pattern.permute.xlu0 0
    %5759 = vperm.xlu0 %5758, %v5256
    %v5760 = vpop.permute.xlu0 %5759
    %5761 = vset.pattern.permute.xlu0 0
    %5762 = vperm.xlu0 %5761, %v5257
    %v5763 = vpop.permute.xlu0 %5762
    %5764 = vset.pattern.permute.xlu0 0
    %5765 = vperm.xlu0 %5764, %v5258
    %v5766 = vpop.permute.xlu0 %5765
    %5767 = vset.pattern.permute.xlu0 0
    %5768 = vperm.xlu0 %5767, %v5259
    %v5769 = vpop.permute.xlu0 %5768
    %5770 = vset.pattern.permute.xlu0 0
    %5771 = vperm.xlu0 %5770, %v5260
    %v5772 = vpop.permute.xlu0 %5771
    %5773 = vset.pattern.permute.xlu0 0
    %5774 = vperm.xlu0 %5773, %v5261
    %v5775 = vpop.permute.xlu0 %5774
    %5776 = vset.pattern.permute.xlu0 0
    %5777 = vperm.xlu0 %5776, %v5262
    %v5778 = vpop.permute.xlu0 %5777
    %5779 = vset.pattern.permute.xlu0 0
    %5780 = vperm.xlu0 %5779, %v5263
    %v5781 = vpop.permute.xlu0 %5780
    %5782 = vset.pattern.permute.xlu0 0
    %5783 = vperm.xlu0 %5782, %v5264
    %v5784 = vpop.permute.xlu0 %5783
    %5785 = vset.pattern.permute.xlu0 0
    %5786 = vperm.xlu0 %5785, %v5265
    %v5787 = vpop.permute.xlu0 %5786
    %5788 = vset.pattern.permute.xlu0 0
    %5789 = vperm.xlu0 %5788, %v5266
    %v5790 = vpop.permute.xlu0 %5789
    %5791 = vset.pattern.permute.xlu0 0
    %5792 = vperm.xlu0 %5791, %v5267
    %v5793 = vpop.permute.xlu0 %5792
    %5794 = vset.pattern.permute.xlu0 0
    %5795 = vperm.xlu0 %5794, %v5268
    %v5796 = vpop.permute.xlu0 %5795
    %5797 = vset.pattern.permute.xlu0 0
    %5798 = vperm.xlu0 %5797, %v5269
    %v5799 = vpop.permute.xlu0 %5798
    %5800 = vset.pattern.permute.xlu0 0
    %5801 = vperm.xlu0 %5800, %v5270
    %v5802 = vpop.permute.xlu0 %5801
    %5803 = vset.pattern.permute.xlu0 0
    %5804 = vperm.xlu0 %5803, %v5271
    %v5805 = vpop.permute.xlu0 %5804
    %5806 = vset.pattern.permute.xlu0 0
    %5807 = vperm.xlu0 %5806, %v5272
    %v5808 = vpop.permute.xlu0 %5807
    %5809 = vset.pattern.permute.xlu0 0
    %5810 = vperm.xlu0 %5809, %v5273
    %v5811 = vpop.permute.xlu0 %5810
    %5812 = vset.pattern.permute.xlu0 0
    %5813 = vperm.xlu0 %5812, %v5274
    %v5814 = vpop.permute.xlu0 %5813
    %5815 = vset.pattern.permute.xlu0 0
    %5816 = vperm.xlu0 %5815, %v5275
    %v5817 = vpop.permute.xlu0 %5816
    %5818 = vset.pattern.permute.xlu0 0
    %5819 = vperm.xlu0 %5818, %v5276
    %v5820 = vpop.permute.xlu0 %5819
    %5821 = vset.pattern.permute.xlu0 0
    %5822 = vperm.xlu0 %5821, %v5277
    %v5823 = vpop.permute.xlu0 %5822
    %5824 = vset.pattern.permute.xlu0 0
    %5825 = vperm.xlu0 %5824, %v5278
    %v5826 = vpop.permute.xlu0 %5825
    %5827 = vset.pattern.permute.xlu0 0
    %5828 = vperm.xlu0 %5827, %v5279
    %v5829 = vpop.permute.xlu0 %5828
    %5830 = vset.pattern.permute.xlu0 0
    %5831 = vperm.xlu0 %5830, %v5280
    %v5832 = vpop.permute.xlu0 %5831
    %5833 = vset.pattern.permute.xlu0 0
    %5834 = vperm.xlu0 %5833, %v5281
    %v5835 = vpop.permute.xlu0 %5834
    %5836 = vset.pattern.permute.xlu0 0
    %5837 = vperm.xlu0 %5836, %v5282
    %v5838 = vpop.permute.xlu0 %5837
    %5839 = vset.pattern.permute.xlu0 0
    %5840 = vperm.xlu0 %5839, %v5283
    %v5841 = vpop.permute.xlu0 %5840
    %5842 = vset.pattern.permute.xlu0 0
    %5843 = vperm.xlu0 %5842, %v5284
    %v5844 = vpop.permute.xlu0 %5843
    %5845 = vset.pattern.permute.xlu0 0
    %5846 = vperm.xlu0 %5845, %v5285
    %v5847 = vpop.permute.xlu0 %5846
    %5848 = vset.pattern.permute.xlu0 0
    %5849 = vperm.xlu0 %5848, %v5286
    %v5850 = vpop.permute.xlu0 %5849
    %5851 = vset.pattern.permute.xlu0 0
    %5852 = vperm.xlu0 %5851, %v5287
    %v5853 = vpop.permute.xlu0 %5852
    %5854 = vset.pattern.permute.xlu0 0
    %5855 = vperm.xlu0 %5854, %v5288
    %v5856 = vpop.permute.xlu0 %5855
    %5857 = vset.pattern.permute.xlu0 0
    %5858 = vperm.xlu0 %5857, %v5289
    %v5859 = vpop.permute.xlu0 %5858
    %5860 = vset.pattern.permute.xlu0 0
    %5861 = vperm.xlu0 %5860, %v5290
    %v5862 = vpop.permute.xlu0 %5861
    %5863 = vset.pattern.permute.xlu0 0
    %5864 = vperm.xlu0 %5863, %v5291
    %v5865 = vpop.permute.xlu0 %5864
    %5866 = vset.pattern.permute.xlu0 0
    %5867 = vperm.xlu0 %5866, %v5292
    %v5868 = vpop.permute.xlu0 %5867
    %5869 = vset.pattern.permute.xlu0 0
    %5870 = vperm.xlu0 %5869, %v5293
    %v5871 = vpop.permute.xlu0 %5870
    %5872 = vset.pattern.permute.xlu0 0
    %5873 = vperm.xlu0 %5872, %v5294
    %v5874 = vpop.permute.xlu0 %5873
    %5875 = vset.pattern.permute.xlu0 0
    %5876 = vperm.xlu0 %5875, %v5295
    %v5877 = vpop.permute.xlu0 %5876
    %5878 = vset.pattern.permute.xlu0 0
    %5879 = vperm.xlu0 %5878, %v5296
    %v5880 = vpop.permute.xlu0 %5879
    %5881 = vset.pattern.permute.xlu0 0
    %5882 = vperm.xlu0 %5881, %v5297
    %v5883 = vpop.permute.xlu0 %5882
    %5884 = vset.pattern.permute.xlu0 0
    %5885 = vperm.xlu0 %5884, %v5298
    %v5886 = vpop.permute.xlu0 %5885
    %5887 = vset.pattern.permute.xlu0 0
    %5888 = vperm.xlu0 %5887, %v5299
    %v5889 = vpop.permute.xlu0 %5888
    %5890 = vset.pattern.permute.xlu0 0
    %5891 = vperm.xlu0 %5890, %v5300
    %v5892 = vpop.permute.xlu0 %5891
    %5893 = vset.pattern.permute.xlu0 0
    %5894 = vperm.xlu0 %5893, %v5301
    %v5895 = vpop.permute.xlu0 %5894
    %5896 = vset.pattern.permute.xlu0 0
    %5897 = vperm.xlu0 %5896, %v5302
    %v5898 = vpop.permute.xlu0 %5897
    %5899 = vset.pattern.permute.xlu0 0
    %5900 = vperm.xlu0 %5899, %v5303
    %v5901 = vpop.permute.xlu0 %5900
    %5902 = vset.pattern.permute.xlu0 0
    %5903 = vperm.xlu0 %5902, %v5304
    %v5904 = vpop.permute.xlu0 %5903
    %5905 = vset.pattern.permute.xlu0 0
    %5906 = vperm.xlu0 %5905, %v5305
    %v5907 = vpop.permute.xlu0 %5906
    %5908 = vset.pattern.permute.xlu0 0
    %5909 = vperm.xlu0 %5908, %v5306
    %v5910 = vpop.permute.xlu0 %5909
    %5911 = vset.pattern.permute.xlu0 0
    %5912 = vperm.xlu0 %5911, %v5307
    %v5913 = vpop.permute.xlu0 %5912
    %5914 = vset.pattern.permute.xlu0 0
    %5915 = vperm.xlu0 %5914, %v5308
    %v5916 = vpop.permute.xlu0 %5915
    %5917 = vset.pattern.permute.xlu0 0
    %5918 = vperm.xlu0 %5917, %v5309
    %v5919 = vpop.permute.xlu0 %5918
    %5920 = vset.pattern.permute.xlu0 0
    %5921 = vperm.xlu0 %5920, %v5310
    %v5922 = vpop.permute.xlu0 %5921
    %5923 = vset.pattern.permute.xlu0 0
    %5924 = vperm.xlu0 %5923, %v5311
    %v5925 = vpop.permute.xlu0 %5924
    %5926 = vset.pattern.permute.xlu0 0
    %5927 = vperm.xlu0 %5926, %v5312
    %v5928 = vpop.permute.xlu0 %5927
    %5929 = vset.pattern.permute.xlu0 0
    %5930 = vperm.xlu0 %5929, %v5313
    %v5931 = vpop.permute.xlu0 %5930
    %5932 = vset.pattern.permute.xlu0 0
    %5933 = vperm.xlu0 %5932, %v5314
    %v5934 = vpop.permute.xlu0 %5933
    %5935 = vset.pattern.permute.xlu0 0
    %5936 = vperm.xlu0 %5935, %v5315
    %v5937 = vpop.permute.xlu0 %5936
    %5938 = vset.pattern.permute.xlu0 0
    %5939 = vperm.xlu0 %5938, %v5316
    %v5940 = vpop.permute.xlu0 %5939
    %5941 = vset.pattern.permute.xlu0 0
    %5942 = vperm.xlu0 %5941, %v5317
    %v5943 = vpop.permute.xlu0 %5942
    %5944 = vset.pattern.permute.xlu0 0
    %5945 = vperm.xlu0 %5944, %v5318
    %v5946 = vpop.permute.xlu0 %5945
    %5947 = vset.pattern.permute.xlu0 0
    %5948 = vperm.xlu0 %5947, %v5319
    %v5949 = vpop.permute.xlu0 %5948
    %5950 = vset.pattern.permute.xlu0 0
    %5951 = vperm.xlu0 %5950, %v5320
    %v5952 = vpop.permute.xlu0 %5951
    %5953 = vset.pattern.permute.xlu0 0
    %5954 = vperm.xlu0 %5953, %v5321
    %v5955 = vpop.permute.xlu0 %5954
    %5956 = vset.pattern.permute.xlu0 0
    %5957 = vperm.xlu0 %5956, %v5322
    %v5958 = vpop.permute.xlu0 %5957
    %5959 = vset.pattern.permute.xlu0 0
    %5960 = vperm.xlu0 %5959, %v5323
    %v5961 = vpop.permute.xlu0 %5960
    %5962 = vset.pattern.permute.xlu0 0
    %5963 = vperm.xlu0 %5962, %v5324
    %v5964 = vpop.permute.xlu0 %5963
    %5965 = vset.pattern.permute.xlu0 0
    %5966 = vperm.xlu0 %5965, %v5325
    %v5967 = vpop.permute.xlu0 %5966
    %5968 = vset.pattern.permute.xlu0 0
    %5969 = vperm.xlu0 %5968, %v5326
    %v5970 = vpop.permute.xlu0 %5969
    %5971 = vset.pattern.permute.xlu0 0
    %5972 = vperm.xlu0 %5971, %v5327
    %v5973 = vpop.permute.xlu0 %5972
    %5974 = vset.pattern.permute.xlu0 0
    %5975 = vperm.xlu0 %5974, %v5328
    %v5976 = vpop.permute.xlu0 %5975
    %5977 = vset.pattern.permute.xlu0 0
    %5978 = vperm.xlu0 %5977, %v5329
    %v5979 = vpop.permute.xlu0 %5978
    %5980 = vset.pattern.permute.xlu0 0
    %5981 = vperm.xlu0 %5980, %v5330
    %v5982 = vpop.permute.xlu0 %5981
    %5983 = vset.pattern.permute.xlu0 0
    %5984 = vperm.xlu0 %5983, %v5331
    %v5985 = vpop.permute.xlu0 %5984
    %5986 = vset.pattern.permute.xlu0 0
    %5987 = vperm.xlu0 %5986, %v5332
    %v5988 = vpop.permute.xlu0 %5987
    %5989 = vset.pattern.permute.xlu0 0
    %5990 = vperm.xlu0 %5989, %v5333
    %v5991 = vpop.permute.xlu0 %5990
    %5992 = vset.pattern.permute.xlu0 0
    %5993 = vperm.xlu0 %5992, %v5334
    %v5994 = vpop.permute.xlu0 %5993
    %5995 = vset.pattern.permute.xlu0 0
    %5996 = vperm.xlu0 %5995, %v5335
    %v5997 = vpop.permute.xlu0 %5996
    %5998 = vset.pattern.permute.xlu0 0
    %5999 = vperm.xlu0 %5998, %v5336
    %v6000 = vpop.permute.xlu0 %5999
    %6001 = vset.pattern.permute.xlu0 0
    %6002 = vperm.xlu0 %6001, %v5337
    %v6003 = vpop.permute.xlu0 %6002
    %6004 = vset.pattern.permute.xlu0 0
    %6005 = vperm.xlu0 %6004, %v5338
    %v6006 = vpop.permute.xlu0 %6005
    %6007 = vset.pattern.permute.xlu0 0
    %6008 = vperm.xlu0 %6007, %v5339
    %v6009 = vpop.permute.xlu0 %6008
    %6010 = vset.pattern.permute.xlu0 0
    %6011 = vperm.xlu0 %6010, %v5340
    %v6012 = vpop.permute.xlu0 %6011
    %6013 = vset.pattern.permute.xlu0 0
    %6014 = vperm.xlu0 %6013, %v5341
    %v6015 = vpop.permute.xlu0 %6014
    %6016 = vset.pattern.permute.xlu0 0
    %6017 = vperm.xlu0 %6016, %v5342
    %v6018 = vpop.permute.xlu0 %6017
    %6019 = vset.pattern.permute.xlu0 0
    %6020 = vperm.xlu0 %6019, %v5343
    %v6021 = vpop.permute.xlu0 %6020
    %6022 = vset.pattern.permute.xlu0 0
    %6023 = vperm.xlu0 %6022, %v5344
    %v6024 = vpop.permute.xlu0 %6023
    %6025 = vset.pattern.permute.xlu0 0
    %6026 = vperm.xlu0 %6025, %v5345
    %v6027 = vpop.permute.xlu0 %6026
    %6028 = vset.pattern.permute.xlu0 0
    %6029 = vperm.xlu0 %6028, %v5346
    %v6030 = vpop.permute.xlu0 %6029
    %6031 = vset.pattern.permute.xlu0 0
    %6032 = vperm.xlu0 %6031, %v5347
    %v6033 = vpop.permute.xlu0 %6032
    %6034 = vset.pattern.permute.xlu0 0
    %6035 = vperm.xlu0 %6034, %v5348
    %v6036 = vpop.permute.xlu0 %6035
    %6037 = vset.pattern.permute.xlu0 0
    %6038 = vperm.xlu0 %6037, %v5349
    %v6039 = vpop.permute.xlu0 %6038
    %6040 = vset.pattern.permute.xlu0 0
    %6041 = vperm.xlu0 %6040, %v5350
    %v6042 = vpop.permute.xlu0 %6041
    %6043 = vset.pattern.permute.xlu0 0
    %6044 = vperm.xlu0 %6043, %v5351
    %v6045 = vpop.permute.xlu0 %6044
    %6046 = vset.pattern.permute.xlu0 0
    %6047 = vperm.xlu0 %6046, %v5352
    %v6048 = vpop.permute.xlu0 %6047
    %6049 = vset.pattern.permute.xlu0 0
    %6050 = vperm.xlu0 %6049, %v5353
    %v6051 = vpop.permute.xlu0 %6050
    %6052 = vset.pattern.permute.xlu0 0
    %6053 = vperm.xlu0 %6052, %v5354
    %v6054 = vpop.permute.xlu0 %6053
    %6055 = vset.pattern.permute.xlu0 0
    %6056 = vperm.xlu0 %6055, %v5355
    %v6057 = vpop.permute.xlu0 %6056
    %6058 = vset.pattern.permute.xlu0 0
    %6059 = vperm.xlu0 %6058, %v5356
    %v6060 = vpop.permute.xlu0 %6059
    %6061 = vset.pattern.permute.xlu0 0
    %6062 = vperm.xlu0 %6061, %v5357
    %v6063 = vpop.permute.xlu0 %6062
    %6064 = vset.pattern.permute.xlu0 0
    %6065 = vperm.xlu0 %6064, %v5358
    %v6066 = vpop.permute.xlu0 %6065
    %6067 = vset.pattern.permute.xlu0 0
    %6068 = vperm.xlu0 %6067, %v5359
    %v6069 = vpop.permute.xlu0 %6068
    %6070 = vset.pattern.permute.xlu0 0
    %6071 = vperm.xlu0 %6070, %v5360
    %v6072 = vpop.permute.xlu0 %6071
    %6073 = vset.pattern.permute.xlu0 0
    %6074 = vperm.xlu0 %6073, %v5361
    %v6075 = vpop.permute.xlu0 %6074
    %6076 = vset.pattern.permute.xlu0 0
    %6077 = vperm.xlu0 %6076, %v5362
    %v6078 = vpop.permute.xlu0 %6077
    %6079 = vset.pattern.permute.xlu0 0
    %6080 = vperm.xlu0 %6079, %v5363
    %v6081 = vpop.permute.xlu0 %6080
    %6082 = vset.pattern.permute.xlu0 0
    %6083 = vperm.xlu0 %6082, %v5364
    %v6084 = vpop.permute.xlu0 %6083
    %6085 = vset.pattern.permute.xlu0 0
    %6086 = vperm.xlu0 %6085, %v5365
    %v6087 = vpop.permute.xlu0 %6086
    %6088 = vset.pattern.permute.xlu0 0
    %6089 = vperm.xlu0 %6088, %v5366
    %v6090 = vpop.permute.xlu0 %6089
    %6091 = vset.pattern.permute.xlu0 0
    %6092 = vperm.xlu0 %6091, %v5367
    %v6093 = vpop.permute.xlu0 %6092
    %6094 = vset.pattern.permute.xlu0 0
    %6095 = vperm.xlu0 %6094, %v5368
    %v6096 = vpop.permute.xlu0 %6095
    %6097 = vset.pattern.permute.xlu0 0
    %6098 = vperm.xlu0 %6097, %v5369
    %v6099 = vpop.permute.xlu0 %6098
    %6100 = vset.pattern.permute.xlu0 0
    %6101 = vperm.xlu0 %6100, %v5370
    %v6102 = vpop.permute.xlu0 %6101
    %6103 = vset.pattern.permute.xlu0 0
    %6104 = vperm.xlu0 %6103, %v5371
    %v6105 = vpop.permute.xlu0 %6104
    %6106 = vset.pattern.permute.xlu0 0
    %6107 = vperm.xlu0 %6106, %v5372
    %v6108 = vpop.permute.xlu0 %6107
    %6109 = vset.pattern.permute.xlu0 0
    %6110 = vperm.xlu0 %6109, %v5373
    %v6111 = vpop.permute.xlu0 %6110
    %6112 = vset.pattern.permute.xlu0 0
    %6113 = vperm.xlu0 %6112, %v5374
    %v6114 = vpop.permute.xlu0 %6113
    %6115 = vset.pattern.permute.xlu0 0
    %6116 = vperm.xlu0 %6115, %v5375
    %v6117 = vpop.permute.xlu0 %6116
    %6118 = vset.pattern.permute.xlu0 0
    %6119 = vperm.xlu0 %6118, %v5376
    %v6120 = vpop.permute.xlu0 %6119
    %6121 = vset.pattern.permute.xlu0 0
    %6122 = vperm.xlu0 %6121, %v5377
    %v6123 = vpop.permute.xlu0 %6122
    %6124 = vset.pattern.permute.xlu0 0
    %6125 = vperm.xlu0 %6124, %v5378
    %v6126 = vpop.permute.xlu0 %6125
    %6127 = vset.pattern.permute.xlu0 0
    %6128 = vperm.xlu0 %6127, %v5379
    %v6129 = vpop.permute.xlu0 %6128
    %6130 = vset.pattern.permute.xlu0 0
    %6131 = vperm.xlu0 %6130, %v5380
    %v6132 = vpop.permute.xlu0 %6131
    %6133 = vset.pattern.permute.xlu0 0
    %6134 = vperm.xlu0 %6133, %v5381
    %v6135 = vpop.permute.xlu0 %6134
    %6136 = vset.pattern.permute.xlu0 0
    %6137 = vperm.xlu0 %6136, %v5382
    %v6138 = vpop.permute.xlu0 %6137
    %6139 = vset.pattern.permute.xlu0 0
    %6140 = vperm.xlu0 %6139, %v5383
    %v6141 = vpop.permute.xlu0 %6140
    %6142 = vset.pattern.permute.xlu0 0
    %6143 = vperm.xlu0 %6142, %v5384
    %v6144 = vpop.permute.xlu0 %6143
    %6145 = vset.pattern.permute.xlu0 0
    %6146 = vperm.xlu0 %6145, %v5385
    %v6147 = vpop.permute.xlu0 %6146
    %6148 = vset.pattern.permute.xlu0 0
    %6149 = vperm.xlu0 %6148, %v5386
    %v6150 = vpop.permute.xlu0 %6149
    %6151 = vset.pattern.permute.xlu0 0
    %6152 = vperm.xlu0 %6151, %v5387
    %v6153 = vpop.permute.xlu0 %6152
    %6154 = vset.pattern.permute.xlu0 0
    %6155 = vperm.xlu0 %6154, %v5388
    %v6156 = vpop.permute.xlu0 %6155
    %6157 = vset.pattern.permute.xlu0 0
    %6158 = vperm.xlu0 %6157, %v5389
    %v6159 = vpop.permute.xlu0 %6158
    %6160 = vset.pattern.permute.xlu0 0
    %6161 = vperm.xlu0 %6160, %v5390
    %v6162 = vpop.permute.xlu0 %6161
    %6163 = vset.pattern.permute.xlu0 0
    %6164 = vperm.xlu0 %6163, %v5391
    %v6165 = vpop.permute.xlu0 %6164
    %6166 = vset.pattern.permute.xlu0 0
    %6167 = vperm.xlu0 %6166, %v5392
    %v6168 = vpop.permute.xlu0 %6167
    %6169 = vset.pattern.permute.xlu0 0
    %6170 = vperm.xlu0 %6169, %v5393
    %v6171 = vpop.permute.xlu0 %6170
    %6172 = vset.pattern.permute.xlu0 0
    %6173 = vperm.xlu0 %6172, %v5394
    %v6174 = vpop.permute.xlu0 %6173
    %6175 = vset.pattern.permute.xlu0 0
    %6176 = vperm.xlu0 %6175, %v5395
    %v6177 = vpop.permute.xlu0 %6176
    %6178 = vset.pattern.permute.xlu0 0
    %6179 = vperm.xlu0 %6178, %v5396
    %v6180 = vpop.permute.xlu0 %6179
    %6181 = vset.pattern.permute.xlu0 0
    %6182 = vperm.xlu0 %6181, %v5397
    %v6183 = vpop.permute.xlu0 %6182
    %6184 = vset.pattern.permute.xlu0 0
    %6185 = vperm.xlu0 %6184, %v5398
    %v6186 = vpop.permute.xlu0 %6185
    %6187 = vset.pattern.permute.xlu0 0
    %6188 = vperm.xlu0 %6187, %v5399
    %v6189 = vpop.permute.xlu0 %6188
    %6190 = vset.pattern.permute.xlu0 0
    %6191 = vperm.xlu0 %6190, %v5400
    %v6192 = vpop.permute.xlu0 %6191
    %6193 = vset.pattern.permute.xlu0 0
    %6194 = vperm.xlu0 %6193, %v5401
    %v6195 = vpop.permute.xlu0 %6194
    %6196 = vset.pattern.permute.xlu0 0
    %6197 = vperm.xlu0 %6196, %v5402
    %v6198 = vpop.permute.xlu0 %6197
    %6199 = vset.pattern.permute.xlu0 0
    %6200 = vperm.xlu0 %6199, %v5403
    %v6201 = vpop.permute.xlu0 %6200
    %6202 = vset.pattern.permute.xlu0 0
    %6203 = vperm.xlu0 %6202, %v5404
    %v6204 = vpop.permute.xlu0 %6203
    %6205 = vset.pattern.permute.xlu0 0
    %6206 = vperm.xlu0 %6205, %v5405
    %v6207 = vpop.permute.xlu0 %6206
    %6208 = vset.pattern.permute.xlu0 0
    %6209 = vperm.xlu0 %6208, %v5406
    %v6210 = vpop.permute.xlu0 %6209
    %6211 = vset.pattern.permute.xlu0 0
    %6212 = vperm.xlu0 %6211, %v5407
    %v6213 = vpop.permute.xlu0 %6212
    %6214 = vset.pattern.permute.xlu0 0
    %6215 = vperm.xlu0 %6214, %v5408
    %v6216 = vpop.permute.xlu0 %6215
    %6217 = vset.pattern.permute.xlu0 0
    %6218 = vperm.xlu0 %6217, %v5409
    %v6219 = vpop.permute.xlu0 %6218
    %6220 = vset.pattern.permute.xlu0 0
    %6221 = vperm.xlu0 %6220, %v5410
    %v6222 = vpop.permute.xlu0 %6221
    %6223 = vset.pattern.permute.xlu0 0
    %6224 = vperm.xlu0 %6223, %v5411
    %v6225 = vpop.permute.xlu0 %6224
    %6226 = vset.pattern.permute.xlu0 0
    %6227 = vperm.xlu0 %6226, %v5412
    %v6228 = vpop.permute.xlu0 %6227
    %6229 = vset.pattern.permute.xlu0 0
    %6230 = vperm.xlu0 %6229, %v5413
    %v6231 = vpop.permute.xlu0 %6230
    %6232 = vset.pattern.permute.xlu0 0
    %6233 = vperm.xlu0 %6232, %v5414
    %v6234 = vpop.permute.xlu0 %6233
    %6235 = vset.pattern.permute.xlu0 0
    %6236 = vperm.xlu0 %6235, %v5415
    %v6237 = vpop.permute.xlu0 %6236
    %6238 = vset.pattern.permute.xlu0 0
    %6239 = vperm.xlu0 %6238, %v5416
    %v6240 = vpop.permute.xlu0 %6239
    %6241 = vset.pattern.permute.xlu0 0
    %6242 = vperm.xlu0 %6241, %v5417
    %v6243 = vpop.permute.xlu0 %6242
    %6244 = vset.pattern.permute.xlu0 0
    %6245 = vperm.xlu0 %6244, %v5418
    %v6246 = vpop.permute.xlu0 %6245
    %6247 = vset.pattern.permute.xlu0 0
    %6248 = vperm.xlu0 %6247, %v5419
    %v6249 = vpop.permute.xlu0 %6248
    %6250 = vset.pattern.permute.xlu0 0
    %6251 = vperm.xlu0 %6250, %v5420
    %v6252 = vpop.permute.xlu0 %6251
    %6253 = vset.pattern.permute.xlu0 0
    %6254 = vperm.xlu0 %6253, %v5421
    %v6255 = vpop.permute.xlu0 %6254
    %6256 = vset.pattern.permute.xlu0 0
    %6257 = vperm.xlu0 %6256, %v5422
    %v6258 = vpop.permute.xlu0 %6257
    %6259 = vset.pattern.permute.xlu0 0
    %6260 = vperm.xlu0 %6259, %v5423
    %v6261 = vpop.permute.xlu0 %6260
    %6262 = vset.pattern.permute.xlu0 0
    %6263 = vperm.xlu0 %6262, %v5424
    %v6264 = vpop.permute.xlu0 %6263
    %6265 = vset.pattern.permute.xlu0 0
    %6266 = vperm.xlu0 %6265, %v5425
    %v6267 = vpop.permute.xlu0 %6266
    %6268 = vset.pattern.permute.xlu0 0
    %6269 = vperm.xlu0 %6268, %v5426
    %v6270 = vpop.permute.xlu0 %6269
    %6271 = vset.pattern.permute.xlu0 0
    %6272 = vperm.xlu0 %6271, %v5427
    %v6273 = vpop.permute.xlu0 %6272
    %6274 = vset.pattern.permute.xlu0 0
    %6275 = vperm.xlu0 %6274, %v5428
    %v6276 = vpop.permute.xlu0 %6275
    %6277 = vset.pattern.permute.xlu0 0
    %6278 = vperm.xlu0 %6277, %v5429
    %v6279 = vpop.permute.xlu0 %6278
    %6280 = vset.pattern.permute.xlu0 0
    %6281 = vperm.xlu0 %6280, %v5430
    %v6282 = vpop.permute.xlu0 %6281
    %6283 = vset.pattern.permute.xlu0 0
    %6284 = vperm.xlu0 %6283, %v5431
    %v6285 = vpop.permute.xlu0 %6284
    %6286 = vset.pattern.permute.xlu0 0
    %6287 = vperm.xlu0 %6286, %v5432
    %v6288 = vpop.permute.xlu0 %6287
    %6289 = vset.pattern.permute.xlu0 0
    %6290 = vperm.xlu0 %6289, %v5433
    %v6291 = vpop.permute.xlu0 %6290
    %6292 = vset.pattern.permute.xlu0 0
    %6293 = vperm.xlu0 %6292, %v5434
    %v6294 = vpop.permute.xlu0 %6293
    %6295 = vset.pattern.permute.xlu0 0
    %6296 = vperm.xlu0 %6295, %v5435
    %v6297 = vpop.permute.xlu0 %6296
    %6298 = vset.pattern.permute.xlu0 0
    %6299 = vperm.xlu0 %6298, %v5436
    %v6300 = vpop.permute.xlu0 %6299
    %6301 = vset.pattern.permute.xlu0 0
    %6302 = vperm.xlu0 %6301, %v5437
    %v6303 = vpop.permute.xlu0 %6302
    %6304 = vset.pattern.permute.xlu0 0
    %6305 = vperm.xlu0 %6304, %v5438
    %v6306 = vpop.permute.xlu0 %6305
    %6307 = vset.pattern.permute.xlu0 0
    %6308 = vperm.xlu0 %6307, %v5439
    %v6309 = vpop.permute.xlu0 %6308
    %6310 = vset.pattern.permute.xlu0 0
    %6311 = vperm.xlu0 %6310, %v5440
    %v6312 = vpop.permute.xlu0 %6311
    %6313 = vset.pattern.permute.xlu0 0
    %6314 = vperm.xlu0 %6313, %v5441
    %v6315 = vpop.permute.xlu0 %6314
    %6316 = vset.pattern.permute.xlu0 0
    %6317 = vperm.xlu0 %6316, %v5442
    %v6318 = vpop.permute.xlu0 %6317
    %6319 = vset.pattern.permute.xlu0 0
    %6320 = vperm.xlu0 %6319, %v5443
    %v6321 = vpop.permute.xlu0 %6320
    %6322 = vset.pattern.permute.xlu0 0
    %6323 = vperm.xlu0 %6322, %v5444
    %v6324 = vpop.permute.xlu0 %6323
    %6325 = vset.pattern.permute.xlu0 0
    %6326 = vperm.xlu0 %6325, %v5445
    %v6327 = vpop.permute.xlu0 %6326
    %6328 = vset.pattern.permute.xlu0 0
    %6329 = vperm.xlu0 %6328, %v5446
    %v6330 = vpop.permute.xlu0 %6329
    %6331 = vset.pattern.permute.xlu0 0
    %6332 = vperm.xlu0 %6331, %v5447
    %v6333 = vpop.permute.xlu0 %6332
    %6334 = vset.pattern.permute.xlu0 0
    %6335 = vperm.xlu0 %6334, %v5448
    %v6336 = vpop.permute.xlu0 %6335
    %6337 = vset.pattern.permute.xlu0 0
    %6338 = vperm.xlu0 %6337, %v5449
    %v6339 = vpop.permute.xlu0 %6338
    %6340 = vset.pattern.permute.xlu0 0
    %6341 = vperm.xlu0 %6340, %v5450
    %v6342 = vpop.permute.xlu0 %6341
    %6343 = vset.pattern.permute.xlu0 0
    %6344 = vperm.xlu0 %6343, %v5451
    %v6345 = vpop.permute.xlu0 %6344
    %6346 = vset.pattern.permute.xlu0 0
    %6347 = vperm.xlu0 %6346, %v5452
    %v6348 = vpop.permute.xlu0 %6347
    %6349 = vset.pattern.permute.xlu0 0
    %6350 = vperm.xlu0 %6349, %v5453
    %v6351 = vpop.permute.xlu0 %6350
    %6352 = vset.pattern.permute.xlu0 0
    %6353 = vperm.xlu0 %6352, %v5454
    %v6354 = vpop.permute.xlu0 %6353
    %6355 = vset.pattern.permute.xlu0 0
    %6356 = vperm.xlu0 %6355, %v5455
    %v6357 = vpop.permute.xlu0 %6356
    %6358 = vset.pattern.permute.xlu0 0
    %6359 = vperm.xlu0 %6358, %v5456
    %v6360 = vpop.permute.xlu0 %6359
    %6361 = vset.pattern.permute.xlu0 0
    %6362 = vperm.xlu0 %6361, %v5457
    %v6363 = vpop.permute.xlu0 %6362
    %6364 = vset.pattern.permute.xlu0 0
    %6365 = vperm.xlu0 %6364, %v5458
    %v6366 = vpop.permute.xlu0 %6365
    %6367 = vset.pattern.permute.xlu0 0
    %6368 = vperm.xlu0 %6367, %v5459
    %v6369 = vpop.permute.xlu0 %6368
    %6370 = vset.pattern.permute.xlu0 0
    %6371 = vperm.xlu0 %6370, %v5460
    %v6372 = vpop.permute.xlu0 %6371
    %6373 = vset.pattern.permute.xlu0 0
    %6374 = vperm.xlu0 %6373, %v5461
    %v6375 = vpop.permute.xlu0 %6374
    %6376 = vset.pattern.permute.xlu0 0
    %6377 = vperm.xlu0 %6376, %v5462
    %v6378 = vpop.permute.xlu0 %6377
    %6379 = vset.pattern.permute.xlu0 0
    %6380 = vperm.xlu0 %6379, %v5463
    %v6381 = vpop.permute.xlu0 %6380
    %6382 = vset.pattern.permute.xlu0 0
    %6383 = vperm.xlu0 %6382, %v5464
    %v6384 = vpop.permute.xlu0 %6383
    %6385 = vset.pattern.permute.xlu0 0
    %6386 = vperm.xlu0 %6385, %v5465
    %v6387 = vpop.permute.xlu0 %6386
    %6388 = vset.pattern.permute.xlu0 0
    %6389 = vperm.xlu0 %6388, %v5466
    %v6390 = vpop.permute.xlu0 %6389
    %6391 = vset.pattern.permute.xlu0 0
    %6392 = vperm.xlu0 %6391, %v5467
    %v6393 = vpop.permute.xlu0 %6392
    %6394 = vset.pattern.permute.xlu0 0
    %6395 = vperm.xlu0 %6394, %v5468
    %v6396 = vpop.permute.xlu0 %6395
    %6397 = vset.pattern.permute.xlu0 0
    %6398 = vperm.xlu0 %6397, %v5469
    %v6399 = vpop.permute.xlu0 %6398
    %6400 = vset.pattern.permute.xlu0 0
    %6401 = vperm.xlu0 %6400, %v5470
    %v6402 = vpop.permute.xlu0 %6401
    %6403 = vset.pattern.permute.xlu0 0
    %6404 = vperm.xlu0 %6403, %v5471
    %v6405 = vpop.permute.xlu0 %6404
    %6406 = vset.pattern.permute.xlu0 0
    %6407 = vperm.xlu0 %6406, %v5472
    %v6408 = vpop.permute.xlu0 %6407
    %6409 = vset.pattern.permute.xlu0 0
    %6410 = vperm.xlu0 %6409, %v5473
    %v6411 = vpop.permute.xlu0 %6410
    %6412 = vset.pattern.permute.xlu0 0
    %6413 = vperm.xlu0 %6412, %v5474
    %v6414 = vpop.permute.xlu0 %6413
    %6415 = vset.pattern.permute.xlu0 0
    %6416 = vperm.xlu0 %6415, %v5475
    %v6417 = vpop.permute.xlu0 %6416
    %6418 = vset.pattern.permute.xlu0 0
    %6419 = vperm.xlu0 %6418, %v5476
    %v6420 = vpop.permute.xlu0 %6419
    %6421 = vset.pattern.permute.xlu0 0
    %6422 = vperm.xlu0 %6421, %v5477
    %v6423 = vpop.permute.xlu0 %6422
    %6424 = vset.pattern.permute.xlu0 0
    %6425 = vperm.xlu0 %6424, %v5478
    %v6426 = vpop.permute.xlu0 %6425
    %6427 = vset.pattern.permute.xlu0 0
    %6428 = vperm.xlu0 %6427, %v5479
    %v6429 = vpop.permute.xlu0 %6428
    %6430 = vset.pattern.permute.xlu0 0
    %6431 = vperm.xlu0 %6430, %v5480
    %v6432 = vpop.permute.xlu0 %6431
    %6433 = vset.pattern.permute.xlu0 0
    %6434 = vperm.xlu0 %6433, %v5481
    %v6435 = vpop.permute.xlu0 %6434
    %6436 = vset.pattern.permute.xlu0 0
    %6437 = vperm.xlu0 %6436, %v5482
    %v6438 = vpop.permute.xlu0 %6437
    %6439 = vset.pattern.permute.xlu0 0
    %6440 = vperm.xlu0 %6439, %v5483
    %v6441 = vpop.permute.xlu0 %6440
    %6442 = vset.pattern.permute.xlu0 0
    %6443 = vperm.xlu0 %6442, %v5484
    %v6444 = vpop.permute.xlu0 %6443
    %6445 = vset.pattern.permute.xlu0 0
    %6446 = vperm.xlu0 %6445, %v5485
    %v6447 = vpop.permute.xlu0 %6446
    %6448 = vset.pattern.permute.xlu0 0
    %6449 = vperm.xlu0 %6448, %v5486
    %v6450 = vpop.permute.xlu0 %6449
    %6451 = vset.pattern.permute.xlu0 0
    %6452 = vperm.xlu0 %6451, %v5487
    %v6453 = vpop.permute.xlu0 %6452
    %6454 = vset.pattern.permute.xlu0 0
    %6455 = vperm.xlu0 %6454, %v5488
    %v6456 = vpop.permute.xlu0 %6455
    %6457 = vset.pattern.permute.xlu0 0
    %6458 = vperm.xlu0 %6457, %v5489
    %v6459 = vpop.permute.xlu0 %6458
    %6460 = vset.pattern.permute.xlu0 0
    %6461 = vperm.xlu0 %6460, %v5490
    %v6462 = vpop.permute.xlu0 %6461
    %6463 = vset.pattern.permute.xlu0 0
    %6464 = vperm.xlu0 %6463, %v5491
    %v6465 = vpop.permute.xlu0 %6464
    %6466 = vset.pattern.permute.xlu0 0
    %6467 = vperm.xlu0 %6466, %v5492
    %v6468 = vpop.permute.xlu0 %6467
    %6469 = vset.pattern.permute.xlu0 0
    %6470 = vperm.xlu0 %6469, %v5493
    %v6471 = vpop.permute.xlu0 %6470
    %6472 = vset.pattern.permute.xlu0 0
    %6473 = vperm.xlu0 %6472, %v5494
    %v6474 = vpop.permute.xlu0 %6473
    %6475 = vset.pattern.permute.xlu0 0
    %6476 = vperm.xlu0 %6475, %v5495
    %v6477 = vpop.permute.xlu0 %6476
    %6478 = vset.pattern.permute.xlu0 0
    %6479 = vperm.xlu0 %6478, %v5496
    %v6480 = vpop.permute.xlu0 %6479
    %6481 = vset.pattern.permute.xlu0 0
    %6482 = vperm.xlu0 %6481, %v5497
    %v6483 = vpop.permute.xlu0 %6482
    %6484 = vset.pattern.permute.xlu0 0
    %6485 = vperm.xlu0 %6484, %v5498
    %v6486 = vpop.permute.xlu0 %6485
    %6487 = vset.pattern.permute.xlu0 0
    %6488 = vperm.xlu0 %6487, %v5499
    %v6489 = vpop.permute.xlu0 %6488
    %6490 = vset.pattern.permute.xlu0 0
    %6491 = vperm.xlu0 %6490, %v5500
    %v6492 = vpop.permute.xlu0 %6491
    %6493 = vset.pattern.permute.xlu0 0
    %6494 = vperm.xlu0 %6493, %v5501
    %v6495 = vpop.permute.xlu0 %6494
    %6496 = vset.pattern.permute.xlu0 0
    %6497 = vperm.xlu0 %6496, %v5502
    %v6498 = vpop.permute.xlu0 %6497
    %6499 = vset.pattern.permute.xlu0 0
    %6500 = vperm.xlu0 %6499, %v5503
    %v6501 = vpop.permute.xlu0 %6500
    %6502 = vset.pattern.permute.xlu0 0
    %6503 = vperm.xlu0 %6502, %v5504
    %v6504 = vpop.permute.xlu0 %6503
    %6505 = vset.pattern.permute.xlu0 0
    %6506 = vperm.xlu0 %6505, %v5505
    %v6507 = vpop.permute.xlu0 %6506
    %6508 = vset.pattern.permute.xlu0 0
    %6509 = vperm.xlu0 %6508, %v5506
    %v6510 = vpop.permute.xlu0 %6509
    %6511 = vset.pattern.permute.xlu0 0
    %6512 = vperm.xlu0 %6511, %v5507
    %v6513 = vpop.permute.xlu0 %6512
    %6514 = vset.pattern.permute.xlu0 0
    %6515 = vperm.xlu0 %6514, %v5508
    %v6516 = vpop.permute.xlu0 %6515
    %6517 = vset.pattern.permute.xlu0 0
    %6518 = vperm.xlu0 %6517, %v5509
    %v6519 = vpop.permute.xlu0 %6518
    %6520 = vset.pattern.permute.xlu0 0
    %6521 = vperm.xlu0 %6520, %v5510
    %v6522 = vpop.permute.xlu0 %6521
    %6523 = vset.pattern.permute.xlu0 0
    %6524 = vperm.xlu0 %6523, %v5511
    %v6525 = vpop.permute.xlu0 %6524
    %6526 = vset.pattern.permute.xlu0 0
    %6527 = vperm.xlu0 %6526, %v5512
    %v6528 = vpop.permute.xlu0 %6527
    %6529 = vset.pattern.permute.xlu0 0
    %6530 = vperm.xlu0 %6529, %v5513
    %v6531 = vpop.permute.xlu0 %6530
    %6532 = vset.pattern.permute.xlu0 0
    %6533 = vperm.xlu0 %6532, %v5514
    %v6534 = vpop.permute.xlu0 %6533
    %6535 = vset.pattern.permute.xlu0 0
    %6536 = vperm.xlu0 %6535, %v5515
    %v6537 = vpop.permute.xlu0 %6536
    %6538 = vset.pattern.permute.xlu0 0
    %6539 = vperm.xlu0 %6538, %v5516
    %v6540 = vpop.permute.xlu0 %6539
    %6541 = vset.pattern.permute.xlu0 0
    %6542 = vperm.xlu0 %6541, %v5517
    %v6543 = vpop.permute.xlu0 %6542
    %6544 = vset.pattern.permute.xlu0 0
    %6545 = vperm.xlu0 %6544, %v5518
    %v6546 = vpop.permute.xlu0 %6545
    %6547 = vset.pattern.permute.xlu0 0
    %6548 = vperm.xlu0 %6547, %v5519
    %v6549 = vpop.permute.xlu0 %6548
    %6550 = vset.pattern.permute.xlu0 0
    %6551 = vperm.xlu0 %6550, %v5520
    %v6552 = vpop.permute.xlu0 %6551
    %6553 = vset.pattern.permute.xlu0 0
    %6554 = vperm.xlu0 %6553, %v5521
    %v6555 = vpop.permute.xlu0 %6554
    %6556 = vset.pattern.permute.xlu0 0
    %6557 = vperm.xlu0 %6556, %v5522
    %v6558 = vpop.permute.xlu0 %6557
    %6559 = vset.pattern.permute.xlu0 0
    %6560 = vperm.xlu0 %6559, %v5523
    %v6561 = vpop.permute.xlu0 %6560
    %6562 = vset.pattern.permute.xlu0 0
    %6563 = vperm.xlu0 %6562, %v5524
    %v6564 = vpop.permute.xlu0 %6563
    %6565 = vset.pattern.permute.xlu0 0
    %6566 = vperm.xlu0 %6565, %v5525
    %v6567 = vpop.permute.xlu0 %6566
    %6568 = vset.pattern.permute.xlu0 0
    %6569 = vperm.xlu0 %6568, %v5526
    %v6570 = vpop.permute.xlu0 %6569
    %6571 = vset.pattern.permute.xlu0 0
    %6572 = vperm.xlu0 %6571, %v5527
    %v6573 = vpop.permute.xlu0 %6572
    %6574 = vset.pattern.permute.xlu0 0
    %6575 = vperm.xlu0 %6574, %v5528
    %v6576 = vpop.permute.xlu0 %6575
    %6577 = vset.pattern.permute.xlu0 0
    %6578 = vperm.xlu0 %6577, %v5529
    %v6579 = vpop.permute.xlu0 %6578
    %6580 = vset.pattern.permute.xlu0 0
    %6581 = vperm.xlu0 %6580, %v5530
    %v6582 = vpop.permute.xlu0 %6581
    %6583 = vset.pattern.permute.xlu0 0
    %6584 = vperm.xlu0 %6583, %v5531
    %v6585 = vpop.permute.xlu0 %6584
    %6586 = vset.pattern.permute.xlu0 0
    %6587 = vperm.xlu0 %6586, %v5532
    %v6588 = vpop.permute.xlu0 %6587
    %6589 = vset.pattern.permute.xlu0 0
    %6590 = vperm.xlu0 %6589, %v5533
    %v6591 = vpop.permute.xlu0 %6590
    %6592 = vset.pattern.permute.xlu0 0
    %6593 = vperm.xlu0 %6592, %v5534
    %v6594 = vpop.permute.xlu0 %6593
    %6595 = vset.pattern.permute.xlu0 0
    %6596 = vperm.xlu0 %6595, %v5535
    %v6597 = vpop.permute.xlu0 %6596
    %6598 = vset.pattern.permute.xlu0 0
    %6599 = vperm.xlu0 %6598, %v5536
    %v6600 = vpop.permute.xlu0 %6599
    %6601 = vset.pattern.permute.xlu0 0
    %6602 = vperm.xlu0 %6601, %v5537
    %v6603 = vpop.permute.xlu0 %6602
    %6604 = vset.pattern.permute.xlu0 0
    %6605 = vperm.xlu0 %6604, %v5538
    %v6606 = vpop.permute.xlu0 %6605
    %6607 = vset.pattern.permute.xlu0 0
    %6608 = vperm.xlu0 %6607, %v5539
    %v6609 = vpop.permute.xlu0 %6608
    %6610 = vset.pattern.permute.xlu0 0
    %6611 = vperm.xlu0 %6610, %v5540
    %v6612 = vpop.permute.xlu0 %6611
    %6613 = vset.pattern.permute.xlu0 0
    %6614 = vperm.xlu0 %6613, %v5541
    %v6615 = vpop.permute.xlu0 %6614
    %6616 = vset.pattern.permute.xlu0 0
    %6617 = vperm.xlu0 %6616, %v5542
    %v6618 = vpop.permute.xlu0 %6617
    %6619 = vset.pattern.permute.xlu0 0
    %6620 = vperm.xlu0 %6619, %v5543
    %v6621 = vpop.permute.xlu0 %6620
    %6622 = vset.pattern.permute.xlu0 0
    %6623 = vperm.xlu0 %6622, %v5544
    %v6624 = vpop.permute.xlu0 %6623
    %6625 = vset.pattern.permute.xlu0 0
    %6626 = vperm.xlu0 %6625, %v5545
    %v6627 = vpop.permute.xlu0 %6626
    %6628 = vset.pattern.permute.xlu0 0
    %6629 = vperm.xlu0 %6628, %v5546
    %v6630 = vpop.permute.xlu0 %6629
    %6631 = vset.pattern.permute.xlu0 0
    %6632 = vperm.xlu0 %6631, %v5547
    %v6633 = vpop.permute.xlu0 %6632
    %6634 = vset.pattern.permute.xlu0 0
    %6635 = vperm.xlu0 %6634, %v5548
    %v6636 = vpop.permute.xlu0 %6635
    %6637 = vset.pattern.permute.xlu0 0
    %6638 = vperm.xlu0 %6637, %v5549
    %v6639 = vpop.permute.xlu0 %6638
    %6640 = vset.pattern.permute.xlu0 0
    %6641 = vperm.xlu0 %6640, %v5550
    %v6642 = vpop.permute.xlu0 %6641
    %6643 = vset.pattern.permute.xlu0 0
    %6644 = vperm.xlu0 %6643, %v5551
    %v6645 = vpop.permute.xlu0 %6644
    %6646 = vset.pattern.permute.xlu0 0
    %6647 = vperm.xlu0 %6646, %v5552
    %v6648 = vpop.permute.xlu0 %6647
    %6649 = vset.pattern.permute.xlu0 0
    %6650 = vperm.xlu0 %6649, %v5553
    %v6651 = vpop.permute.xlu0 %6650
    %6652 = vset.pattern.permute.xlu0 0
    %6653 = vperm.xlu0 %6652, %v5554
    %v6654 = vpop.permute.xlu0 %6653
    %6655 = vset.pattern.permute.xlu0 0
    %6656 = vperm.xlu0 %6655, %v5555
    %v6657 = vpop.permute.xlu0 %6656
    %6658 = vset.pattern.permute.xlu0 0
    %6659 = vperm.xlu0 %6658, %v5556
    %v6660 = vpop.permute.xlu0 %6659
    %6661 = vset.pattern.permute.xlu0 0
    %6662 = vperm.xlu0 %6661, %v5557
    %v6663 = vpop.permute.xlu0 %6662
    %6664 = vset.pattern.permute.xlu0 0
    %6665 = vperm.xlu0 %6664, %v5558
    %v6666 = vpop.permute.xlu0 %6665
    %6667 = vset.pattern.permute.xlu0 0
    %6668 = vperm.xlu0 %6667, %v5559
    %v6669 = vpop.permute.xlu0 %6668
    %6670 = vset.pattern.permute.xlu0 0
    %6671 = vperm.xlu0 %6670, %v5560
    %v6672 = vpop.permute.xlu0 %6671
    %6673 = vset.pattern.permute.xlu0 0
    %6674 = vperm.xlu0 %6673, %v5561
    %v6675 = vpop.permute.xlu0 %6674
    %6676 = vset.pattern.permute.xlu0 0
    %6677 = vperm.xlu0 %6676, %v5562
    %v6678 = vpop.permute.xlu0 %6677
    %6679 = vset.pattern.permute.xlu0 0
    %6680 = vperm.xlu0 %6679, %v5563
    %v6681 = vpop.permute.xlu0 %6680
    %6682 = vset.pattern.permute.xlu0 0
    %6683 = vperm.xlu0 %6682, %v5564
    %v6684 = vpop.permute.xlu0 %6683
    %6685 = vset.pattern.permute.xlu0 0
    %6686 = vperm.xlu0 %6685, %v5565
    %v6687 = vpop.permute.xlu0 %6686
    %6688 = vset.pattern.permute.xlu0 0
    %6689 = vperm.xlu0 %6688, %v5566
    %v6690 = vpop.permute.xlu0 %6689
    %6691 = vset.pattern.permute.xlu0 0
    %6692 = vperm.xlu0 %6691, %v5567
    %v6693 = vpop.permute.xlu0 %6692
    %6694 = vset.pattern.permute.xlu0 0
    %6695 = vperm.xlu0 %6694, %v5568
    %v6696 = vpop.permute.xlu0 %6695
    %6697 = vset.pattern.permute.xlu0 0
    %6698 = vperm.xlu0 %6697, %v5569
    %v6699 = vpop.permute.xlu0 %6698
    %6700 = vset.pattern.permute.xlu0 0
    %6701 = vperm.xlu0 %6700, %v5570
    %v6702 = vpop.permute.xlu0 %6701
    %6703 = vset.pattern.permute.xlu0 0
    %6704 = vperm.xlu0 %6703, %v5571
    %v6705 = vpop.permute.xlu0 %6704
    %6706 = vset.pattern.permute.xlu0 0
    %6707 = vperm.xlu0 %6706, %v5572
    %v6708 = vpop.permute.xlu0 %6707
    %6709 = vset.pattern.permute.xlu0 0
    %6710 = vperm.xlu0 %6709, %v5573
    %v6711 = vpop.permute.xlu0 %6710
    %6712 = vset.pattern.permute.xlu0 0
    %6713 = vperm.xlu0 %6712, %v5574
    %v6714 = vpop.permute.xlu0 %6713
    %6715 = vset.pattern.permute.xlu0 0
    %6716 = vperm.xlu0 %6715, %v5575
    %v6717 = vpop.permute.xlu0 %6716
    %6718 = vset.pattern.permute.xlu0 0
    %6719 = vperm.xlu0 %6718, %v5576
    %v6720 = vpop.permute.xlu0 %6719
    %6721 = vset.pattern.permute.xlu0 0
    %6722 = vperm.xlu0 %6721, %v5577
    %v6723 = vpop.permute.xlu0 %6722
    %6724 = vset.pattern.permute.xlu0 0
    %6725 = vperm.xlu0 %6724, %v5578
    %v6726 = vpop.permute.xlu0 %6725
    %6727 = vset.pattern.permute.xlu0 0
    %6728 = vperm.xlu0 %6727, %v5579
    %v6729 = vpop.permute.xlu0 %6728
    %6730 = vset.pattern.permute.xlu0 0
    %6731 = vperm.xlu0 %6730, %v5580
    %v6732 = vpop.permute.xlu0 %6731
    %v6733 = vlaneseq
    %v6734 = vand.u32 %v6733, 127
    %v6735 = vlaneseq
    %v6736 = vshrl.u32 %v6735, 7
    %v6737 = vsub.s32 %v6734, %v6736
    %v6738 = vrot.slane %v5583, %v6737
    %v6739 = vadd.s32 %v6734, 4294967288
    %v6740 = vlaneseq
    %v6741 = vshrl.u32 %v6740, 7
    %v6742 = vsub.s32 %v6739, %v6741
    %v6743 = vrot.slane %v5586, %v6742
    %vm6744 = vcmask 130112
    %v6745 = vsel %vm6744, %v6743, %v6738
    %v6746 = vadd.s32 %v6734, 4294967280
    %v6747 = vlaneseq
    %v6748 = vshrl.u32 %v6747, 7
    %v6749 = vsub.s32 %v6746, %v6748
    %v6750 = vrot.slane %v5589, %v6749
    %vm6751 = vcmask 195712
    %v6752 = vsel %vm6751, %v6750, %v6745
    %v6753 = vadd.s32 %v6734, 4294967272
    %v6754 = vlaneseq
    %v6755 = vshrl.u32 %v6754, 7
    %v6756 = vsub.s32 %v6753, %v6755
    %v6757 = vrot.slane %v5592, %v6756
    %vm6758 = vcmask 261312
    %v6759 = vsel %vm6758, %v6757, %v6752
    %v6760 = vadd.s32 %v6734, 4294967264
    %v6761 = vlaneseq
    %v6762 = vshrl.u32 %v6761, 7
    %v6763 = vsub.s32 %v6760, %v6762
    %v6764 = vrot.slane %v5595, %v6763
    %vm6765 = vcmask 326912
    %v6766 = vsel %vm6765, %v6764, %v6759
    %v6767 = vadd.s32 %v6734, 4294967256
    %v6768 = vlaneseq
    %v6769 = vshrl.u32 %v6768, 7
    %v6770 = vsub.s32 %v6767, %v6769
    %v6771 = vrot.slane %v5598, %v6770
    %vm6772 = vcmask 392512
    %v6773 = vsel %vm6772, %v6771, %v6766
    %v6774 = vadd.s32 %v6734, 4294967248
    %v6775 = vlaneseq
    %v6776 = vshrl.u32 %v6775, 7
    %v6777 = vsub.s32 %v6774, %v6776
    %v6778 = vrot.slane %v5601, %v6777
    %vm6779 = vcmask 458112
    %v6780 = vsel %vm6779, %v6778, %v6773
    %v6781 = vadd.s32 %v6734, 4294967240
    %v6782 = vlaneseq
    %v6783 = vshrl.u32 %v6782, 7
    %v6784 = vsub.s32 %v6781, %v6783
    %v6785 = vrot.slane %v5604, %v6784
    %vm6786 = vcmask 523712
    %v6787 = vsel %vm6786, %v6785, %v6780
    %v6788 = vadd.s32 %v6734, 4294967232
    %v6789 = vlaneseq
    %v6790 = vshrl.u32 %v6789, 7
    %v6791 = vsub.s32 %v6788, %v6790
    %v6792 = vrot.slane %v5607, %v6791
    %vm6793 = vcmask 589312
    %v6794 = vsel %vm6793, %v6792, %v6787
    %v6795 = vadd.s32 %v6734, 4294967224
    %v6796 = vlaneseq
    %v6797 = vshrl.u32 %v6796, 7
    %v6798 = vsub.s32 %v6795, %v6797
    %v6799 = vrot.slane %v5610, %v6798
    %vm6800 = vcmask 654912
    %v6801 = vsel %vm6800, %v6799, %v6794
    %v6802 = vadd.s32 %v6734, 4294967216
    %v6803 = vlaneseq
    %v6804 = vshrl.u32 %v6803, 7
    %v6805 = vsub.s32 %v6802, %v6804
    %v6806 = vrot.slane %v5613, %v6805
    %vm6807 = vcmask 720512
    %v6808 = vsel %vm6807, %v6806, %v6801
    %v6809 = vadd.s32 %v6734, 4294967208
    %v6810 = vlaneseq
    %v6811 = vshrl.u32 %v6810, 7
    %v6812 = vsub.s32 %v6809, %v6811
    %v6813 = vrot.slane %v5616, %v6812
    %vm6814 = vcmask 786112
    %v6815 = vsel %vm6814, %v6813, %v6808
    %v6816 = vadd.s32 %v6734, 4294967200
    %v6817 = vlaneseq
    %v6818 = vshrl.u32 %v6817, 7
    %v6819 = vsub.s32 %v6816, %v6818
    %v6820 = vrot.slane %v5619, %v6819
    %vm6821 = vcmask 851712
    %v6822 = vsel %vm6821, %v6820, %v6815
    %v6823 = vadd.s32 %v6734, 4294967192
    %v6824 = vlaneseq
    %v6825 = vshrl.u32 %v6824, 7
    %v6826 = vsub.s32 %v6823, %v6825
    %v6827 = vrot.slane %v5622, %v6826
    %vm6828 = vcmask 917312
    %v6829 = vsel %vm6828, %v6827, %v6822
    %v6830 = vadd.s32 %v6734, 4294967184
    %v6831 = vlaneseq
    %v6832 = vshrl.u32 %v6831, 7
    %v6833 = vsub.s32 %v6830, %v6832
    %v6834 = vrot.slane %v5625, %v6833
    %vm6835 = vcmask 982912
    %v6836 = vsel %vm6835, %v6834, %v6829
    %v6837 = vadd.s32 %v6734, 4294967176
    %v6838 = vlaneseq
    %v6839 = vshrl.u32 %v6838, 7
    %v6840 = vsub.s32 %v6837, %v6839
    %v6841 = vrot.slane %v5628, %v6840
    %vm6842 = vcmask 1048512
    %v6843 = vsel %vm6842, %v6841, %v6836
    %v6844 = vlaneseq
    %v6845 = vshrl.u32 %v6844, 7
    %v6846 = vsub.s32 %v6734, %v6845
    %v6847 = vrot.slane %v5631, %v6846
    %v6848 = vlaneseq
    %v6849 = vshrl.u32 %v6848, 7
    %v6850 = vsub.s32 %v6739, %v6849
    %v6851 = vrot.slane %v5634, %v6850
    %v6852 = vsel %vm6744, %v6851, %v6847
    %v6853 = vlaneseq
    %v6854 = vshrl.u32 %v6853, 7
    %v6855 = vsub.s32 %v6746, %v6854
    %v6856 = vrot.slane %v5637, %v6855
    %v6857 = vsel %vm6751, %v6856, %v6852
    %v6858 = vlaneseq
    %v6859 = vshrl.u32 %v6858, 7
    %v6860 = vsub.s32 %v6753, %v6859
    %v6861 = vrot.slane %v5640, %v6860
    %v6862 = vsel %vm6758, %v6861, %v6857
    %v6863 = vlaneseq
    %v6864 = vshrl.u32 %v6863, 7
    %v6865 = vsub.s32 %v6760, %v6864
    %v6866 = vrot.slane %v5643, %v6865
    %v6867 = vsel %vm6765, %v6866, %v6862
    %v6868 = vlaneseq
    %v6869 = vshrl.u32 %v6868, 7
    %v6870 = vsub.s32 %v6767, %v6869
    %v6871 = vrot.slane %v5646, %v6870
    %v6872 = vsel %vm6772, %v6871, %v6867
    %v6873 = vlaneseq
    %v6874 = vshrl.u32 %v6873, 7
    %v6875 = vsub.s32 %v6774, %v6874
    %v6876 = vrot.slane %v5649, %v6875
    %v6877 = vsel %vm6779, %v6876, %v6872
    %v6878 = vlaneseq
    %v6879 = vshrl.u32 %v6878, 7
    %v6880 = vsub.s32 %v6781, %v6879
    %v6881 = vrot.slane %v5652, %v6880
    %v6882 = vsel %vm6786, %v6881, %v6877
    %v6883 = vlaneseq
    %v6884 = vshrl.u32 %v6883, 7
    %v6885 = vsub.s32 %v6788, %v6884
    %v6886 = vrot.slane %v5655, %v6885
    %v6887 = vsel %vm6793, %v6886, %v6882
    %v6888 = vlaneseq
    %v6889 = vshrl.u32 %v6888, 7
    %v6890 = vsub.s32 %v6795, %v6889
    %v6891 = vrot.slane %v5658, %v6890
    %v6892 = vsel %vm6800, %v6891, %v6887
    %v6893 = vlaneseq
    %v6894 = vshrl.u32 %v6893, 7
    %v6895 = vsub.s32 %v6802, %v6894
    %v6896 = vrot.slane %v5661, %v6895
    %v6897 = vsel %vm6807, %v6896, %v6892
    %v6898 = vlaneseq
    %v6899 = vshrl.u32 %v6898, 7
    %v6900 = vsub.s32 %v6809, %v6899
    %v6901 = vrot.slane %v5664, %v6900
    %v6902 = vsel %vm6814, %v6901, %v6897
    %v6903 = vlaneseq
    %v6904 = vshrl.u32 %v6903, 7
    %v6905 = vsub.s32 %v6816, %v6904
    %v6906 = vrot.slane %v5667, %v6905
    %v6907 = vsel %vm6821, %v6906, %v6902
    %v6908 = vlaneseq
    %v6909 = vshrl.u32 %v6908, 7
    %v6910 = vsub.s32 %v6823, %v6909
    %v6911 = vrot.slane %v5670, %v6910
    %v6912 = vsel %vm6828, %v6911, %v6907
    %v6913 = vlaneseq
    %v6914 = vshrl.u32 %v6913, 7
    %v6915 = vsub.s32 %v6830, %v6914
    %v6916 = vrot.slane %v5673, %v6915
    %v6917 = vsel %vm6835, %v6916, %v6912
    %v6918 = vlaneseq
    %v6919 = vshrl.u32 %v6918, 7
    %v6920 = vsub.s32 %v6837, %v6919
    %v6921 = vrot.slane %v5676, %v6920
    %v6922 = vsel %vm6842, %v6921, %v6917
    %v6923 = vlaneseq
    %v6924 = vshrl.u32 %v6923, 7
    %v6925 = vsub.s32 %v6734, %v6924
    %v6926 = vrot.slane %v5679, %v6925
    %v6927 = vlaneseq
    %v6928 = vshrl.u32 %v6927, 7
    %v6929 = vsub.s32 %v6739, %v6928
    %v6930 = vrot.slane %v5682, %v6929
    %v6931 = vsel %vm6744, %v6930, %v6926
    %v6932 = vlaneseq
    %v6933 = vshrl.u32 %v6932, 7
    %v6934 = vsub.s32 %v6746, %v6933
    %v6935 = vrot.slane %v5685, %v6934
    %v6936 = vsel %vm6751, %v6935, %v6931
    %v6937 = vlaneseq
    %v6938 = vshrl.u32 %v6937, 7
    %v6939 = vsub.s32 %v6753, %v6938
    %v6940 = vrot.slane %v5688, %v6939
    %v6941 = vsel %vm6758, %v6940, %v6936
    %v6942 = vlaneseq
    %v6943 = vshrl.u32 %v6942, 7
    %v6944 = vsub.s32 %v6760, %v6943
    %v6945 = vrot.slane %v5691, %v6944
    %v6946 = vsel %vm6765, %v6945, %v6941
    %v6947 = vlaneseq
    %v6948 = vshrl.u32 %v6947, 7
    %v6949 = vsub.s32 %v6767, %v6948
    %v6950 = vrot.slane %v5694, %v6949
    %v6951 = vsel %vm6772, %v6950, %v6946
    %v6952 = vlaneseq
    %v6953 = vshrl.u32 %v6952, 7
    %v6954 = vsub.s32 %v6774, %v6953
    %v6955 = vrot.slane %v5697, %v6954
    %v6956 = vsel %vm6779, %v6955, %v6951
    %v6957 = vlaneseq
    %v6958 = vshrl.u32 %v6957, 7
    %v6959 = vsub.s32 %v6781, %v6958
    %v6960 = vrot.slane %v5700, %v6959
    %v6961 = vsel %vm6786, %v6960, %v6956
    %v6962 = vlaneseq
    %v6963 = vshrl.u32 %v6962, 7
    %v6964 = vsub.s32 %v6788, %v6963
    %v6965 = vrot.slane %v5703, %v6964
    %v6966 = vsel %vm6793, %v6965, %v6961
    %v6967 = vlaneseq
    %v6968 = vshrl.u32 %v6967, 7
    %v6969 = vsub.s32 %v6795, %v6968
    %v6970 = vrot.slane %v5706, %v6969
    %v6971 = vsel %vm6800, %v6970, %v6966
    %v6972 = vlaneseq
    %v6973 = vshrl.u32 %v6972, 7
    %v6974 = vsub.s32 %v6802, %v6973
    %v6975 = vrot.slane %v5709, %v6974
    %v6976 = vsel %vm6807, %v6975, %v6971
    %v6977 = vlaneseq
    %v6978 = vshrl.u32 %v6977, 7
    %v6979 = vsub.s32 %v6809, %v6978
    %v6980 = vrot.slane %v5712, %v6979
    %v6981 = vsel %vm6814, %v6980, %v6976
    %v6982 = vlaneseq
    %v6983 = vshrl.u32 %v6982, 7
    %v6984 = vsub.s32 %v6816, %v6983
    %v6985 = vrot.slane %v5715, %v6984
    %v6986 = vsel %vm6821, %v6985, %v6981
    %v6987 = vlaneseq
    %v6988 = vshrl.u32 %v6987, 7
    %v6989 = vsub.s32 %v6823, %v6988
    %v6990 = vrot.slane %v5718, %v6989
    %v6991 = vsel %vm6828, %v6990, %v6986
    %v6992 = vlaneseq
    %v6993 = vshrl.u32 %v6992, 7
    %v6994 = vsub.s32 %v6830, %v6993
    %v6995 = vrot.slane %v5721, %v6994
    %v6996 = vsel %vm6835, %v6995, %v6991
    %v6997 = vlaneseq
    %v6998 = vshrl.u32 %v6997, 7
    %v6999 = vsub.s32 %v6837, %v6998
    %v7000 = vrot.slane %v5724, %v6999
    %v7001 = vsel %vm6842, %v7000, %v6996
    %v7002 = vlaneseq
    %v7003 = vshrl.u32 %v7002, 7
    %v7004 = vsub.s32 %v6734, %v7003
    %v7005 = vrot.slane %v5727, %v7004
    %v7006 = vlaneseq
    %v7007 = vshrl.u32 %v7006, 7
    %v7008 = vsub.s32 %v6739, %v7007
    %v7009 = vrot.slane %v5730, %v7008
    %v7010 = vsel %vm6744, %v7009, %v7005
    %v7011 = vlaneseq
    %v7012 = vshrl.u32 %v7011, 7
    %v7013 = vsub.s32 %v6746, %v7012
    %v7014 = vrot.slane %v5733, %v7013
    %v7015 = vsel %vm6751, %v7014, %v7010
    %v7016 = vlaneseq
    %v7017 = vshrl.u32 %v7016, 7
    %v7018 = vsub.s32 %v6753, %v7017
    %v7019 = vrot.slane %v5736, %v7018
    %v7020 = vsel %vm6758, %v7019, %v7015
    %v7021 = vlaneseq
    %v7022 = vshrl.u32 %v7021, 7
    %v7023 = vsub.s32 %v6760, %v7022
    %v7024 = vrot.slane %v5739, %v7023
    %v7025 = vsel %vm6765, %v7024, %v7020
    %v7026 = vlaneseq
    %v7027 = vshrl.u32 %v7026, 7
    %v7028 = vsub.s32 %v6767, %v7027
    %v7029 = vrot.slane %v5742, %v7028
    %v7030 = vsel %vm6772, %v7029, %v7025
    %v7031 = vlaneseq
    %v7032 = vshrl.u32 %v7031, 7
    %v7033 = vsub.s32 %v6774, %v7032
    %v7034 = vrot.slane %v5745, %v7033
    %v7035 = vsel %vm6779, %v7034, %v7030
    %v7036 = vlaneseq
    %v7037 = vshrl.u32 %v7036, 7
    %v7038 = vsub.s32 %v6781, %v7037
    %v7039 = vrot.slane %v5748, %v7038
    %v7040 = vsel %vm6786, %v7039, %v7035
    %v7041 = vlaneseq
    %v7042 = vshrl.u32 %v7041, 7
    %v7043 = vsub.s32 %v6788, %v7042
    %v7044 = vrot.slane %v5751, %v7043
    %v7045 = vsel %vm6793, %v7044, %v7040
    %v7046 = vlaneseq
    %v7047 = vshrl.u32 %v7046, 7
    %v7048 = vsub.s32 %v6795, %v7047
    %v7049 = vrot.slane %v5754, %v7048
    %v7050 = vsel %vm6800, %v7049, %v7045
    %v7051 = vlaneseq
    %v7052 = vshrl.u32 %v7051, 7
    %v7053 = vsub.s32 %v6802, %v7052
    %v7054 = vrot.slane %v5757, %v7053
    %v7055 = vsel %vm6807, %v7054, %v7050
    %v7056 = vlaneseq
    %v7057 = vshrl.u32 %v7056, 7
    %v7058 = vsub.s32 %v6809, %v7057
    %v7059 = vrot.slane %v5760, %v7058
    %v7060 = vsel %vm6814, %v7059, %v7055
    %v7061 = vlaneseq
    %v7062 = vshrl.u32 %v7061, 7
    %v7063 = vsub.s32 %v6816, %v7062
    %v7064 = vrot.slane %v5763, %v7063
    %v7065 = vsel %vm6821, %v7064, %v7060
    %v7066 = vlaneseq
    %v7067 = vshrl.u32 %v7066, 7
    %v7068 = vsub.s32 %v6823, %v7067
    %v7069 = vrot.slane %v5766, %v7068
    %v7070 = vsel %vm6828, %v7069, %v7065
    %v7071 = vlaneseq
    %v7072 = vshrl.u32 %v7071, 7
    %v7073 = vsub.s32 %v6830, %v7072
    %v7074 = vrot.slane %v5769, %v7073
    %v7075 = vsel %vm6835, %v7074, %v7070
    %v7076 = vlaneseq
    %v7077 = vshrl.u32 %v7076, 7
    %v7078 = vsub.s32 %v6837, %v7077
    %v7079 = vrot.slane %v5772, %v7078
    %v7080 = vsel %vm6842, %v7079, %v7075
    %v7081 = vlaneseq
    %v7082 = vshrl.u32 %v7081, 7
    %v7083 = vsub.s32 %v6734, %v7082
    %v7084 = vrot.slane %v5775, %v7083
    %v7085 = vlaneseq
    %v7086 = vshrl.u32 %v7085, 7
    %v7087 = vsub.s32 %v6739, %v7086
    %v7088 = vrot.slane %v5778, %v7087
    %v7089 = vsel %vm6744, %v7088, %v7084
    %v7090 = vlaneseq
    %v7091 = vshrl.u32 %v7090, 7
    %v7092 = vsub.s32 %v6746, %v7091
    %v7093 = vrot.slane %v5781, %v7092
    %v7094 = vsel %vm6751, %v7093, %v7089
    %v7095 = vlaneseq
    %v7096 = vshrl.u32 %v7095, 7
    %v7097 = vsub.s32 %v6753, %v7096
    %v7098 = vrot.slane %v5784, %v7097
    %v7099 = vsel %vm6758, %v7098, %v7094
    %v7100 = vlaneseq
    %v7101 = vshrl.u32 %v7100, 7
    %v7102 = vsub.s32 %v6760, %v7101
    %v7103 = vrot.slane %v5787, %v7102
    %v7104 = vsel %vm6765, %v7103, %v7099
    %v7105 = vlaneseq
    %v7106 = vshrl.u32 %v7105, 7
    %v7107 = vsub.s32 %v6767, %v7106
    %v7108 = vrot.slane %v5790, %v7107
    %v7109 = vsel %vm6772, %v7108, %v7104
    %v7110 = vlaneseq
    %v7111 = vshrl.u32 %v7110, 7
    %v7112 = vsub.s32 %v6774, %v7111
    %v7113 = vrot.slane %v5793, %v7112
    %v7114 = vsel %vm6779, %v7113, %v7109
    %v7115 = vlaneseq
    %v7116 = vshrl.u32 %v7115, 7
    %v7117 = vsub.s32 %v6781, %v7116
    %v7118 = vrot.slane %v5796, %v7117
    %v7119 = vsel %vm6786, %v7118, %v7114
    %v7120 = vlaneseq
    %v7121 = vshrl.u32 %v7120, 7
    %v7122 = vsub.s32 %v6788, %v7121
    %v7123 = vrot.slane %v5799, %v7122
    %v7124 = vsel %vm6793, %v7123, %v7119
    %v7125 = vlaneseq
    %v7126 = vshrl.u32 %v7125, 7
    %v7127 = vsub.s32 %v6795, %v7126
    %v7128 = vrot.slane %v5802, %v7127
    %v7129 = vsel %vm6800, %v7128, %v7124
    %v7130 = vlaneseq
    %v7131 = vshrl.u32 %v7130, 7
    %v7132 = vsub.s32 %v6802, %v7131
    %v7133 = vrot.slane %v5805, %v7132
    %v7134 = vsel %vm6807, %v7133, %v7129
    %v7135 = vlaneseq
    %v7136 = vshrl.u32 %v7135, 7
    %v7137 = vsub.s32 %v6809, %v7136
    %v7138 = vrot.slane %v5808, %v7137
    %v7139 = vsel %vm6814, %v7138, %v7134
    %v7140 = vlaneseq
    %v7141 = vshrl.u32 %v7140, 7
    %v7142 = vsub.s32 %v6816, %v7141
    %v7143 = vrot.slane %v5811, %v7142
    %v7144 = vsel %vm6821, %v7143, %v7139
    %v7145 = vlaneseq
    %v7146 = vshrl.u32 %v7145, 7
    %v7147 = vsub.s32 %v6823, %v7146
    %v7148 = vrot.slane %v5814, %v7147
    %v7149 = vsel %vm6828, %v7148, %v7144
    %v7150 = vlaneseq
    %v7151 = vshrl.u32 %v7150, 7
    %v7152 = vsub.s32 %v6830, %v7151
    %v7153 = vrot.slane %v5817, %v7152
    %v7154 = vsel %vm6835, %v7153, %v7149
    %v7155 = vlaneseq
    %v7156 = vshrl.u32 %v7155, 7
    %v7157 = vsub.s32 %v6837, %v7156
    %v7158 = vrot.slane %v5820, %v7157
    %v7159 = vsel %vm6842, %v7158, %v7154
    %v7160 = vlaneseq
    %v7161 = vshrl.u32 %v7160, 7
    %v7162 = vsub.s32 %v6734, %v7161
    %v7163 = vrot.slane %v5823, %v7162
    %v7164 = vlaneseq
    %v7165 = vshrl.u32 %v7164, 7
    %v7166 = vsub.s32 %v6739, %v7165
    %v7167 = vrot.slane %v5826, %v7166
    %v7168 = vsel %vm6744, %v7167, %v7163
    %v7169 = vlaneseq
    %v7170 = vshrl.u32 %v7169, 7
    %v7171 = vsub.s32 %v6746, %v7170
    %v7172 = vrot.slane %v5829, %v7171
    %v7173 = vsel %vm6751, %v7172, %v7168
    %v7174 = vlaneseq
    %v7175 = vshrl.u32 %v7174, 7
    %v7176 = vsub.s32 %v6753, %v7175
    %v7177 = vrot.slane %v5832, %v7176
    %v7178 = vsel %vm6758, %v7177, %v7173
    %v7179 = vlaneseq
    %v7180 = vshrl.u32 %v7179, 7
    %v7181 = vsub.s32 %v6760, %v7180
    %v7182 = vrot.slane %v5835, %v7181
    %v7183 = vsel %vm6765, %v7182, %v7178
    %v7184 = vlaneseq
    %v7185 = vshrl.u32 %v7184, 7
    %v7186 = vsub.s32 %v6767, %v7185
    %v7187 = vrot.slane %v5838, %v7186
    %v7188 = vsel %vm6772, %v7187, %v7183
    %v7189 = vlaneseq
    %v7190 = vshrl.u32 %v7189, 7
    %v7191 = vsub.s32 %v6774, %v7190
    %v7192 = vrot.slane %v5841, %v7191
    %v7193 = vsel %vm6779, %v7192, %v7188
    %v7194 = vlaneseq
    %v7195 = vshrl.u32 %v7194, 7
    %v7196 = vsub.s32 %v6781, %v7195
    %v7197 = vrot.slane %v5844, %v7196
    %v7198 = vsel %vm6786, %v7197, %v7193
    %v7199 = vlaneseq
    %v7200 = vshrl.u32 %v7199, 7
    %v7201 = vsub.s32 %v6788, %v7200
    %v7202 = vrot.slane %v5847, %v7201
    %v7203 = vsel %vm6793, %v7202, %v7198
    %v7204 = vlaneseq
    %v7205 = vshrl.u32 %v7204, 7
    %v7206 = vsub.s32 %v6795, %v7205
    %v7207 = vrot.slane %v5850, %v7206
    %v7208 = vsel %vm6800, %v7207, %v7203
    %v7209 = vlaneseq
    %v7210 = vshrl.u32 %v7209, 7
    %v7211 = vsub.s32 %v6802, %v7210
    %v7212 = vrot.slane %v5853, %v7211
    %v7213 = vsel %vm6807, %v7212, %v7208
    %v7214 = vlaneseq
    %v7215 = vshrl.u32 %v7214, 7
    %v7216 = vsub.s32 %v6809, %v7215
    %v7217 = vrot.slane %v5856, %v7216
    %v7218 = vsel %vm6814, %v7217, %v7213
    %v7219 = vlaneseq
    %v7220 = vshrl.u32 %v7219, 7
    %v7221 = vsub.s32 %v6816, %v7220
    %v7222 = vrot.slane %v5859, %v7221
    %v7223 = vsel %vm6821, %v7222, %v7218
    %v7224 = vlaneseq
    %v7225 = vshrl.u32 %v7224, 7
    %v7226 = vsub.s32 %v6823, %v7225
    %v7227 = vrot.slane %v5862, %v7226
    %v7228 = vsel %vm6828, %v7227, %v7223
    %v7229 = vlaneseq
    %v7230 = vshrl.u32 %v7229, 7
    %v7231 = vsub.s32 %v6830, %v7230
    %v7232 = vrot.slane %v5865, %v7231
    %v7233 = vsel %vm6835, %v7232, %v7228
    %v7234 = vlaneseq
    %v7235 = vshrl.u32 %v7234, 7
    %v7236 = vsub.s32 %v6837, %v7235
    %v7237 = vrot.slane %v5868, %v7236
    %v7238 = vsel %vm6842, %v7237, %v7233
    %v7239 = vlaneseq
    %v7240 = vshrl.u32 %v7239, 7
    %v7241 = vsub.s32 %v6734, %v7240
    %v7242 = vrot.slane %v5871, %v7241
    %v7243 = vlaneseq
    %v7244 = vshrl.u32 %v7243, 7
    %v7245 = vsub.s32 %v6739, %v7244
    %v7246 = vrot.slane %v5874, %v7245
    %v7247 = vsel %vm6744, %v7246, %v7242
    %v7248 = vlaneseq
    %v7249 = vshrl.u32 %v7248, 7
    %v7250 = vsub.s32 %v6746, %v7249
    %v7251 = vrot.slane %v5877, %v7250
    %v7252 = vsel %vm6751, %v7251, %v7247
    %v7253 = vlaneseq
    %v7254 = vshrl.u32 %v7253, 7
    %v7255 = vsub.s32 %v6753, %v7254
    %v7256 = vrot.slane %v5880, %v7255
    %v7257 = vsel %vm6758, %v7256, %v7252
    %v7258 = vlaneseq
    %v7259 = vshrl.u32 %v7258, 7
    %v7260 = vsub.s32 %v6760, %v7259
    %v7261 = vrot.slane %v5883, %v7260
    %v7262 = vsel %vm6765, %v7261, %v7257
    %v7263 = vlaneseq
    %v7264 = vshrl.u32 %v7263, 7
    %v7265 = vsub.s32 %v6767, %v7264
    %v7266 = vrot.slane %v5886, %v7265
    %v7267 = vsel %vm6772, %v7266, %v7262
    %v7268 = vlaneseq
    %v7269 = vshrl.u32 %v7268, 7
    %v7270 = vsub.s32 %v6774, %v7269
    %v7271 = vrot.slane %v5889, %v7270
    %v7272 = vsel %vm6779, %v7271, %v7267
    %v7273 = vlaneseq
    %v7274 = vshrl.u32 %v7273, 7
    %v7275 = vsub.s32 %v6781, %v7274
    %v7276 = vrot.slane %v5892, %v7275
    %v7277 = vsel %vm6786, %v7276, %v7272
    %v7278 = vlaneseq
    %v7279 = vshrl.u32 %v7278, 7
    %v7280 = vsub.s32 %v6788, %v7279
    %v7281 = vrot.slane %v5895, %v7280
    %v7282 = vsel %vm6793, %v7281, %v7277
    %v7283 = vlaneseq
    %v7284 = vshrl.u32 %v7283, 7
    %v7285 = vsub.s32 %v6795, %v7284
    %v7286 = vrot.slane %v5898, %v7285
    %v7287 = vsel %vm6800, %v7286, %v7282
    %v7288 = vlaneseq
    %v7289 = vshrl.u32 %v7288, 7
    %v7290 = vsub.s32 %v6802, %v7289
    %v7291 = vrot.slane %v5901, %v7290
    %v7292 = vsel %vm6807, %v7291, %v7287
    %v7293 = vlaneseq
    %v7294 = vshrl.u32 %v7293, 7
    %v7295 = vsub.s32 %v6809, %v7294
    %v7296 = vrot.slane %v5904, %v7295
    %v7297 = vsel %vm6814, %v7296, %v7292
    %v7298 = vlaneseq
    %v7299 = vshrl.u32 %v7298, 7
    %v7300 = vsub.s32 %v6816, %v7299
    %v7301 = vrot.slane %v5907, %v7300
    %v7302 = vsel %vm6821, %v7301, %v7297
    %v7303 = vlaneseq
    %v7304 = vshrl.u32 %v7303, 7
    %v7305 = vsub.s32 %v6823, %v7304
    %v7306 = vrot.slane %v5910, %v7305
    %v7307 = vsel %vm6828, %v7306, %v7302
    %v7308 = vlaneseq
    %v7309 = vshrl.u32 %v7308, 7
    %v7310 = vsub.s32 %v6830, %v7309
    %v7311 = vrot.slane %v5913, %v7310
    %v7312 = vsel %vm6835, %v7311, %v7307
    %v7313 = vlaneseq
    %v7314 = vshrl.u32 %v7313, 7
    %v7315 = vsub.s32 %v6837, %v7314
    %v7316 = vrot.slane %v5916, %v7315
    %v7317 = vsel %vm6842, %v7316, %v7312
    %v7318 = vlaneseq
    %v7319 = vshrl.u32 %v7318, 7
    %v7320 = vsub.s32 %v6734, %v7319
    %v7321 = vrot.slane %v5919, %v7320
    %v7322 = vlaneseq
    %v7323 = vshrl.u32 %v7322, 7
    %v7324 = vsub.s32 %v6739, %v7323
    %v7325 = vrot.slane %v5922, %v7324
    %v7326 = vsel %vm6744, %v7325, %v7321
    %v7327 = vlaneseq
    %v7328 = vshrl.u32 %v7327, 7
    %v7329 = vsub.s32 %v6746, %v7328
    %v7330 = vrot.slane %v5925, %v7329
    %v7331 = vsel %vm6751, %v7330, %v7326
    %v7332 = vlaneseq
    %v7333 = vshrl.u32 %v7332, 7
    %v7334 = vsub.s32 %v6753, %v7333
    %v7335 = vrot.slane %v5928, %v7334
    %v7336 = vsel %vm6758, %v7335, %v7331
    %v7337 = vlaneseq
    %v7338 = vshrl.u32 %v7337, 7
    %v7339 = vsub.s32 %v6760, %v7338
    %v7340 = vrot.slane %v5931, %v7339
    %v7341 = vsel %vm6765, %v7340, %v7336
    %v7342 = vlaneseq
    %v7343 = vshrl.u32 %v7342, 7
    %v7344 = vsub.s32 %v6767, %v7343
    %v7345 = vrot.slane %v5934, %v7344
    %v7346 = vsel %vm6772, %v7345, %v7341
    %v7347 = vlaneseq
    %v7348 = vshrl.u32 %v7347, 7
    %v7349 = vsub.s32 %v6774, %v7348
    %v7350 = vrot.slane %v5937, %v7349
    %v7351 = vsel %vm6779, %v7350, %v7346
    %v7352 = vlaneseq
    %v7353 = vshrl.u32 %v7352, 7
    %v7354 = vsub.s32 %v6781, %v7353
    %v7355 = vrot.slane %v5940, %v7354
    %v7356 = vsel %vm6786, %v7355, %v7351
    %v7357 = vlaneseq
    %v7358 = vshrl.u32 %v7357, 7
    %v7359 = vsub.s32 %v6788, %v7358
    %v7360 = vrot.slane %v5943, %v7359
    %v7361 = vsel %vm6793, %v7360, %v7356
    %v7362 = vlaneseq
    %v7363 = vshrl.u32 %v7362, 7
    %v7364 = vsub.s32 %v6795, %v7363
    %v7365 = vrot.slane %v5946, %v7364
    %v7366 = vsel %vm6800, %v7365, %v7361
    %v7367 = vlaneseq
    %v7368 = vshrl.u32 %v7367, 7
    %v7369 = vsub.s32 %v6802, %v7368
    %v7370 = vrot.slane %v5949, %v7369
    %v7371 = vsel %vm6807, %v7370, %v7366
    %v7372 = vlaneseq
    %v7373 = vshrl.u32 %v7372, 7
    %v7374 = vsub.s32 %v6809, %v7373
    %v7375 = vrot.slane %v5952, %v7374
    %v7376 = vsel %vm6814, %v7375, %v7371
    %v7377 = vlaneseq
    %v7378 = vshrl.u32 %v7377, 7
    %v7379 = vsub.s32 %v6816, %v7378
    %v7380 = vrot.slane %v5955, %v7379
    %v7381 = vsel %vm6821, %v7380, %v7376
    %v7382 = vlaneseq
    %v7383 = vshrl.u32 %v7382, 7
    %v7384 = vsub.s32 %v6823, %v7383
    %v7385 = vrot.slane %v5958, %v7384
    %v7386 = vsel %vm6828, %v7385, %v7381
    %v7387 = vlaneseq
    %v7388 = vshrl.u32 %v7387, 7
    %v7389 = vsub.s32 %v6830, %v7388
    %v7390 = vrot.slane %v5961, %v7389
    %v7391 = vsel %vm6835, %v7390, %v7386
    %v7392 = vlaneseq
    %v7393 = vshrl.u32 %v7392, 7
    %v7394 = vsub.s32 %v6837, %v7393
    %v7395 = vrot.slane %v5964, %v7394
    %v7396 = vsel %vm6842, %v7395, %v7391
    %v7397 = vlaneseq
    %v7398 = vshrl.u32 %v7397, 7
    %v7399 = vsub.s32 %v6734, %v7398
    %v7400 = vrot.slane %v5967, %v7399
    %v7401 = vlaneseq
    %v7402 = vshrl.u32 %v7401, 7
    %v7403 = vsub.s32 %v6739, %v7402
    %v7404 = vrot.slane %v5970, %v7403
    %v7405 = vsel %vm6744, %v7404, %v7400
    %v7406 = vlaneseq
    %v7407 = vshrl.u32 %v7406, 7
    %v7408 = vsub.s32 %v6746, %v7407
    %v7409 = vrot.slane %v5973, %v7408
    %v7410 = vsel %vm6751, %v7409, %v7405
    %v7411 = vlaneseq
    %v7412 = vshrl.u32 %v7411, 7
    %v7413 = vsub.s32 %v6753, %v7412
    %v7414 = vrot.slane %v5976, %v7413
    %v7415 = vsel %vm6758, %v7414, %v7410
    %v7416 = vlaneseq
    %v7417 = vshrl.u32 %v7416, 7
    %v7418 = vsub.s32 %v6760, %v7417
    %v7419 = vrot.slane %v5979, %v7418
    %v7420 = vsel %vm6765, %v7419, %v7415
    %v7421 = vlaneseq
    %v7422 = vshrl.u32 %v7421, 7
    %v7423 = vsub.s32 %v6767, %v7422
    %v7424 = vrot.slane %v5982, %v7423
    %v7425 = vsel %vm6772, %v7424, %v7420
    %v7426 = vlaneseq
    %v7427 = vshrl.u32 %v7426, 7
    %v7428 = vsub.s32 %v6774, %v7427
    %v7429 = vrot.slane %v5985, %v7428
    %v7430 = vsel %vm6779, %v7429, %v7425
    %v7431 = vlaneseq
    %v7432 = vshrl.u32 %v7431, 7
    %v7433 = vsub.s32 %v6781, %v7432
    %v7434 = vrot.slane %v5988, %v7433
    %v7435 = vsel %vm6786, %v7434, %v7430
    %v7436 = vlaneseq
    %v7437 = vshrl.u32 %v7436, 7
    %v7438 = vsub.s32 %v6788, %v7437
    %v7439 = vrot.slane %v5991, %v7438
    %v7440 = vsel %vm6793, %v7439, %v7435
    %v7441 = vlaneseq
    %v7442 = vshrl.u32 %v7441, 7
    %v7443 = vsub.s32 %v6795, %v7442
    %v7444 = vrot.slane %v5994, %v7443
    %v7445 = vsel %vm6800, %v7444, %v7440
    %v7446 = vlaneseq
    %v7447 = vshrl.u32 %v7446, 7
    %v7448 = vsub.s32 %v6802, %v7447
    %v7449 = vrot.slane %v5997, %v7448
    %v7450 = vsel %vm6807, %v7449, %v7445
    %v7451 = vlaneseq
    %v7452 = vshrl.u32 %v7451, 7
    %v7453 = vsub.s32 %v6809, %v7452
    %v7454 = vrot.slane %v6000, %v7453
    %v7455 = vsel %vm6814, %v7454, %v7450
    %v7456 = vlaneseq
    %v7457 = vshrl.u32 %v7456, 7
    %v7458 = vsub.s32 %v6816, %v7457
    %v7459 = vrot.slane %v6003, %v7458
    %v7460 = vsel %vm6821, %v7459, %v7455
    %v7461 = vlaneseq
    %v7462 = vshrl.u32 %v7461, 7
    %v7463 = vsub.s32 %v6823, %v7462
    %v7464 = vrot.slane %v6006, %v7463
    %v7465 = vsel %vm6828, %v7464, %v7460
    %v7466 = vlaneseq
    %v7467 = vshrl.u32 %v7466, 7
    %v7468 = vsub.s32 %v6830, %v7467
    %v7469 = vrot.slane %v6009, %v7468
    %v7470 = vsel %vm6835, %v7469, %v7465
    %v7471 = vlaneseq
    %v7472 = vshrl.u32 %v7471, 7
    %v7473 = vsub.s32 %v6837, %v7472
    %v7474 = vrot.slane %v6012, %v7473
    %v7475 = vsel %vm6842, %v7474, %v7470
    %v7476 = vlaneseq
    %v7477 = vshrl.u32 %v7476, 7
    %v7478 = vsub.s32 %v6734, %v7477
    %v7479 = vrot.slane %v6015, %v7478
    %v7480 = vlaneseq
    %v7481 = vshrl.u32 %v7480, 7
    %v7482 = vsub.s32 %v6739, %v7481
    %v7483 = vrot.slane %v6018, %v7482
    %v7484 = vsel %vm6744, %v7483, %v7479
    %v7485 = vlaneseq
    %v7486 = vshrl.u32 %v7485, 7
    %v7487 = vsub.s32 %v6746, %v7486
    %v7488 = vrot.slane %v6021, %v7487
    %v7489 = vsel %vm6751, %v7488, %v7484
    %v7490 = vlaneseq
    %v7491 = vshrl.u32 %v7490, 7
    %v7492 = vsub.s32 %v6753, %v7491
    %v7493 = vrot.slane %v6024, %v7492
    %v7494 = vsel %vm6758, %v7493, %v7489
    %v7495 = vlaneseq
    %v7496 = vshrl.u32 %v7495, 7
    %v7497 = vsub.s32 %v6760, %v7496
    %v7498 = vrot.slane %v6027, %v7497
    %v7499 = vsel %vm6765, %v7498, %v7494
    %v7500 = vlaneseq
    %v7501 = vshrl.u32 %v7500, 7
    %v7502 = vsub.s32 %v6767, %v7501
    %v7503 = vrot.slane %v6030, %v7502
    %v7504 = vsel %vm6772, %v7503, %v7499
    %v7505 = vlaneseq
    %v7506 = vshrl.u32 %v7505, 7
    %v7507 = vsub.s32 %v6774, %v7506
    %v7508 = vrot.slane %v6033, %v7507
    %v7509 = vsel %vm6779, %v7508, %v7504
    %v7510 = vlaneseq
    %v7511 = vshrl.u32 %v7510, 7
    %v7512 = vsub.s32 %v6781, %v7511
    %v7513 = vrot.slane %v6036, %v7512
    %v7514 = vsel %vm6786, %v7513, %v7509
    %v7515 = vlaneseq
    %v7516 = vshrl.u32 %v7515, 7
    %v7517 = vsub.s32 %v6788, %v7516
    %v7518 = vrot.slane %v6039, %v7517
    %v7519 = vsel %vm6793, %v7518, %v7514
    %v7520 = vlaneseq
    %v7521 = vshrl.u32 %v7520, 7
    %v7522 = vsub.s32 %v6795, %v7521
    %v7523 = vrot.slane %v6042, %v7522
    %v7524 = vsel %vm6800, %v7523, %v7519
    %v7525 = vlaneseq
    %v7526 = vshrl.u32 %v7525, 7
    %v7527 = vsub.s32 %v6802, %v7526
    %v7528 = vrot.slane %v6045, %v7527
    %v7529 = vsel %vm6807, %v7528, %v7524
    %v7530 = vlaneseq
    %v7531 = vshrl.u32 %v7530, 7
    %v7532 = vsub.s32 %v6809, %v7531
    %v7533 = vrot.slane %v6048, %v7532
    %v7534 = vsel %vm6814, %v7533, %v7529
    %v7535 = vlaneseq
    %v7536 = vshrl.u32 %v7535, 7
    %v7537 = vsub.s32 %v6816, %v7536
    %v7538 = vrot.slane %v6051, %v7537
    %v7539 = vsel %vm6821, %v7538, %v7534
    %v7540 = vlaneseq
    %v7541 = vshrl.u32 %v7540, 7
    %v7542 = vsub.s32 %v6823, %v7541
    %v7543 = vrot.slane %v6054, %v7542
    %v7544 = vsel %vm6828, %v7543, %v7539
    %v7545 = vlaneseq
    %v7546 = vshrl.u32 %v7545, 7
    %v7547 = vsub.s32 %v6830, %v7546
    %v7548 = vrot.slane %v6057, %v7547
    %v7549 = vsel %vm6835, %v7548, %v7544
    %v7550 = vlaneseq
    %v7551 = vshrl.u32 %v7550, 7
    %v7552 = vsub.s32 %v6837, %v7551
    %v7553 = vrot.slane %v6060, %v7552
    %v7554 = vsel %vm6842, %v7553, %v7549
    %v7555 = vlaneseq
    %v7556 = vshrl.u32 %v7555, 7
    %v7557 = vsub.s32 %v6734, %v7556
    %v7558 = vrot.slane %v6063, %v7557
    %v7559 = vlaneseq
    %v7560 = vshrl.u32 %v7559, 7
    %v7561 = vsub.s32 %v6739, %v7560
    %v7562 = vrot.slane %v6066, %v7561
    %v7563 = vsel %vm6744, %v7562, %v7558
    %v7564 = vlaneseq
    %v7565 = vshrl.u32 %v7564, 7
    %v7566 = vsub.s32 %v6746, %v7565
    %v7567 = vrot.slane %v6069, %v7566
    %v7568 = vsel %vm6751, %v7567, %v7563
    %v7569 = vlaneseq
    %v7570 = vshrl.u32 %v7569, 7
    %v7571 = vsub.s32 %v6753, %v7570
    %v7572 = vrot.slane %v6072, %v7571
    %v7573 = vsel %vm6758, %v7572, %v7568
    %v7574 = vlaneseq
    %v7575 = vshrl.u32 %v7574, 7
    %v7576 = vsub.s32 %v6760, %v7575
    %v7577 = vrot.slane %v6075, %v7576
    %v7578 = vsel %vm6765, %v7577, %v7573
    %v7579 = vlaneseq
    %v7580 = vshrl.u32 %v7579, 7
    %v7581 = vsub.s32 %v6767, %v7580
    %v7582 = vrot.slane %v6078, %v7581
    %v7583 = vsel %vm6772, %v7582, %v7578
    %v7584 = vlaneseq
    %v7585 = vshrl.u32 %v7584, 7
    %v7586 = vsub.s32 %v6774, %v7585
    %v7587 = vrot.slane %v6081, %v7586
    %v7588 = vsel %vm6779, %v7587, %v7583
    %v7589 = vlaneseq
    %v7590 = vshrl.u32 %v7589, 7
    %v7591 = vsub.s32 %v6781, %v7590
    %v7592 = vrot.slane %v6084, %v7591
    %v7593 = vsel %vm6786, %v7592, %v7588
    %v7594 = vlaneseq
    %v7595 = vshrl.u32 %v7594, 7
    %v7596 = vsub.s32 %v6788, %v7595
    %v7597 = vrot.slane %v6087, %v7596
    %v7598 = vsel %vm6793, %v7597, %v7593
    %v7599 = vlaneseq
    %v7600 = vshrl.u32 %v7599, 7
    %v7601 = vsub.s32 %v6795, %v7600
    %v7602 = vrot.slane %v6090, %v7601
    %v7603 = vsel %vm6800, %v7602, %v7598
    %v7604 = vlaneseq
    %v7605 = vshrl.u32 %v7604, 7
    %v7606 = vsub.s32 %v6802, %v7605
    %v7607 = vrot.slane %v6093, %v7606
    %v7608 = vsel %vm6807, %v7607, %v7603
    %v7609 = vlaneseq
    %v7610 = vshrl.u32 %v7609, 7
    %v7611 = vsub.s32 %v6809, %v7610
    %v7612 = vrot.slane %v6096, %v7611
    %v7613 = vsel %vm6814, %v7612, %v7608
    %v7614 = vlaneseq
    %v7615 = vshrl.u32 %v7614, 7
    %v7616 = vsub.s32 %v6816, %v7615
    %v7617 = vrot.slane %v6099, %v7616
    %v7618 = vsel %vm6821, %v7617, %v7613
    %v7619 = vlaneseq
    %v7620 = vshrl.u32 %v7619, 7
    %v7621 = vsub.s32 %v6823, %v7620
    %v7622 = vrot.slane %v6102, %v7621
    %v7623 = vsel %vm6828, %v7622, %v7618
    %v7624 = vlaneseq
    %v7625 = vshrl.u32 %v7624, 7
    %v7626 = vsub.s32 %v6830, %v7625
    %v7627 = vrot.slane %v6105, %v7626
    %v7628 = vsel %vm6835, %v7627, %v7623
    %v7629 = vlaneseq
    %v7630 = vshrl.u32 %v7629, 7
    %v7631 = vsub.s32 %v6837, %v7630
    %v7632 = vrot.slane %v6108, %v7631
    %v7633 = vsel %vm6842, %v7632, %v7628
    %v7634 = vlaneseq
    %v7635 = vshrl.u32 %v7634, 7
    %v7636 = vsub.s32 %v6734, %v7635
    %v7637 = vrot.slane %v6111, %v7636
    %v7638 = vlaneseq
    %v7639 = vshrl.u32 %v7638, 7
    %v7640 = vsub.s32 %v6739, %v7639
    %v7641 = vrot.slane %v6114, %v7640
    %v7642 = vsel %vm6744, %v7641, %v7637
    %v7643 = vlaneseq
    %v7644 = vshrl.u32 %v7643, 7
    %v7645 = vsub.s32 %v6746, %v7644
    %v7646 = vrot.slane %v6117, %v7645
    %v7647 = vsel %vm6751, %v7646, %v7642
    %v7648 = vlaneseq
    %v7649 = vshrl.u32 %v7648, 7
    %v7650 = vsub.s32 %v6753, %v7649
    %v7651 = vrot.slane %v6120, %v7650
    %v7652 = vsel %vm6758, %v7651, %v7647
    %v7653 = vlaneseq
    %v7654 = vshrl.u32 %v7653, 7
    %v7655 = vsub.s32 %v6760, %v7654
    %v7656 = vrot.slane %v6123, %v7655
    %v7657 = vsel %vm6765, %v7656, %v7652
    %v7658 = vlaneseq
    %v7659 = vshrl.u32 %v7658, 7
    %v7660 = vsub.s32 %v6767, %v7659
    %v7661 = vrot.slane %v6126, %v7660
    %v7662 = vsel %vm6772, %v7661, %v7657
    %v7663 = vlaneseq
    %v7664 = vshrl.u32 %v7663, 7
    %v7665 = vsub.s32 %v6774, %v7664
    %v7666 = vrot.slane %v6129, %v7665
    %v7667 = vsel %vm6779, %v7666, %v7662
    %v7668 = vlaneseq
    %v7669 = vshrl.u32 %v7668, 7
    %v7670 = vsub.s32 %v6781, %v7669
    %v7671 = vrot.slane %v6132, %v7670
    %v7672 = vsel %vm6786, %v7671, %v7667
    %v7673 = vlaneseq
    %v7674 = vshrl.u32 %v7673, 7
    %v7675 = vsub.s32 %v6788, %v7674
    %v7676 = vrot.slane %v6135, %v7675
    %v7677 = vsel %vm6793, %v7676, %v7672
    %v7678 = vlaneseq
    %v7679 = vshrl.u32 %v7678, 7
    %v7680 = vsub.s32 %v6795, %v7679
    %v7681 = vrot.slane %v6138, %v7680
    %v7682 = vsel %vm6800, %v7681, %v7677
    %v7683 = vlaneseq
    %v7684 = vshrl.u32 %v7683, 7
    %v7685 = vsub.s32 %v6802, %v7684
    %v7686 = vrot.slane %v6141, %v7685
    %v7687 = vsel %vm6807, %v7686, %v7682
    %v7688 = vlaneseq
    %v7689 = vshrl.u32 %v7688, 7
    %v7690 = vsub.s32 %v6809, %v7689
    %v7691 = vrot.slane %v6144, %v7690
    %v7692 = vsel %vm6814, %v7691, %v7687
    %v7693 = vlaneseq
    %v7694 = vshrl.u32 %v7693, 7
    %v7695 = vsub.s32 %v6816, %v7694
    %v7696 = vrot.slane %v6147, %v7695
    %v7697 = vsel %vm6821, %v7696, %v7692
    %v7698 = vlaneseq
    %v7699 = vshrl.u32 %v7698, 7
    %v7700 = vsub.s32 %v6823, %v7699
    %v7701 = vrot.slane %v6150, %v7700
    %v7702 = vsel %vm6828, %v7701, %v7697
    %v7703 = vlaneseq
    %v7704 = vshrl.u32 %v7703, 7
    %v7705 = vsub.s32 %v6830, %v7704
    %v7706 = vrot.slane %v6153, %v7705
    %v7707 = vsel %vm6835, %v7706, %v7702
    %v7708 = vlaneseq
    %v7709 = vshrl.u32 %v7708, 7
    %v7710 = vsub.s32 %v6837, %v7709
    %v7711 = vrot.slane %v6156, %v7710
    %v7712 = vsel %vm6842, %v7711, %v7707
    %v7713 = vlaneseq
    %v7714 = vshrl.u32 %v7713, 7
    %v7715 = vsub.s32 %v6734, %v7714
    %v7716 = vrot.slane %v6159, %v7715
    %v7717 = vlaneseq
    %v7718 = vshrl.u32 %v7717, 7
    %v7719 = vsub.s32 %v6739, %v7718
    %v7720 = vrot.slane %v6162, %v7719
    %v7721 = vsel %vm6744, %v7720, %v7716
    %v7722 = vlaneseq
    %v7723 = vshrl.u32 %v7722, 7
    %v7724 = vsub.s32 %v6746, %v7723
    %v7725 = vrot.slane %v6165, %v7724
    %v7726 = vsel %vm6751, %v7725, %v7721
    %v7727 = vlaneseq
    %v7728 = vshrl.u32 %v7727, 7
    %v7729 = vsub.s32 %v6753, %v7728
    %v7730 = vrot.slane %v6168, %v7729
    %v7731 = vsel %vm6758, %v7730, %v7726
    %v7732 = vlaneseq
    %v7733 = vshrl.u32 %v7732, 7
    %v7734 = vsub.s32 %v6760, %v7733
    %v7735 = vrot.slane %v6171, %v7734
    %v7736 = vsel %vm6765, %v7735, %v7731
    %v7737 = vlaneseq
    %v7738 = vshrl.u32 %v7737, 7
    %v7739 = vsub.s32 %v6767, %v7738
    %v7740 = vrot.slane %v6174, %v7739
    %v7741 = vsel %vm6772, %v7740, %v7736
    %v7742 = vlaneseq
    %v7743 = vshrl.u32 %v7742, 7
    %v7744 = vsub.s32 %v6774, %v7743
    %v7745 = vrot.slane %v6177, %v7744
    %v7746 = vsel %vm6779, %v7745, %v7741
    %v7747 = vlaneseq
    %v7748 = vshrl.u32 %v7747, 7
    %v7749 = vsub.s32 %v6781, %v7748
    %v7750 = vrot.slane %v6180, %v7749
    %v7751 = vsel %vm6786, %v7750, %v7746
    %v7752 = vlaneseq
    %v7753 = vshrl.u32 %v7752, 7
    %v7754 = vsub.s32 %v6788, %v7753
    %v7755 = vrot.slane %v6183, %v7754
    %v7756 = vsel %vm6793, %v7755, %v7751
    %v7757 = vlaneseq
    %v7758 = vshrl.u32 %v7757, 7
    %v7759 = vsub.s32 %v6795, %v7758
    %v7760 = vrot.slane %v6186, %v7759
    %v7761 = vsel %vm6800, %v7760, %v7756
    %v7762 = vlaneseq
    %v7763 = vshrl.u32 %v7762, 7
    %v7764 = vsub.s32 %v6802, %v7763
    %v7765 = vrot.slane %v6189, %v7764
    %v7766 = vsel %vm6807, %v7765, %v7761
    %v7767 = vlaneseq
    %v7768 = vshrl.u32 %v7767, 7
    %v7769 = vsub.s32 %v6809, %v7768
    %v7770 = vrot.slane %v6192, %v7769
    %v7771 = vsel %vm6814, %v7770, %v7766
    %v7772 = vlaneseq
    %v7773 = vshrl.u32 %v7772, 7
    %v7774 = vsub.s32 %v6816, %v7773
    %v7775 = vrot.slane %v6195, %v7774
    %v7776 = vsel %vm6821, %v7775, %v7771
    %v7777 = vlaneseq
    %v7778 = vshrl.u32 %v7777, 7
    %v7779 = vsub.s32 %v6823, %v7778
    %v7780 = vrot.slane %v6198, %v7779
    %v7781 = vsel %vm6828, %v7780, %v7776
    %v7782 = vlaneseq
    %v7783 = vshrl.u32 %v7782, 7
    %v7784 = vsub.s32 %v6830, %v7783
    %v7785 = vrot.slane %v6201, %v7784
    %v7786 = vsel %vm6835, %v7785, %v7781
    %v7787 = vlaneseq
    %v7788 = vshrl.u32 %v7787, 7
    %v7789 = vsub.s32 %v6837, %v7788
    %v7790 = vrot.slane %v6204, %v7789
    %v7791 = vsel %vm6842, %v7790, %v7786
    %v7792 = vlaneseq
    %v7793 = vshrl.u32 %v7792, 7
    %v7794 = vsub.s32 %v6734, %v7793
    %v7795 = vrot.slane %v6207, %v7794
    %v7796 = vlaneseq
    %v7797 = vshrl.u32 %v7796, 7
    %v7798 = vsub.s32 %v6739, %v7797
    %v7799 = vrot.slane %v6210, %v7798
    %v7800 = vsel %vm6744, %v7799, %v7795
    %v7801 = vlaneseq
    %v7802 = vshrl.u32 %v7801, 7
    %v7803 = vsub.s32 %v6746, %v7802
    %v7804 = vrot.slane %v6213, %v7803
    %v7805 = vsel %vm6751, %v7804, %v7800
    %v7806 = vlaneseq
    %v7807 = vshrl.u32 %v7806, 7
    %v7808 = vsub.s32 %v6753, %v7807
    %v7809 = vrot.slane %v6216, %v7808
    %v7810 = vsel %vm6758, %v7809, %v7805
    %v7811 = vlaneseq
    %v7812 = vshrl.u32 %v7811, 7
    %v7813 = vsub.s32 %v6760, %v7812
    %v7814 = vrot.slane %v6219, %v7813
    %v7815 = vsel %vm6765, %v7814, %v7810
    %v7816 = vlaneseq
    %v7817 = vshrl.u32 %v7816, 7
    %v7818 = vsub.s32 %v6767, %v7817
    %v7819 = vrot.slane %v6222, %v7818
    %v7820 = vsel %vm6772, %v7819, %v7815
    %v7821 = vlaneseq
    %v7822 = vshrl.u32 %v7821, 7
    %v7823 = vsub.s32 %v6774, %v7822
    %v7824 = vrot.slane %v6225, %v7823
    %v7825 = vsel %vm6779, %v7824, %v7820
    %v7826 = vlaneseq
    %v7827 = vshrl.u32 %v7826, 7
    %v7828 = vsub.s32 %v6781, %v7827
    %v7829 = vrot.slane %v6228, %v7828
    %v7830 = vsel %vm6786, %v7829, %v7825
    %v7831 = vlaneseq
    %v7832 = vshrl.u32 %v7831, 7
    %v7833 = vsub.s32 %v6788, %v7832
    %v7834 = vrot.slane %v6231, %v7833
    %v7835 = vsel %vm6793, %v7834, %v7830
    %v7836 = vlaneseq
    %v7837 = vshrl.u32 %v7836, 7
    %v7838 = vsub.s32 %v6795, %v7837
    %v7839 = vrot.slane %v6234, %v7838
    %v7840 = vsel %vm6800, %v7839, %v7835
    %v7841 = vlaneseq
    %v7842 = vshrl.u32 %v7841, 7
    %v7843 = vsub.s32 %v6802, %v7842
    %v7844 = vrot.slane %v6237, %v7843
    %v7845 = vsel %vm6807, %v7844, %v7840
    %v7846 = vlaneseq
    %v7847 = vshrl.u32 %v7846, 7
    %v7848 = vsub.s32 %v6809, %v7847
    %v7849 = vrot.slane %v6240, %v7848
    %v7850 = vsel %vm6814, %v7849, %v7845
    %v7851 = vlaneseq
    %v7852 = vshrl.u32 %v7851, 7
    %v7853 = vsub.s32 %v6816, %v7852
    %v7854 = vrot.slane %v6243, %v7853
    %v7855 = vsel %vm6821, %v7854, %v7850
    %v7856 = vlaneseq
    %v7857 = vshrl.u32 %v7856, 7
    %v7858 = vsub.s32 %v6823, %v7857
    %v7859 = vrot.slane %v6246, %v7858
    %v7860 = vsel %vm6828, %v7859, %v7855
    %v7861 = vlaneseq
    %v7862 = vshrl.u32 %v7861, 7
    %v7863 = vsub.s32 %v6830, %v7862
    %v7864 = vrot.slane %v6249, %v7863
    %v7865 = vsel %vm6835, %v7864, %v7860
    %v7866 = vlaneseq
    %v7867 = vshrl.u32 %v7866, 7
    %v7868 = vsub.s32 %v6837, %v7867
    %v7869 = vrot.slane %v6252, %v7868
    %v7870 = vsel %vm6842, %v7869, %v7865
    %v7871 = vlaneseq
    %v7872 = vshrl.u32 %v7871, 7
    %v7873 = vsub.s32 %v6734, %v7872
    %v7874 = vrot.slane %v6255, %v7873
    %v7875 = vlaneseq
    %v7876 = vshrl.u32 %v7875, 7
    %v7877 = vsub.s32 %v6739, %v7876
    %v7878 = vrot.slane %v6258, %v7877
    %v7879 = vsel %vm6744, %v7878, %v7874
    %v7880 = vlaneseq
    %v7881 = vshrl.u32 %v7880, 7
    %v7882 = vsub.s32 %v6746, %v7881
    %v7883 = vrot.slane %v6261, %v7882
    %v7884 = vsel %vm6751, %v7883, %v7879
    %v7885 = vlaneseq
    %v7886 = vshrl.u32 %v7885, 7
    %v7887 = vsub.s32 %v6753, %v7886
    %v7888 = vrot.slane %v6264, %v7887
    %v7889 = vsel %vm6758, %v7888, %v7884
    %v7890 = vlaneseq
    %v7891 = vshrl.u32 %v7890, 7
    %v7892 = vsub.s32 %v6760, %v7891
    %v7893 = vrot.slane %v6267, %v7892
    %v7894 = vsel %vm6765, %v7893, %v7889
    %v7895 = vlaneseq
    %v7896 = vshrl.u32 %v7895, 7
    %v7897 = vsub.s32 %v6767, %v7896
    %v7898 = vrot.slane %v6270, %v7897
    %v7899 = vsel %vm6772, %v7898, %v7894
    %v7900 = vlaneseq
    %v7901 = vshrl.u32 %v7900, 7
    %v7902 = vsub.s32 %v6774, %v7901
    %v7903 = vrot.slane %v6273, %v7902
    %v7904 = vsel %vm6779, %v7903, %v7899
    %v7905 = vlaneseq
    %v7906 = vshrl.u32 %v7905, 7
    %v7907 = vsub.s32 %v6781, %v7906
    %v7908 = vrot.slane %v6276, %v7907
    %v7909 = vsel %vm6786, %v7908, %v7904
    %v7910 = vlaneseq
    %v7911 = vshrl.u32 %v7910, 7
    %v7912 = vsub.s32 %v6788, %v7911
    %v7913 = vrot.slane %v6279, %v7912
    %v7914 = vsel %vm6793, %v7913, %v7909
    %v7915 = vlaneseq
    %v7916 = vshrl.u32 %v7915, 7
    %v7917 = vsub.s32 %v6795, %v7916
    %v7918 = vrot.slane %v6282, %v7917
    %v7919 = vsel %vm6800, %v7918, %v7914
    %v7920 = vlaneseq
    %v7921 = vshrl.u32 %v7920, 7
    %v7922 = vsub.s32 %v6802, %v7921
    %v7923 = vrot.slane %v6285, %v7922
    %v7924 = vsel %vm6807, %v7923, %v7919
    %v7925 = vlaneseq
    %v7926 = vshrl.u32 %v7925, 7
    %v7927 = vsub.s32 %v6809, %v7926
    %v7928 = vrot.slane %v6288, %v7927
    %v7929 = vsel %vm6814, %v7928, %v7924
    %v7930 = vlaneseq
    %v7931 = vshrl.u32 %v7930, 7
    %v7932 = vsub.s32 %v6816, %v7931
    %v7933 = vrot.slane %v6291, %v7932
    %v7934 = vsel %vm6821, %v7933, %v7929
    %v7935 = vlaneseq
    %v7936 = vshrl.u32 %v7935, 7
    %v7937 = vsub.s32 %v6823, %v7936
    %v7938 = vrot.slane %v6294, %v7937
    %v7939 = vsel %vm6828, %v7938, %v7934
    %v7940 = vlaneseq
    %v7941 = vshrl.u32 %v7940, 7
    %v7942 = vsub.s32 %v6830, %v7941
    %v7943 = vrot.slane %v6297, %v7942
    %v7944 = vsel %vm6835, %v7943, %v7939
    %v7945 = vlaneseq
    %v7946 = vshrl.u32 %v7945, 7
    %v7947 = vsub.s32 %v6837, %v7946
    %v7948 = vrot.slane %v6300, %v7947
    %v7949 = vsel %vm6842, %v7948, %v7944
    %v7950 = vlaneseq
    %v7951 = vshrl.u32 %v7950, 7
    %v7952 = vsub.s32 %v6734, %v7951
    %v7953 = vrot.slane %v6303, %v7952
    %v7954 = vlaneseq
    %v7955 = vshrl.u32 %v7954, 7
    %v7956 = vsub.s32 %v6739, %v7955
    %v7957 = vrot.slane %v6306, %v7956
    %v7958 = vsel %vm6744, %v7957, %v7953
    %v7959 = vlaneseq
    %v7960 = vshrl.u32 %v7959, 7
    %v7961 = vsub.s32 %v6746, %v7960
    %v7962 = vrot.slane %v6309, %v7961
    %v7963 = vsel %vm6751, %v7962, %v7958
    %v7964 = vlaneseq
    %v7965 = vshrl.u32 %v7964, 7
    %v7966 = vsub.s32 %v6753, %v7965
    %v7967 = vrot.slane %v6312, %v7966
    %v7968 = vsel %vm6758, %v7967, %v7963
    %v7969 = vlaneseq
    %v7970 = vshrl.u32 %v7969, 7
    %v7971 = vsub.s32 %v6760, %v7970
    %v7972 = vrot.slane %v6315, %v7971
    %v7973 = vsel %vm6765, %v7972, %v7968
    %v7974 = vlaneseq
    %v7975 = vshrl.u32 %v7974, 7
    %v7976 = vsub.s32 %v6767, %v7975
    %v7977 = vrot.slane %v6318, %v7976
    %v7978 = vsel %vm6772, %v7977, %v7973
    %v7979 = vlaneseq
    %v7980 = vshrl.u32 %v7979, 7
    %v7981 = vsub.s32 %v6774, %v7980
    %v7982 = vrot.slane %v6321, %v7981
    %v7983 = vsel %vm6779, %v7982, %v7978
    %v7984 = vlaneseq
    %v7985 = vshrl.u32 %v7984, 7
    %v7986 = vsub.s32 %v6781, %v7985
    %v7987 = vrot.slane %v6324, %v7986
    %v7988 = vsel %vm6786, %v7987, %v7983
    %v7989 = vlaneseq
    %v7990 = vshrl.u32 %v7989, 7
    %v7991 = vsub.s32 %v6788, %v7990
    %v7992 = vrot.slane %v6327, %v7991
    %v7993 = vsel %vm6793, %v7992, %v7988
    %v7994 = vlaneseq
    %v7995 = vshrl.u32 %v7994, 7
    %v7996 = vsub.s32 %v6795, %v7995
    %v7997 = vrot.slane %v6330, %v7996
    %v7998 = vsel %vm6800, %v7997, %v7993
    %v7999 = vlaneseq
    %v8000 = vshrl.u32 %v7999, 7
    %v8001 = vsub.s32 %v6802, %v8000
    %v8002 = vrot.slane %v6333, %v8001
    %v8003 = vsel %vm6807, %v8002, %v7998
    %v8004 = vlaneseq
    %v8005 = vshrl.u32 %v8004, 7
    %v8006 = vsub.s32 %v6809, %v8005
    %v8007 = vrot.slane %v6336, %v8006
    %v8008 = vsel %vm6814, %v8007, %v8003
    %v8009 = vlaneseq
    %v8010 = vshrl.u32 %v8009, 7
    %v8011 = vsub.s32 %v6816, %v8010
    %v8012 = vrot.slane %v6339, %v8011
    %v8013 = vsel %vm6821, %v8012, %v8008
    %v8014 = vlaneseq
    %v8015 = vshrl.u32 %v8014, 7
    %v8016 = vsub.s32 %v6823, %v8015
    %v8017 = vrot.slane %v6342, %v8016
    %v8018 = vsel %vm6828, %v8017, %v8013
    %v8019 = vlaneseq
    %v8020 = vshrl.u32 %v8019, 7
    %v8021 = vsub.s32 %v6830, %v8020
    %v8022 = vrot.slane %v6345, %v8021
    %v8023 = vsel %vm6835, %v8022, %v8018
    %v8024 = vlaneseq
    %v8025 = vshrl.u32 %v8024, 7
    %v8026 = vsub.s32 %v6837, %v8025
    %v8027 = vrot.slane %v6348, %v8026
    %v8028 = vsel %vm6842, %v8027, %v8023
    %v8029 = vlaneseq
    %v8030 = vshrl.u32 %v8029, 7
    %v8031 = vsub.s32 %v6734, %v8030
    %v8032 = vrot.slane %v6351, %v8031
    %v8033 = vlaneseq
    %v8034 = vshrl.u32 %v8033, 7
    %v8035 = vsub.s32 %v6739, %v8034
    %v8036 = vrot.slane %v6354, %v8035
    %v8037 = vsel %vm6744, %v8036, %v8032
    %v8038 = vlaneseq
    %v8039 = vshrl.u32 %v8038, 7
    %v8040 = vsub.s32 %v6746, %v8039
    %v8041 = vrot.slane %v6357, %v8040
    %v8042 = vsel %vm6751, %v8041, %v8037
    %v8043 = vlaneseq
    %v8044 = vshrl.u32 %v8043, 7
    %v8045 = vsub.s32 %v6753, %v8044
    %v8046 = vrot.slane %v6360, %v8045
    %v8047 = vsel %vm6758, %v8046, %v8042
    %v8048 = vlaneseq
    %v8049 = vshrl.u32 %v8048, 7
    %v8050 = vsub.s32 %v6760, %v8049
    %v8051 = vrot.slane %v6363, %v8050
    %v8052 = vsel %vm6765, %v8051, %v8047
    %v8053 = vlaneseq
    %v8054 = vshrl.u32 %v8053, 7
    %v8055 = vsub.s32 %v6767, %v8054
    %v8056 = vrot.slane %v6366, %v8055
    %v8057 = vsel %vm6772, %v8056, %v8052
    %v8058 = vlaneseq
    %v8059 = vshrl.u32 %v8058, 7
    %v8060 = vsub.s32 %v6774, %v8059
    %v8061 = vrot.slane %v6369, %v8060
    %v8062 = vsel %vm6779, %v8061, %v8057
    %v8063 = vlaneseq
    %v8064 = vshrl.u32 %v8063, 7
    %v8065 = vsub.s32 %v6781, %v8064
    %v8066 = vrot.slane %v6372, %v8065
    %v8067 = vsel %vm6786, %v8066, %v8062
    %v8068 = vlaneseq
    %v8069 = vshrl.u32 %v8068, 7
    %v8070 = vsub.s32 %v6788, %v8069
    %v8071 = vrot.slane %v6375, %v8070
    %v8072 = vsel %vm6793, %v8071, %v8067
    %v8073 = vlaneseq
    %v8074 = vshrl.u32 %v8073, 7
    %v8075 = vsub.s32 %v6795, %v8074
    %v8076 = vrot.slane %v6378, %v8075
    %v8077 = vsel %vm6800, %v8076, %v8072
    %v8078 = vlaneseq
    %v8079 = vshrl.u32 %v8078, 7
    %v8080 = vsub.s32 %v6802, %v8079
    %v8081 = vrot.slane %v6381, %v8080
    %v8082 = vsel %vm6807, %v8081, %v8077
    %v8083 = vlaneseq
    %v8084 = vshrl.u32 %v8083, 7
    %v8085 = vsub.s32 %v6809, %v8084
    %v8086 = vrot.slane %v6384, %v8085
    %v8087 = vsel %vm6814, %v8086, %v8082
    %v8088 = vlaneseq
    %v8089 = vshrl.u32 %v8088, 7
    %v8090 = vsub.s32 %v6816, %v8089
    %v8091 = vrot.slane %v6387, %v8090
    %v8092 = vsel %vm6821, %v8091, %v8087
    %v8093 = vlaneseq
    %v8094 = vshrl.u32 %v8093, 7
    %v8095 = vsub.s32 %v6823, %v8094
    %v8096 = vrot.slane %v6390, %v8095
    %v8097 = vsel %vm6828, %v8096, %v8092
    %v8098 = vlaneseq
    %v8099 = vshrl.u32 %v8098, 7
    %v8100 = vsub.s32 %v6830, %v8099
    %v8101 = vrot.slane %v6393, %v8100
    %v8102 = vsel %vm6835, %v8101, %v8097
    %v8103 = vlaneseq
    %v8104 = vshrl.u32 %v8103, 7
    %v8105 = vsub.s32 %v6837, %v8104
    %v8106 = vrot.slane %v6396, %v8105
    %v8107 = vsel %vm6842, %v8106, %v8102
    %v8108 = vlaneseq
    %v8109 = vshrl.u32 %v8108, 7
    %v8110 = vsub.s32 %v6734, %v8109
    %v8111 = vrot.slane %v6399, %v8110
    %v8112 = vlaneseq
    %v8113 = vshrl.u32 %v8112, 7
    %v8114 = vsub.s32 %v6739, %v8113
    %v8115 = vrot.slane %v6402, %v8114
    %v8116 = vsel %vm6744, %v8115, %v8111
    %v8117 = vlaneseq
    %v8118 = vshrl.u32 %v8117, 7
    %v8119 = vsub.s32 %v6746, %v8118
    %v8120 = vrot.slane %v6405, %v8119
    %v8121 = vsel %vm6751, %v8120, %v8116
    %v8122 = vlaneseq
    %v8123 = vshrl.u32 %v8122, 7
    %v8124 = vsub.s32 %v6753, %v8123
    %v8125 = vrot.slane %v6408, %v8124
    %v8126 = vsel %vm6758, %v8125, %v8121
    %v8127 = vlaneseq
    %v8128 = vshrl.u32 %v8127, 7
    %v8129 = vsub.s32 %v6760, %v8128
    %v8130 = vrot.slane %v6411, %v8129
    %v8131 = vsel %vm6765, %v8130, %v8126
    %v8132 = vlaneseq
    %v8133 = vshrl.u32 %v8132, 7
    %v8134 = vsub.s32 %v6767, %v8133
    %v8135 = vrot.slane %v6414, %v8134
    %v8136 = vsel %vm6772, %v8135, %v8131
    %v8137 = vlaneseq
    %v8138 = vshrl.u32 %v8137, 7
    %v8139 = vsub.s32 %v6774, %v8138
    %v8140 = vrot.slane %v6417, %v8139
    %v8141 = vsel %vm6779, %v8140, %v8136
    %v8142 = vlaneseq
    %v8143 = vshrl.u32 %v8142, 7
    %v8144 = vsub.s32 %v6781, %v8143
    %v8145 = vrot.slane %v6420, %v8144
    %v8146 = vsel %vm6786, %v8145, %v8141
    %v8147 = vlaneseq
    %v8148 = vshrl.u32 %v8147, 7
    %v8149 = vsub.s32 %v6788, %v8148
    %v8150 = vrot.slane %v6423, %v8149
    %v8151 = vsel %vm6793, %v8150, %v8146
    %v8152 = vlaneseq
    %v8153 = vshrl.u32 %v8152, 7
    %v8154 = vsub.s32 %v6795, %v8153
    %v8155 = vrot.slane %v6426, %v8154
    %v8156 = vsel %vm6800, %v8155, %v8151
    %v8157 = vlaneseq
    %v8158 = vshrl.u32 %v8157, 7
    %v8159 = vsub.s32 %v6802, %v8158
    %v8160 = vrot.slane %v6429, %v8159
    %v8161 = vsel %vm6807, %v8160, %v8156
    %v8162 = vlaneseq
    %v8163 = vshrl.u32 %v8162, 7
    %v8164 = vsub.s32 %v6809, %v8163
    %v8165 = vrot.slane %v6432, %v8164
    %v8166 = vsel %vm6814, %v8165, %v8161
    %v8167 = vlaneseq
    %v8168 = vshrl.u32 %v8167, 7
    %v8169 = vsub.s32 %v6816, %v8168
    %v8170 = vrot.slane %v6435, %v8169
    %v8171 = vsel %vm6821, %v8170, %v8166
    %v8172 = vlaneseq
    %v8173 = vshrl.u32 %v8172, 7
    %v8174 = vsub.s32 %v6823, %v8173
    %v8175 = vrot.slane %v6438, %v8174
    %v8176 = vsel %vm6828, %v8175, %v8171
    %v8177 = vlaneseq
    %v8178 = vshrl.u32 %v8177, 7
    %v8179 = vsub.s32 %v6830, %v8178
    %v8180 = vrot.slane %v6441, %v8179
    %v8181 = vsel %vm6835, %v8180, %v8176
    %v8182 = vlaneseq
    %v8183 = vshrl.u32 %v8182, 7
    %v8184 = vsub.s32 %v6837, %v8183
    %v8185 = vrot.slane %v6444, %v8184
    %v8186 = vsel %vm6842, %v8185, %v8181
    %v8187 = vlaneseq
    %v8188 = vshrl.u32 %v8187, 7
    %v8189 = vsub.s32 %v6734, %v8188
    %v8190 = vrot.slane %v6447, %v8189
    %v8191 = vlaneseq
    %v8192 = vshrl.u32 %v8191, 7
    %v8193 = vsub.s32 %v6739, %v8192
    %v8194 = vrot.slane %v6450, %v8193
    %v8195 = vsel %vm6744, %v8194, %v8190
    %v8196 = vlaneseq
    %v8197 = vshrl.u32 %v8196, 7
    %v8198 = vsub.s32 %v6746, %v8197
    %v8199 = vrot.slane %v6453, %v8198
    %v8200 = vsel %vm6751, %v8199, %v8195
    %v8201 = vlaneseq
    %v8202 = vshrl.u32 %v8201, 7
    %v8203 = vsub.s32 %v6753, %v8202
    %v8204 = vrot.slane %v6456, %v8203
    %v8205 = vsel %vm6758, %v8204, %v8200
    %v8206 = vlaneseq
    %v8207 = vshrl.u32 %v8206, 7
    %v8208 = vsub.s32 %v6760, %v8207
    %v8209 = vrot.slane %v6459, %v8208
    %v8210 = vsel %vm6765, %v8209, %v8205
    %v8211 = vlaneseq
    %v8212 = vshrl.u32 %v8211, 7
    %v8213 = vsub.s32 %v6767, %v8212
    %v8214 = vrot.slane %v6462, %v8213
    %v8215 = vsel %vm6772, %v8214, %v8210
    %v8216 = vlaneseq
    %v8217 = vshrl.u32 %v8216, 7
    %v8218 = vsub.s32 %v6774, %v8217
    %v8219 = vrot.slane %v6465, %v8218
    %v8220 = vsel %vm6779, %v8219, %v8215
    %v8221 = vlaneseq
    %v8222 = vshrl.u32 %v8221, 7
    %v8223 = vsub.s32 %v6781, %v8222
    %v8224 = vrot.slane %v6468, %v8223
    %v8225 = vsel %vm6786, %v8224, %v8220
    %v8226 = vlaneseq
    %v8227 = vshrl.u32 %v8226, 7
    %v8228 = vsub.s32 %v6788, %v8227
    %v8229 = vrot.slane %v6471, %v8228
    %v8230 = vsel %vm6793, %v8229, %v8225
    %v8231 = vlaneseq
    %v8232 = vshrl.u32 %v8231, 7
    %v8233 = vsub.s32 %v6795, %v8232
    %v8234 = vrot.slane %v6474, %v8233
    %v8235 = vsel %vm6800, %v8234, %v8230
    %v8236 = vlaneseq
    %v8237 = vshrl.u32 %v8236, 7
    %v8238 = vsub.s32 %v6802, %v8237
    %v8239 = vrot.slane %v6477, %v8238
    %v8240 = vsel %vm6807, %v8239, %v8235
    %v8241 = vlaneseq
    %v8242 = vshrl.u32 %v8241, 7
    %v8243 = vsub.s32 %v6809, %v8242
    %v8244 = vrot.slane %v6480, %v8243
    %v8245 = vsel %vm6814, %v8244, %v8240
    %v8246 = vlaneseq
    %v8247 = vshrl.u32 %v8246, 7
    %v8248 = vsub.s32 %v6816, %v8247
    %v8249 = vrot.slane %v6483, %v8248
    %v8250 = vsel %vm6821, %v8249, %v8245
    %v8251 = vlaneseq
    %v8252 = vshrl.u32 %v8251, 7
    %v8253 = vsub.s32 %v6823, %v8252
    %v8254 = vrot.slane %v6486, %v8253
    %v8255 = vsel %vm6828, %v8254, %v8250
    %v8256 = vlaneseq
    %v8257 = vshrl.u32 %v8256, 7
    %v8258 = vsub.s32 %v6830, %v8257
    %v8259 = vrot.slane %v6489, %v8258
    %v8260 = vsel %vm6835, %v8259, %v8255
    %v8261 = vlaneseq
    %v8262 = vshrl.u32 %v8261, 7
    %v8263 = vsub.s32 %v6837, %v8262
    %v8264 = vrot.slane %v6492, %v8263
    %v8265 = vsel %vm6842, %v8264, %v8260
    %v8266 = vlaneseq
    %v8267 = vshrl.u32 %v8266, 7
    %v8268 = vsub.s32 %v6734, %v8267
    %v8269 = vrot.slane %v6495, %v8268
    %v8270 = vlaneseq
    %v8271 = vshrl.u32 %v8270, 7
    %v8272 = vsub.s32 %v6739, %v8271
    %v8273 = vrot.slane %v6498, %v8272
    %v8274 = vsel %vm6744, %v8273, %v8269
    %v8275 = vlaneseq
    %v8276 = vshrl.u32 %v8275, 7
    %v8277 = vsub.s32 %v6746, %v8276
    %v8278 = vrot.slane %v6501, %v8277
    %v8279 = vsel %vm6751, %v8278, %v8274
    %v8280 = vlaneseq
    %v8281 = vshrl.u32 %v8280, 7
    %v8282 = vsub.s32 %v6753, %v8281
    %v8283 = vrot.slane %v6504, %v8282
    %v8284 = vsel %vm6758, %v8283, %v8279
    %v8285 = vlaneseq
    %v8286 = vshrl.u32 %v8285, 7
    %v8287 = vsub.s32 %v6760, %v8286
    %v8288 = vrot.slane %v6507, %v8287
    %v8289 = vsel %vm6765, %v8288, %v8284
    %v8290 = vlaneseq
    %v8291 = vshrl.u32 %v8290, 7
    %v8292 = vsub.s32 %v6767, %v8291
    %v8293 = vrot.slane %v6510, %v8292
    %v8294 = vsel %vm6772, %v8293, %v8289
    %v8295 = vlaneseq
    %v8296 = vshrl.u32 %v8295, 7
    %v8297 = vsub.s32 %v6774, %v8296
    %v8298 = vrot.slane %v6513, %v8297
    %v8299 = vsel %vm6779, %v8298, %v8294
    %v8300 = vlaneseq
    %v8301 = vshrl.u32 %v8300, 7
    %v8302 = vsub.s32 %v6781, %v8301
    %v8303 = vrot.slane %v6516, %v8302
    %v8304 = vsel %vm6786, %v8303, %v8299
    %v8305 = vlaneseq
    %v8306 = vshrl.u32 %v8305, 7
    %v8307 = vsub.s32 %v6788, %v8306
    %v8308 = vrot.slane %v6519, %v8307
    %v8309 = vsel %vm6793, %v8308, %v8304
    %v8310 = vlaneseq
    %v8311 = vshrl.u32 %v8310, 7
    %v8312 = vsub.s32 %v6795, %v8311
    %v8313 = vrot.slane %v6522, %v8312
    %v8314 = vsel %vm6800, %v8313, %v8309
    %v8315 = vlaneseq
    %v8316 = vshrl.u32 %v8315, 7
    %v8317 = vsub.s32 %v6802, %v8316
    %v8318 = vrot.slane %v6525, %v8317
    %v8319 = vsel %vm6807, %v8318, %v8314
    %v8320 = vlaneseq
    %v8321 = vshrl.u32 %v8320, 7
    %v8322 = vsub.s32 %v6809, %v8321
    %v8323 = vrot.slane %v6528, %v8322
    %v8324 = vsel %vm6814, %v8323, %v8319
    %v8325 = vlaneseq
    %v8326 = vshrl.u32 %v8325, 7
    %v8327 = vsub.s32 %v6816, %v8326
    %v8328 = vrot.slane %v6531, %v8327
    %v8329 = vsel %vm6821, %v8328, %v8324
    %v8330 = vlaneseq
    %v8331 = vshrl.u32 %v8330, 7
    %v8332 = vsub.s32 %v6823, %v8331
    %v8333 = vrot.slane %v6534, %v8332
    %v8334 = vsel %vm6828, %v8333, %v8329
    %v8335 = vlaneseq
    %v8336 = vshrl.u32 %v8335, 7
    %v8337 = vsub.s32 %v6830, %v8336
    %v8338 = vrot.slane %v6537, %v8337
    %v8339 = vsel %vm6835, %v8338, %v8334
    %v8340 = vlaneseq
    %v8341 = vshrl.u32 %v8340, 7
    %v8342 = vsub.s32 %v6837, %v8341
    %v8343 = vrot.slane %v6540, %v8342
    %v8344 = vsel %vm6842, %v8343, %v8339
    %v8345 = vlaneseq
    %v8346 = vshrl.u32 %v8345, 7
    %v8347 = vsub.s32 %v6734, %v8346
    %v8348 = vrot.slane %v6543, %v8347
    %v8349 = vlaneseq
    %v8350 = vshrl.u32 %v8349, 7
    %v8351 = vsub.s32 %v6739, %v8350
    %v8352 = vrot.slane %v6546, %v8351
    %v8353 = vsel %vm6744, %v8352, %v8348
    %v8354 = vlaneseq
    %v8355 = vshrl.u32 %v8354, 7
    %v8356 = vsub.s32 %v6746, %v8355
    %v8357 = vrot.slane %v6549, %v8356
    %v8358 = vsel %vm6751, %v8357, %v8353
    %v8359 = vlaneseq
    %v8360 = vshrl.u32 %v8359, 7
    %v8361 = vsub.s32 %v6753, %v8360
    %v8362 = vrot.slane %v6552, %v8361
    %v8363 = vsel %vm6758, %v8362, %v8358
    %v8364 = vlaneseq
    %v8365 = vshrl.u32 %v8364, 7
    %v8366 = vsub.s32 %v6760, %v8365
    %v8367 = vrot.slane %v6555, %v8366
    %v8368 = vsel %vm6765, %v8367, %v8363
    %v8369 = vlaneseq
    %v8370 = vshrl.u32 %v8369, 7
    %v8371 = vsub.s32 %v6767, %v8370
    %v8372 = vrot.slane %v6558, %v8371
    %v8373 = vsel %vm6772, %v8372, %v8368
    %v8374 = vlaneseq
    %v8375 = vshrl.u32 %v8374, 7
    %v8376 = vsub.s32 %v6774, %v8375
    %v8377 = vrot.slane %v6561, %v8376
    %v8378 = vsel %vm6779, %v8377, %v8373
    %v8379 = vlaneseq
    %v8380 = vshrl.u32 %v8379, 7
    %v8381 = vsub.s32 %v6781, %v8380
    %v8382 = vrot.slane %v6564, %v8381
    %v8383 = vsel %vm6786, %v8382, %v8378
    %v8384 = vlaneseq
    %v8385 = vshrl.u32 %v8384, 7
    %v8386 = vsub.s32 %v6788, %v8385
    %v8387 = vrot.slane %v6567, %v8386
    %v8388 = vsel %vm6793, %v8387, %v8383
    %v8389 = vlaneseq
    %v8390 = vshrl.u32 %v8389, 7
    %v8391 = vsub.s32 %v6795, %v8390
    %v8392 = vrot.slane %v6570, %v8391
    %v8393 = vsel %vm6800, %v8392, %v8388
    %v8394 = vlaneseq
    %v8395 = vshrl.u32 %v8394, 7
    %v8396 = vsub.s32 %v6802, %v8395
    %v8397 = vrot.slane %v6573, %v8396
    %v8398 = vsel %vm6807, %v8397, %v8393
    %v8399 = vlaneseq
    %v8400 = vshrl.u32 %v8399, 7
    %v8401 = vsub.s32 %v6809, %v8400
    %v8402 = vrot.slane %v6576, %v8401
    %v8403 = vsel %vm6814, %v8402, %v8398
    %v8404 = vlaneseq
    %v8405 = vshrl.u32 %v8404, 7
    %v8406 = vsub.s32 %v6816, %v8405
    %v8407 = vrot.slane %v6579, %v8406
    %v8408 = vsel %vm6821, %v8407, %v8403
    %v8409 = vlaneseq
    %v8410 = vshrl.u32 %v8409, 7
    %v8411 = vsub.s32 %v6823, %v8410
    %v8412 = vrot.slane %v6582, %v8411
    %v8413 = vsel %vm6828, %v8412, %v8408
    %v8414 = vlaneseq
    %v8415 = vshrl.u32 %v8414, 7
    %v8416 = vsub.s32 %v6830, %v8415
    %v8417 = vrot.slane %v6585, %v8416
    %v8418 = vsel %vm6835, %v8417, %v8413
    %v8419 = vlaneseq
    %v8420 = vshrl.u32 %v8419, 7
    %v8421 = vsub.s32 %v6837, %v8420
    %v8422 = vrot.slane %v6588, %v8421
    %v8423 = vsel %vm6842, %v8422, %v8418
    %v8424 = vlaneseq
    %v8425 = vshrl.u32 %v8424, 7
    %v8426 = vsub.s32 %v6734, %v8425
    %v8427 = vrot.slane %v6591, %v8426
    %v8428 = vlaneseq
    %v8429 = vshrl.u32 %v8428, 7
    %v8430 = vsub.s32 %v6739, %v8429
    %v8431 = vrot.slane %v6594, %v8430
    %v8432 = vsel %vm6744, %v8431, %v8427
    %v8433 = vlaneseq
    %v8434 = vshrl.u32 %v8433, 7
    %v8435 = vsub.s32 %v6746, %v8434
    %v8436 = vrot.slane %v6597, %v8435
    %v8437 = vsel %vm6751, %v8436, %v8432
    %v8438 = vlaneseq
    %v8439 = vshrl.u32 %v8438, 7
    %v8440 = vsub.s32 %v6753, %v8439
    %v8441 = vrot.slane %v6600, %v8440
    %v8442 = vsel %vm6758, %v8441, %v8437
    %v8443 = vlaneseq
    %v8444 = vshrl.u32 %v8443, 7
    %v8445 = vsub.s32 %v6760, %v8444
    %v8446 = vrot.slane %v6603, %v8445
    %v8447 = vsel %vm6765, %v8446, %v8442
    %v8448 = vlaneseq
    %v8449 = vshrl.u32 %v8448, 7
    %v8450 = vsub.s32 %v6767, %v8449
    %v8451 = vrot.slane %v6606, %v8450
    %v8452 = vsel %vm6772, %v8451, %v8447
    %v8453 = vlaneseq
    %v8454 = vshrl.u32 %v8453, 7
    %v8455 = vsub.s32 %v6774, %v8454
    %v8456 = vrot.slane %v6609, %v8455
    %v8457 = vsel %vm6779, %v8456, %v8452
    %v8458 = vlaneseq
    %v8459 = vshrl.u32 %v8458, 7
    %v8460 = vsub.s32 %v6781, %v8459
    %v8461 = vrot.slane %v6612, %v8460
    %v8462 = vsel %vm6786, %v8461, %v8457
    %v8463 = vlaneseq
    %v8464 = vshrl.u32 %v8463, 7
    %v8465 = vsub.s32 %v6788, %v8464
    %v8466 = vrot.slane %v6615, %v8465
    %v8467 = vsel %vm6793, %v8466, %v8462
    %v8468 = vlaneseq
    %v8469 = vshrl.u32 %v8468, 7
    %v8470 = vsub.s32 %v6795, %v8469
    %v8471 = vrot.slane %v6618, %v8470
    %v8472 = vsel %vm6800, %v8471, %v8467
    %v8473 = vlaneseq
    %v8474 = vshrl.u32 %v8473, 7
    %v8475 = vsub.s32 %v6802, %v8474
    %v8476 = vrot.slane %v6621, %v8475
    %v8477 = vsel %vm6807, %v8476, %v8472
    %v8478 = vlaneseq
    %v8479 = vshrl.u32 %v8478, 7
    %v8480 = vsub.s32 %v6809, %v8479
    %v8481 = vrot.slane %v6624, %v8480
    %v8482 = vsel %vm6814, %v8481, %v8477
    %v8483 = vlaneseq
    %v8484 = vshrl.u32 %v8483, 7
    %v8485 = vsub.s32 %v6816, %v8484
    %v8486 = vrot.slane %v6627, %v8485
    %v8487 = vsel %vm6821, %v8486, %v8482
    %v8488 = vlaneseq
    %v8489 = vshrl.u32 %v8488, 7
    %v8490 = vsub.s32 %v6823, %v8489
    %v8491 = vrot.slane %v6630, %v8490
    %v8492 = vsel %vm6828, %v8491, %v8487
    %v8493 = vlaneseq
    %v8494 = vshrl.u32 %v8493, 7
    %v8495 = vsub.s32 %v6830, %v8494
    %v8496 = vrot.slane %v6633, %v8495
    %v8497 = vsel %vm6835, %v8496, %v8492
    %v8498 = vlaneseq
    %v8499 = vshrl.u32 %v8498, 7
    %v8500 = vsub.s32 %v6837, %v8499
    %v8501 = vrot.slane %v6636, %v8500
    %v8502 = vsel %vm6842, %v8501, %v8497
    %v8503 = vlaneseq
    %v8504 = vshrl.u32 %v8503, 7
    %v8505 = vsub.s32 %v6734, %v8504
    %v8506 = vrot.slane %v6639, %v8505
    %v8507 = vlaneseq
    %v8508 = vshrl.u32 %v8507, 7
    %v8509 = vsub.s32 %v6739, %v8508
    %v8510 = vrot.slane %v6642, %v8509
    %v8511 = vsel %vm6744, %v8510, %v8506
    %v8512 = vlaneseq
    %v8513 = vshrl.u32 %v8512, 7
    %v8514 = vsub.s32 %v6746, %v8513
    %v8515 = vrot.slane %v6645, %v8514
    %v8516 = vsel %vm6751, %v8515, %v8511
    %v8517 = vlaneseq
    %v8518 = vshrl.u32 %v8517, 7
    %v8519 = vsub.s32 %v6753, %v8518
    %v8520 = vrot.slane %v6648, %v8519
    %v8521 = vsel %vm6758, %v8520, %v8516
    %v8522 = vlaneseq
    %v8523 = vshrl.u32 %v8522, 7
    %v8524 = vsub.s32 %v6760, %v8523
    %v8525 = vrot.slane %v6651, %v8524
    %v8526 = vsel %vm6765, %v8525, %v8521
    %v8527 = vlaneseq
    %v8528 = vshrl.u32 %v8527, 7
    %v8529 = vsub.s32 %v6767, %v8528
    %v8530 = vrot.slane %v6654, %v8529
    %v8531 = vsel %vm6772, %v8530, %v8526
    %v8532 = vlaneseq
    %v8533 = vshrl.u32 %v8532, 7
    %v8534 = vsub.s32 %v6774, %v8533
    %v8535 = vrot.slane %v6657, %v8534
    %v8536 = vsel %vm6779, %v8535, %v8531
    %v8537 = vlaneseq
    %v8538 = vshrl.u32 %v8537, 7
    %v8539 = vsub.s32 %v6781, %v8538
    %v8540 = vrot.slane %v6660, %v8539
    %v8541 = vsel %vm6786, %v8540, %v8536
    %v8542 = vlaneseq
    %v8543 = vshrl.u32 %v8542, 7
    %v8544 = vsub.s32 %v6788, %v8543
    %v8545 = vrot.slane %v6663, %v8544
    %v8546 = vsel %vm6793, %v8545, %v8541
    %v8547 = vlaneseq
    %v8548 = vshrl.u32 %v8547, 7
    %v8549 = vsub.s32 %v6795, %v8548
    %v8550 = vrot.slane %v6666, %v8549
    %v8551 = vsel %vm6800, %v8550, %v8546
    %v8552 = vlaneseq
    %v8553 = vshrl.u32 %v8552, 7
    %v8554 = vsub.s32 %v6802, %v8553
    %v8555 = vrot.slane %v6669, %v8554
    %v8556 = vsel %vm6807, %v8555, %v8551
    %v8557 = vlaneseq
    %v8558 = vshrl.u32 %v8557, 7
    %v8559 = vsub.s32 %v6809, %v8558
    %v8560 = vrot.slane %v6672, %v8559
    %v8561 = vsel %vm6814, %v8560, %v8556
    %v8562 = vlaneseq
    %v8563 = vshrl.u32 %v8562, 7
    %v8564 = vsub.s32 %v6816, %v8563
    %v8565 = vrot.slane %v6675, %v8564
    %v8566 = vsel %vm6821, %v8565, %v8561
    %v8567 = vlaneseq
    %v8568 = vshrl.u32 %v8567, 7
    %v8569 = vsub.s32 %v6823, %v8568
    %v8570 = vrot.slane %v6678, %v8569
    %v8571 = vsel %vm6828, %v8570, %v8566
    %v8572 = vlaneseq
    %v8573 = vshrl.u32 %v8572, 7
    %v8574 = vsub.s32 %v6830, %v8573
    %v8575 = vrot.slane %v6681, %v8574
    %v8576 = vsel %vm6835, %v8575, %v8571
    %v8577 = vlaneseq
    %v8578 = vshrl.u32 %v8577, 7
    %v8579 = vsub.s32 %v6837, %v8578
    %v8580 = vrot.slane %v6684, %v8579
    %v8581 = vsel %vm6842, %v8580, %v8576
    %v8582 = vlaneseq
    %v8583 = vshrl.u32 %v8582, 7
    %v8584 = vsub.s32 %v6734, %v8583
    %v8585 = vrot.slane %v6687, %v8584
    %v8586 = vlaneseq
    %v8587 = vshrl.u32 %v8586, 7
    %v8588 = vsub.s32 %v6739, %v8587
    %v8589 = vrot.slane %v6690, %v8588
    %v8590 = vsel %vm6744, %v8589, %v8585
    %v8591 = vlaneseq
    %v8592 = vshrl.u32 %v8591, 7
    %v8593 = vsub.s32 %v6746, %v8592
    %v8594 = vrot.slane %v6693, %v8593
    %v8595 = vsel %vm6751, %v8594, %v8590
    %v8596 = vlaneseq
    %v8597 = vshrl.u32 %v8596, 7
    %v8598 = vsub.s32 %v6753, %v8597
    %v8599 = vrot.slane %v6696, %v8598
    %v8600 = vsel %vm6758, %v8599, %v8595
    %v8601 = vlaneseq
    %v8602 = vshrl.u32 %v8601, 7
    %v8603 = vsub.s32 %v6760, %v8602
    %v8604 = vrot.slane %v6699, %v8603
    %v8605 = vsel %vm6765, %v8604, %v8600
    %v8606 = vlaneseq
    %v8607 = vshrl.u32 %v8606, 7
    %v8608 = vsub.s32 %v6767, %v8607
    %v8609 = vrot.slane %v6702, %v8608
    %v8610 = vsel %vm6772, %v8609, %v8605
    %v8611 = vlaneseq
    %v8612 = vshrl.u32 %v8611, 7
    %v8613 = vsub.s32 %v6774, %v8612
    %v8614 = vrot.slane %v6705, %v8613
    %v8615 = vsel %vm6779, %v8614, %v8610
    %v8616 = vlaneseq
    %v8617 = vshrl.u32 %v8616, 7
    %v8618 = vsub.s32 %v6781, %v8617
    %v8619 = vrot.slane %v6708, %v8618
    %v8620 = vsel %vm6786, %v8619, %v8615
    %v8621 = vlaneseq
    %v8622 = vshrl.u32 %v8621, 7
    %v8623 = vsub.s32 %v6788, %v8622
    %v8624 = vrot.slane %v6711, %v8623
    %v8625 = vsel %vm6793, %v8624, %v8620
    %v8626 = vlaneseq
    %v8627 = vshrl.u32 %v8626, 7
    %v8628 = vsub.s32 %v6795, %v8627
    %v8629 = vrot.slane %v6714, %v8628
    %v8630 = vsel %vm6800, %v8629, %v8625
    %v8631 = vlaneseq
    %v8632 = vshrl.u32 %v8631, 7
    %v8633 = vsub.s32 %v6802, %v8632
    %v8634 = vrot.slane %v6717, %v8633
    %v8635 = vsel %vm6807, %v8634, %v8630
    %v8636 = vlaneseq
    %v8637 = vshrl.u32 %v8636, 7
    %v8638 = vsub.s32 %v6809, %v8637
    %v8639 = vrot.slane %v6720, %v8638
    %v8640 = vsel %vm6814, %v8639, %v8635
    %v8641 = vlaneseq
    %v8642 = vshrl.u32 %v8641, 7
    %v8643 = vsub.s32 %v6816, %v8642
    %v8644 = vrot.slane %v6723, %v8643
    %v8645 = vsel %vm6821, %v8644, %v8640
    %v8646 = vlaneseq
    %v8647 = vshrl.u32 %v8646, 7
    %v8648 = vsub.s32 %v6823, %v8647
    %v8649 = vrot.slane %v6726, %v8648
    %v8650 = vsel %vm6828, %v8649, %v8645
    %v8651 = vlaneseq
    %v8652 = vshrl.u32 %v8651, 7
    %v8653 = vsub.s32 %v6830, %v8652
    %v8654 = vrot.slane %v6729, %v8653
    %v8655 = vsel %vm6835, %v8654, %v8650
    %v8656 = vlaneseq
    %v8657 = vshrl.u32 %v8656, 7
    %v8658 = vsub.s32 %v6837, %v8657
    %v8659 = vrot.slane %v6732, %v8658
    %v8660 = vsel %vm6842, %v8659, %v8655
    %vm8661 = vcmask 1041409
    %v8662 = vsel %vm8661, %v7080, %v6843
    %vm8663 = vcmask 1042434
    %v8664 = vsel %vm8663, %v7317, %v8662
    %vm8665 = vcmask 1043459
    %v8666 = vsel %vm8665, %v7554, %v8664
    %vm8667 = vcmask 1044484
    %v8668 = vsel %vm8667, %v7791, %v8666
    %vm8669 = vcmask 1045509
    %v8670 = vsel %vm8669, %v8028, %v8668
    %vm8671 = vcmask 1046534
    %v8672 = vsel %vm8671, %v8265, %v8670
    %vm8673 = vcmask 1047559
    %v8674 = vsel %vm8673, %v8502, %v8672
    %v8675 = vsel %vm8661, %v7159, %v6922
    %v8676 = vsel %vm8663, %v7396, %v8675
    %v8677 = vsel %vm8665, %v7633, %v8676
    %v8678 = vsel %vm8667, %v7870, %v8677
    %v8679 = vsel %vm8669, %v8107, %v8678
    %v8680 = vsel %vm8671, %v8344, %v8679
    %v8681 = vsel %vm8673, %v8581, %v8680
    %v8682 = vsel %vm8661, %v7238, %v7001
    %v8683 = vsel %vm8663, %v7475, %v8682
    %v8684 = vsel %vm8665, %v7712, %v8683
    %v8685 = vsel %vm8667, %v7949, %v8684
    %v8686 = vsel %vm8669, %v8186, %v8685
    %v8687 = vsel %vm8671, %v8423, %v8686
    %v8688 = vsel %vm8673, %v8660, %v8687
    %v8689 = vpack.c.b16 %v8674, %v8674
    %v8690 = vpack.c.b16 %v8681, %v8681
    %v8691 = vpack.c.b16 %v8688, %v8688
    %v8791 = vunpack.c.l.b16 %v4887
    %v8792 = vunpack.c.h.b16 %v4887
    %v8793 = vunpack.c.l.b16 %v4888
    %v8794 = vunpack.c.h.b16 %v4888
    %v8795 = vunpack.c.l.b16 %v4889
    %v8796 = vunpack.c.h.b16 %v4889
    %v8797 = vunpack.c.l.b16 %v4890
    %v8798 = vunpack.c.h.b16 %v4890
    %v8799 = vunpack.c.l.b16 %v4891
    %v8800 = vunpack.c.h.b16 %v4891
    %v8801 = vunpack.c.l.b16 %v4892
    %v8802 = vunpack.c.h.b16 %v4892
    %v8803 = vunpack.c.l.b16 %v4893
    %v8804 = vunpack.c.h.b16 %v4893
    %v8805 = vunpack.c.l.b16 %v4894
    %v8806 = vunpack.c.h.b16 %v4894
    %v8807 = vunpack.c.l.b16 %v4895
    %v8808 = vunpack.c.h.b16 %v4895
    %v8809 = vunpack.c.l.b16 %v4896
    %v8810 = vunpack.c.h.b16 %v4896
    %v8811 = vunpack.c.l.b16 %v4897
    %v8812 = vunpack.c.h.b16 %v4897
    %v8813 = vunpack.c.l.b16 %v4898
    %v8814 = vunpack.c.h.b16 %v4898
    %v8815 = vunpack.c.l.b16 %v4899
    %v8816 = vunpack.c.h.b16 %v4899
    %v8817 = vunpack.c.l.b16 %v4900
    %v8818 = vunpack.c.h.b16 %v4900
    %v8819 = vunpack.c.l.b16 %v4901
    %v8820 = vunpack.c.h.b16 %v4901
    %v8821 = vunpack.c.l.b16 %v4902
    %v8822 = vunpack.c.h.b16 %v4902
    %v8823 = vunpack.c.l.b16 %v4903
    %v8824 = vunpack.c.h.b16 %v4903
    %v8825 = vunpack.c.l.b16 %v4904
    %v8826 = vunpack.c.h.b16 %v4904
    %v8827 = vunpack.c.l.b16 %v4905
    %v8828 = vunpack.c.h.b16 %v4905
    %v8829 = vunpack.c.l.b16 %v4906
    %v8830 = vunpack.c.h.b16 %v4906
    %v8831 = vunpack.c.l.b16 %v4907
    %v8832 = vunpack.c.h.b16 %v4907
    %v8833 = vunpack.c.l.b16 %v4908
    %v8834 = vunpack.c.h.b16 %v4908
    %v8835 = vunpack.c.l.b16 %v4909
    %v8836 = vunpack.c.h.b16 %v4909
    %v8837 = vunpack.c.l.b16 %v4910
    %v8838 = vunpack.c.h.b16 %v4910
    %v8839 = vunpack.c.l.b16 %v4911
    %v8840 = vunpack.c.h.b16 %v4911
    %v8841 = vunpack.c.l.b16 %v4912
    %v8842 = vunpack.c.h.b16 %v4912
    %v8843 = vunpack.c.l.b16 %v4913
    %v8844 = vunpack.c.h.b16 %v4913
    %v8845 = vunpack.c.l.b16 %v4914
    %v8846 = vunpack.c.h.b16 %v4914
    %v8847 = vunpack.c.l.b16 %v4915
    %v8848 = vunpack.c.h.b16 %v4915
    %v8849 = vunpack.c.l.b16 %v4916
    %v8850 = vunpack.c.h.b16 %v4916
    %v8851 = vunpack.c.l.b16 %v4917
    %v8852 = vunpack.c.h.b16 %v4917
    %v8853 = vunpack.c.l.b16 %v4918
    %v8854 = vunpack.c.h.b16 %v4918
    %v8855 = vunpack.c.l.b16 %v4919
    %v8856 = vunpack.c.h.b16 %v4919
    %v8857 = vunpack.c.l.b16 %v4920
    %v8858 = vunpack.c.h.b16 %v4920
    %v8859 = vunpack.c.l.b16 %v4921
    %v8860 = vunpack.c.h.b16 %v4921
    %v8861 = vunpack.c.l.b16 %v4922
    %v8862 = vunpack.c.h.b16 %v4922
    %v8863 = vunpack.c.l.b16 %v4923
    %v8864 = vunpack.c.h.b16 %v4923
    %v8865 = vunpack.c.l.b16 %v4924
    %v8866 = vunpack.c.h.b16 %v4924
    %v8867 = vunpack.c.l.b16 %v4925
    %v8868 = vunpack.c.h.b16 %v4925
    %v8869 = vunpack.c.l.b16 %v4926
    %v8870 = vunpack.c.h.b16 %v4926
    %v8871 = vunpack.c.l.b16 %v4927
    %v8872 = vunpack.c.h.b16 %v4927
    %v8873 = vunpack.c.l.b16 %v4928
    %v8874 = vunpack.c.h.b16 %v4928
    %v8875 = vunpack.c.l.b16 %v4929
    %v8876 = vunpack.c.h.b16 %v4929
    %v8877 = vunpack.c.l.b16 %v4930
    %v8878 = vunpack.c.h.b16 %v4930
    %v8879 = vunpack.c.l.b16 %v4931
    %v8880 = vunpack.c.h.b16 %v4931
    %v8881 = vunpack.c.l.b16 %v4932
    %v8882 = vunpack.c.h.b16 %v4932
    %v8883 = vunpack.c.l.b16 %v4933
    %v8884 = vunpack.c.h.b16 %v4933
    %v8885 = vunpack.c.l.b16 %v4934
    %v8886 = vunpack.c.h.b16 %v4934
    %v8887 = vunpack.c.l.b16 %v4935
    %v8888 = vunpack.c.h.b16 %v4935
    %v8889 = vunpack.c.l.b16 %v4936
    %v8890 = vunpack.c.h.b16 %v4936
    %v8891 = vunpack.c.l.b16 %v4937
    %v8892 = vunpack.c.h.b16 %v4937
    %v8893 = vunpack.c.l.b16 %v4938
    %v8894 = vunpack.c.h.b16 %v4938
    %v8895 = vunpack.c.l.b16 %v4939
    %v8896 = vunpack.c.h.b16 %v4939
    %v8897 = vunpack.c.l.b16 %v4940
    %v8898 = vunpack.c.h.b16 %v4940
    %v8899 = vunpack.c.l.b16 %v4941
    %v8900 = vunpack.c.h.b16 %v4941
    %v8901 = vunpack.c.l.b16 %v4942
    %v8902 = vunpack.c.h.b16 %v4942
    %v8903 = vunpack.c.l.b16 %v4943
    %v8904 = vunpack.c.h.b16 %v4943
    %v8905 = vunpack.c.l.b16 %v4944
    %v8906 = vunpack.c.h.b16 %v4944
    %v8907 = vunpack.c.l.b16 %v4945
    %v8908 = vunpack.c.h.b16 %v4945
    %v8909 = vunpack.c.l.b16 %v4946
    %v8910 = vunpack.c.h.b16 %v4946
    %v8911 = vunpack.c.l.b16 %v4947
    %v8912 = vunpack.c.h.b16 %v4947
    %v8913 = vunpack.c.l.b16 %v4948
    %v8914 = vunpack.c.h.b16 %v4948
    %v8915 = vunpack.c.l.b16 %v4949
    %v8916 = vunpack.c.h.b16 %v4949
    %v8917 = vunpack.c.l.b16 %v4950
    %v8918 = vunpack.c.h.b16 %v4950
    %v8919 = vunpack.c.l.b16 %v4951
    %v8920 = vunpack.c.h.b16 %v4951
    %v8921 = vunpack.c.l.b16 %v4952
    %v8922 = vunpack.c.h.b16 %v4952
    %v8923 = vunpack.c.l.b16 %v4953
    %v8924 = vunpack.c.h.b16 %v4953
    %v8925 = vunpack.c.l.b16 %v4954
    %v8926 = vunpack.c.h.b16 %v4954
    %v8927 = vunpack.c.l.b16 %v4955
    %v8928 = vunpack.c.h.b16 %v4955
    %v8929 = vunpack.c.l.b16 %v4956
    %v8930 = vunpack.c.h.b16 %v4956
    %v8931 = vunpack.c.l.b16 %v4957
    %v8932 = vunpack.c.h.b16 %v4957
    %v8933 = vunpack.c.l.b16 %v4958
    %v8934 = vunpack.c.h.b16 %v4958
    %v8935 = vunpack.c.l.b16 %v4959
    %v8936 = vunpack.c.h.b16 %v4959
    %v8937 = vunpack.c.l.b16 %v4960
    %v8938 = vunpack.c.h.b16 %v4960
    %v8939 = vunpack.c.l.b16 %v4961
    %v8940 = vunpack.c.h.b16 %v4961
    %v8941 = vunpack.c.l.b16 %v4962
    %v8942 = vunpack.c.h.b16 %v4962
    %v8943 = vunpack.c.l.b16 %v4963
    %v8944 = vunpack.c.h.b16 %v4963
    %v8945 = vunpack.c.l.b16 %v4964
    %v8946 = vunpack.c.h.b16 %v4964
    %v8947 = vunpack.c.l.b16 %v4965
    %v8948 = vunpack.c.h.b16 %v4965
    %v8949 = vunpack.c.l.b16 %v4966
    %v8950 = vunpack.c.h.b16 %v4966
    %v8951 = vunpack.c.l.b16 %v4967
    %v8952 = vunpack.c.h.b16 %v4967
    %v8953 = vunpack.c.l.b16 %v4968
    %v8954 = vunpack.c.h.b16 %v4968
    %v8955 = vunpack.c.l.b16 %v4969
    %v8956 = vunpack.c.h.b16 %v4969
    %v8957 = vunpack.c.l.b16 %v4970
    %v8958 = vunpack.c.h.b16 %v4970
    %v8959 = vunpack.c.l.b16 %v4971
    %v8960 = vunpack.c.h.b16 %v4971
    %v8961 = vunpack.c.l.b16 %v4972
    %v8962 = vunpack.c.h.b16 %v4972
    %v8963 = vunpack.c.l.b16 %v4973
    %v8964 = vunpack.c.h.b16 %v4973
    %v8965 = vunpack.c.l.b16 %v4974
    %v8966 = vunpack.c.h.b16 %v4974
    %v8967 = vunpack.c.l.b16 %v4975
    %v8968 = vunpack.c.h.b16 %v4975
    %v8969 = vunpack.c.l.b16 %v4976
    %v8970 = vunpack.c.h.b16 %v4976
    %v8971 = vunpack.c.l.b16 %v4977
    %v8972 = vunpack.c.h.b16 %v4977
    %v8973 = vunpack.c.l.b16 %v4978
    %v8974 = vunpack.c.h.b16 %v4978
    %v8975 = vunpack.c.l.b16 %v4979
    %v8976 = vunpack.c.h.b16 %v4979
    %v8977 = vunpack.c.l.b16 %v4980
    %v8978 = vunpack.c.h.b16 %v4980
    %v8979 = vunpack.c.l.b16 %v4981
    %v8980 = vunpack.c.h.b16 %v4981
    %v8981 = vunpack.c.l.b16 %v4982
    %v8982 = vunpack.c.h.b16 %v4982
    %v8983 = vpack.c.b16 %v8795, %v8791
    %v8984 = vpack.c.b16 %v8796, %v8792
    %v8985 = vpack.c.b16 %v8797, %v8793
    %v8986 = vpack.c.b16 %v8798, %v8794
    %v8987 = vpack.c.b16 %v8803, %v8799
    %v8988 = vpack.c.b16 %v8804, %v8800
    %v8989 = vpack.c.b16 %v8805, %v8801
    %v8990 = vpack.c.b16 %v8806, %v8802
    %v8991 = vpack.c.b16 %v8811, %v8807
    %v8992 = vpack.c.b16 %v8812, %v8808
    %v8993 = vpack.c.b16 %v8813, %v8809
    %v8994 = vpack.c.b16 %v8814, %v8810
    %v8995 = vpack.c.b16 %v8819, %v8815
    %v8996 = vpack.c.b16 %v8820, %v8816
    %v8997 = vpack.c.b16 %v8821, %v8817
    %v8998 = vpack.c.b16 %v8822, %v8818
    %v8999 = vpack.c.b16 %v8827, %v8823
    %v9000 = vpack.c.b16 %v8828, %v8824
    %v9001 = vpack.c.b16 %v8829, %v8825
    %v9002 = vpack.c.b16 %v8830, %v8826
    %v9003 = vpack.c.b16 %v8835, %v8831
    %v9004 = vpack.c.b16 %v8836, %v8832
    %v9005 = vpack.c.b16 %v8837, %v8833
    %v9006 = vpack.c.b16 %v8838, %v8834
    %v9007 = vpack.c.b16 %v8843, %v8839
    %v9008 = vpack.c.b16 %v8844, %v8840
    %v9009 = vpack.c.b16 %v8845, %v8841
    %v9010 = vpack.c.b16 %v8846, %v8842
    %v9011 = vpack.c.b16 %v8851, %v8847
    %v9012 = vpack.c.b16 %v8852, %v8848
    %v9013 = vpack.c.b16 %v8853, %v8849
    %v9014 = vpack.c.b16 %v8854, %v8850
    %v9015 = vpack.c.b16 %v8859, %v8855
    %v9016 = vpack.c.b16 %v8860, %v8856
    %v9017 = vpack.c.b16 %v8861, %v8857
    %v9018 = vpack.c.b16 %v8862, %v8858
    %v9019 = vpack.c.b16 %v8867, %v8863
    %v9020 = vpack.c.b16 %v8868, %v8864
    %v9021 = vpack.c.b16 %v8869, %v8865
    %v9022 = vpack.c.b16 %v8870, %v8866
    %v9023 = vpack.c.b16 %v8875, %v8871
    %v9024 = vpack.c.b16 %v8876, %v8872
    %v9025 = vpack.c.b16 %v8877, %v8873
    %v9026 = vpack.c.b16 %v8878, %v8874
    %v9027 = vpack.c.b16 %v8883, %v8879
    %v9028 = vpack.c.b16 %v8884, %v8880
    %v9029 = vpack.c.b16 %v8885, %v8881
    %v9030 = vpack.c.b16 %v8886, %v8882
    %v9031 = vpack.c.b16 %v8891, %v8887
    %v9032 = vpack.c.b16 %v8892, %v8888
    %v9033 = vpack.c.b16 %v8893, %v8889
    %v9034 = vpack.c.b16 %v8894, %v8890
    %v9035 = vpack.c.b16 %v8899, %v8895
    %v9036 = vpack.c.b16 %v8900, %v8896
    %v9037 = vpack.c.b16 %v8901, %v8897
    %v9038 = vpack.c.b16 %v8902, %v8898
    %v9039 = vpack.c.b16 %v8907, %v8903
    %v9040 = vpack.c.b16 %v8908, %v8904
    %v9041 = vpack.c.b16 %v8909, %v8905
    %v9042 = vpack.c.b16 %v8910, %v8906
    %v9043 = vpack.c.b16 %v8915, %v8911
    %v9044 = vpack.c.b16 %v8916, %v8912
    %v9045 = vpack.c.b16 %v8917, %v8913
    %v9046 = vpack.c.b16 %v8918, %v8914
    %v9047 = vpack.c.b16 %v8923, %v8919
    %v9048 = vpack.c.b16 %v8924, %v8920
    %v9049 = vpack.c.b16 %v8925, %v8921
    %v9050 = vpack.c.b16 %v8926, %v8922
    %v9051 = vpack.c.b16 %v8931, %v8927
    %v9052 = vpack.c.b16 %v8932, %v8928
    %v9053 = vpack.c.b16 %v8933, %v8929
    %v9054 = vpack.c.b16 %v8934, %v8930
    %v9055 = vpack.c.b16 %v8939, %v8935
    %v9056 = vpack.c.b16 %v8940, %v8936
    %v9057 = vpack.c.b16 %v8941, %v8937
    %v9058 = vpack.c.b16 %v8942, %v8938
    %v9059 = vpack.c.b16 %v8947, %v8943
    %v9060 = vpack.c.b16 %v8948, %v8944
    %v9061 = vpack.c.b16 %v8949, %v8945
    %v9062 = vpack.c.b16 %v8950, %v8946
    %v9063 = vpack.c.b16 %v8955, %v8951
    %v9064 = vpack.c.b16 %v8956, %v8952
    %v9065 = vpack.c.b16 %v8957, %v8953
    %v9066 = vpack.c.b16 %v8958, %v8954
    %v9067 = vpack.c.b16 %v8963, %v8959
    %v9068 = vpack.c.b16 %v8964, %v8960
    %v9069 = vpack.c.b16 %v8965, %v8961
    %v9070 = vpack.c.b16 %v8966, %v8962
    %v9071 = vpack.c.b16 %v8971, %v8967
    %v9072 = vpack.c.b16 %v8972, %v8968
    %v9073 = vpack.c.b16 %v8973, %v8969
    %v9074 = vpack.c.b16 %v8974, %v8970
    %v9075 = vpack.c.b16 %v8979, %v8975
    %v9076 = vpack.c.b16 %v8980, %v8976
    %v9077 = vpack.c.b16 %v8981, %v8977
    %v9078 = vpack.c.b16 %v8982, %v8978
    %9175 = vmatprep.subr.bf16.mxu0 %v8984
    %9176 = vmatpush1.bf16.msra.mxu0 %v8983
    %9177 = vmatprep.subr.bf16.mxu0 %v8988
    %9178 = vmatpush1.bf16.msra.mxu0 %v8987
    %9179 = vmatprep.subr.bf16.mxu0 %v8992
    %9180 = vmatpush1.bf16.msra.mxu0 %v8991
    %9181 = vmatprep.subr.bf16.mxu0 %v8996
    %9182 = vmatpush1.bf16.msra.mxu0 %v8995
    %9183 = vmatprep.subr.bf16.mxu0 %v9000
    %9184 = vmatpush1.bf16.msra.mxu0 %v8999
    %9185 = vmatprep.subr.bf16.mxu0 %v9004
    %9186 = vmatpush1.bf16.msra.mxu0 %v9003
    %9187 = vmatprep.subr.bf16.mxu0 %v9008
    %9188 = vmatpush1.bf16.msra.mxu0 %v9007
    %9189 = vmatprep.subr.bf16.mxu0 %v9012
    %9190 = vmatpush1.bf16.msra.mxu0 %v9011
    %9191 = vmatprep.subr.bf16.mxu0 %v9016
    %9192 = vmatpush1.bf16.msra.mxu0 %v9015
    %9193 = vmatprep.subr.bf16.mxu0 %v9020
    %9194 = vmatpush1.bf16.msra.mxu0 %v9019
    %9195 = vmatprep.subr.bf16.mxu0 %v9024
    %9196 = vmatpush1.bf16.msra.mxu0 %v9023
    %9197 = vmatprep.subr.bf16.mxu0 %v9028
    %9198 = vmatpush1.bf16.msra.mxu0 %v9027
    %9199 = vmatprep.subr.bf16.mxu0 %v9032
    %9200 = vmatpush1.bf16.msra.mxu0 %v9031
    %9201 = vmatprep.subr.bf16.mxu0 %v9036
    %9202 = vmatpush1.bf16.msra.mxu0 %v9035
    %9203 = vmatprep.subr.bf16.mxu0 %v9040
    %9204 = vmatpush1.bf16.msra.mxu0 %v9039
    %9205 = vmatprep.subr.bf16.mxu0 %v9044
    %9206 = vmatpush1.bf16.msra.mxu0 %v9043
    %9207 = vmatprep.mubr.bf16.mxu0 %v8690
    %9208 = vmatmul.mubr.bf16.gmra.mrb[0].mxu0 %v8689
    %v9209 = vpop.f32.mrb[0].mxu0
    %v9210 = vadd.f32 %v4988, %v9209
    %v9211 = vpop.f32.mrb[0].mxu0
    %v9212 = vadd.f32 %v4992, %v9211
    %v9213 = vpop.f32.mrb[0].mxu0
    %v9214 = vpop.f32.mrb[0].mxu0
    %9215 = vdwg.mxu0
    %9216 = vmatprep.subr.bf16.mxu0 %v9048
    %9217 = vmatpush1.bf16.msra.mxu0 %v9047
    %9218 = vmatprep.subr.bf16.mxu0 %v9052
    %9219 = vmatpush1.bf16.msra.mxu0 %v9051
    %9220 = vmatprep.subr.bf16.mxu0 %v9056
    %9221 = vmatpush1.bf16.msra.mxu0 %v9055
    %9222 = vmatprep.subr.bf16.mxu0 %v9060
    %9223 = vmatpush1.bf16.msra.mxu0 %v9059
    %9224 = vmatprep.subr.bf16.mxu0 %v9064
    %9225 = vmatpush1.bf16.msra.mxu0 %v9063
    %9226 = vmatprep.subr.bf16.mxu0 %v9068
    %9227 = vmatpush1.bf16.msra.mxu0 %v9067
    %9228 = vmatprep.subr.bf16.mxu0 %v9072
    %9229 = vmatpush1.bf16.msra.mxu0 %v9071
    %9230 = vmatprep.subr.bf16.mxu0 %v9076
    %9231 = vmatpush1.bf16.msra.mxu0 %v9075
    %9232 = vmatprep.subr.bf16.mxu0 0
    %9233 = vmatpush1.bf16.msra.mxu0 0
    %9234 = vmatprep.subr.bf16.mxu0 0
    %9235 = vmatpush1.bf16.msra.mxu0 0
    %9236 = vmatprep.subr.bf16.mxu0 0
    %9237 = vmatpush1.bf16.msra.mxu0 0
    %9238 = vmatprep.subr.bf16.mxu0 0
    %9239 = vmatpush1.bf16.msra.mxu0 0
    %9240 = vmatprep.subr.bf16.mxu0 0
    %9241 = vmatpush1.bf16.msra.mxu0 0
    %9242 = vmatprep.subr.bf16.mxu0 0
    %9243 = vmatpush1.bf16.msra.mxu0 0
    %9244 = vmatprep.subr.bf16.mxu0 0
    %9245 = vmatpush1.bf16.msra.mxu0 0
    %9246 = vmatprep.subr.bf16.mxu0 0
    %9247 = vmatpush1.bf16.msra.mxu0 0
    %9248 = vmatprep.mubr.bf16.mxu0 0
    %9249 = vmatmul.mubr.bf16.gmra.mrb[0].mxu0 %v8691
    %v9250 = vpop.f32.mrb[0].mxu0
    %v9251 = vadd.f32 %v9210, %v9250
    %v9252 = vpop.f32.mrb[0].mxu0
    %v9253 = vadd.f32 %v9212, %v9252
    %v9254 = vpop.f32.mrb[0].mxu0
    %v9255 = vpop.f32.mrb[0].mxu0
    %9256 = vdwg.mxu0
    %9257 = vmatprep.subr.bf16.mxu0 %v8986
    %9258 = vmatpush1.bf16.msra.mxu0 %v8985
    %9259 = vmatprep.subr.bf16.mxu0 %v8990
    %9260 = vmatpush1.bf16.msra.mxu0 %v8989
    %9261 = vmatprep.subr.bf16.mxu0 %v8994
    %9262 = vmatpush1.bf16.msra.mxu0 %v8993
    %9263 = vmatprep.subr.bf16.mxu0 %v8998
    %9264 = vmatpush1.bf16.msra.mxu0 %v8997
    %9265 = vmatprep.subr.bf16.mxu0 %v9002
    %9266 = vmatpush1.bf16.msra.mxu0 %v9001
    %9267 = vmatprep.subr.bf16.mxu0 %v9006
    %9268 = vmatpush1.bf16.msra.mxu0 %v9005
    %9269 = vmatprep.subr.bf16.mxu0 %v9010
    %9270 = vmatpush1.bf16.msra.mxu0 %v9009
    %9271 = vmatprep.subr.bf16.mxu0 %v9014
    %9272 = vmatpush1.bf16.msra.mxu0 %v9013
    %9273 = vmatprep.subr.bf16.mxu0 %v9018
    %9274 = vmatpush1.bf16.msra.mxu0 %v9017
    %9275 = vmatprep.subr.bf16.mxu0 %v9022
    %9276 = vmatpush1.bf16.msra.mxu0 %v9021
    %9277 = vmatprep.subr.bf16.mxu0 %v9026
    %9278 = vmatpush1.bf16.msra.mxu0 %v9025
    %9279 = vmatprep.subr.bf16.mxu0 %v9030
    %9280 = vmatpush1.bf16.msra.mxu0 %v9029
    %9281 = vmatprep.subr.bf16.mxu0 %v9034
    %9282 = vmatpush1.bf16.msra.mxu0 %v9033
    %9283 = vmatprep.subr.bf16.mxu0 %v9038
    %9284 = vmatpush1.bf16.msra.mxu0 %v9037
    %9285 = vmatprep.subr.bf16.mxu0 %v9042
    %9286 = vmatpush1.bf16.msra.mxu0 %v9041
    %9287 = vmatprep.subr.bf16.mxu0 %v9046
    %9288 = vmatpush1.bf16.msra.mxu0 %v9045
    %9289 = vmatprep.mubr.bf16.mxu0 %v8690
    %9290 = vmatmul.mubr.bf16.gmra.mrb[0].mxu0 %v8689
    %v9291 = vpop.f32.mrb[0].mxu0
    %v9292 = vadd.f32 %v4996, %v9291
    %v9293 = vpop.f32.mrb[0].mxu0
    %v9294 = vadd.f32 %v5000, %v9293
    %v9295 = vpop.f32.mrb[0].mxu0
    %v9296 = vpop.f32.mrb[0].mxu0
    %9297 = vdwg.mxu0
    %9298 = vmatprep.subr.bf16.mxu0 %v9050
    %9299 = vmatpush1.bf16.msra.mxu0 %v9049
    %9300 = vmatprep.subr.bf16.mxu0 %v9054
    %9301 = vmatpush1.bf16.msra.mxu0 %v9053
    %9302 = vmatprep.subr.bf16.mxu0 %v9058
    %9303 = vmatpush1.bf16.msra.mxu0 %v9057
    %9304 = vmatprep.subr.bf16.mxu0 %v9062
    %9305 = vmatpush1.bf16.msra.mxu0 %v9061
    %9306 = vmatprep.subr.bf16.mxu0 %v9066
    %9307 = vmatpush1.bf16.msra.mxu0 %v9065
    %9308 = vmatprep.subr.bf16.mxu0 %v9070
    %9309 = vmatpush1.bf16.msra.mxu0 %v9069
    %9310 = vmatprep.subr.bf16.mxu0 %v9074
    %9311 = vmatpush1.bf16.msra.mxu0 %v9073
    %9312 = vmatprep.subr.bf16.mxu0 %v9078
    %9313 = vmatpush1.bf16.msra.mxu0 %v9077
    %9314 = vmatprep.subr.bf16.mxu0 0
    %9315 = vmatpush1.bf16.msra.mxu0 0
    %9316 = vmatprep.subr.bf16.mxu0 0
    %9317 = vmatpush1.bf16.msra.mxu0 0
    %9318 = vmatprep.subr.bf16.mxu0 0
    %9319 = vmatpush1.bf16.msra.mxu0 0
    %9320 = vmatprep.subr.bf16.mxu0 0
    %9321 = vmatpush1.bf16.msra.mxu0 0
    %9322 = vmatprep.subr.bf16.mxu0 0
    %9323 = vmatpush1.bf16.msra.mxu0 0
    %9324 = vmatprep.subr.bf16.mxu0 0
    %9325 = vmatpush1.bf16.msra.mxu0 0
    %9326 = vmatprep.subr.bf16.mxu0 0
    %9327 = vmatpush1.bf16.msra.mxu0 0
    %9328 = vmatprep.subr.bf16.mxu0 0
    %9329 = vmatpush1.bf16.msra.mxu0 0
    %9330 = vmatprep.mubr.bf16.mxu0 0
    %9331 = vmatmul.mubr.bf16.gmra.mrb[0].mxu0 %v8691
    %v9332 = vpop.f32.mrb[0].mxu0
    %v9333 = vadd.f32 %v9292, %v9332
    %v9334 = vpop.f32.mrb[0].mxu0
    %v9335 = vadd.f32 %v9294, %v9334
    %v9336 = vpop.f32.mrb[0].mxu0
    %v9337 = vpop.f32.mrb[0].mxu0
    %9338 = vdwg.mxu0
    %v9339 = vmax.f32 %v9251, 0.0
    %v9340 = vmax.f32 %v9253, 0.0
    %v9341 = vmax.f32 %v9333, 0.0
    %v9342 = vmax.f32 %v9335, 0.0
    %v9343 = vpack.c.bf16 %v9339, %v9339
    %v9344 = vpack.c.bf16 %v9340, %v9340
    %v9345 = vpack.c.bf16 %v9341, %v9341
    %v9346 = vpack.c.bf16 %v9342, %v9342
    %v9347 = vld [vmem:[#allocation8] sm:$0xf]
    %v9348 = vld [vmem:[#allocation8 + $0x4] sm:$0xf]
    %v9349 = vld [vmem:[#allocation8 + $0x8] sm:$0xf]
    %v9350 = vld [vmem:[#allocation8 + $0xc] sm:$0xf]
    %v9351 = vld [vmem:[#allocation8 + $0x10] sm:$0xf]
    %v9352 = vld [vmem:[#allocation8 + $0x14] sm:$0xf]
    %v9353 = vld [vmem:[#allocation8 + $0x18] sm:$0xf]
    %v9354 = vld [vmem:[#allocation8 + $0x1c] sm:$0xf]
    %v9355 = vld [vmem:[#allocation8 + $0x20] sm:$0xf]
    %v9356 = vld [vmem:[#allocation8 + $0x24] sm:$0xf]
    %v9357 = vld [vmem:[#allocation8 + $0x28] sm:$0xf]
    %v9358 = vld [vmem:[#allocation8 + $0x2c] sm:$0xf]
    %v9359 = vld [vmem:[#allocation8 + $0x30] sm:$0xf]
    %v9360 = vld [vmem:[#allocation8 + $0x34] sm:$0xf]
    %v9361 = vld [vmem:[#allocation8 + $0x38] sm:$0xf]
    %v9362 = vld [vmem:[#allocation8 + $0x3c] sm:$0xf]
    %v9363 = vld [vmem:[#allocation8 + $0x40] sm:$0xf]
    %v9364 = vld [vmem:[#allocation8 + $0x44] sm:$0xf]
    %v9365 = vld [vmem:[#allocation8 + $0x48] sm:$0xf]
    %v9366 = vld [vmem:[#allocation8 + $0x4c] sm:$0xf]
    %v9367 = vld [vmem:[#allocation8 + $0x50] sm:$0xf]
    %v9368 = vld [vmem:[#allocation8 + $0x54] sm:$0xf]
    %v9369 = vld [vmem:[#allocation8 + $0x58] sm:$0xf]
    %v9370 = vld [vmem:[#allocation8 + $0x5c] sm:$0xf]
    %v9371 = vld [vmem:[#allocation8 + $0x60] sm:$0xf]
    %v9372 = vld [vmem:[#allocation8 + $0x64] sm:$0xf]
    %v9373 = vld [vmem:[#allocation8 + $0x68] sm:$0xf]
    %v9374 = vld [vmem:[#allocation8 + $0x6c] sm:$0xf]
    %v9375 = vld [vmem:[#allocation8 + $0x70] sm:$0xf]
    %v9376 = vld [vmem:[#allocation8 + $0x74] sm:$0xf]
    %v9377 = vld [vmem:[#allocation8 + $0x78] sm:$0xf]
    %v9378 = vld [vmem:[#allocation8 + $0x7c] sm:$0xf]
    %v9379 = vld [vmem:[#allocation8 + $0x80] sm:$0xf]
    %v9380 = vld [vmem:[#allocation8 + $0x84] sm:$0xf]
    %v9381 = vld [vmem:[#allocation8 + $0x88] sm:$0xf]
    %v9382 = vld [vmem:[#allocation8 + $0x8c] sm:$0xf]
    %v9383 = vld [vmem:[#allocation8 + $0x90] sm:$0xf]
    %v9384 = vld [vmem:[#allocation8 + $0x94] sm:$0xf]
    %v9385 = vld [vmem:[#allocation8 + $0x98] sm:$0xf]
    %v9386 = vld [vmem:[#allocation8 + $0x9c] sm:$0xf]
    %v9387 = vld [vmem:[#allocation8 + $0xa0] sm:$0xf]
    %v9388 = vld [vmem:[#allocation8 + $0xa4] sm:$0xf]
    %v9389 = vld [vmem:[#allocation8 + $0xa8] sm:$0xf]
    %v9390 = vld [vmem:[#allocation8 + $0xac] sm:$0xf]
    %v9391 = vld [vmem:[#allocation8 + $0xb0] sm:$0xf]
    %v9392 = vld [vmem:[#allocation8 + $0xb4] sm:$0xf]
    %v9393 = vld [vmem:[#allocation8 + $0xb8] sm:$0xf]
    %v9394 = vld [vmem:[#allocation8 + $0xbc] sm:$0xf]
    %v9395 = vld [vmem:[#allocation8 + $0xc0] sm:$0xf]
    %v9396 = vld [vmem:[#allocation8 + $0xc4] sm:$0xf]
    %v9397 = vld [vmem:[#allocation8 + $0xc8] sm:$0xf]
    %v9398 = vld [vmem:[#allocation8 + $0xcc] sm:$0xf]
    %v9399 = vld [vmem:[#allocation8 + $0xd0] sm:$0xf]
    %v9400 = vld [vmem:[#allocation8 + $0xd4] sm:$0xf]
    %v9401 = vld [vmem:[#allocation8 + $0xd8] sm:$0xf]
    %v9402 = vld [vmem:[#allocation8 + $0xdc] sm:$0xf]
    %v9403 = vld [vmem:[#allocation8 + $0xe0] sm:$0xf]
    %v9404 = vld [vmem:[#allocation8 + $0xe4] sm:$0xf]
    %v9405 = vld [vmem:[#allocation8 + $0xe8] sm:$0xf]
    %v9406 = vld [vmem:[#allocation8 + $0xec] sm:$0xf]
    %v9407 = vld [vmem:[#allocation8 + $0xf0] sm:$0xf]
    %v9408 = vld [vmem:[#allocation8 + $0xf4] sm:$0xf]
    %v9409 = vld [vmem:[#allocation8 + $0xf8] sm:$0xf]
    %v9410 = vld [vmem:[#allocation8 + $0xfc] sm:$0xf]
    %v9411 = vld [vmem:[%s6] sm:$0x1]
    %v9413 = vlaneseq
    %v9414 = vshrl.u32 %v9413, 7
    %v9415 = vsub.s32 0, %v9414
    %v9416 = vrot.slane %v9411, %v9415
    %v9482 = vunpack.c.l.b16 %v9347
    %v9483 = vunpack.c.l.b16 %v9348
    %v9484 = vunpack.c.l.b16 %v9349
    %v9485 = vunpack.c.l.b16 %v9350
    %v9486 = vunpack.c.l.b16 %v9351
    %v9487 = vunpack.c.l.b16 %v9352
    %v9488 = vunpack.c.l.b16 %v9353
    %v9489 = vunpack.c.l.b16 %v9354
    %v9490 = vunpack.c.l.b16 %v9355
    %v9491 = vunpack.c.l.b16 %v9356
    %v9492 = vunpack.c.l.b16 %v9357
    %v9493 = vunpack.c.l.b16 %v9358
    %v9494 = vunpack.c.l.b16 %v9359
    %v9495 = vunpack.c.l.b16 %v9360
    %v9496 = vunpack.c.l.b16 %v9361
    %v9497 = vunpack.c.l.b16 %v9362
    %v9498 = vunpack.c.l.b16 %v9363
    %v9499 = vunpack.c.l.b16 %v9364
    %v9500 = vunpack.c.l.b16 %v9365
    %v9501 = vunpack.c.l.b16 %v9366
    %v9502 = vunpack.c.l.b16 %v9367
    %v9503 = vunpack.c.l.b16 %v9368
    %v9504 = vunpack.c.l.b16 %v9369
    %v9505 = vunpack.c.l.b16 %v9370
    %v9506 = vunpack.c.l.b16 %v9371
    %v9507 = vunpack.c.l.b16 %v9372
    %v9508 = vunpack.c.l.b16 %v9373
    %v9509 = vunpack.c.l.b16 %v9374
    %v9510 = vunpack.c.l.b16 %v9375
    %v9511 = vunpack.c.l.b16 %v9376
    %v9512 = vunpack.c.l.b16 %v9377
    %v9513 = vunpack.c.l.b16 %v9378
    %v9514 = vunpack.c.l.b16 %v9379
    %v9515 = vunpack.c.l.b16 %v9380
    %v9516 = vunpack.c.l.b16 %v9381
    %v9517 = vunpack.c.l.b16 %v9382
    %v9518 = vunpack.c.l.b16 %v9383
    %v9519 = vunpack.c.l.b16 %v9384
    %v9520 = vunpack.c.l.b16 %v9385
    %v9521 = vunpack.c.l.b16 %v9386
    %v9522 = vunpack.c.l.b16 %v9387
    %v9523 = vunpack.c.l.b16 %v9388
    %v9524 = vunpack.c.l.b16 %v9389
    %v9525 = vunpack.c.l.b16 %v9390
    %v9526 = vunpack.c.l.b16 %v9391
    %v9527 = vunpack.c.l.b16 %v9392
    %v9528 = vunpack.c.l.b16 %v9393
    %v9529 = vunpack.c.l.b16 %v9394
    %v9530 = vunpack.c.l.b16 %v9395
    %v9531 = vunpack.c.l.b16 %v9396
    %v9532 = vunpack.c.l.b16 %v9397
    %v9533 = vunpack.c.l.b16 %v9398
    %v9534 = vunpack.c.l.b16 %v9399
    %v9535 = vunpack.c.l.b16 %v9400
    %v9536 = vunpack.c.l.b16 %v9401
    %v9537 = vunpack.c.l.b16 %v9402
    %v9538 = vunpack.c.l.b16 %v9403
    %v9539 = vunpack.c.l.b16 %v9404
    %v9540 = vunpack.c.l.b16 %v9405
    %v9541 = vunpack.c.l.b16 %v9406
    %v9542 = vunpack.c.l.b16 %v9407
    %v9543 = vunpack.c.l.b16 %v9408
    %v9544 = vunpack.c.l.b16 %v9409
    %v9545 = vunpack.c.l.b16 %v9410
    %v9546 = vpack.c.b16 %v9483, %v9482
    %v9547 = vpack.c.b16 %v9485, %v9484
    %v9548 = vpack.c.b16 %v9487, %v9486
    %v9549 = vpack.c.b16 %v9489, %v9488
    %v9550 = vpack.c.b16 %v9491, %v9490
    %v9551 = vpack.c.b16 %v9493, %v9492
    %v9552 = vpack.c.b16 %v9495, %v9494
    %v9553 = vpack.c.b16 %v9497, %v9496
    %v9554 = vpack.c.b16 %v9499, %v9498
    %v9555 = vpack.c.b16 %v9501, %v9500
    %v9556 = vpack.c.b16 %v9503, %v9502
    %v9557 = vpack.c.b16 %v9505, %v9504
    %v9558 = vpack.c.b16 %v9507, %v9506
    %v9559 = vpack.c.b16 %v9509, %v9508
    %v9560 = vpack.c.b16 %v9511, %v9510
    %v9561 = vpack.c.b16 %v9513, %v9512
    %v9562 = vpack.c.b16 %v9515, %v9514
    %v9563 = vpack.c.b16 %v9517, %v9516
    %v9564 = vpack.c.b16 %v9519, %v9518
    %v9565 = vpack.c.b16 %v9521, %v9520
    %v9566 = vpack.c.b16 %v9523, %v9522
    %v9567 = vpack.c.b16 %v9525, %v9524
    %v9568 = vpack.c.b16 %v9527, %v9526
    %v9569 = vpack.c.b16 %v9529, %v9528
    %v9570 = vpack.c.b16 %v9531, %v9530
    %v9571 = vpack.c.b16 %v9533, %v9532
    %v9572 = vpack.c.b16 %v9535, %v9534
    %v9573 = vpack.c.b16 %v9537, %v9536
    %v9574 = vpack.c.b16 %v9539, %v9538
    %v9575 = vpack.c.b16 %v9541, %v9540
    %v9576 = vpack.c.b16 %v9543, %v9542
    %v9577 = vpack.c.b16 %v9545, %v9544
    %9610 = vmatprep.subr.bf16.mxu0 0
    %9611 = vmatpush1.bf16.msra.mxu0 %v9546
    %9612 = vmatprep.subr.bf16.mxu0 0
    %9613 = vmatpush1.bf16.msra.mxu0 %v9547
    %9614 = vmatprep.subr.bf16.mxu0 0
    %9615 = vmatpush1.bf16.msra.mxu0 %v9548
    %9616 = vmatprep.subr.bf16.mxu0 0
    %9617 = vmatpush1.bf16.msra.mxu0 %v9549
    %9618 = vmatprep.subr.bf16.mxu0 0
    %9619 = vmatpush1.bf16.msra.mxu0 %v9550
    %9620 = vmatprep.subr.bf16.mxu0 0
    %9621 = vmatpush1.bf16.msra.mxu0 %v9551
    %9622 = vmatprep.subr.bf16.mxu0 0
    %9623 = vmatpush1.bf16.msra.mxu0 %v9552
    %9624 = vmatprep.subr.bf16.mxu0 0
    %9625 = vmatpush1.bf16.msra.mxu0 %v9553
    %9626 = vmatprep.subr.bf16.mxu0 0
    %9627 = vmatpush1.bf16.msra.mxu0 %v9554
    %9628 = vmatprep.subr.bf16.mxu0 0
    %9629 = vmatpush1.bf16.msra.mxu0 %v9555
    %9630 = vmatprep.subr.bf16.mxu0 0
    %9631 = vmatpush1.bf16.msra.mxu0 %v9556
    %9632 = vmatprep.subr.bf16.mxu0 0
    %9633 = vmatpush1.bf16.msra.mxu0 %v9557
    %9634 = vmatprep.subr.bf16.mxu0 0
    %9635 = vmatpush1.bf16.msra.mxu0 %v9558
    %9636 = vmatprep.subr.bf16.mxu0 0
    %9637 = vmatpush1.bf16.msra.mxu0 %v9559
    %9638 = vmatprep.subr.bf16.mxu0 0
    %9639 = vmatpush1.bf16.msra.mxu0 %v9560
    %9640 = vmatprep.subr.bf16.mxu0 0
    %9641 = vmatpush1.bf16.msra.mxu0 %v9561
    %9642 = vmatprep.mubr.bf16.mxu0 %v9344
    %9643 = vmatmul.mubr.bf16.gmra.mrb[0].mxu0 %v9343
    %v9644 = vpop.f32.mrb[0].mxu0
    %v9645 = vadd.f32 %v9416, %v9644
    %v9646 = vpop.f32.mrb[0].mxu0
    %v9647 = vpop.f32.mrb[0].mxu0
    %v9648 = vpop.f32.mrb[0].mxu0
    %9649 = vdwg.mxu0
    %9650 = vmatprep.subr.bf16.mxu0 0
    %9651 = vmatpush1.bf16.msra.mxu0 %v9562
    %9652 = vmatprep.subr.bf16.mxu0 0
    %9653 = vmatpush1.bf16.msra.mxu0 %v9563
    %9654 = vmatprep.subr.bf16.mxu0 0
    %9655 = vmatpush1.bf16.msra.mxu0 %v9564
    %9656 = vmatprep.subr.bf16.mxu0 0
    %9657 = vmatpush1.bf16.msra.mxu0 %v9565
    %9658 = vmatprep.subr.bf16.mxu0 0
    %9659 = vmatpush1.bf16.msra.mxu0 %v9566
    %9660 = vmatprep.subr.bf16.mxu0 0
    %9661 = vmatpush1.bf16.msra.mxu0 %v9567
    %9662 = vmatprep.subr.bf16.mxu0 0
    %9663 = vmatpush1.bf16.msra.mxu0 %v9568
    %9664 = vmatprep.subr.bf16.mxu0 0
    %9665 = vmatpush1.bf16.msra.mxu0 %v9569
    %9666 = vmatprep.subr.bf16.mxu0 0
    %9667 = vmatpush1.bf16.msra.mxu0 %v9570
    %9668 = vmatprep.subr.bf16.mxu0 0
    %9669 = vmatpush1.bf16.msra.mxu0 %v9571
    %9670 = vmatprep.subr.bf16.mxu0 0
    %9671 = vmatpush1.bf16.msra.mxu0 %v9572
    %9672 = vmatprep.subr.bf16.mxu0 0
    %9673 = vmatpush1.bf16.msra.mxu0 %v9573
    %9674 = vmatprep.subr.bf16.mxu0 0
    %9675 = vmatpush1.bf16.msra.mxu0 %v9574
    %9676 = vmatprep.subr.bf16.mxu0 0
    %9677 = vmatpush1.bf16.msra.mxu0 %v9575
    %9678 = vmatprep.subr.bf16.mxu0 0
    %9679 = vmatpush1.bf16.msra.mxu0 %v9576
    %9680 = vmatprep.subr.bf16.mxu0 0
    %9681 = vmatpush1.bf16.msra.mxu0 %v9577
    %9682 = vmatprep.mubr.bf16.mxu0 %v9346
    %9683 = vmatmul.mubr.bf16.gmra.mrb[0].mxu0 %v9345
    %v9684 = vpop.f32.mrb[0].mxu0
    %v9685 = vadd.f32 %v9645, %v9684
    %v9686 = vpop.f32.mrb[0].mxu0
    %v9687 = vpop.f32.mrb[0].mxu0
    %v9688 = vpop.f32.mrb[0].mxu0
    %9689 = vdwg.mxu0
    %9690 = vst [vmem:[#allocation10] sm:$0xff] %v9685
    // Predicated region
    $region46: #{tpu_custom_call.1} parent=1 // pred_check
      _
    $region47: #{tpu_custom_call.1} parent=1 // pred_check_branch
      %9692 = sbr.rel (0) target = $region49
    $region48: #{tpu_custom_call.1} parent=1 // pred_region
      %s9694 = ssub.s32 128, 128
      %9695 = vsyncadd [#allocation4], %s9694
      %s9697 = sshll.u32 [#allocation10], 4
      %s9698 = int_to_ptr.vmem [resolvable:$true] %s9697
      %9700 = dma.vmem_to_hbm [thread:$0]  %s9698, 128, %s7, [#allocation4]
    $region49: #{tpu_custom_call.1} parent=1 // pred_fallthru
      _
    // Predicated region
    $region50: #{tpu_custom_call.1} parent=1 // pred_check
      _
    $region51: #{tpu_custom_call.1} parent=1 // pred_check_branch
      %9702 = sbr.rel (0) target = $region53
    $region52: #{tpu_custom_call.1} parent=1 // pred_region
      %9703 = dma.done [#allocation4], 128
    $region53: #{tpu_custom_call.1} parent=1 // pred_fallthru
      _
    %9704 = vsyncpa [#allocation3], 1
    %9705 = vsyncpa [#allocation6], 1
    %9706 = vsyncpa [#allocation9], 1
    %9707 = vsyncpa [#allocation4], 1

</llo_original>
